<compile_context>
chip_gen: v7x
topology: tpu7x:2x2x1
jax: 0.10.0
libtpu: 0.0.40
codegen_flags: <defaults>
</compile_context>

<pallas_src>
import functools
import math

import jax
import jax.numpy as jnp
import numpy as np
from jax.experimental import pallas as pl
from jax.experimental.pallas import tpu as pltpu

VMEM_LIMIT = 32 * 1024 * 1024


# ------------------------------ in-kernel helpers ------------------------------ #

def _ln(x, g, b, eps=1e-5):
    mu = jnp.mean(x, axis=-1, keepdims=True)
    var = jnp.mean((x - mu) ** 2, axis=-1, keepdims=True)
    return (x - mu) * jax.lax.rsqrt(var + eps) * g + b


def _rdot(x, wt):
    """x @ wt.T for wt stored in PyTorch Linear layout (out_features, in_features)."""
    return jax.lax.dot_general(x, wt, (((1,), (1,)), ((), ())),
                               preferred_element_type=jnp.float32)


def _mha(q, k, v, wo, *, n_heads, channels):
    """Per-series multi-head attention over patch-major rows (row = patch*channels + c).

    A query attends only to keys of its own (batch, channel) series, i.e. rows with the
    same index modulo `channels`.  The output projection (wo in math (in, out) layout) is
    folded into the head loop; the 1/sqrt(d_head) scale is folded into Wq at pack time.
    """
    nq, d = q.shape
    nk = k.shape[0]
    dh = d // n_heads
    qc = jax.lax.broadcasted_iota(jnp.int32, (nq, nk), 0) % channels
    kc = jax.lax.broadcasted_iota(jnp.int32, (nq, nk), 1) % channels
    same = qc == kc
    out = jnp.zeros((nq, d), jnp.float32)
    for h in range(n_heads):
        sl = slice(h * dh, (h + 1) * dh)
        s = jax.lax.dot_general(q[:, sl], k[:, sl], (((1,), (1,)), ((), ())),
                                preferred_element_type=jnp.float32)
        s = jnp.where(same, s, -1e30)
        s = s - jnp.max(s, axis=-1, keepdims=True)
        p = jnp.exp(s)
        p = p * pl.reciprocal(jnp.sum(p, axis=-1, keepdims=True), approx=True)
        o_h = jnp.dot(p, v[:, sl], preferred_element_type=jnp.float32)
        out = out + jnp.dot(o_h, wo[sl, :], preferred_element_type=jnp.float32)
    return out


# --------------------------------- fused kernel --------------------------------- #

def _crossformer_kernel(x_ref, m_ref, v_ref, o_ref, tok_ref, *,
                        m_index, v_index, channels, d_model, n_heads,
                        patch_len, stride, patch_num, patch_num_out,
                        e_layers, d_layers):
    C, d = channels, d_model

    def M(name):                                  # weight matrices (trailing dim = d)
        off, r, _ = m_index[name]
        return m_ref[off:off + r, :]

    def V(name):                                  # one lane-padded row per vector
        off, _, c = v_index[name]
        return v_ref[off:off + 1, :c]

    # ------- RevIN normalisation: per-channel stats over the time axis -------
    x = x_ref[0].astype(jnp.float32)                              # (C, L)
    mu = jnp.mean(x, axis=-1, keepdims=True)                      # (C, 1)
    var = jnp.mean((x - mu) ** 2, axis=-1, keepdims=True)
    sd = jnp.sqrt(var + 1e-5)
    xn = (x - mu) / sd

    # ------- patching + value embedding + positional embedding + pre-norm LN -------
    wp = M("w_patch")                                             # (patch_len, d)
    b_patch = V("b_patch")
    pos = M("pos")                                                # (patch_num, d)
    g_pre, b_pre = V("pre_g"), V("pre_b")
    for p in range(patch_num):                                    # static, tiny
        seg = xn[:, p * stride: p * stride + patch_len]           # (C, patch_len)
        tok = jnp.dot(seg, wp, preferred_element_type=jnp.float32) + b_patch
        tok = tok + pos[p:p + 1, :]
        tok = _ln(tok, g_pre, b_pre)
        tok_ref[p * C:(p + 1) * C, :] = tok                       # patch-major rows
    enc = tok_ref[...]                                            # (C*patch_num, d)

    # ------- encoder / decoder blocks (standard post-norm transformer layers) -------
    def encoder_block(xv, pfx):
        qkv = _rdot(xv, M(pfx + "wqkv")) + V(pfx + "bqkv")
        a = _mha(qkv[:, :d], qkv[:, d:2 * d], qkv[:, 2 * d:], M(pfx + "wo"),
                 n_heads=n_heads, channels=C) + V(pfx + "bo")
        xv = _ln(xv + a, V(pfx + "ln1g"), V(pfx + "ln1b"))
        h = jax.nn.gelu(_rdot(xv, M(pfx + "w1")) + V(pfx + "b1"))
        f = jnp.dot(h, M(pfx + "w2"), preferred_element_type=jnp.float32) + V(pfx + "b2")
        return _ln(xv + f, V(pfx + "ln2g"), V(pfx + "ln2b"))

    def decoder_block(xv, cross, pfx):
        qkv = _rdot(xv, M(pfx + "s_wqkv")) + V(pfx + "s_bqkv")
        a = _mha(qkv[:, :d], qkv[:, d:2 * d], qkv[:, 2 * d:], M(pfx + "s_wo"),
                 n_heads=n_heads, channels=C) + V(pfx + "s_bo")
        xv = _ln(xv + a, V(pfx + "ln1g"), V(pfx + "ln1b"))
        q_c = _rdot(xv, M(pfx + "c_wq")) + V(pfx + "c_bq")
        kv = _rdot(cross, M(pfx + "c_wkv")) + V(pfx + "c_bkv")
        ca = _mha(q_c, kv[:, :d], kv[:, d:], M(pfx + "c_wo"),
                  n_heads=n_heads, channels=C) + V(pfx + "c_bo")
        xv = _ln(xv + ca, V(pfx + "ln2g"), V(pfx + "ln2b"))
        h = jax.nn.gelu(_rdot(xv, M(pfx + "w1")) + V(pfx + "b1"))
        f = jnp.dot(h, M(pfx + "w2"), preferred_element_type=jnp.float32) + V(pfx + "b2")
        xv = _ln(xv + f, V(pfx + "ln3g"), V(pfx + "ln3b"))
        pred = _rdot(xv, M(pfx + "wpred")) + V(pfx + "bpred")     # (rows, patch_len)
        return xv, pred

    enc_states = [enc]
    for li in range(e_layers):
        enc = encoder_block(enc, "enc%d." % li)
        enc_states.append(enc)

    dec = M("d_p")                                                # (patch_num_out*C, d)
    pred_sum = jnp.zeros((patch_num_out * C, patch_len), jnp.float32)
    for li in range(d_layers):
        dec, pred = decoder_block(dec, enc_states[li], "dec%d." % li)
        pred_sum = pred_sum + pred                                # in-kernel accumulation

    # ------- overlap-add (stride == patch_len), count division, RevIN denorm -------
    cnt = V("count")                                              # (1, pred_len)
    for p in range(patch_num_out):
        blk = pred_sum[p * C:(p + 1) * C, :]                      # (C, patch_len)
        blk = blk / cnt[:, p * patch_len:(p + 1) * patch_len]
        blk = blk * sd + mu
        o_ref[0, :, p * patch_len:(p + 1) * patch_len] = blk.astype(o_ref.dtype)


# ------------------------------- pallas_call wrapper ------------------------------ #

def crossformer_forward(x_enc, m_slab, v_slab, *, m_index, v_index, cfg,
                        patch_num, patch_num_out):
    B, L, C = x_enc.shape
    # (B, L, C) -> (B, C, L): one tiny XLA transpose of the raw input; everything else
    # (RevIN, embedding, encoder, decoder, heads, denorm) runs in a single fused kernel.
    x_cl = jnp.transpose(x_enc, (0, 2, 1))
    kernel = functools.partial(
        _crossformer_kernel, m_index=m_index, v_index=v_index,
        channels=C, d_model=cfg.d_model, n_heads=cfg.n_heads,
        patch_len=cfg.patch_len, stride=cfg.stride,
        patch_num=patch_num, patch_num_out=patch_num_out,
        e_layers=cfg.e_layers, d_layers=cfg.d_layers)
    out_cl = pl.pallas_call(
        kernel,
        out_shape=jax.ShapeDtypeStruct((B, C, cfg.pred_len), x_enc.dtype),
        grid=(B,),
        in_specs=[pl.BlockSpec((1, C, L), lambda b: (b, 0, 0)),
                  pl.BlockSpec(m_slab.shape, lambda b: (0, 0)),
                  pl.BlockSpec(v_slab.shape, lambda b: (0, 0))],
        out_specs=pl.BlockSpec((1, C, cfg.pred_len), lambda b: (b, 0, 0)),
        scratch_shapes=[pltpu.VMEM((C * patch_num, cfg.d_model), jnp.float32)],
        compiler_params=pltpu.CompilerParams(
            dimension_semantics=("parallel",), vmem_limit_bytes=VMEM_LIMIT),
    )(x_cl, m_slab, v_slab)
    # (B, C, pred_len) -> (B, pred_len, C)
    return jnp.transpose(out_cl, (0, 2, 1)), None


# --------------------------------- configuration -------------------------------- #

class Cfg:
    batch_size = 2
    enc_in = 4
    dec_in = 4
    seq_len = 16
    pred_len = 8
    patch_len = 4
    stride = 4
    d_model = 32
    n_heads = 2
    d_ff = 64
    e_layers = 1
    d_layers = 2          # = e_layers + 1 (required by Crossformer)
    revin = True
    affine = False
    dropout = 0.0         # eval mode
    padding_patch = "end"
    distil = False


def build_count_list(cfg):
    count_list = np.ones(cfg.pred_len, dtype=np.float32)
    max_count = cfg.patch_len // cfg.stride
    i = 0
    while i < max_count and i * cfg.stride <= cfg.pred_len // 2:
        count_list[i * cfg.stride:(i + 1) * cfg.stride] += i
        if i == 0:
            count_list[-(i + 1) * cfg.stride:] += i
        else:
            count_list[-(i + 1) * cfg.stride:-i * cfg.stride] += i
        i += 1
    if i < max_count:
        max_count = i
    count_list[i:-i if i > 0 else 0] = max_count
    return count_list


# ------------------------------- parameter packing ------------------------------- #

class _Packer:
    """Packs 2-D f32 params into one (R, width) slab; every entry starts on an 8-row
    (sublane) boundary so static in-kernel row slices are aligned."""

    def __init__(self, width):
        self.width = width
        self._blocks = []
        self.index = {}          # name -> (row_offset, rows, cols)
        self._row = 0

    def add(self, name, arr):
        a = np.asarray(arr, np.float32)
        if a.ndim == 1:
            a = a[None, :]
        r, c = a.shape
        assert c <= self.width, (name, a.shape, self.width)
        rp = ((r + 7) // 8) * 8
        blk = np.zeros((rp, self.width), np.float32)
        blk[:r, :c] = a
        self.index[name] = (self._row, r, c)
        self._blocks.append(blk)
        self._row += rp

    def finalize(self):
        return jnp.asarray(np.concatenate(self._blocks, axis=0))


def build_params(key, cfg, patch_num, patch_num_out, count_np):
    d, dff, H, plen = cfg.d_model, cfg.d_ff, cfg.n_heads, cfg.patch_len
    scale = 1.0 / math.sqrt(d // H)

    kit = iter(jax.random.split(key, 128))

    def rnd(shape, s=0.02):
        return np.asarray(jax.random.normal(next(kit), shape, jnp.float32)) * s

    mp = _Packer(d)        # weight matrices, trailing dim = d_model
    vp = _Packer(128)      # biases / LayerNorm params / misc vectors, one per row

    # --- patch embedding + positional embedding + pre-norm ---
    mp.add("w_patch", rnd((plen, d)))             # math layout: seg @ W
    vp.add("b_patch", rnd((d,)))
    mp.add("pos", rnd((patch_num, d)))            # TODO(synk): pos_embed_type unknown; learned table.
    vp.add("pre_g", np.ones(d)); vp.add("pre_b", np.zeros(d))

    # --- encoder layers ---
    for li in range(cfg.e_layers):
        p = "enc%d." % li
        wqkv = rnd((d, 3 * d)); bqkv = rnd((3 * d,))
        wqkv[:, :d] *= scale; bqkv[:d] *= scale   # fold 1/sqrt(d_head) into Wq, bq
        mp.add(p + "wqkv", wqkv.T); vp.add(p + "bqkv", bqkv)
        mp.add(p + "wo", rnd((d, d))); vp.add(p + "bo", rnd((d,)))
        vp.add(p + "ln1g", np.ones(d)); vp.add(p + "ln1b", np.zeros(d))
        mp.add(p + "w1", rnd((d, dff)).T); vp.add(p + "b1", rnd((dff,)))
        mp.add(p + "w2", rnd((dff, d))); vp.add(p + "b2", rnd((d,)))
        vp.add(p + "ln2g", np.ones(d)); vp.add(p + "ln2b", np.zeros(d))

    # --- decoder layers ---
    for li in range(cfg.d_layers):
        p = "dec%d." % li
        wqkv = rnd((d, 3 * d)); bqkv = rnd((3 * d,))
        wqkv[:, :d] *= scale; bqkv[:d] *= scale
        mp.add(p + "s_wqkv", wqkv.T); vp.add(p + "s_bqkv", bqkv)
        mp.add(p + "s_wo", rnd((d, d))); vp.add(p + "s_bo", rnd((d,)))
        vp.add(p + "ln1g", np.ones(d)); vp.add(p + "ln1b", np.zeros(d))
        mp.add(p + "c_wq", rnd((d, d)).T * scale); vp.add(p + "c_bq", rnd((d,)) * scale)
        mp.add(p + "c_wkv", rnd((d, 2 * d)).T); vp.add(p + "c_bkv", rnd((2 * d,)))
        mp.add(p + "c_wo", rnd((d, d))); vp.add(p + "c_bo", rnd((d,)))
        vp.add(p + "ln2g", np.ones(d)); vp.add(p + "ln2b", np.zeros(d))
        mp.add(p + "w1", rnd((d, dff)).T); vp.add(p + "b1", rnd((dff,)))
        mp.add(p + "w2", rnd((dff, d))); vp.add(p + "b2", rnd((d,)))
        vp.add(p + "ln3g", np.ones(d)); vp.add(p + "ln3b", np.zeros(d))
        mp.add(p + "wpred", rnd((d, plen)).T); vp.add(p + "bpred", rnd((plen,)))

    # --- learned decoder initial state D_P (reordered to patch-major rows) + count ---
    dp = np.asarray(jax.random.normal(next(kit), (1, cfg.dec_in, patch_num_out, d),
                                      jnp.float32))
    dp = np.transpose(dp[0], (1, 0, 2)).reshape(patch_num_out * cfg.dec_in, d)
    mp.add("d_p", dp)
    vp.add("count", count_np)

    return mp.finalize(), vp.finalize(), mp.index, vp.index


# --------------------------------------- main ------------------------------------ #

if __name__ == "__main__":
    cfg = Cfg()
    assert cfg.seq_len % cfg.stride == 0          # Identity process-layer path
    # TODO(synk): overlap-add for overlapping patches (stride < patch_len) not implemented.
    assert cfg.stride == cfg.patch_len
    assert cfg.e_layers == cfg.d_layers - 1
    patch_num = (cfg.seq_len - cfg.patch_len) // cfg.stride + 1
    patch_num_out = (cfg.pred_len - cfg.patch_len) // cfg.stride + 1

    count_np = build_count_list(cfg)

    key = jax.random.PRNGKey(0)
    k_x, k_p = jax.random.split(key)
    x_enc = jax.random.normal(k_x, (cfg.batch_size, cfg.seq_len, cfg.enc_in), jnp.float32)
    # x_mark_enc / x_dec / x_mark_dec are unused by the Crossformer forward pass.

    m_slab, v_slab, m_index, v_index = build_params(k_p, cfg, patch_num, patch_num_out,
                                                    count_np)

    fwd = jax.jit(functools.partial(
        crossformer_forward, m_index=m_index, v_index=v_index, cfg=cfg,
        patch_num=patch_num, patch_num_out=patch_num_out))
    out, _ = fwd(x_enc, m_slab, v_slab)
    out = jax.block_until_ready(out)
    assert out.shape == (cfg.batch_size, cfg.pred_len, cfg.enc_in)
    assert bool(jnp.all(jnp.isfinite(out)))
    print("KERNEL_OK")
</pallas_src>

<mosaic_0001>
module attributes {stable_mosaic.version = 11 : i64} {
  func.func @_crossformer_kernel(%arg0: i32, %arg1: memref<1x4x16xf32, #tpu.memory_space<vmem>>, %arg2: memref<1064x32xf32, #tpu.memory_space<vmem>>, %arg3: memref<320x128xf32, #tpu.memory_space<vmem>>, %arg4: memref<1x4x8xf32, #tpu.memory_space<vmem>>, %arg5: memref<16x32xf32, #tpu.memory_space<vmem>>) attributes {dimension_semantics = [#tpu.dimension_semantics<parallel>], iteration_bounds = array<i64: 2>, scalar_prefetch = 0 : i64, scratch_operands = 1 : i64, tpu.core_type = #tpu.core_type<tc>, window_params = [{transform_indices = @transform_0, window_bounds = array<i64: 1, 4, 16>}, {pipeline_mode = #tpu.pipeline_mode<synchronous>, transform_indices = @transform_1, window_bounds = array<i64: 1064, 32>}, {pipeline_mode = #tpu.pipeline_mode<synchronous>, transform_indices = @transform_2, window_bounds = array<i64: 320, 128>}, {transform_indices = @transform_3, window_bounds = array<i64: 1, 4, 8>}]} {
    %c0 = arith.constant 0 : index
    %c0_0 = arith.constant 0 : index
    %c0_1 = arith.constant 0 : index
    %0 = vector.load %arg1[%c0, %c0_0, %c0_1] : memref<1x4x16xf32, #tpu.memory_space<vmem>>, vector<1x4x16xf32>
    %1 = vector.shape_cast %0 : vector<1x4x16xf32> to vector<4x16xf32>
    %cst = arith.constant dense<0.000000e+00> : vector<4xf32>
    %2 = vector.multi_reduction <add>, %1, %cst [1] : vector<4x16xf32> to vector<4xf32>
    %3 = vector.shape_cast %2 : vector<4xf32> to vector<4x1xf32>
    %cst_2 = arith.constant 1.600000e+01 : f32
    %4 = vector.broadcast %cst_2 : f32 to vector<4x1xf32>
    %5 = arith.divf %3, %4 : vector<4x1xf32>
    %6 = vector.broadcast %5 : vector<4x1xf32> to vector<4x16xf32>
    %7 = arith.subf %1, %6 : vector<4x16xf32>
    %8 = arith.mulf %7, %7 : vector<4x16xf32>
    %cst_3 = arith.constant dense<0.000000e+00> : vector<4xf32>
    %9 = vector.multi_reduction <add>, %8, %cst_3 [1] : vector<4x16xf32> to vector<4xf32>
    %10 = vector.shape_cast %9 : vector<4xf32> to vector<4x1xf32>
    %cst_4 = arith.constant 1.600000e+01 : f32
    %11 = vector.broadcast %cst_4 : f32 to vector<4x1xf32>
    %12 = arith.divf %10, %11 : vector<4x1xf32>
    %cst_5 = arith.constant 9.99999974E-6 : f32
    %13 = vector.broadcast %cst_5 : f32 to vector<4x1xf32>
    %14 = arith.addf %12, %13 : vector<4x1xf32>
    %15 = math.sqrt %14 : vector<4x1xf32>
    %16 = vector.broadcast %5 : vector<4x1xf32> to vector<4x16xf32>
    %17 = arith.subf %1, %16 : vector<4x16xf32>
    %18 = vector.broadcast %15 : vector<4x1xf32> to vector<4x16xf32>
    %19 = arith.divf %17, %18 : vector<4x16xf32>
    %c0_6 = arith.constant 0 : index
    %c0_7 = arith.constant 0 : index
    %20 = vector.load %arg2[%c0_6, %c0_7] : memref<1064x32xf32, #tpu.memory_space<vmem>>, vector<4x32xf32>
    %c0_8 = arith.constant 0 : index
    %c0_9 = arith.constant 0 : index
    %21 = vector.load %arg3[%c0_8, %c0_9] : memref<320x128xf32, #tpu.memory_space<vmem>>, vector<1x32xf32>
    %c8 = arith.constant 8 : index
    %c0_10 = arith.constant 0 : index
    %22 = vector.load %arg2[%c8, %c0_10] : memref<1064x32xf32, #tpu.memory_space<vmem>>, vector<4x32xf32>
    %c8_11 = arith.constant 8 : index
    %c0_12 = arith.constant 0 : index
    %23 = vector.load %arg3[%c8_11, %c0_12] : memref<320x128xf32, #tpu.memory_space<vmem>>, vector<1x32xf32>
    %c16 = arith.constant 16 : index
    %c0_13 = arith.constant 0 : index
    %24 = vector.load %arg3[%c16, %c0_13] : memref<320x128xf32, #tpu.memory_space<vmem>>, vector<1x32xf32>
    %25 = vector.extract_strided_slice %19 {offsets = [0, 0], sizes = [4, 4], strides = [1, 1]} : vector<4x16xf32> to vector<4x4xf32>
    %cst_14 = arith.constant dense<0.000000e+00> : vector<4x32xf32>
    %26 = tpu.matmul %25, %20, %cst_14 {dimension_numbers = #tpu.dot_dimension_numbers<[1], [0], [0], [1], [0, 0, 1, 1], [], []>} : vector<4x4xf32>, vector<4x32xf32>, vector<4x32xf32> -> vector<4x32xf32>
    %27 = vector.broadcast %21 : vector<1x32xf32> to vector<4x32xf32>
    %28 = arith.addf %26, %27 : vector<4x32xf32>
    %29 = vector.extract_strided_slice %22 {offsets = [0, 0], sizes = [1, 32], strides = [1, 1]} : vector<4x32xf32> to vector<1x32xf32>
    %30 = vector.broadcast %29 : vector<1x32xf32> to vector<4x32xf32>
    %31 = arith.addf %28, %30 : vector<4x32xf32>
    %cst_15 = arith.constant dense<0.000000e+00> : vector<4xf32>
    %32 = vector.multi_reduction <add>, %31, %cst_15 [1] : vector<4x32xf32> to vector<4xf32>
    %33 = vector.shape_cast %32 : vector<4xf32> to vector<4x1xf32>
    %cst_16 = arith.constant 3.200000e+01 : f32
    %34 = vector.broadcast %cst_16 : f32 to vector<4x1xf32>
    %35 = arith.divf %33, %34 : vector<4x1xf32>
    %36 = vector.broadcast %35 : vector<4x1xf32> to vector<4x32xf32>
    %37 = arith.subf %31, %36 : vector<4x32xf32>
    %38 = arith.mulf %37, %37 : vector<4x32xf32>
    %cst_17 = arith.constant dense<0.000000e+00> : vector<4xf32>
    %39 = vector.multi_reduction <add>, %38, %cst_17 [1] : vector<4x32xf32> to vector<4xf32>
    %40 = vector.shape_cast %39 : vector<4xf32> to vector<4x1xf32>
    %cst_18 = arith.constant 3.200000e+01 : f32
    %41 = vector.broadcast %cst_18 : f32 to vector<4x1xf32>
    %42 = arith.divf %40, %41 : vector<4x1xf32>
    %43 = vector.broadcast %35 : vector<4x1xf32> to vector<4x32xf32>
    %44 = arith.subf %31, %43 : vector<4x32xf32>
    %cst_19 = arith.constant 9.99999974E-6 : f32
    %45 = vector.broadcast %cst_19 : f32 to vector<4x1xf32>
    %46 = arith.addf %42, %45 : vector<4x1xf32>
    %47 = math.rsqrt %46 : vector<4x1xf32>
    %48 = vector.broadcast %47 : vector<4x1xf32> to vector<4x32xf32>
    %49 = arith.mulf %44, %48 : vector<4x32xf32>
    %50 = vector.broadcast %23 : vector<1x32xf32> to vector<4x32xf32>
    %51 = arith.mulf %49, %50 : vector<4x32xf32>
    %52 = vector.broadcast %24 : vector<1x32xf32> to vector<4x32xf32>
    %53 = arith.addf %51, %52 : vector<4x32xf32>
    %c0_20 = arith.constant 0 : index
    %c0_21 = arith.constant 0 : index
    %54 = vector.load %arg5[%c0_20, %c0_21] : memref<16x32xf32, #tpu.memory_space<vmem>>, vector<4x32xf32>
    tpu.vector_store %arg5[%c0_20, %c0_21], %53 {strides = array<i32>} : memref<16x32xf32, #tpu.memory_space<vmem>>, vector<4x32xf32>,
    %55 = vector.extract_strided_slice %19 {offsets = [0, 4], sizes = [4, 4], strides = [1, 1]} : vector<4x16xf32> to vector<4x4xf32>
    %cst_22 = arith.constant dense<0.000000e+00> : vector<4x32xf32>
    %56 = tpu.matmul %55, %20, %cst_22 {dimension_numbers = #tpu.dot_dimension_numbers<[1], [0], [0], [1], [0, 0, 1, 1], [], []>} : vector<4x4xf32>, vector<4x32xf32>, vector<4x32xf32> -> vector<4x32xf32>
    %57 = vector.broadcast %21 : vector<1x32xf32> to vector<4x32xf32>
    %58 = arith.addf %56, %57 : vector<4x32xf32>
    %59 = vector.extract_strided_slice %22 {offsets = [1, 0], sizes = [1, 32], strides = [1, 1]} : vector<4x32xf32> to vector<1x32xf32>
    %60 = vector.broadcast %59 : vector<1x32xf32> to vector<4x32xf32>
    %61 = arith.addf %58, %60 : vector<4x32xf32>
    %cst_23 = arith.constant dense<0.000000e+00> : vector<4xf32>
    %62 = vector.multi_reduction <add>, %61, %cst_23 [1] : vector<4x32xf32> to vector<4xf32>
    %63 = vector.shape_cast %62 : vector<4xf32> to vector<4x1xf32>
    %cst_24 = arith.constant 3.200000e+01 : f32
    %64 = vector.broadcast %cst_24 : f32 to vector<4x1xf32>
    %65 = arith.divf %63, %64 : vector<4x1xf32>
    %66 = vector.broadcast %65 : vector<4x1xf32> to vector<4x32xf32>
    %67 = arith.subf %61, %66 : vector<4x32xf32>
    %68 = arith.mulf %67, %67 : vector<4x32xf32>
    %cst_25 = arith.constant dense<0.000000e+00> : vector<4xf32>
    %69 = vector.multi_reduction <add>, %68, %cst_25 [1] : vector<4x32xf32> to vector<4xf32>
    %70 = vector.shape_cast %69 : vector<4xf32> to vector<4x1xf32>
    %cst_26 = arith.constant 3.200000e+01 : f32
    %71 = vector.broadcast %cst_26 : f32 to vector<4x1xf32>
    %72 = arith.divf %70, %71 : vector<4x1xf32>
    %73 = vector.broadcast %65 : vector<4x1xf32> to vector<4x32xf32>
    %74 = arith.subf %61, %73 : vector<4x32xf32>
    %cst_27 = arith.constant 9.99999974E-6 : f32
    %75 = vector.broadcast %cst_27 : f32 to vector<4x1xf32>
    %76 = arith.addf %72, %75 : vector<4x1xf32>
    %77 = math.rsqrt %76 : vector<4x1xf32>
    %78 = vector.broadcast %77 : vector<4x1xf32> to vector<4x32xf32>
    %79 = arith.mulf %74, %78 : vector<4x32xf32>
    %80 = vector.broadcast %23 : vector<1x32xf32> to vector<4x32xf32>
    %81 = arith.mulf %79, %80 : vector<4x32xf32>
    %82 = vector.broadcast %24 : vector<1x32xf32> to vector<4x32xf32>
    %83 = arith.addf %81, %82 : vector<4x32xf32>
    %c4 = arith.constant 4 : index
    %c0_28 = arith.constant 0 : index
    %84 = vector.load %arg5[%c4, %c0_28] : memref<16x32xf32, #tpu.memory_space<vmem>>, vector<4x32xf32>
    tpu.vector_store %arg5[%c4, %c0_28], %83 {strides = array<i32>} : memref<16x32xf32, #tpu.memory_space<vmem>>, vector<4x32xf32>,
    %85 = vector.extract_strided_slice %19 {offsets = [0, 8], sizes = [4, 4], strides = [1, 1]} : vector<4x16xf32> to vector<4x4xf32>
    %cst_29 = arith.constant dense<0.000000e+00> : vector<4x32xf32>
    %86 = tpu.matmul %85, %20, %cst_29 {dimension_numbers = #tpu.dot_dimension_numbers<[1], [0], [0], [1], [0, 0, 1, 1], [], []>} : vector<4x4xf32>, vector<4x32xf32>, vector<4x32xf32> -> vector<4x32xf32>
    %87 = vector.broadcast %21 : vector<1x32xf32> to vector<4x32xf32>
    %88 = arith.addf %86, %87 : vector<4x32xf32>
    %89 = vector.extract_strided_slice %22 {offsets = [2, 0], sizes = [1, 32], strides = [1, 1]} : vector<4x32xf32> to vector<1x32xf32>
    %90 = vector.broadcast %89 : vector<1x32xf32> to vector<4x32xf32>
    %91 = arith.addf %88, %90 : vector<4x32xf32>
    %cst_30 = arith.constant dense<0.000000e+00> : vector<4xf32>
    %92 = vector.multi_reduction <add>, %91, %cst_30 [1] : vector<4x32xf32> to vector<4xf32>
    %93 = vector.shape_cast %92 : vector<4xf32> to vector<4x1xf32>
    %cst_31 = arith.constant 3.200000e+01 : f32
    %94 = vector.broadcast %cst_31 : f32 to vector<4x1xf32>
    %95 = arith.divf %93, %94 : vector<4x1xf32>
    %96 = vector.broadcast %95 : vector<4x1xf32> to vector<4x32xf32>
    %97 = arith.subf %91, %96 : vector<4x32xf32>
    %98 = arith.mulf %97, %97 : vector<4x32xf32>
    %cst_32 = arith.constant dense<0.000000e+00> : vector<4xf32>
    %99 = vector.multi_reduction <add>, %98, %cst_32 [1] : vector<4x32xf32> to vector<4xf32>
    %100 = vector.shape_cast %99 : vector<4xf32> to vector<4x1xf32>
    %cst_33 = arith.constant 3.200000e+01 : f32
    %101 = vector.broadcast %cst_33 : f32 to vector<4x1xf32>
    %102 = arith.divf %100, %101 : vector<4x1xf32>
    %103 = vector.broadcast %95 : vector<4x1xf32> to vector<4x32xf32>
    %104 = arith.subf %91, %103 : vector<4x32xf32>
    %cst_34 = arith.constant 9.99999974E-6 : f32
    %105 = vector.broadcast %cst_34 : f32 to vector<4x1xf32>
    %106 = arith.addf %102, %105 : vector<4x1xf32>
    %107 = math.rsqrt %106 : vector<4x1xf32>
    %108 = vector.broadcast %107 : vector<4x1xf32> to vector<4x32xf32>
    %109 = arith.mulf %104, %108 : vector<4x32xf32>
    %110 = vector.broadcast %23 : vector<1x32xf32> to vector<4x32xf32>
    %111 = arith.mulf %109, %110 : vector<4x32xf32>
    %112 = vector.broadcast %24 : vector<1x32xf32> to vector<4x32xf32>
    %113 = arith.addf %111, %112 : vector<4x32xf32>
    %c8_35 = arith.constant 8 : index
    %c0_36 = arith.constant 0 : index
    %114 = vector.load %arg5[%c8_35, %c0_36] : memref<16x32xf32, #tpu.memory_space<vmem>>, vector<4x32xf32>
    tpu.vector_store %arg5[%c8_35, %c0_36], %113 {strides = array<i32>} : memref<16x32xf32, #tpu.memory_space<vmem>>, vector<4x32xf32>,
    %115 = vector.extract_strided_slice %19 {offsets = [0, 12], sizes = [4, 4], strides = [1, 1]} : vector<4x16xf32> to vector<4x4xf32>
    %cst_37 = arith.constant dense<0.000000e+00> : vector<4x32xf32>
    %116 = tpu.matmul %115, %20, %cst_37 {dimension_numbers = #tpu.dot_dimension_numbers<[1], [0], [0], [1], [0, 0, 1, 1], [], []>} : vector<4x4xf32>, vector<4x32xf32>, vector<4x32xf32> -> vector<4x32xf32>
    %117 = vector.broadcast %21 : vector<1x32xf32> to vector<4x32xf32>
    %118 = arith.addf %116, %117 : vector<4x32xf32>
    %119 = vector.extract_strided_slice %22 {offsets = [3, 0], sizes = [1, 32], strides = [1, 1]} : vector<4x32xf32> to vector<1x32xf32>
    %120 = vector.broadcast %119 : vector<1x32xf32> to vector<4x32xf32>
    %121 = arith.addf %118, %120 : vector<4x32xf32>
    %cst_38 = arith.constant dense<0.000000e+00> : vector<4xf32>
    %122 = vector.multi_reduction <add>, %121, %cst_38 [1] : vector<4x32xf32> to vector<4xf32>
    %123 = vector.shape_cast %122 : vector<4xf32> to vector<4x1xf32>
    %cst_39 = arith.constant 3.200000e+01 : f32
    %124 = vector.broadcast %cst_39 : f32 to vector<4x1xf32>
    %125 = arith.divf %123, %124 : vector<4x1xf32>
    %126 = vector.broadcast %125 : vector<4x1xf32> to vector<4x32xf32>
    %127 = arith.subf %121, %126 : vector<4x32xf32>
    %128 = arith.mulf %127, %127 : vector<4x32xf32>
    %cst_40 = arith.constant dense<0.000000e+00> : vector<4xf32>
    %129 = vector.multi_reduction <add>, %128, %cst_40 [1] : vector<4x32xf32> to vector<4xf32>
    %130 = vector.shape_cast %129 : vector<4xf32> to vector<4x1xf32>
    %cst_41 = arith.constant 3.200000e+01 : f32
    %131 = vector.broadcast %cst_41 : f32 to vector<4x1xf32>
    %132 = arith.divf %130, %131 : vector<4x1xf32>
    %133 = vector.broadcast %125 : vector<4x1xf32> to vector<4x32xf32>
    %134 = arith.subf %121, %133 : vector<4x32xf32>
    %cst_42 = arith.constant 9.99999974E-6 : f32
    %135 = vector.broadcast %cst_42 : f32 to vector<4x1xf32>
    %136 = arith.addf %132, %135 : vector<4x1xf32>
    %137 = math.rsqrt %136 : vector<4x1xf32>
    %138 = vector.broadcast %137 : vector<4x1xf32> to vector<4x32xf32>
    %139 = arith.mulf %134, %138 : vector<4x32xf32>
    %140 = vector.broadcast %23 : vector<1x32xf32> to vector<4x32xf32>
    %141 = arith.mulf %139, %140 : vector<4x32xf32>
    %142 = vector.broadcast %24 : vector<1x32xf32> to vector<4x32xf32>
    %143 = arith.addf %141, %142 : vector<4x32xf32>
    %c12 = arith.constant 12 : index
    %c0_43 = arith.constant 0 : index
    %144 = vector.load %arg5[%c12, %c0_43] : memref<16x32xf32, #tpu.memory_space<vmem>>, vector<4x32xf32>
    tpu.vector_store %arg5[%c12, %c0_43], %143 {strides = array<i32>} : memref<16x32xf32, #tpu.memory_space<vmem>>, vector<4x32xf32>,
    %c0_44 = arith.constant 0 : index
    %c0_45 = arith.constant 0 : index
    %145 = vector.load %arg5[%c0_44, %c0_45] : memref<16x32xf32, #tpu.memory_space<vmem>>, vector<16x32xf32>
    %c16_46 = arith.constant 16 : index
    %c0_47 = arith.constant 0 : index
    %146 = vector.load %arg2[%c16_46, %c0_47] : memref<1064x32xf32, #tpu.memory_space<vmem>>, vector<96x32xf32>
    %cst_48 = arith.constant dense<0.000000e+00> : vector<16x96xf32>
    %147 = tpu.matmul %145, %146, %cst_48 {dimension_numbers = #tpu.dot_dimension_numbers<[1], [1], [0], [0], [0, 0, 1, 0], [], []>} : vector<16x32xf32>, vector<96x32xf32>, vector<16x96xf32> -> vector<16x96xf32>
    %c24 = arith.constant 24 : index
    %c0_49 = arith.constant 0 : index
    %148 = vector.load %arg3[%c24, %c0_49] : memref<320x128xf32, #tpu.memory_space<vmem>>, vector<1x96xf32>
    %149 = vector.broadcast %148 : vector<1x96xf32> to vector<16x96xf32>
    %150 = arith.addf %147, %149 : vector<16x96xf32>
    %151 = vector.extract_strided_slice %150 {offsets = [0, 0], sizes = [16, 32], strides = [1, 1]} : vector<16x96xf32> to vector<16x32xf32>
    %152 = vector.extract_strided_slice %150 {offsets = [0, 32], sizes = [16, 32], strides = [1, 1]} : vector<16x96xf32> to vector<16x32xf32>
    %153 = vector.extract_strided_slice %150 {offsets = [0, 64], sizes = [16, 32], strides = [1, 1]} : vector<16x96xf32> to vector<16x32xf32>
    %c112 = arith.constant 112 : index
    %c0_50 = arith.constant 0 : index
    %154 = vector.load %arg2[%c112, %c0_50] : memref<1064x32xf32, #tpu.memory_space<vmem>>, vector<32x32xf32>
    %155 = tpu.iota {dimensions = array<i32: 0>} : vector<16x16xi32>
    %c4_i32 = arith.constant 4 : i32
    %c0_i32 = arith.constant 0 : i32
    %156 = arith.cmpi eq, %c4_i32, %c0_i32 : i32
    %c1_i32 = arith.constant 1 : i32
    %157 = arith.select %156, %c1_i32, %c4_i32 : i32
    %158 = vector.broadcast %157 : i32 to vector<16x16xi32>
    %159 = arith.remsi %155, %158 : vector<16x16xi32>
    %c0_i32_51 = arith.constant 0 : i32
    %160 = vector.broadcast %c0_i32_51 : i32 to vector<16x16xi32>
    %161 = arith.cmpi ne, %159, %160 : vector<16x16xi32>
    %c0_i32_52 = arith.constant 0 : i32
    %162 = vector.broadcast %c0_i32_52 : i32 to vector<16x16xi32>
    %163 = arith.cmpi slt, %159, %162 : vector<16x16xi32>
    %c0_i32_53 = arith.constant 0 : i32
    %164 = arith.cmpi slt, %157, %c0_i32_53 : i32
    %165 = vector.broadcast %164 : i1 to vector<16x16xi1>
    %166 = vector.broadcast %165 : vector<16x16xi1> to vector<16x16xi1>
    %167 = arith.xori %163, %166 : vector<16x16xi1>
    %168 = arith.andi %167, %161 : vector<16x16xi1>
    %169 = vector.broadcast %157 : i32 to vector<16x16xi32>
    %170 = arith.addi %159, %169 : vector<16x16xi32>
    %171 = arith.select %168, %170, %159 : vector<16x16xi1>, vector<16x16xi32>
    %172 = tpu.iota {dimensions = array<i32: 1>} : vector<16x16xi32>
    %c4_i32_54 = arith.constant 4 : i32
    %c0_i32_55 = arith.constant 0 : i32
    %173 = arith.cmpi eq, %c4_i32_54, %c0_i32_55 : i32
    %c1_i32_56 = arith.constant 1 : i32
    %174 = arith.select %173, %c1_i32_56, %c4_i32_54 : i32
    %175 = vector.broadcast %174 : i32 to vector<16x16xi32>
    %176 = arith.remsi %172, %175 : vector<16x16xi32>
    %c0_i32_57 = arith.constant 0 : i32
    %177 = vector.broadcast %c0_i32_57 : i32 to vector<16x16xi32>
    %178 = arith.cmpi ne, %176, %177 : vector<16x16xi32>
    %c0_i32_58 = arith.constant 0 : i32
    %179 = vector.broadcast %c0_i32_58 : i32 to vector<16x16xi32>
    %180 = arith.cmpi slt, %176, %179 : vector<16x16xi32>
    %c0_i32_59 = arith.constant 0 : i32
    %181 = arith.cmpi slt, %174, %c0_i32_59 : i32
    %182 = vector.broadcast %181 : i1 to vector<16x16xi1>
    %183 = vector.broadcast %182 : vector<16x16xi1> to vector<16x16xi1>
    %184 = arith.xori %180, %183 : vector<16x16xi1>
    %185 = arith.andi %184, %178 : vector<16x16xi1>
    %186 = vector.broadcast %174 : i32 to vector<16x16xi32>
    %187 = arith.addi %176, %186 : vector<16x16xi32>
    %188 = arith.select %185, %187, %176 : vector<16x16xi1>, vector<16x16xi32>
    %189 = arith.cmpi eq, %171, %188 : vector<16x16xi32>
    %cst_60 = arith.constant 0.000000e+00 : f32
    %190 = vector.broadcast %cst_60 : f32 to vector<16x32xf32>
    %191 = vector.extract_strided_slice %151 {offsets = [0, 0], sizes = [16, 16], strides = [1, 1]} : vector<16x32xf32> to vector<16x16xf32>
    %192 = vector.extract_strided_slice %152 {offsets = [0, 0], sizes = [16, 16], strides = [1, 1]} : vector<16x32xf32> to vector<16x16xf32>
    %cst_61 = arith.constant dense<0.000000e+00> : vector<16x16xf32>
    %193 = tpu.matmul %191, %192, %cst_61 {dimension_numbers = #tpu.dot_dimension_numbers<[1], [1], [0], [0], [0, 0, 1, 0], [], []>} : vector<16x16xf32>, vector<16x16xf32>, vector<16x16xf32> -> vector<16x16xf32>
    %cst_62 = arith.constant -1.000000e+30 : f32
    %194 = vector.broadcast %cst_62 : f32 to vector<16x16xf32>
    %195 = arith.select %189, %193, %194 : vector<16x16xi1>, vector<16x16xf32>
    %cst_63 = arith.constant dense<0xFF800000> : vector<16xf32>
    %196 = vector.multi_reduction <maximumf>, %195, %cst_63 [1] : vector<16x16xf32> to vector<16xf32>
    %197 = vector.shape_cast %196 : vector<16xf32> to vector<16x1xf32>
    %198 = vector.broadcast %197 : vector<16x1xf32> to vector<16x16xf32>
    %199 = arith.subf %195, %198 : vector<16x16xf32>
    %200 = math.exp %199 : vector<16x16xf32>
    %cst_64 = arith.constant dense<0.000000e+00> : vector<16xf32>
    %201 = vector.multi_reduction <add>, %200, %cst_64 [1] : vector<16x16xf32> to vector<16xf32>
    %202 = vector.shape_cast %201 : vector<16xf32> to vector<16x1xf32>
    %203 = tpu.reciprocal %202 {approx = true} : vector<16x1xf32> -> vector<16x1xf32>
    %204 = vector.broadcast %203 : vector<16x1xf32> to vector<16x16xf32>
    %205 = arith.mulf %200, %204 : vector<16x16xf32>
    %206 = vector.extract_strided_slice %153 {offsets = [0, 0], sizes = [16, 16], strides = [1, 1]} : vector<16x32xf32> to vector<16x16xf32>
    %cst_65 = arith.constant dense<0.000000e+00> : vector<16x16xf32>
    %207 = tpu.matmul %205, %206, %cst_65 {dimension_numbers = #tpu.dot_dimension_numbers<[1], [0], [0], [1], [0, 0, 1, 1], [], []>} : vector<16x16xf32>, vector<16x16xf32>, vector<16x16xf32> -> vector<16x16xf32>
    %208 = vector.extract_strided_slice %154 {offsets = [0, 0], sizes = [16, 32], strides = [1, 1]} : vector<32x32xf32> to vector<16x32xf32>
    %cst_66 = arith.constant dense<0.000000e+00> : vector<16x32xf32>
    %209 = tpu.matmul %207, %208, %cst_66 {dimension_numbers = #tpu.dot_dimension_numbers<[1], [0], [0], [1], [0, 0, 1, 1], [], []>} : vector<16x16xf32>, vector<16x32xf32>, vector<16x32xf32> -> vector<16x32xf32>
    %210 = arith.addf %190, %209 : vector<16x32xf32>
    %211 = vector.extract_strided_slice %151 {offsets = [0, 16], sizes = [16, 16], strides = [1, 1]} : vector<16x32xf32> to vector<16x16xf32>
    %212 = vector.extract_strided_slice %152 {offsets = [0, 16], sizes = [16, 16], strides = [1, 1]} : vector<16x32xf32> to vector<16x16xf32>
    %cst_67 = arith.constant dense<0.000000e+00> : vector<16x16xf32>
    %213 = tpu.matmul %211, %212, %cst_67 {dimension_numbers = #tpu.dot_dimension_numbers<[1], [1], [0], [0], [0, 0, 1, 0], [], []>} : vector<16x16xf32>, vector<16x16xf32>, vector<16x16xf32> -> vector<16x16xf32>
    %cst_68 = arith.constant -1.000000e+30 : f32
    %214 = vector.broadcast %cst_68 : f32 to vector<16x16xf32>
    %215 = arith.select %189, %213, %214 : vector<16x16xi1>, vector<16x16xf32>
    %cst_69 = arith.constant dense<0xFF800000> : vector<16xf32>
    %216 = vector.multi_reduction <maximumf>, %215, %cst_69 [1] : vector<16x16xf32> to vector<16xf32>
    %217 = vector.shape_cast %216 : vector<16xf32> to vector<16x1xf32>
    %218 = vector.broadcast %217 : vector<16x1xf32> to vector<16x16xf32>
    %219 = arith.subf %215, %218 : vector<16x16xf32>
    %220 = math.exp %219 : vector<16x16xf32>
    %cst_70 = arith.constant dense<0.000000e+00> : vector<16xf32>
    %221 = vector.multi_reduction <add>, %220, %cst_70 [1] : vector<16x16xf32> to vector<16xf32>
    %222 = vector.shape_cast %221 : vector<16xf32> to vector<16x1xf32>
    %223 = tpu.reciprocal %222 {approx = true} : vector<16x1xf32> -> vector<16x1xf32>
    %224 = vector.broadcast %223 : vector<16x1xf32> to vector<16x16xf32>
    %225 = arith.mulf %220, %224 : vector<16x16xf32>
    %226 = vector.extract_strided_slice %153 {offsets = [0, 16], sizes = [16, 16], strides = [1, 1]} : vector<16x32xf32> to vector<16x16xf32>
    %cst_71 = arith.constant dense<0.000000e+00> : vector<16x16xf32>
    %227 = tpu.matmul %225, %226, %cst_71 {dimension_numbers = #tpu.dot_dimension_numbers<[1], [0], [0], [1], [0, 0, 1, 1], [], []>} : vector<16x16xf32>, vector<16x16xf32>, vector<16x16xf32> -> vector<16x16xf32>
    %228 = vector.extract_strided_slice %154 {offsets = [16, 0], sizes = [16, 32], strides = [1, 1]} : vector<32x32xf32> to vector<16x32xf32>
    %cst_72 = arith.constant dense<0.000000e+00> : vector<16x32xf32>
    %229 = tpu.matmul %227, %228, %cst_72 {dimension_numbers = #tpu.dot_dimension_numbers<[1], [0], [0], [1], [0, 0, 1, 1], [], []>} : vector<16x16xf32>, vector<16x32xf32>, vector<16x32xf32> -> vector<16x32xf32>
    %230 = arith.addf %210, %229 : vector<16x32xf32>
    %c32 = arith.constant 32 : index
    %c0_73 = arith.constant 0 : index
    %231 = vector.load %arg3[%c32, %c0_73] : memref<320x128xf32, #tpu.memory_space<vmem>>, vector<1x32xf32>
    %232 = vector.broadcast %231 : vector<1x32xf32> to vector<16x32xf32>
    %233 = arith.addf %230, %232 : vector<16x32xf32>
    %234 = arith.addf %145, %233 : vector<16x32xf32>
    %c40 = arith.constant 40 : index
    %c0_74 = arith.constant 0 : index
    %235 = vector.load %arg3[%c40, %c0_74] : memref<320x128xf32, #tpu.memory_space<vmem>>, vector<1x32xf32>
    %c48 = arith.constant 48 : index
    %c0_75 = arith.constant 0 : index
    %236 = vector.load %arg3[%c48, %c0_75] : memref<320x128xf32, #tpu.memory_space<vmem>>, vector<1x32xf32>
    %cst_76 = arith.constant dense<0.000000e+00> : vector<16xf32>
    %237 = vector.multi_reduction <add>, %234, %cst_76 [1] : vector<16x32xf32> to vector<16xf32>
    %238 = vector.shape_cast %237 : vector<16xf32> to vector<16x1xf32>
    %cst_77 = arith.constant 3.200000e+01 : f32
    %239 = vector.broadcast %cst_77 : f32 to vector<16x1xf32>
    %240 = arith.divf %238, %239 : vector<16x1xf32>
    %241 = vector.broadcast %240 : vector<16x1xf32> to vector<16x32xf32>
    %242 = arith.subf %234, %241 : vector<16x32xf32>
    %243 = arith.mulf %242, %242 : vector<16x32xf32>
    %cst_78 = arith.constant dense<0.000000e+00> : vector<16xf32>
    %244 = vector.multi_reduction <add>, %243, %cst_78 [1] : vector<16x32xf32> to vector<16xf32>
    %245 = vector.shape_cast %244 : vector<16xf32> to vector<16x1xf32>
    %cst_79 = arith.constant 3.200000e+01 : f32
    %246 = vector.broadcast %cst_79 : f32 to vector<16x1xf32>
    %247 = arith.divf %245, %246 : vector<16x1xf32>
    %248 = vector.broadcast %240 : vector<16x1xf32> to vector<16x32xf32>
    %249 = arith.subf %234, %248 : vector<16x32xf32>
    %cst_80 = arith.constant 9.99999974E-6 : f32
    %250 = vector.broadcast %cst_80 : f32 to vector<16x1xf32>
    %251 = arith.addf %247, %250 : vector<16x1xf32>
    %252 = math.rsqrt %251 : vector<16x1xf32>
    %253 = vector.broadcast %252 : vector<16x1xf32> to vector<16x32xf32>
    %254 = arith.mulf %249, %253 : vector<16x32xf32>
    %255 = vector.broadcast %235 : vector<1x32xf32> to vector<16x32xf32>
    %256 = arith.mulf %254, %255 : vector<16x32xf32>
    %257 = vector.broadcast %236 : vector<1x32xf32> to vector<16x32xf32>
    %258 = arith.addf %256, %257 : vector<16x32xf32>
    %c144 = arith.constant 144 : index
    %c0_81 = arith.constant 0 : index
    %259 = vector.load %arg2[%c144, %c0_81] : memref<1064x32xf32, #tpu.memory_space<vmem>>, vector<64x32xf32>
    %cst_82 = arith.constant dense<0.000000e+00> : vector<16x64xf32>
    %260 = tpu.matmul %258, %259, %cst_82 {dimension_numbers = #tpu.dot_dimension_numbers<[1], [1], [0], [0], [0, 0, 1, 0], [], []>} : vector<16x32xf32>, vector<64x32xf32>, vector<16x64xf32> -> vector<16x64xf32>
    %c56 = arith.constant 56 : index
    %c0_83 = arith.constant 0 : index
    %261 = vector.load %arg3[%c56, %c0_83] : memref<320x128xf32, #tpu.memory_space<vmem>>, vector<1x64xf32>
    %262 = vector.broadcast %261 : vector<1x64xf32> to vector<16x64xf32>
    %263 = arith.addf %260, %262 : vector<16x64xf32>
    %264 = arith.mulf %263, %263 : vector<16x64xf32>
    %265 = arith.mulf %263, %264 : vector<16x64xf32>
    %cst_84 = arith.constant 4.471500e-02 : f32
    %266 = vector.broadcast %cst_84 : f32 to vector<16x64xf32>
    %267 = arith.mulf %266, %265 : vector<16x64xf32>
    %268 = arith.addf %263, %267 : vector<16x64xf32>
    %cst_85 = arith.constant 0.797884583 : f32
    %269 = vector.broadcast %cst_85 : f32 to vector<16x64xf32>
    %270 = arith.mulf %269, %268 : vector<16x64xf32>
    %271 = math.tanh %270 : vector<16x64xf32>
    %cst_86 = arith.constant 1.000000e+00 : f32
    %272 = vector.broadcast %cst_86 : f32 to vector<16x64xf32>
    %273 = arith.addf %272, %271 : vector<16x64xf32>
    %cst_87 = arith.constant 5.000000e-01 : f32
    %274 = vector.broadcast %cst_87 : f32 to vector<16x64xf32>
    %275 = arith.mulf %274, %273 : vector<16x64xf32>
    %276 = arith.mulf %263, %275 : vector<16x64xf32>
    %c208 = arith.constant 208 : index
    %c0_88 = arith.constant 0 : index
    %277 = vector.load %arg2[%c208, %c0_88] : memref<1064x32xf32, #tpu.memory_space<vmem>>, vector<64x32xf32>
    %cst_89 = arith.constant dense<0.000000e+00> : vector<16x32xf32>
    %278 = tpu.matmul %276, %277, %cst_89 {dimension_numbers = #tpu.dot_dimension_numbers<[1], [0], [0], [1], [0, 0, 1, 1], [], []>} : vector<16x64xf32>, vector<64x32xf32>, vector<16x32xf32> -> vector<16x32xf32>
    %c64 = arith.constant 64 : index
    %c0_90 = arith.constant 0 : index
    %279 = vector.load %arg3[%c64, %c0_90] : memref<320x128xf32, #tpu.memory_space<vmem>>, vector<1x32xf32>
    %280 = vector.broadcast %279 : vector<1x32xf32> to vector<16x32xf32>
    %281 = arith.addf %278, %280 : vector<16x32xf32>
    %282 = arith.addf %258, %281 : vector<16x32xf32>
    %c72 = arith.constant 72 : index
    %c0_91 = arith.constant 0 : index
    %283 = vector.load %arg3[%c72, %c0_91] : memref<320x128xf32, #tpu.memory_space<vmem>>, vector<1x32xf32>
    %c80 = arith.constant 80 : index
    %c0_92 = arith.constant 0 : index
    %284 = vector.load %arg3[%c80, %c0_92] : memref<320x128xf32, #tpu.memory_space<vmem>>, vector<1x32xf32>
    %cst_93 = arith.constant dense<0.000000e+00> : vector<16xf32>
    %285 = vector.multi_reduction <add>, %282, %cst_93 [1] : vector<16x32xf32> to vector<16xf32>
    %286 = vector.shape_cast %285 : vector<16xf32> to vector<16x1xf32>
    %cst_94 = arith.constant 3.200000e+01 : f32
    %287 = vector.broadcast %cst_94 : f32 to vector<16x1xf32>
    %288 = arith.divf %286, %287 : vector<16x1xf32>
    %289 = vector.broadcast %288 : vector<16x1xf32> to vector<16x32xf32>
    %290 = arith.subf %282, %289 : vector<16x32xf32>
    %291 = arith.mulf %290, %290 : vector<16x32xf32>
    %cst_95 = arith.constant dense<0.000000e+00> : vector<16xf32>
    %292 = vector.multi_reduction <add>, %291, %cst_95 [1] : vector<16x32xf32> to vector<16xf32>
    %293 = vector.shape_cast %292 : vector<16xf32> to vector<16x1xf32>
    %cst_96 = arith.constant 3.200000e+01 : f32
    %294 = vector.broadcast %cst_96 : f32 to vector<16x1xf32>
    %295 = arith.divf %293, %294 : vector<16x1xf32>
    %296 = vector.broadcast %288 : vector<16x1xf32> to vector<16x32xf32>
    %297 = arith.subf %282, %296 : vector<16x32xf32>
    %cst_97 = arith.constant 9.99999974E-6 : f32
    %298 = vector.broadcast %cst_97 : f32 to vector<16x1xf32>
    %299 = arith.addf %295, %298 : vector<16x1xf32>
    %300 = math.rsqrt %299 : vector<16x1xf32>
    %301 = vector.broadcast %300 : vector<16x1xf32> to vector<16x32xf32>
    %302 = arith.mulf %297, %301 : vector<16x32xf32>
    %303 = vector.broadcast %283 : vector<1x32xf32> to vector<16x32xf32>
    %304 = arith.mulf %302, %303 : vector<16x32xf32>
    %305 = vector.broadcast %284 : vector<1x32xf32> to vector<16x32xf32>
    %306 = arith.addf %304, %305 : vector<16x32xf32>
    %c1056 = arith.constant 1056 : index
    %c0_98 = arith.constant 0 : index
    %307 = vector.load %arg2[%c1056, %c0_98] : memref<1064x32xf32, #tpu.memory_space<vmem>>, vector<8x32xf32>
    %cst_99 = arith.constant 0.000000e+00 : f32
    %308 = vector.broadcast %cst_99 : f32 to vector<8x4xf32>
    %c272 = arith.constant 272 : index
    %c0_100 = arith.constant 0 : index
    %309 = vector.load %arg2[%c272, %c0_100] : memref<1064x32xf32, #tpu.memory_space<vmem>>, vector<96x32xf32>
    %cst_101 = arith.constant dense<0.000000e+00> : vector<8x96xf32>
    %310 = tpu.matmul %307, %309, %cst_101 {dimension_numbers = #tpu.dot_dimension_numbers<[1], [1], [0], [0], [0, 0, 1, 0], [], []>} : vector<8x32xf32>, vector<96x32xf32>, vector<8x96xf32> -> vector<8x96xf32>
    %c88 = arith.constant 88 : index
    %c0_102 = arith.constant 0 : index
    %311 = vector.load %arg3[%c88, %c0_102] : memref<320x128xf32, #tpu.memory_space<vmem>>, vector<1x96xf32>
    %312 = vector.broadcast %311 : vector<1x96xf32> to vector<8x96xf32>
    %313 = arith.addf %310, %312 : vector<8x96xf32>
    %314 = vector.extract_strided_slice %313 {offsets = [0, 0], sizes = [8, 32], strides = [1, 1]} : vector<8x96xf32> to vector<8x32xf32>
    %315 = vector.extract_strided_slice %313 {offsets = [0, 32], sizes = [8, 32], strides = [1, 1]} : vector<8x96xf32> to vector<8x32xf32>
    %316 = vector.extract_strided_slice %313 {offsets = [0, 64], sizes = [8, 32], strides = [1, 1]} : vector<8x96xf32> to vector<8x32xf32>
    %c368 = arith.constant 368 : index
    %c0_103 = arith.constant 0 : index
    %317 = vector.load %arg2[%c368, %c0_103] : memref<1064x32xf32, #tpu.memory_space<vmem>>, vector<32x32xf32>
    %318 = tpu.iota {dimensions = array<i32: 0>} : vector<8x8xi32>
    %c4_i32_104 = arith.constant 4 : i32
    %c0_i32_105 = arith.constant 0 : i32
    %319 = arith.cmpi eq, %c4_i32_104, %c0_i32_105 : i32
    %c1_i32_106 = arith.constant 1 : i32
    %320 = arith.select %319, %c1_i32_106, %c4_i32_104 : i32
    %321 = vector.broadcast %320 : i32 to vector<8x8xi32>
    %322 = arith.remsi %318, %321 : vector<8x8xi32>
    %c0_i32_107 = arith.constant 0 : i32
    %323 = vector.broadcast %c0_i32_107 : i32 to vector<8x8xi32>
    %324 = arith.cmpi ne, %322, %323 : vector<8x8xi32>
    %c0_i32_108 = arith.constant 0 : i32
    %325 = vector.broadcast %c0_i32_108 : i32 to vector<8x8xi32>
    %326 = arith.cmpi slt, %322, %325 : vector<8x8xi32>
    %c0_i32_109 = arith.constant 0 : i32
    %327 = arith.cmpi slt, %320, %c0_i32_109 : i32
    %328 = vector.broadcast %327 : i1 to vector<8x8xi1>
    %329 = vector.broadcast %328 : vector<8x8xi1> to vector<8x8xi1>
    %330 = arith.xori %326, %329 : vector<8x8xi1>
    %331 = arith.andi %330, %324 : vector<8x8xi1>
    %332 = vector.broadcast %320 : i32 to vector<8x8xi32>
    %333 = arith.addi %322, %332 : vector<8x8xi32>
    %334 = arith.select %331, %333, %322 : vector<8x8xi1>, vector<8x8xi32>
    %335 = tpu.iota {dimensions = array<i32: 1>} : vector<8x8xi32>
    %c4_i32_110 = arith.constant 4 : i32
    %c0_i32_111 = arith.constant 0 : i32
    %336 = arith.cmpi eq, %c4_i32_110, %c0_i32_111 : i32
    %c1_i32_112 = arith.constant 1 : i32
    %337 = arith.select %336, %c1_i32_112, %c4_i32_110 : i32
    %338 = vector.broadcast %337 : i32 to vector<8x8xi32>
    %339 = arith.remsi %335, %338 : vector<8x8xi32>
    %c0_i32_113 = arith.constant 0 : i32
    %340 = vector.broadcast %c0_i32_113 : i32 to vector<8x8xi32>
    %341 = arith.cmpi ne, %339, %340 : vector<8x8xi32>
    %c0_i32_114 = arith.constant 0 : i32
    %342 = vector.broadcast %c0_i32_114 : i32 to vector<8x8xi32>
    %343 = arith.cmpi slt, %339, %342 : vector<8x8xi32>
    %c0_i32_115 = arith.constant 0 : i32
    %344 = arith.cmpi slt, %337, %c0_i32_115 : i32
    %345 = vector.broadcast %344 : i1 to vector<8x8xi1>
    %346 = vector.broadcast %345 : vector<8x8xi1> to vector<8x8xi1>
    %347 = arith.xori %343, %346 : vector<8x8xi1>
    %348 = arith.andi %347, %341 : vector<8x8xi1>
    %349 = vector.broadcast %337 : i32 to vector<8x8xi32>
    %350 = arith.addi %339, %349 : vector<8x8xi32>
    %351 = arith.select %348, %350, %339 : vector<8x8xi1>, vector<8x8xi32>
    %352 = arith.cmpi eq, %334, %351 : vector<8x8xi32>
    %cst_116 = arith.constant 0.000000e+00 : f32
    %353 = vector.broadcast %cst_116 : f32 to vector<8x32xf32>
    %354 = vector.extract_strided_slice %314 {offsets = [0, 0], sizes = [8, 16], strides = [1, 1]} : vector<8x32xf32> to vector<8x16xf32>
    %355 = vector.extract_strided_slice %315 {offsets = [0, 0], sizes = [8, 16], strides = [1, 1]} : vector<8x32xf32> to vector<8x16xf32>
    %cst_117 = arith.constant dense<0.000000e+00> : vector<8x8xf32>
    %356 = tpu.matmul %354, %355, %cst_117 {dimension_numbers = #tpu.dot_dimension_numbers<[1], [1], [0], [0], [0, 0, 1, 0], [], []>} : vector<8x16xf32>, vector<8x16xf32>, vector<8x8xf32> -> vector<8x8xf32>
    %cst_118 = arith.constant -1.000000e+30 : f32
    %357 = vector.broadcast %cst_118 : f32 to vector<8x8xf32>
    %358 = arith.select %352, %356, %357 : vector<8x8xi1>, vector<8x8xf32>
    %cst_119 = arith.constant dense<0xFF800000> : vector<8xf32>
    %359 = vector.multi_reduction <maximumf>, %358, %cst_119 [1] : vector<8x8xf32> to vector<8xf32>
    %360 = vector.shape_cast %359 : vector<8xf32> to vector<8x1xf32>
    %361 = vector.broadcast %360 : vector<8x1xf32> to vector<8x8xf32>
    %362 = arith.subf %358, %361 : vector<8x8xf32>
    %363 = math.exp %362 : vector<8x8xf32>
    %cst_120 = arith.constant dense<0.000000e+00> : vector<8xf32>
    %364 = vector.multi_reduction <add>, %363, %cst_120 [1] : vector<8x8xf32> to vector<8xf32>
    %365 = vector.shape_cast %364 : vector<8xf32> to vector<8x1xf32>
    %366 = tpu.reciprocal %365 {approx = true} : vector<8x1xf32> -> vector<8x1xf32>
    %367 = vector.broadcast %366 : vector<8x1xf32> to vector<8x8xf32>
    %368 = arith.mulf %363, %367 : vector<8x8xf32>
    %369 = vector.extract_strided_slice %316 {offsets = [0, 0], sizes = [8, 16], strides = [1, 1]} : vector<8x32xf32> to vector<8x16xf32>
    %cst_121 = arith.constant dense<0.000000e+00> : vector<8x16xf32>
    %370 = tpu.matmul %368, %369, %cst_121 {dimension_numbers = #tpu.dot_dimension_numbers<[1], [0], [0], [1], [0, 0, 1, 1], [], []>} : vector<8x8xf32>, vector<8x16xf32>, vector<8x16xf32> -> vector<8x16xf32>
    %371 = vector.extract_strided_slice %317 {offsets = [0, 0], sizes = [16, 32], strides = [1, 1]} : vector<32x32xf32> to vector<16x32xf32>
    %cst_122 = arith.constant dense<0.000000e+00> : vector<8x32xf32>
    %372 = tpu.matmul %370, %371, %cst_122 {dimension_numbers = #tpu.dot_dimension_numbers<[1], [0], [0], [1], [0, 0, 1, 1], [], []>} : vector<8x16xf32>, vector<16x32xf32>, vector<8x32xf32> -> vector<8x32xf32>
    %373 = arith.addf %353, %372 : vector<8x32xf32>
    %374 = vector.extract_strided_slice %314 {offsets = [0, 16], sizes = [8, 16], strides = [1, 1]} : vector<8x32xf32> to vector<8x16xf32>
    %375 = vector.extract_strided_slice %315 {offsets = [0, 16], sizes = [8, 16], strides = [1, 1]} : vector<8x32xf32> to vector<8x16xf32>
    %cst_123 = arith.constant dense<0.000000e+00> : vector<8x8xf32>
    %376 = tpu.matmul %374, %375, %cst_123 {dimension_numbers = #tpu.dot_dimension_numbers<[1], [1], [0], [0], [0, 0, 1, 0], [], []>} : vector<8x16xf32>, vector<8x16xf32>, vector<8x8xf32> -> vector<8x8xf32>
    %cst_124 = arith.constant -1.000000e+30 : f32
    %377 = vector.broadcast %cst_124 : f32 to vector<8x8xf32>
    %378 = arith.select %352, %376, %377 : vector<8x8xi1>, vector<8x8xf32>
    %cst_125 = arith.constant dense<0xFF800000> : vector<8xf32>
    %379 = vector.multi_reduction <maximumf>, %378, %cst_125 [1] : vector<8x8xf32> to vector<8xf32>
    %380 = vector.shape_cast %379 : vector<8xf32> to vector<8x1xf32>
    %381 = vector.broadcast %380 : vector<8x1xf32> to vector<8x8xf32>
    %382 = arith.subf %378, %381 : vector<8x8xf32>
    %383 = math.exp %382 : vector<8x8xf32>
    %cst_126 = arith.constant dense<0.000000e+00> : vector<8xf32>
    %384 = vector.multi_reduction <add>, %383, %cst_126 [1] : vector<8x8xf32> to vector<8xf32>
    %385 = vector.shape_cast %384 : vector<8xf32> to vector<8x1xf32>
    %386 = tpu.reciprocal %385 {approx = true} : vector<8x1xf32> -> vector<8x1xf32>
    %387 = vector.broadcast %386 : vector<8x1xf32> to vector<8x8xf32>
    %388 = arith.mulf %383, %387 : vector<8x8xf32>
    %389 = vector.extract_strided_slice %316 {offsets = [0, 16], sizes = [8, 16], strides = [1, 1]} : vector<8x32xf32> to vector<8x16xf32>
    %cst_127 = arith.constant dense<0.000000e+00> : vector<8x16xf32>
    %390 = tpu.matmul %388, %389, %cst_127 {dimension_numbers = #tpu.dot_dimension_numbers<[1], [0], [0], [1], [0, 0, 1, 1], [], []>} : vector<8x8xf32>, vector<8x16xf32>, vector<8x16xf32> -> vector<8x16xf32>
    %391 = vector.extract_strided_slice %317 {offsets = [16, 0], sizes = [16, 32], strides = [1, 1]} : vector<32x32xf32> to vector<16x32xf32>
    %cst_128 = arith.constant dense<0.000000e+00> : vector<8x32xf32>
    %392 = tpu.matmul %390, %391, %cst_128 {dimension_numbers = #tpu.dot_dimension_numbers<[1], [0], [0], [1], [0, 0, 1, 1], [], []>} : vector<8x16xf32>, vector<16x32xf32>, vector<8x32xf32> -> vector<8x32xf32>
    %393 = arith.addf %373, %392 : vector<8x32xf32>
    %c96 = arith.constant 96 : index
    %c0_129 = arith.constant 0 : index
    %394 = vector.load %arg3[%c96, %c0_129] : memref<320x128xf32, #tpu.memory_space<vmem>>, vector<1x32xf32>
    %395 = vector.broadcast %394 : vector<1x32xf32> to vector<8x32xf32>
    %396 = arith.addf %393, %395 : vector<8x32xf32>
    %397 = arith.addf %307, %396 : vector<8x32xf32>
    %c104 = arith.constant 104 : index
    %c0_130 = arith.constant 0 : index
    %398 = vector.load %arg3[%c104, %c0_130] : memref<320x128xf32, #tpu.memory_space<vmem>>, vector<1x32xf32>
    %c112_131 = arith.constant 112 : index
    %c0_132 = arith.constant 0 : index
    %399 = vector.load %arg3[%c112_131, %c0_132] : memref<320x128xf32, #tpu.memory_space<vmem>>, vector<1x32xf32>
    %cst_133 = arith.constant dense<0.000000e+00> : vector<8xf32>
    %400 = vector.multi_reduction <add>, %397, %cst_133 [1] : vector<8x32xf32> to vector<8xf32>
    %401 = vector.shape_cast %400 : vector<8xf32> to vector<8x1xf32>
    %cst_134 = arith.constant 3.200000e+01 : f32
    %402 = vector.broadcast %cst_134 : f32 to vector<8x1xf32>
    %403 = arith.divf %401, %402 : vector<8x1xf32>
    %404 = vector.broadcast %403 : vector<8x1xf32> to vector<8x32xf32>
    %405 = arith.subf %397, %404 : vector<8x32xf32>
    %406 = arith.mulf %405, %405 : vector<8x32xf32>
    %cst_135 = arith.constant dense<0.000000e+00> : vector<8xf32>
    %407 = vector.multi_reduction <add>, %406, %cst_135 [1] : vector<8x32xf32> to vector<8xf32>
    %408 = vector.shape_cast %407 : vector<8xf32> to vector<8x1xf32>
    %cst_136 = arith.constant 3.200000e+01 : f32
    %409 = vector.broadcast %cst_136 : f32 to vector<8x1xf32>
    %410 = arith.divf %408, %409 : vector<8x1xf32>
    %411 = vector.broadcast %403 : vector<8x1xf32> to vector<8x32xf32>
    %412 = arith.subf %397, %411 : vector<8x32xf32>
    %cst_137 = arith.constant 9.99999974E-6 : f32
    %413 = vector.broadcast %cst_137 : f32 to vector<8x1xf32>
    %414 = arith.addf %410, %413 : vector<8x1xf32>
    %415 = math.rsqrt %414 : vector<8x1xf32>
    %416 = vector.broadcast %415 : vector<8x1xf32> to vector<8x32xf32>
    %417 = arith.mulf %412, %416 : vector<8x32xf32>
    %418 = vector.broadcast %398 : vector<1x32xf32> to vector<8x32xf32>
    %419 = arith.mulf %417, %418 : vector<8x32xf32>
    %420 = vector.broadcast %399 : vector<1x32xf32> to vector<8x32xf32>
    %421 = arith.addf %419, %420 : vector<8x32xf32>
    %c400 = arith.constant 400 : index
    %c0_138 = arith.constant 0 : index
    %422 = vector.load %arg2[%c400, %c0_138] : memref<1064x32xf32, #tpu.memory_space<vmem>>, vector<32x32xf32>
    %cst_139 = arith.constant dense<0.000000e+00> : vector<8x32xf32>
    %423 = tpu.matmul %421, %422, %cst_139 {dimension_numbers = #tpu.dot_dimension_numbers<[1], [1], [0], [0], [0, 0, 1, 0], [], []>} : vector<8x32xf32>, vector<32x32xf32>, vector<8x32xf32> -> vector<8x32xf32>
    %c120 = arith.constant 120 : index
    %c0_140 = arith.constant 0 : index
    %424 = vector.load %arg3[%c120, %c0_140] : memref<320x128xf32, #tpu.memory_space<vmem>>, vector<1x32xf32>
    %425 = vector.broadcast %424 : vector<1x32xf32> to vector<8x32xf32>
    %426 = arith.addf %423, %425 : vector<8x32xf32>
    %c432 = arith.constant 432 : index
    %c0_141 = arith.constant 0 : index
    %427 = vector.load %arg2[%c432, %c0_141] : memref<1064x32xf32, #tpu.memory_space<vmem>>, vector<64x32xf32>
    %cst_142 = arith.constant dense<0.000000e+00> : vector<16x64xf32>
    %428 = tpu.matmul %145, %427, %cst_142 {dimension_numbers = #tpu.dot_dimension_numbers<[1], [1], [0], [0], [0, 0, 1, 0], [], []>} : vector<16x32xf32>, vector<64x32xf32>, vector<16x64xf32> -> vector<16x64xf32>
    %c128 = arith.constant 128 : index
    %c0_143 = arith.constant 0 : index
    %429 = vector.load %arg3[%c128, %c0_143] : memref<320x128xf32, #tpu.memory_space<vmem>>, vector<1x64xf32>
    %430 = vector.broadcast %429 : vector<1x64xf32> to vector<16x64xf32>
    %431 = arith.addf %428, %430 : vector<16x64xf32>
    %432 = vector.extract_strided_slice %431 {offsets = [0, 0], sizes = [16, 32], strides = [1, 1]} : vector<16x64xf32> to vector<16x32xf32>
    %433 = vector.extract_strided_slice %431 {offsets = [0, 32], sizes = [16, 32], strides = [1, 1]} : vector<16x64xf32> to vector<16x32xf32>
    %c496 = arith.constant 496 : index
    %c0_144 = arith.constant 0 : index
    %434 = vector.load %arg2[%c496, %c0_144] : memref<1064x32xf32, #tpu.memory_space<vmem>>, vector<32x32xf32>
    %435 = tpu.iota {dimensions = array<i32: 0>} : vector<8x16xi32>
    %c4_i32_145 = arith.constant 4 : i32
    %c0_i32_146 = arith.constant 0 : i32
    %436 = arith.cmpi eq, %c4_i32_145, %c0_i32_146 : i32
    %c1_i32_147 = arith.constant 1 : i32
    %437 = arith.select %436, %c1_i32_147, %c4_i32_145 : i32
    %438 = vector.broadcast %437 : i32 to vector<8x16xi32>
    %439 = arith.remsi %435, %438 : vector<8x16xi32>
    %c0_i32_148 = arith.constant 0 : i32
    %440 = vector.broadcast %c0_i32_148 : i32 to vector<8x16xi32>
    %441 = arith.cmpi ne, %439, %440 : vector<8x16xi32>
    %c0_i32_149 = arith.constant 0 : i32
    %442 = vector.broadcast %c0_i32_149 : i32 to vector<8x16xi32>
    %443 = arith.cmpi slt, %439, %442 : vector<8x16xi32>
    %c0_i32_150 = arith.constant 0 : i32
    %444 = arith.cmpi slt, %437, %c0_i32_150 : i32
    %445 = vector.broadcast %444 : i1 to vector<8x16xi1>
    %446 = vector.broadcast %445 : vector<8x16xi1> to vector<8x16xi1>
    %447 = arith.xori %443, %446 : vector<8x16xi1>
    %448 = arith.andi %447, %441 : vector<8x16xi1>
    %449 = vector.broadcast %437 : i32 to vector<8x16xi32>
    %450 = arith.addi %439, %449 : vector<8x16xi32>
    %451 = arith.select %448, %450, %439 : vector<8x16xi1>, vector<8x16xi32>
    %452 = tpu.iota {dimensions = array<i32: 1>} : vector<8x16xi32>
    %c4_i32_151 = arith.constant 4 : i32
    %c0_i32_152 = arith.constant 0 : i32
    %453 = arith.cmpi eq, %c4_i32_151, %c0_i32_152 : i32
    %c1_i32_153 = arith.constant 1 : i32
    %454 = arith.select %453, %c1_i32_153, %c4_i32_151 : i32
    %455 = vector.broadcast %454 : i32 to vector<8x16xi32>
    %456 = arith.remsi %452, %455 : vector<8x16xi32>
    %c0_i32_154 = arith.constant 0 : i32
    %457 = vector.broadcast %c0_i32_154 : i32 to vector<8x16xi32>
    %458 = arith.cmpi ne, %456, %457 : vector<8x16xi32>
    %c0_i32_155 = arith.constant 0 : i32
    %459 = vector.broadcast %c0_i32_155 : i32 to vector<8x16xi32>
    %460 = arith.cmpi slt, %456, %459 : vector<8x16xi32>
    %c0_i32_156 = arith.constant 0 : i32
    %461 = arith.cmpi slt, %454, %c0_i32_156 : i32
    %462 = vector.broadcast %461 : i1 to vector<8x16xi1>
    %463 = vector.broadcast %462 : vector<8x16xi1> to vector<8x16xi1>
    %464 = arith.xori %460, %463 : vector<8x16xi1>
    %465 = arith.andi %464, %458 : vector<8x16xi1>
    %466 = vector.broadcast %454 : i32 to vector<8x16xi32>
    %467 = arith.addi %456, %466 : vector<8x16xi32>
    %468 = arith.select %465, %467, %456 : vector<8x16xi1>, vector<8x16xi32>
    %469 = arith.cmpi eq, %451, %468 : vector<8x16xi32>
    %cst_157 = arith.constant 0.000000e+00 : f32
    %470 = vector.broadcast %cst_157 : f32 to vector<8x32xf32>
    %471 = vector.extract_strided_slice %426 {offsets = [0, 0], sizes = [8, 16], strides = [1, 1]} : vector<8x32xf32> to vector<8x16xf32>
    %472 = vector.extract_strided_slice %432 {offsets = [0, 0], sizes = [16, 16], strides = [1, 1]} : vector<16x32xf32> to vector<16x16xf32>
    %cst_158 = arith.constant dense<0.000000e+00> : vector<8x16xf32>
    %473 = tpu.matmul %471, %472, %cst_158 {dimension_numbers = #tpu.dot_dimension_numbers<[1], [1], [0], [0], [0, 0, 1, 0], [], []>} : vector<8x16xf32>, vector<16x16xf32>, vector<8x16xf32> -> vector<8x16xf32>
    %cst_159 = arith.constant -1.000000e+30 : f32
    %474 = vector.broadcast %cst_159 : f32 to vector<8x16xf32>
    %475 = arith.select %469, %473, %474 : vector<8x16xi1>, vector<8x16xf32>
    %cst_160 = arith.constant dense<0xFF800000> : vector<8xf32>
    %476 = vector.multi_reduction <maximumf>, %475, %cst_160 [1] : vector<8x16xf32> to vector<8xf32>
    %477 = vector.shape_cast %476 : vector<8xf32> to vector<8x1xf32>
    %478 = vector.broadcast %477 : vector<8x1xf32> to vector<8x16xf32>
    %479 = arith.subf %475, %478 : vector<8x16xf32>
    %480 = math.exp %479 : vector<8x16xf32>
    %cst_161 = arith.constant dense<0.000000e+00> : vector<8xf32>
    %481 = vector.multi_reduction <add>, %480, %cst_161 [1] : vector<8x16xf32> to vector<8xf32>
    %482 = vector.shape_cast %481 : vector<8xf32> to vector<8x1xf32>
    %483 = tpu.reciprocal %482 {approx = true} : vector<8x1xf32> -> vector<8x1xf32>
    %484 = vector.broadcast %483 : vector<8x1xf32> to vector<8x16xf32>
    %485 = arith.mulf %480, %484 : vector<8x16xf32>
    %486 = vector.extract_strided_slice %433 {offsets = [0, 0], sizes = [16, 16], strides = [1, 1]} : vector<16x32xf32> to vector<16x16xf32>
    %cst_162 = arith.constant dense<0.000000e+00> : vector<8x16xf32>
    %487 = tpu.matmul %485, %486, %cst_162 {dimension_numbers = #tpu.dot_dimension_numbers<[1], [0], [0], [1], [0, 0, 1, 1], [], []>} : vector<8x16xf32>, vector<16x16xf32>, vector<8x16xf32> -> vector<8x16xf32>
    %488 = vector.extract_strided_slice %434 {offsets = [0, 0], sizes = [16, 32], strides = [1, 1]} : vector<32x32xf32> to vector<16x32xf32>
    %cst_163 = arith.constant dense<0.000000e+00> : vector<8x32xf32>
    %489 = tpu.matmul %487, %488, %cst_163 {dimension_numbers = #tpu.dot_dimension_numbers<[1], [0], [0], [1], [0, 0, 1, 1], [], []>} : vector<8x16xf32>, vector<16x32xf32>, vector<8x32xf32> -> vector<8x32xf32>
    %490 = arith.addf %470, %489 : vector<8x32xf32>
    %491 = vector.extract_strided_slice %426 {offsets = [0, 16], sizes = [8, 16], strides = [1, 1]} : vector<8x32xf32> to vector<8x16xf32>
    %492 = vector.extract_strided_slice %432 {offsets = [0, 16], sizes = [16, 16], strides = [1, 1]} : vector<16x32xf32> to vector<16x16xf32>
    %cst_164 = arith.constant dense<0.000000e+00> : vector<8x16xf32>
    %493 = tpu.matmul %491, %492, %cst_164 {dimension_numbers = #tpu.dot_dimension_numbers<[1], [1], [0], [0], [0, 0, 1, 0], [], []>} : vector<8x16xf32>, vector<16x16xf32>, vector<8x16xf32> -> vector<8x16xf32>
    %cst_165 = arith.constant -1.000000e+30 : f32
    %494 = vector.broadcast %cst_165 : f32 to vector<8x16xf32>
    %495 = arith.select %469, %493, %494 : vector<8x16xi1>, vector<8x16xf32>
    %cst_166 = arith.constant dense<0xFF800000> : vector<8xf32>
    %496 = vector.multi_reduction <maximumf>, %495, %cst_166 [1] : vector<8x16xf32> to vector<8xf32>
    %497 = vector.shape_cast %496 : vector<8xf32> to vector<8x1xf32>
    %498 = vector.broadcast %497 : vector<8x1xf32> to vector<8x16xf32>
    %499 = arith.subf %495, %498 : vector<8x16xf32>
    %500 = math.exp %499 : vector<8x16xf32>
    %cst_167 = arith.constant dense<0.000000e+00> : vector<8xf32>
    %501 = vector.multi_reduction <add>, %500, %cst_167 [1] : vector<8x16xf32> to vector<8xf32>
    %502 = vector.shape_cast %501 : vector<8xf32> to vector<8x1xf32>
    %503 = tpu.reciprocal %502 {approx = true} : vector<8x1xf32> -> vector<8x1xf32>
    %504 = vector.broadcast %503 : vector<8x1xf32> to vector<8x16xf32>
    %505 = arith.mulf %500, %504 : vector<8x16xf32>
    %506 = vector.extract_strided_slice %433 {offsets = [0, 16], sizes = [16, 16], strides = [1, 1]} : vector<16x32xf32> to vector<16x16xf32>
    %cst_168 = arith.constant dense<0.000000e+00> : vector<8x16xf32>
    %507 = tpu.matmul %505, %506, %cst_168 {dimension_numbers = #tpu.dot_dimension_numbers<[1], [0], [0], [1], [0, 0, 1, 1], [], []>} : vector<8x16xf32>, vector<16x16xf32>, vector<8x16xf32> -> vector<8x16xf32>
    %508 = vector.extract_strided_slice %434 {offsets = [16, 0], sizes = [16, 32], strides = [1, 1]} : vector<32x32xf32> to vector<16x32xf32>
    %cst_169 = arith.constant dense<0.000000e+00> : vector<8x32xf32>
    %509 = tpu.matmul %507, %508, %cst_169 {dimension_numbers = #tpu.dot_dimension_numbers<[1], [0], [0], [1], [0, 0, 1, 1], [], []>} : vector<8x16xf32>, vector<16x32xf32>, vector<8x32xf32> -> vector<8x32xf32>
    %510 = arith.addf %490, %509 : vector<8x32xf32>
    %c136 = arith.constant 136 : index
    %c0_170 = arith.constant 0 : index
    %511 = vector.load %arg3[%c136, %c0_170] : memref<320x128xf32, #tpu.memory_space<vmem>>, vector<1x32xf32>
    %512 = vector.broadcast %511 : vector<1x32xf32> to vector<8x32xf32>
    %513 = arith.addf %510, %512 : vector<8x32xf32>
    %514 = arith.addf %421, %513 : vector<8x32xf32>
    %c144_171 = arith.constant 144 : index
    %c0_172 = arith.constant 0 : index
    %515 = vector.load %arg3[%c144_171, %c0_172] : memref<320x128xf32, #tpu.memory_space<vmem>>, vector<1x32xf32>
    %c152 = arith.constant 152 : index
    %c0_173 = arith.constant 0 : index
    %516 = vector.load %arg3[%c152, %c0_173] : memref<320x128xf32, #tpu.memory_space<vmem>>, vector<1x32xf32>
    %cst_174 = arith.constant dense<0.000000e+00> : vector<8xf32>
    %517 = vector.multi_reduction <add>, %514, %cst_174 [1] : vector<8x32xf32> to vector<8xf32>
    %518 = vector.shape_cast %517 : vector<8xf32> to vector<8x1xf32>
    %cst_175 = arith.constant 3.200000e+01 : f32
    %519 = vector.broadcast %cst_175 : f32 to vector<8x1xf32>
    %520 = arith.divf %518, %519 : vector<8x1xf32>
    %521 = vector.broadcast %520 : vector<8x1xf32> to vector<8x32xf32>
    %522 = arith.subf %514, %521 : vector<8x32xf32>
    %523 = arith.mulf %522, %522 : vector<8x32xf32>
    %cst_176 = arith.constant dense<0.000000e+00> : vector<8xf32>
    %524 = vector.multi_reduction <add>, %523, %cst_176 [1] : vector<8x32xf32> to vector<8xf32>
    %525 = vector.shape_cast %524 : vector<8xf32> to vector<8x1xf32>
    %cst_177 = arith.constant 3.200000e+01 : f32
    %526 = vector.broadcast %cst_177 : f32 to vector<8x1xf32>
    %527 = arith.divf %525, %526 : vector<8x1xf32>
    %528 = vector.broadcast %520 : vector<8x1xf32> to vector<8x32xf32>
    %529 = arith.subf %514, %528 : vector<8x32xf32>
    %cst_178 = arith.constant 9.99999974E-6 : f32
    %530 = vector.broadcast %cst_178 : f32 to vector<8x1xf32>
    %531 = arith.addf %527, %530 : vector<8x1xf32>
    %532 = math.rsqrt %531 : vector<8x1xf32>
    %533 = vector.broadcast %532 : vector<8x1xf32> to vector<8x32xf32>
    %534 = arith.mulf %529, %533 : vector<8x32xf32>
    %535 = vector.broadcast %515 : vector<1x32xf32> to vector<8x32xf32>
    %536 = arith.mulf %534, %535 : vector<8x32xf32>
    %537 = vector.broadcast %516 : vector<1x32xf32> to vector<8x32xf32>
    %538 = arith.addf %536, %537 : vector<8x32xf32>
    %c528 = arith.constant 528 : index
    %c0_179 = arith.constant 0 : index
    %539 = vector.load %arg2[%c528, %c0_179] : memref<1064x32xf32, #tpu.memory_space<vmem>>, vector<64x32xf32>
    %cst_180 = arith.constant dense<0.000000e+00> : vector<8x64xf32>
    %540 = tpu.matmul %538, %539, %cst_180 {dimension_numbers = #tpu.dot_dimension_numbers<[1], [1], [0], [0], [0, 0, 1, 0], [], []>} : vector<8x32xf32>, vector<64x32xf32>, vector<8x64xf32> -> vector<8x64xf32>
    %c160 = arith.constant 160 : index
    %c0_181 = arith.constant 0 : index
    %541 = vector.load %arg3[%c160, %c0_181] : memref<320x128xf32, #tpu.memory_space<vmem>>, vector<1x64xf32>
    %542 = vector.broadcast %541 : vector<1x64xf32> to vector<8x64xf32>
    %543 = arith.addf %540, %542 : vector<8x64xf32>
    %544 = arith.mulf %543, %543 : vector<8x64xf32>
    %545 = arith.mulf %543, %544 : vector<8x64xf32>
    %cst_182 = arith.constant 4.471500e-02 : f32
    %546 = vector.broadcast %cst_182 : f32 to vector<8x64xf32>
    %547 = arith.mulf %546, %545 : vector<8x64xf32>
    %548 = arith.addf %543, %547 : vector<8x64xf32>
    %cst_183 = arith.constant 0.797884583 : f32
    %549 = vector.broadcast %cst_183 : f32 to vector<8x64xf32>
    %550 = arith.mulf %549, %548 : vector<8x64xf32>
    %551 = math.tanh %550 : vector<8x64xf32>
    %cst_184 = arith.constant 1.000000e+00 : f32
    %552 = vector.broadcast %cst_184 : f32 to vector<8x64xf32>
    %553 = arith.addf %552, %551 : vector<8x64xf32>
    %cst_185 = arith.constant 5.000000e-01 : f32
    %554 = vector.broadcast %cst_185 : f32 to vector<8x64xf32>
    %555 = arith.mulf %554, %553 : vector<8x64xf32>
    %556 = arith.mulf %543, %555 : vector<8x64xf32>
    %c592 = arith.constant 592 : index
    %c0_186 = arith.constant 0 : index
    %557 = vector.load %arg2[%c592, %c0_186] : memref<1064x32xf32, #tpu.memory_space<vmem>>, vector<64x32xf32>
    %cst_187 = arith.constant dense<0.000000e+00> : vector<8x32xf32>
    %558 = tpu.matmul %556, %557, %cst_187 {dimension_numbers = #tpu.dot_dimension_numbers<[1], [0], [0], [1], [0, 0, 1, 1], [], []>} : vector<8x64xf32>, vector<64x32xf32>, vector<8x32xf32> -> vector<8x32xf32>
    %c168 = arith.constant 168 : index
    %c0_188 = arith.constant 0 : index
    %559 = vector.load %arg3[%c168, %c0_188] : memref<320x128xf32, #tpu.memory_space<vmem>>, vector<1x32xf32>
    %560 = vector.broadcast %559 : vector<1x32xf32> to vector<8x32xf32>
    %561 = arith.addf %558, %560 : vector<8x32xf32>
    %562 = arith.addf %538, %561 : vector<8x32xf32>
    %c176 = arith.constant 176 : index
    %c0_189 = arith.constant 0 : index
    %563 = vector.load %arg3[%c176, %c0_189] : memref<320x128xf32, #tpu.memory_space<vmem>>, vector<1x32xf32>
    %c184 = arith.constant 184 : index
    %c0_190 = arith.constant 0 : index
    %564 = vector.load %arg3[%c184, %c0_190] : memref<320x128xf32, #tpu.memory_space<vmem>>, vector<1x32xf32>
    %cst_191 = arith.constant dense<0.000000e+00> : vector<8xf32>
    %565 = vector.multi_reduction <add>, %562, %cst_191 [1] : vector<8x32xf32> to vector<8xf32>
    %566 = vector.shape_cast %565 : vector<8xf32> to vector<8x1xf32>
    %cst_192 = arith.constant 3.200000e+01 : f32
    %567 = vector.broadcast %cst_192 : f32 to vector<8x1xf32>
    %568 = arith.divf %566, %567 : vector<8x1xf32>
    %569 = vector.broadcast %568 : vector<8x1xf32> to vector<8x32xf32>
    %570 = arith.subf %562, %569 : vector<8x32xf32>
    %571 = arith.mulf %570, %570 : vector<8x32xf32>
    %cst_193 = arith.constant dense<0.000000e+00> : vector<8xf32>
    %572 = vector.multi_reduction <add>, %571, %cst_193 [1] : vector<8x32xf32> to vector<8xf32>
    %573 = vector.shape_cast %572 : vector<8xf32> to vector<8x1xf32>
    %cst_194 = arith.constant 3.200000e+01 : f32
    %574 = vector.broadcast %cst_194 : f32 to vector<8x1xf32>
    %575 = arith.divf %573, %574 : vector<8x1xf32>
    %576 = vector.broadcast %568 : vector<8x1xf32> to vector<8x32xf32>
    %577 = arith.subf %562, %576 : vector<8x32xf32>
    %cst_195 = arith.constant 9.99999974E-6 : f32
    %578 = vector.broadcast %cst_195 : f32 to vector<8x1xf32>
    %579 = arith.addf %575, %578 : vector<8x1xf32>
    %580 = math.rsqrt %579 : vector<8x1xf32>
    %581 = vector.broadcast %580 : vector<8x1xf32> to vector<8x32xf32>
    %582 = arith.mulf %577, %581 : vector<8x32xf32>
    %583 = vector.broadcast %563 : vector<1x32xf32> to vector<8x32xf32>
    %584 = arith.mulf %582, %583 : vector<8x32xf32>
    %585 = vector.broadcast %564 : vector<1x32xf32> to vector<8x32xf32>
    %586 = arith.addf %584, %585 : vector<8x32xf32>
    %c656 = arith.constant 656 : index
    %c0_196 = arith.constant 0 : index
    %587 = vector.load %arg2[%c656, %c0_196] : memref<1064x32xf32, #tpu.memory_space<vmem>>, vector<4x32xf32>
    %cst_197 = arith.constant dense<0.000000e+00> : vector<8x4xf32>
    %588 = tpu.matmul %586, %587, %cst_197 {dimension_numbers = #tpu.dot_dimension_numbers<[1], [1], [0], [0], [0, 0, 1, 0], [], []>} : vector<8x32xf32>, vector<4x32xf32>, vector<8x4xf32> -> vector<8x4xf32>
    %c192 = arith.constant 192 : index
    %c0_198 = arith.constant 0 : index
    %589 = vector.load %arg3[%c192, %c0_198] : memref<320x128xf32, #tpu.memory_space<vmem>>, vector<1x4xf32>
    %590 = vector.broadcast %589 : vector<1x4xf32> to vector<8x4xf32>
    %591 = arith.addf %588, %590 : vector<8x4xf32>
    %592 = arith.addf %308, %591 : vector<8x4xf32>
    %c664 = arith.constant 664 : index
    %c0_199 = arith.constant 0 : index
    %593 = vector.load %arg2[%c664, %c0_199] : memref<1064x32xf32, #tpu.memory_space<vmem>>, vector<96x32xf32>
    %cst_200 = arith.constant dense<0.000000e+00> : vector<8x96xf32>
    %594 = tpu.matmul %586, %593, %cst_200 {dimension_numbers = #tpu.dot_dimension_numbers<[1], [1], [0], [0], [0, 0, 1, 0], [], []>} : vector<8x32xf32>, vector<96x32xf32>, vector<8x96xf32> -> vector<8x96xf32>
    %c200 = arith.constant 200 : index
    %c0_201 = arith.constant 0 : index
    %595 = vector.load %arg3[%c200, %c0_201] : memref<320x128xf32, #tpu.memory_space<vmem>>, vector<1x96xf32>
    %596 = vector.broadcast %595 : vector<1x96xf32> to vector<8x96xf32>
    %597 = arith.addf %594, %596 : vector<8x96xf32>
    %598 = vector.extract_strided_slice %597 {offsets = [0, 0], sizes = [8, 32], strides = [1, 1]} : vector<8x96xf32> to vector<8x32xf32>
    %599 = vector.extract_strided_slice %597 {offsets = [0, 32], sizes = [8, 32], strides = [1, 1]} : vector<8x96xf32> to vector<8x32xf32>
    %600 = vector.extract_strided_slice %597 {offsets = [0, 64], sizes = [8, 32], strides = [1, 1]} : vector<8x96xf32> to vector<8x32xf32>
    %c760 = arith.constant 760 : index
    %c0_202 = arith.constant 0 : index
    %601 = vector.load %arg2[%c760, %c0_202] : memref<1064x32xf32, #tpu.memory_space<vmem>>, vector<32x32xf32>
    %602 = tpu.iota {dimensions = array<i32: 0>} : vector<8x8xi32>
    %c4_i32_203 = arith.constant 4 : i32
    %c0_i32_204 = arith.constant 0 : i32
    %603 = arith.cmpi eq, %c4_i32_203, %c0_i32_204 : i32
    %c1_i32_205 = arith.constant 1 : i32
    %604 = arith.select %603, %c1_i32_205, %c4_i32_203 : i32
    %605 = vector.broadcast %604 : i32 to vector<8x8xi32>
    %606 = arith.remsi %602, %605 : vector<8x8xi32>
    %c0_i32_206 = arith.constant 0 : i32
    %607 = vector.broadcast %c0_i32_206 : i32 to vector<8x8xi32>
    %608 = arith.cmpi ne, %606, %607 : vector<8x8xi32>
    %c0_i32_207 = arith.constant 0 : i32
    %609 = vector.broadcast %c0_i32_207 : i32 to vector<8x8xi32>
    %610 = arith.cmpi slt, %606, %609 : vector<8x8xi32>
    %c0_i32_208 = arith.constant 0 : i32
    %611 = arith.cmpi slt, %604, %c0_i32_208 : i32
    %612 = vector.broadcast %611 : i1 to vector<8x8xi1>
    %613 = vector.broadcast %612 : vector<8x8xi1> to vector<8x8xi1>
    %614 = arith.xori %610, %613 : vector<8x8xi1>
    %615 = arith.andi %614, %608 : vector<8x8xi1>
    %616 = vector.broadcast %604 : i32 to vector<8x8xi32>
    %617 = arith.addi %606, %616 : vector<8x8xi32>
    %618 = arith.select %615, %617, %606 : vector<8x8xi1>, vector<8x8xi32>
    %619 = tpu.iota {dimensions = array<i32: 1>} : vector<8x8xi32>
    %c4_i32_209 = arith.constant 4 : i32
    %c0_i32_210 = arith.constant 0 : i32
    %620 = arith.cmpi eq, %c4_i32_209, %c0_i32_210 : i32
    %c1_i32_211 = arith.constant 1 : i32
    %621 = arith.select %620, %c1_i32_211, %c4_i32_209 : i32
    %622 = vector.broadcast %621 : i32 to vector<8x8xi32>
    %623 = arith.remsi %619, %622 : vector<8x8xi32>
    %c0_i32_212 = arith.constant 0 : i32
    %624 = vector.broadcast %c0_i32_212 : i32 to vector<8x8xi32>
    %625 = arith.cmpi ne, %623, %624 : vector<8x8xi32>
    %c0_i32_213 = arith.constant 0 : i32
    %626 = vector.broadcast %c0_i32_213 : i32 to vector<8x8xi32>
    %627 = arith.cmpi slt, %623, %626 : vector<8x8xi32>
    %c0_i32_214 = arith.constant 0 : i32
    %628 = arith.cmpi slt, %621, %c0_i32_214 : i32
    %629 = vector.broadcast %628 : i1 to vector<8x8xi1>
    %630 = vector.broadcast %629 : vector<8x8xi1> to vector<8x8xi1>
    %631 = arith.xori %627, %630 : vector<8x8xi1>
    %632 = arith.andi %631, %625 : vector<8x8xi1>
    %633 = vector.broadcast %621 : i32 to vector<8x8xi32>
    %634 = arith.addi %623, %633 : vector<8x8xi32>
    %635 = arith.select %632, %634, %623 : vector<8x8xi1>, vector<8x8xi32>
    %636 = arith.cmpi eq, %618, %635 : vector<8x8xi32>
    %cst_215 = arith.constant 0.000000e+00 : f32
    %637 = vector.broadcast %cst_215 : f32 to vector<8x32xf32>
    %638 = vector.extract_strided_slice %598 {offsets = [0, 0], sizes = [8, 16], strides = [1, 1]} : vector<8x32xf32> to vector<8x16xf32>
    %639 = vector.extract_strided_slice %599 {offsets = [0, 0], sizes = [8, 16], strides = [1, 1]} : vector<8x32xf32> to vector<8x16xf32>
    %cst_216 = arith.constant dense<0.000000e+00> : vector<8x8xf32>
    %640 = tpu.matmul %638, %639, %cst_216 {dimension_numbers = #tpu.dot_dimension_numbers<[1], [1], [0], [0], [0, 0, 1, 0], [], []>} : vector<8x16xf32>, vector<8x16xf32>, vector<8x8xf32> -> vector<8x8xf32>
    %cst_217 = arith.constant -1.000000e+30 : f32
    %641 = vector.broadcast %cst_217 : f32 to vector<8x8xf32>
    %642 = arith.select %636, %640, %641 : vector<8x8xi1>, vector<8x8xf32>
    %cst_218 = arith.constant dense<0xFF800000> : vector<8xf32>
    %643 = vector.multi_reduction <maximumf>, %642, %cst_218 [1] : vector<8x8xf32> to vector<8xf32>
    %644 = vector.shape_cast %643 : vector<8xf32> to vector<8x1xf32>
    %645 = vector.broadcast %644 : vector<8x1xf32> to vector<8x8xf32>
    %646 = arith.subf %642, %645 : vector<8x8xf32>
    %647 = math.exp %646 : vector<8x8xf32>
    %cst_219 = arith.constant dense<0.000000e+00> : vector<8xf32>
    %648 = vector.multi_reduction <add>, %647, %cst_219 [1] : vector<8x8xf32> to vector<8xf32>
    %649 = vector.shape_cast %648 : vector<8xf32> to vector<8x1xf32>
    %650 = tpu.reciprocal %649 {approx = true} : vector<8x1xf32> -> vector<8x1xf32>
    %651 = vector.broadcast %650 : vector<8x1xf32> to vector<8x8xf32>
    %652 = arith.mulf %647, %651 : vector<8x8xf32>
    %653 = vector.extract_strided_slice %600 {offsets = [0, 0], sizes = [8, 16], strides = [1, 1]} : vector<8x32xf32> to vector<8x16xf32>
    %cst_220 = arith.constant dense<0.000000e+00> : vector<8x16xf32>
    %654 = tpu.matmul %652, %653, %cst_220 {dimension_numbers = #tpu.dot_dimension_numbers<[1], [0], [0], [1], [0, 0, 1, 1], [], []>} : vector<8x8xf32>, vector<8x16xf32>, vector<8x16xf32> -> vector<8x16xf32>
    %655 = vector.extract_strided_slice %601 {offsets = [0, 0], sizes = [16, 32], strides = [1, 1]} : vector<32x32xf32> to vector<16x32xf32>
    %cst_221 = arith.constant dense<0.000000e+00> : vector<8x32xf32>
    %656 = tpu.matmul %654, %655, %cst_221 {dimension_numbers = #tpu.dot_dimension_numbers<[1], [0], [0], [1], [0, 0, 1, 1], [], []>} : vector<8x16xf32>, vector<16x32xf32>, vector<8x32xf32> -> vector<8x32xf32>
    %657 = arith.addf %637, %656 : vector<8x32xf32>
    %658 = vector.extract_strided_slice %598 {offsets = [0, 16], sizes = [8, 16], strides = [1, 1]} : vector<8x32xf32> to vector<8x16xf32>
    %659 = vector.extract_strided_slice %599 {offsets = [0, 16], sizes = [8, 16], strides = [1, 1]} : vector<8x32xf32> to vector<8x16xf32>
    %cst_222 = arith.constant dense<0.000000e+00> : vector<8x8xf32>
    %660 = tpu.matmul %658, %659, %cst_222 {dimension_numbers = #tpu.dot_dimension_numbers<[1], [1], [0], [0], [0, 0, 1, 0], [], []>} : vector<8x16xf32>, vector<8x16xf32>, vector<8x8xf32> -> vector<8x8xf32>
    %cst_223 = arith.constant -1.000000e+30 : f32
    %661 = vector.broadcast %cst_223 : f32 to vector<8x8xf32>
    %662 = arith.select %636, %660, %661 : vector<8x8xi1>, vector<8x8xf32>
    %cst_224 = arith.constant dense<0xFF800000> : vector<8xf32>
    %663 = vector.multi_reduction <maximumf>, %662, %cst_224 [1] : vector<8x8xf32> to vector<8xf32>
    %664 = vector.shape_cast %663 : vector<8xf32> to vector<8x1xf32>
    %665 = vector.broadcast %664 : vector<8x1xf32> to vector<8x8xf32>
    %666 = arith.subf %662, %665 : vector<8x8xf32>
    %667 = math.exp %666 : vector<8x8xf32>
    %cst_225 = arith.constant dense<0.000000e+00> : vector<8xf32>
    %668 = vector.multi_reduction <add>, %667, %cst_225 [1] : vector<8x8xf32> to vector<8xf32>
    %669 = vector.shape_cast %668 : vector<8xf32> to vector<8x1xf32>
    %670 = tpu.reciprocal %669 {approx = true} : vector<8x1xf32> -> vector<8x1xf32>
    %671 = vector.broadcast %670 : vector<8x1xf32> to vector<8x8xf32>
    %672 = arith.mulf %667, %671 : vector<8x8xf32>
    %673 = vector.extract_strided_slice %600 {offsets = [0, 16], sizes = [8, 16], strides = [1, 1]} : vector<8x32xf32> to vector<8x16xf32>
    %cst_226 = arith.constant dense<0.000000e+00> : vector<8x16xf32>
    %674 = tpu.matmul %672, %673, %cst_226 {dimension_numbers = #tpu.dot_dimension_numbers<[1], [0], [0], [1], [0, 0, 1, 1], [], []>} : vector<8x8xf32>, vector<8x16xf32>, vector<8x16xf32> -> vector<8x16xf32>
    %675 = vector.extract_strided_slice %601 {offsets = [16, 0], sizes = [16, 32], strides = [1, 1]} : vector<32x32xf32> to vector<16x32xf32>
    %cst_227 = arith.constant dense<0.000000e+00> : vector<8x32xf32>
    %676 = tpu.matmul %674, %675, %cst_227 {dimension_numbers = #tpu.dot_dimension_numbers<[1], [0], [0], [1], [0, 0, 1, 1], [], []>} : vector<8x16xf32>, vector<16x32xf32>, vector<8x32xf32> -> vector<8x32xf32>
    %677 = arith.addf %657, %676 : vector<8x32xf32>
    %c208_228 = arith.constant 208 : index
    %c0_229 = arith.constant 0 : index
    %678 = vector.load %arg3[%c208_228, %c0_229] : memref<320x128xf32, #tpu.memory_space<vmem>>, vector<1x32xf32>
    %679 = vector.broadcast %678 : vector<1x32xf32> to vector<8x32xf32>
    %680 = arith.addf %677, %679 : vector<8x32xf32>
    %681 = arith.addf %586, %680 : vector<8x32xf32>
    %c216 = arith.constant 216 : index
    %c0_230 = arith.constant 0 : index
    %682 = vector.load %arg3[%c216, %c0_230] : memref<320x128xf32, #tpu.memory_space<vmem>>, vector<1x32xf32>
    %c224 = arith.constant 224 : index
    %c0_231 = arith.constant 0 : index
    %683 = vector.load %arg3[%c224, %c0_231] : memref<320x128xf32, #tpu.memory_space<vmem>>, vector<1x32xf32>
    %cst_232 = arith.constant dense<0.000000e+00> : vector<8xf32>
    %684 = vector.multi_reduction <add>, %681, %cst_232 [1] : vector<8x32xf32> to vector<8xf32>
    %685 = vector.shape_cast %684 : vector<8xf32> to vector<8x1xf32>
    %cst_233 = arith.constant 3.200000e+01 : f32
    %686 = vector.broadcast %cst_233 : f32 to vector<8x1xf32>
    %687 = arith.divf %685, %686 : vector<8x1xf32>
    %688 = vector.broadcast %687 : vector<8x1xf32> to vector<8x32xf32>
    %689 = arith.subf %681, %688 : vector<8x32xf32>
    %690 = arith.mulf %689, %689 : vector<8x32xf32>
    %cst_234 = arith.constant dense<0.000000e+00> : vector<8xf32>
    %691 = vector.multi_reduction <add>, %690, %cst_234 [1] : vector<8x32xf32> to vector<8xf32>
    %692 = vector.shape_cast %691 : vector<8xf32> to vector<8x1xf32>
    %cst_235 = arith.constant 3.200000e+01 : f32
    %693 = vector.broadcast %cst_235 : f32 to vector<8x1xf32>
    %694 = arith.divf %692, %693 : vector<8x1xf32>
    %695 = vector.broadcast %687 : vector<8x1xf32> to vector<8x32xf32>
    %696 = arith.subf %681, %695 : vector<8x32xf32>
    %cst_236 = arith.constant 9.99999974E-6 : f32
    %697 = vector.broadcast %cst_236 : f32 to vector<8x1xf32>
    %698 = arith.addf %694, %697 : vector<8x1xf32>
    %699 = math.rsqrt %698 : vector<8x1xf32>
    %700 = vector.broadcast %699 : vector<8x1xf32> to vector<8x32xf32>
    %701 = arith.mulf %696, %700 : vector<8x32xf32>
    %702 = vector.broadcast %682 : vector<1x32xf32> to vector<8x32xf32>
    %703 = arith.mulf %701, %702 : vector<8x32xf32>
    %704 = vector.broadcast %683 : vector<1x32xf32> to vector<8x32xf32>
    %705 = arith.addf %703, %704 : vector<8x32xf32>
    %c792 = arith.constant 792 : index
    %c0_237 = arith.constant 0 : index
    %706 = vector.load %arg2[%c792, %c0_237] : memref<1064x32xf32, #tpu.memory_space<vmem>>, vector<32x32xf32>
    %cst_238 = arith.constant dense<0.000000e+00> : vector<8x32xf32>
    %707 = tpu.matmul %705, %706, %cst_238 {dimension_numbers = #tpu.dot_dimension_numbers<[1], [1], [0], [0], [0, 0, 1, 0], [], []>} : vector<8x32xf32>, vector<32x32xf32>, vector<8x32xf32> -> vector<8x32xf32>
    %c232 = arith.constant 232 : index
    %c0_239 = arith.constant 0 : index
    %708 = vector.load %arg3[%c232, %c0_239] : memref<320x128xf32, #tpu.memory_space<vmem>>, vector<1x32xf32>
    %709 = vector.broadcast %708 : vector<1x32xf32> to vector<8x32xf32>
    %710 = arith.addf %707, %709 : vector<8x32xf32>
    %c824 = arith.constant 824 : index
    %c0_240 = arith.constant 0 : index
    %711 = vector.load %arg2[%c824, %c0_240] : memref<1064x32xf32, #tpu.memory_space<vmem>>, vector<64x32xf32>
    %cst_241 = arith.constant dense<0.000000e+00> : vector<16x64xf32>
    %712 = tpu.matmul %306, %711, %cst_241 {dimension_numbers = #tpu.dot_dimension_numbers<[1], [1], [0], [0], [0, 0, 1, 0], [], []>} : vector<16x32xf32>, vector<64x32xf32>, vector<16x64xf32> -> vector<16x64xf32>
    %c240 = arith.constant 240 : index
    %c0_242 = arith.constant 0 : index
    %713 = vector.load %arg3[%c240, %c0_242] : memref<320x128xf32, #tpu.memory_space<vmem>>, vector<1x64xf32>
    %714 = vector.broadcast %713 : vector<1x64xf32> to vector<16x64xf32>
    %715 = arith.addf %712, %714 : vector<16x64xf32>
    %716 = vector.extract_strided_slice %715 {offsets = [0, 0], sizes = [16, 32], strides = [1, 1]} : vector<16x64xf32> to vector<16x32xf32>
    %717 = vector.extract_strided_slice %715 {offsets = [0, 32], sizes = [16, 32], strides = [1, 1]} : vector<16x64xf32> to vector<16x32xf32>
    %c888 = arith.constant 888 : index
    %c0_243 = arith.constant 0 : index
    %718 = vector.load %arg2[%c888, %c0_243] : memref<1064x32xf32, #tpu.memory_space<vmem>>, vector<32x32xf32>
    %719 = tpu.iota {dimensions = array<i32: 0>} : vector<8x16xi32>
    %c4_i32_244 = arith.constant 4 : i32
    %c0_i32_245 = arith.constant 0 : i32
    %720 = arith.cmpi eq, %c4_i32_244, %c0_i32_245 : i32
    %c1_i32_246 = arith.constant 1 : i32
    %721 = arith.select %720, %c1_i32_246, %c4_i32_244 : i32
    %722 = vector.broadcast %721 : i32 to vector<8x16xi32>
    %723 = arith.remsi %719, %722 : vector<8x16xi32>
    %c0_i32_247 = arith.constant 0 : i32
    %724 = vector.broadcast %c0_i32_247 : i32 to vector<8x16xi32>
    %725 = arith.cmpi ne, %723, %724 : vector<8x16xi32>
    %c0_i32_248 = arith.constant 0 : i32
    %726 = vector.broadcast %c0_i32_248 : i32 to vector<8x16xi32>
    %727 = arith.cmpi slt, %723, %726 : vector<8x16xi32>
    %c0_i32_249 = arith.constant 0 : i32
    %728 = arith.cmpi slt, %721, %c0_i32_249 : i32
    %729 = vector.broadcast %728 : i1 to vector<8x16xi1>
    %730 = vector.broadcast %729 : vector<8x16xi1> to vector<8x16xi1>
    %731 = arith.xori %727, %730 : vector<8x16xi1>
    %732 = arith.andi %731, %725 : vector<8x16xi1>
    %733 = vector.broadcast %721 : i32 to vector<8x16xi32>
    %734 = arith.addi %723, %733 : vector<8x16xi32>
    %735 = arith.select %732, %734, %723 : vector<8x16xi1>, vector<8x16xi32>
    %736 = tpu.iota {dimensions = array<i32: 1>} : vector<8x16xi32>
    %c4_i32_250 = arith.constant 4 : i32
    %c0_i32_251 = arith.constant 0 : i32
    %737 = arith.cmpi eq, %c4_i32_250, %c0_i32_251 : i32
    %c1_i32_252 = arith.constant 1 : i32
    %738 = arith.select %737, %c1_i32_252, %c4_i32_250 : i32
    %739 = vector.broadcast %738 : i32 to vector<8x16xi32>
    %740 = arith.remsi %736, %739 : vector<8x16xi32>
    %c0_i32_253 = arith.constant 0 : i32
    %741 = vector.broadcast %c0_i32_253 : i32 to vector<8x16xi32>
    %742 = arith.cmpi ne, %740, %741 : vector<8x16xi32>
    %c0_i32_254 = arith.constant 0 : i32
    %743 = vector.broadcast %c0_i32_254 : i32 to vector<8x16xi32>
    %744 = arith.cmpi slt, %740, %743 : vector<8x16xi32>
    %c0_i32_255 = arith.constant 0 : i32
    %745 = arith.cmpi slt, %738, %c0_i32_255 : i32
    %746 = vector.broadcast %745 : i1 to vector<8x16xi1>
    %747 = vector.broadcast %746 : vector<8x16xi1> to vector<8x16xi1>
    %748 = arith.xori %744, %747 : vector<8x16xi1>
    %749 = arith.andi %748, %742 : vector<8x16xi1>
    %750 = vector.broadcast %738 : i32 to vector<8x16xi32>
    %751 = arith.addi %740, %750 : vector<8x16xi32>
    %752 = arith.select %749, %751, %740 : vector<8x16xi1>, vector<8x16xi32>
    %753 = arith.cmpi eq, %735, %752 : vector<8x16xi32>
    %cst_256 = arith.constant 0.000000e+00 : f32
    %754 = vector.broadcast %cst_256 : f32 to vector<8x32xf32>
    %755 = vector.extract_strided_slice %710 {offsets = [0, 0], sizes = [8, 16], strides = [1, 1]} : vector<8x32xf32> to vector<8x16xf32>
    %756 = vector.extract_strided_slice %716 {offsets = [0, 0], sizes = [16, 16], strides = [1, 1]} : vector<16x32xf32> to vector<16x16xf32>
    %cst_257 = arith.constant dense<0.000000e+00> : vector<8x16xf32>
    %757 = tpu.matmul %755, %756, %cst_257 {dimension_numbers = #tpu.dot_dimension_numbers<[1], [1], [0], [0], [0, 0, 1, 0], [], []>} : vector<8x16xf32>, vector<16x16xf32>, vector<8x16xf32> -> vector<8x16xf32>
    %cst_258 = arith.constant -1.000000e+30 : f32
    %758 = vector.broadcast %cst_258 : f32 to vector<8x16xf32>
    %759 = arith.select %753, %757, %758 : vector<8x16xi1>, vector<8x16xf32>
    %cst_259 = arith.constant dense<0xFF800000> : vector<8xf32>
    %760 = vector.multi_reduction <maximumf>, %759, %cst_259 [1] : vector<8x16xf32> to vector<8xf32>
    %761 = vector.shape_cast %760 : vector<8xf32> to vector<8x1xf32>
    %762 = vector.broadcast %761 : vector<8x1xf32> to vector<8x16xf32>
    %763 = arith.subf %759, %762 : vector<8x16xf32>
    %764 = math.exp %763 : vector<8x16xf32>
    %cst_260 = arith.constant dense<0.000000e+00> : vector<8xf32>
    %765 = vector.multi_reduction <add>, %764, %cst_260 [1] : vector<8x16xf32> to vector<8xf32>
    %766 = vector.shape_cast %765 : vector<8xf32> to vector<8x1xf32>
    %767 = tpu.reciprocal %766 {approx = true} : vector<8x1xf32> -> vector<8x1xf32>
    %768 = vector.broadcast %767 : vector<8x1xf32> to vector<8x16xf32>
    %769 = arith.mulf %764, %768 : vector<8x16xf32>
    %770 = vector.extract_strided_slice %717 {offsets = [0, 0], sizes = [16, 16], strides = [1, 1]} : vector<16x32xf32> to vector<16x16xf32>
    %cst_261 = arith.constant dense<0.000000e+00> : vector<8x16xf32>
    %771 = tpu.matmul %769, %770, %cst_261 {dimension_numbers = #tpu.dot_dimension_numbers<[1], [0], [0], [1], [0, 0, 1, 1], [], []>} : vector<8x16xf32>, vector<16x16xf32>, vector<8x16xf32> -> vector<8x16xf32>
    %772 = vector.extract_strided_slice %718 {offsets = [0, 0], sizes = [16, 32], strides = [1, 1]} : vector<32x32xf32> to vector<16x32xf32>
    %cst_262 = arith.constant dense<0.000000e+00> : vector<8x32xf32>
    %773 = tpu.matmul %771, %772, %cst_262 {dimension_numbers = #tpu.dot_dimension_numbers<[1], [0], [0], [1], [0, 0, 1, 1], [], []>} : vector<8x16xf32>, vector<16x32xf32>, vector<8x32xf32> -> vector<8x32xf32>
    %774 = arith.addf %754, %773 : vector<8x32xf32>
    %775 = vector.extract_strided_slice %710 {offsets = [0, 16], sizes = [8, 16], strides = [1, 1]} : vector<8x32xf32> to vector<8x16xf32>
    %776 = vector.extract_strided_slice %716 {offsets = [0, 16], sizes = [16, 16], strides = [1, 1]} : vector<16x32xf32> to vector<16x16xf32>
    %cst_263 = arith.constant dense<0.000000e+00> : vector<8x16xf32>
    %777 = tpu.matmul %775, %776, %cst_263 {dimension_numbers = #tpu.dot_dimension_numbers<[1], [1], [0], [0], [0, 0, 1, 0], [], []>} : vector<8x16xf32>, vector<16x16xf32>, vector<8x16xf32> -> vector<8x16xf32>
    %cst_264 = arith.constant -1.000000e+30 : f32
    %778 = vector.broadcast %cst_264 : f32 to vector<8x16xf32>
    %779 = arith.select %753, %777, %778 : vector<8x16xi1>, vector<8x16xf32>
    %cst_265 = arith.constant dense<0xFF800000> : vector<8xf32>
    %780 = vector.multi_reduction <maximumf>, %779, %cst_265 [1] : vector<8x16xf32> to vector<8xf32>
    %781 = vector.shape_cast %780 : vector<8xf32> to vector<8x1xf32>
    %782 = vector.broadcast %781 : vector<8x1xf32> to vector<8x16xf32>
    %783 = arith.subf %779, %782 : vector<8x16xf32>
    %784 = math.exp %783 : vector<8x16xf32>
    %cst_266 = arith.constant dense<0.000000e+00> : vector<8xf32>
    %785 = vector.multi_reduction <add>, %784, %cst_266 [1] : vector<8x16xf32> to vector<8xf32>
    %786 = vector.shape_cast %785 : vector<8xf32> to vector<8x1xf32>
    %787 = tpu.reciprocal %786 {approx = true} : vector<8x1xf32> -> vector<8x1xf32>
    %788 = vector.broadcast %787 : vector<8x1xf32> to vector<8x16xf32>
    %789 = arith.mulf %784, %788 : vector<8x16xf32>
    %790 = vector.extract_strided_slice %717 {offsets = [0, 16], sizes = [16, 16], strides = [1, 1]} : vector<16x32xf32> to vector<16x16xf32>
    %cst_267 = arith.constant dense<0.000000e+00> : vector<8x16xf32>
    %791 = tpu.matmul %789, %790, %cst_267 {dimension_numbers = #tpu.dot_dimension_numbers<[1], [0], [0], [1], [0, 0, 1, 1], [], []>} : vector<8x16xf32>, vector<16x16xf32>, vector<8x16xf32> -> vector<8x16xf32>
    %792 = vector.extract_strided_slice %718 {offsets = [16, 0], sizes = [16, 32], strides = [1, 1]} : vector<32x32xf32> to vector<16x32xf32>
    %cst_268 = arith.constant dense<0.000000e+00> : vector<8x32xf32>
    %793 = tpu.matmul %791, %792, %cst_268 {dimension_numbers = #tpu.dot_dimension_numbers<[1], [0], [0], [1], [0, 0, 1, 1], [], []>} : vector<8x16xf32>, vector<16x32xf32>, vector<8x32xf32> -> vector<8x32xf32>
    %794 = arith.addf %774, %793 : vector<8x32xf32>
    %c248 = arith.constant 248 : index
    %c0_269 = arith.constant 0 : index
    %795 = vector.load %arg3[%c248, %c0_269] : memref<320x128xf32, #tpu.memory_space<vmem>>, vector<1x32xf32>
    %796 = vector.broadcast %795 : vector<1x32xf32> to vector<8x32xf32>
    %797 = arith.addf %794, %796 : vector<8x32xf32>
    %798 = arith.addf %705, %797 : vector<8x32xf32>
    %c256 = arith.constant 256 : index
    %c0_270 = arith.constant 0 : index
    %799 = vector.load %arg3[%c256, %c0_270] : memref<320x128xf32, #tpu.memory_space<vmem>>, vector<1x32xf32>
    %c264 = arith.constant 264 : index
    %c0_271 = arith.constant 0 : index
    %800 = vector.load %arg3[%c264, %c0_271] : memref<320x128xf32, #tpu.memory_space<vmem>>, vector<1x32xf32>
    %cst_272 = arith.constant dense<0.000000e+00> : vector<8xf32>
    %801 = vector.multi_reduction <add>, %798, %cst_272 [1] : vector<8x32xf32> to vector<8xf32>
    %802 = vector.shape_cast %801 : vector<8xf32> to vector<8x1xf32>
    %cst_273 = arith.constant 3.200000e+01 : f32
    %803 = vector.broadcast %cst_273 : f32 to vector<8x1xf32>
    %804 = arith.divf %802, %803 : vector<8x1xf32>
    %805 = vector.broadcast %804 : vector<8x1xf32> to vector<8x32xf32>
    %806 = arith.subf %798, %805 : vector<8x32xf32>
    %807 = arith.mulf %806, %806 : vector<8x32xf32>
    %cst_274 = arith.constant dense<0.000000e+00> : vector<8xf32>
    %808 = vector.multi_reduction <add>, %807, %cst_274 [1] : vector<8x32xf32> to vector<8xf32>
    %809 = vector.shape_cast %808 : vector<8xf32> to vector<8x1xf32>
    %cst_275 = arith.constant 3.200000e+01 : f32
    %810 = vector.broadcast %cst_275 : f32 to vector<8x1xf32>
    %811 = arith.divf %809, %810 : vector<8x1xf32>
    %812 = vector.broadcast %804 : vector<8x1xf32> to vector<8x32xf32>
    %813 = arith.subf %798, %812 : vector<8x32xf32>
    %cst_276 = arith.constant 9.99999974E-6 : f32
    %814 = vector.broadcast %cst_276 : f32 to vector<8x1xf32>
    %815 = arith.addf %811, %814 : vector<8x1xf32>
    %816 = math.rsqrt %815 : vector<8x1xf32>
    %817 = vector.broadcast %816 : vector<8x1xf32> to vector<8x32xf32>
    %818 = arith.mulf %813, %817 : vector<8x32xf32>
    %819 = vector.broadcast %799 : vector<1x32xf32> to vector<8x32xf32>
    %820 = arith.mulf %818, %819 : vector<8x32xf32>
    %821 = vector.broadcast %800 : vector<1x32xf32> to vector<8x32xf32>
    %822 = arith.addf %820, %821 : vector<8x32xf32>
    %c920 = arith.constant 920 : index
    %c0_277 = arith.constant 0 : index
    %823 = vector.load %arg2[%c920, %c0_277] : memref<1064x32xf32, #tpu.memory_space<vmem>>, vector<64x32xf32>
    %cst_278 = arith.constant dense<0.000000e+00> : vector<8x64xf32>
    %824 = tpu.matmul %822, %823, %cst_278 {dimension_numbers = #tpu.dot_dimension_numbers<[1], [1], [0], [0], [0, 0, 1, 0], [], []>} : vector<8x32xf32>, vector<64x32xf32>, vector<8x64xf32> -> vector<8x64xf32>
    %c272_279 = arith.constant 272 : index
    %c0_280 = arith.constant 0 : index
    %825 = vector.load %arg3[%c272_279, %c0_280] : memref<320x128xf32, #tpu.memory_space<vmem>>, vector<1x64xf32>
    %826 = vector.broadcast %825 : vector<1x64xf32> to vector<8x64xf32>
    %827 = arith.addf %824, %826 : vector<8x64xf32>
    %828 = arith.mulf %827, %827 : vector<8x64xf32>
    %829 = arith.mulf %827, %828 : vector<8x64xf32>
    %cst_281 = arith.constant 4.471500e-02 : f32
    %830 = vector.broadcast %cst_281 : f32 to vector<8x64xf32>
    %831 = arith.mulf %830, %829 : vector<8x64xf32>
    %832 = arith.addf %827, %831 : vector<8x64xf32>
    %cst_282 = arith.constant 0.797884583 : f32
    %833 = vector.broadcast %cst_282 : f32 to vector<8x64xf32>
    %834 = arith.mulf %833, %832 : vector<8x64xf32>
    %835 = math.tanh %834 : vector<8x64xf32>
    %cst_283 = arith.constant 1.000000e+00 : f32
    %836 = vector.broadcast %cst_283 : f32 to vector<8x64xf32>
    %837 = arith.addf %836, %835 : vector<8x64xf32>
    %cst_284 = arith.constant 5.000000e-01 : f32
    %838 = vector.broadcast %cst_284 : f32 to vector<8x64xf32>
    %839 = arith.mulf %838, %837 : vector<8x64xf32>
    %840 = arith.mulf %827, %839 : vector<8x64xf32>
    %c984 = arith.constant 984 : index
    %c0_285 = arith.constant 0 : index
    %841 = vector.load %arg2[%c984, %c0_285] : memref<1064x32xf32, #tpu.memory_space<vmem>>, vector<64x32xf32>
    %cst_286 = arith.constant dense<0.000000e+00> : vector<8x32xf32>
    %842 = tpu.matmul %840, %841, %cst_286 {dimension_numbers = #tpu.dot_dimension_numbers<[1], [0], [0], [1], [0, 0, 1, 1], [], []>} : vector<8x64xf32>, vector<64x32xf32>, vector<8x32xf32> -> vector<8x32xf32>
    %c280 = arith.constant 280 : index
    %c0_287 = arith.constant 0 : index
    %843 = vector.load %arg3[%c280, %c0_287] : memref<320x128xf32, #tpu.memory_space<vmem>>, vector<1x32xf32>
    %844 = vector.broadcast %843 : vector<1x32xf32> to vector<8x32xf32>
    %845 = arith.addf %842, %844 : vector<8x32xf32>
    %846 = arith.addf %822, %845 : vector<8x32xf32>
    %c288 = arith.constant 288 : index
    %c0_288 = arith.constant 0 : index
    %847 = vector.load %arg3[%c288, %c0_288] : memref<320x128xf32, #tpu.memory_space<vmem>>, vector<1x32xf32>
    %c296 = arith.constant 296 : index
    %c0_289 = arith.constant 0 : index
    %848 = vector.load %arg3[%c296, %c0_289] : memref<320x128xf32, #tpu.memory_space<vmem>>, vector<1x32xf32>
    %cst_290 = arith.constant dense<0.000000e+00> : vector<8xf32>
    %849 = vector.multi_reduction <add>, %846, %cst_290 [1] : vector<8x32xf32> to vector<8xf32>
    %850 = vector.shape_cast %849 : vector<8xf32> to vector<8x1xf32>
    %cst_291 = arith.constant 3.200000e+01 : f32
    %851 = vector.broadcast %cst_291 : f32 to vector<8x1xf32>
    %852 = arith.divf %850, %851 : vector<8x1xf32>
    %853 = vector.broadcast %852 : vector<8x1xf32> to vector<8x32xf32>
    %854 = arith.subf %846, %853 : vector<8x32xf32>
    %855 = arith.mulf %854, %854 : vector<8x32xf32>
    %cst_292 = arith.constant dense<0.000000e+00> : vector<8xf32>
    %856 = vector.multi_reduction <add>, %855, %cst_292 [1] : vector<8x32xf32> to vector<8xf32>
    %857 = vector.shape_cast %856 : vector<8xf32> to vector<8x1xf32>
    %cst_293 = arith.constant 3.200000e+01 : f32
    %858 = vector.broadcast %cst_293 : f32 to vector<8x1xf32>
    %859 = arith.divf %857, %858 : vector<8x1xf32>
    %860 = vector.broadcast %852 : vector<8x1xf32> to vector<8x32xf32>
    %861 = arith.subf %846, %860 : vector<8x32xf32>
    %cst_294 = arith.constant 9.99999974E-6 : f32
    %862 = vector.broadcast %cst_294 : f32 to vector<8x1xf32>
    %863 = arith.addf %859, %862 : vector<8x1xf32>
    %864 = math.rsqrt %863 : vector<8x1xf32>
    %865 = vector.broadcast %864 : vector<8x1xf32> to vector<8x32xf32>
    %866 = arith.mulf %861, %865 : vector<8x32xf32>
    %867 = vector.broadcast %847 : vector<1x32xf32> to vector<8x32xf32>
    %868 = arith.mulf %866, %867 : vector<8x32xf32>
    %869 = vector.broadcast %848 : vector<1x32xf32> to vector<8x32xf32>
    %870 = arith.addf %868, %869 : vector<8x32xf32>
    %c1048 = arith.constant 1048 : index
    %c0_295 = arith.constant 0 : index
    %871 = vector.load %arg2[%c1048, %c0_295] : memref<1064x32xf32, #tpu.memory_space<vmem>>, vector<4x32xf32>
    %cst_296 = arith.constant dense<0.000000e+00> : vector<8x4xf32>
    %872 = tpu.matmul %870, %871, %cst_296 {dimension_numbers = #tpu.dot_dimension_numbers<[1], [1], [0], [0], [0, 0, 1, 0], [], []>} : vector<8x32xf32>, vector<4x32xf32>, vector<8x4xf32> -> vector<8x4xf32>
    %c304 = arith.constant 304 : index
    %c0_297 = arith.constant 0 : index
    %873 = vector.load %arg3[%c304, %c0_297] : memref<320x128xf32, #tpu.memory_space<vmem>>, vector<1x4xf32>
    %874 = vector.broadcast %873 : vector<1x4xf32> to vector<8x4xf32>
    %875 = arith.addf %872, %874 : vector<8x4xf32>
    %876 = arith.addf %592, %875 : vector<8x4xf32>
    %c312 = arith.constant 312 : index
    %c0_298 = arith.constant 0 : index
    %877 = vector.load %arg3[%c312, %c0_298] : memref<320x128xf32, #tpu.memory_space<vmem>>, vector<1x8xf32>
    %878 = vector.extract_strided_slice %876 {offsets = [0, 0], sizes = [4, 4], strides = [1, 1]} : vector<8x4xf32> to vector<4x4xf32>
    %879 = vector.extract_strided_slice %877 {offsets = [0, 0], sizes = [1, 4], strides = [1, 1]} : vector<1x8xf32> to vector<1x4xf32>
    %880 = vector.broadcast %879 : vector<1x4xf32> to vector<4x4xf32>
    %881 = arith.divf %878, %880 : vector<4x4xf32>
    %882 = vector.broadcast %15 : vector<4x1xf32> to vector<4x4xf32>
    %883 = arith.mulf %881, %882 : vector<4x4xf32>
    %884 = vector.broadcast %5 : vector<4x1xf32> to vector<4x4xf32>
    %885 = arith.addf %883, %884 : vector<4x4xf32>
    %c0_299 = arith.constant 0 : index
    %c0_300 = arith.constant 0 : index
    %c0_301 = arith.constant 0 : index
    %886 = vector.load %arg4[%c0_299, %c0_300, %c0_301] : memref<1x4x8xf32, #tpu.memory_space<vmem>>, vector<1x4x4xf32>
    %887 = vector.shape_cast %886 : vector<1x4x4xf32> to vector<4x4xf32>
    %888 = vector.shape_cast %885 : vector<4x4xf32> to vector<1x4x4xf32>
    tpu.vector_store %arg4[%c0_299, %c0_300, %c0_301], %888 {strides = array<i32>} : memref<1x4x8xf32, #tpu.memory_space<vmem>>, vector<1x4x4xf32>,
    %889 = vector.extract_strided_slice %876 {offsets = [4, 0], sizes = [4, 4], strides = [1, 1]} : vector<8x4xf32> to vector<4x4xf32>
    %890 = vector.extract_strided_slice %877 {offsets = [0, 4], sizes = [1, 4], strides = [1, 1]} : vector<1x8xf32> to vector<1x4xf32>
    %891 = vector.broadcast %890 : vector<1x4xf32> to vector<4x4xf32>
    %892 = arith.divf %889, %891 : vector<4x4xf32>
    %893 = vector.broadcast %15 : vector<4x1xf32> to vector<4x4xf32>
    %894 = arith.mulf %892, %893 : vector<4x4xf32>
    %895 = vector.broadcast %5 : vector<4x1xf32> to vector<4x4xf32>
    %896 = arith.addf %894, %895 : vector<4x4xf32>
    %c0_302 = arith.constant 0 : index
    %c0_303 = arith.constant 0 : index
    %c4_304 = arith.constant 4 : index
    %897 = vector.load %arg4[%c0_302, %c0_303, %c4_304] : memref<1x4x8xf32, #tpu.memory_space<vmem>>, vector<1x4x4xf32>
    %898 = vector.shape_cast %897 : vector<1x4x4xf32> to vector<4x4xf32>
    %899 = vector.shape_cast %896 : vector<4x4xf32> to vector<1x4x4xf32>
    tpu.vector_store %arg4[%c0_302, %c0_303, %c4_304], %899 {strides = array<i32>} : memref<1x4x8xf32, #tpu.memory_space<vmem>>, vector<1x4x4xf32>,
    return
  }
  func.func @transform_0(%arg0: i32) -> (i32, i32, i32) {
    %c0_i32 = arith.constant 0 : i32
    %c0_i32_0 = arith.constant 0 : i32
    %c0_i32_1 = arith.constant 0 : i32
    return %arg0, %c0_i32, %c0_i32_0 : i32, i32, i32
  }
  func.func @transform_1(%arg0: i32) -> (i32, i32) {
    %c0_i32 = arith.constant 0 : i32
    %c0_i32_0 = arith.constant 0 : i32
    %c0_i32_1 = arith.constant 0 : i32
    return %c0_i32, %c0_i32_0 : i32, i32
  }
  func.func @transform_2(%arg0: i32) -> (i32, i32) {
    %c0_i32 = arith.constant 0 : i32
    %c0_i32_0 = arith.constant 0 : i32
    %c0_i32_1 = arith.constant 0 : i32
    return %c0_i32, %c0_i32_0 : i32, i32
  }
  func.func @transform_3(%arg0: i32) -> (i32, i32, i32) {
    %c0_i32 = arith.constant 0 : i32
    %c0_i32_0 = arith.constant 0 : i32
    %c0_i32_1 = arith.constant 0 : i32
    return %arg0, %c0_i32, %c0_i32_0 : i32, i32, i32
  }
}

</mosaic_0001>

<llo_original>
// kernel: crossformer_forward.1
$region0: #{crossformer_forward.1}
  #allocation0 [shape = 'u32[]', space=smem, size = 0x4, offset = 0x4, fixed_abs, tag = 'smem constant byte address 0x4 - core index']
  #allocation1 [shape = 'u32[144,128]{1,0:T(1,128)}', space=vmem, size = 0x12000, scoped, tag = 'internal scratch']
  #allocation2 [shape = 'f32[16,32]{1,0:T(8,128)}', space=vmem, size = 0x2000, scoped, tag = 'scratch operand']
  %s0 = inlined_call_operand.vmem [shape: f32[2,4,16], index: 0, kind: input, shape index: {}]
  %s1 = inlined_call_operand.vmem [shape: f32[1064,32], index: 1, kind: input, shape index: {}]
  %s2 = inlined_call_operand.vmem [shape: f32[320,128], index: 2, kind: input, shape index: {}]
  %s3 = inlined_call_operand.hbm [shape: f32[2,4,8], index: 3, kind: output, shape index: {}]
  %s4 = sld [smem:[#allocation0]]
  $region45: #{crossformer_forward.1} parent=0
    _
  %s6 = ssub.s32 1, %s4
  %s7 = scalar_select 0, %s6, %s4
  $region1: #{crossformer_forward.1} parent=0
    #allocation3 [shape = 'u8[4096]{0}', space=vmem, size = 0x1000, scoped, tag = 'output window, operand 0']
    #allocation4 [shape = 's32[2]{0}', space=sflag, size = 0x8, scoped, tag = 'scoped memory for crossformer_forward.1']
    %8 = vsyncpa [#allocation4], 0
    %s9 = scalar_lea.sflag [#allocation4], 1
    %10 = vsyncpa %s9, 0
    loop: start=0, step=1, limit=4
    $region2: #{crossformer_forward.1} parent=1 // loop_pre_header
      _
    $region3: #{crossformer_forward.1} parent=1 // loop_header
      %s12 = sphi 0, %s16
      %p13 = scmp.ge.s32.totalorder %s12, 4
      %s22 = sphi 0, %s24
      %s25 = sphi 0, %s22
      %s26 = sphi 0, %s25
      %s42 = sphi 0, %s26
      %s46 = sphi 0, %s46
      %s48 = sphi 0, %s46
      %s49 = sphi 0, %s48
      %s63 = sphi 0, %s49
      %s67 = sphi 0, %s67
      %s69 = sphi 0, %s67
      %s70 = sphi 0, %s69
      %s84 = sphi 0, %s70
      %s90 = sphi 0, %s92
      %s93 = sphi 0, %s90
      %s94 = sphi 0, %s93
      %s110 = sphi 0, %s94
    $region4: #{crossformer_forward.1} parent=1 // loop_header_branch
      %15 = sbr.rel (%p13) target = $region8
    $region5: #{crossformer_forward.1} parent=1 // loop_body
      %s17 = ssub.s32 %s12, 1
      %s18 = ssub.s32 %s12, 2
      %s19 = sadd.s32 %s12, 1
      %s20 = ssub.s32 %s12, %s19
      %p21 = scmp.eq.s32.totalorder %s20, 0
      %s23 = sadd.s32 %s22, 1
      %s24 = scalar_select %p21, %s22, %s23
      %p27 = pneg %p21
      %p28 = scmp.eq.s32.totalorder %s12, 1
      %p29 = por %p27, %p28
      %p30 = scmp.ne.s32.totalorder %s22, %s25
      %p31 = scmp.eq.s32.totalorder %s12, 0
      %p32 = por %p30, %p31
      %p33 = scmp.ne.s32.totalorder %s22, %s25
      %p34 = scmp.eq.s32.totalorder %s17, 1
      %p35 = por %p33, %p34
      %p36 = scmp.ne.s32.totalorder %s25, %s26
      %p37 = scmp.eq.s32.totalorder %s17, 0
      %p38 = por %p36, %p37
      %p39 = scmp.ne.s32.totalorder %s25, %s26
      %p40 = scmp.eq.s32.totalorder %s18, 1
      %p41 = por %p39, %p40
      %p43 = scmp.ne.s32.totalorder %s26, %s42
      %p44 = scmp.eq.s32.totalorder %s18, 0
      %p45 = por %p43, %p44
      %s47 = sadd.s32 %s46, 1
      %p50 = scmp.eq.s32.totalorder %s12, 1
      %p51 = scmp.ne.s32.totalorder %s46, %s48
      %p52 = scmp.eq.s32.totalorder %s12, 0
      %p53 = por %p51, %p52
      %p54 = scmp.ne.s32.totalorder %s46, %s48
      %p55 = scmp.eq.s32.totalorder %s17, 1
      %p56 = por %p54, %p55
      %p57 = scmp.ne.s32.totalorder %s48, %s49
      %p58 = scmp.eq.s32.totalorder %s17, 0
      %p59 = por %p57, %p58
      %p60 = scmp.ne.s32.totalorder %s48, %s49
      %p61 = scmp.eq.s32.totalorder %s18, 1
      %p62 = por %p60, %p61
      %p64 = scmp.ne.s32.totalorder %s49, %s63
      %p65 = scmp.eq.s32.totalorder %s18, 0
      %p66 = por %p64, %p65
      %s68 = sadd.s32 %s67, 1
      %p71 = scmp.eq.s32.totalorder %s12, 1
      %p72 = scmp.ne.s32.totalorder %s67, %s69
      %p73 = scmp.eq.s32.totalorder %s12, 0
      %p74 = por %p72, %p73
      %p75 = scmp.ne.s32.totalorder %s67, %s69
      %p76 = scmp.eq.s32.totalorder %s17, 1
      %p77 = por %p75, %p76
      %p78 = scmp.ne.s32.totalorder %s69, %s70
      %p79 = scmp.eq.s32.totalorder %s17, 0
      %p80 = por %p78, %p79
      %p81 = scmp.ne.s32.totalorder %s69, %s70
      %p82 = scmp.eq.s32.totalorder %s18, 1
      %p83 = por %p81, %p82
      %p85 = scmp.ne.s32.totalorder %s70, %s84
      %p86 = scmp.eq.s32.totalorder %s18, 0
      %p87 = por %p85, %p86
      %s88 = ssub.s32 %s12, %s19
      %p89 = scmp.eq.s32.totalorder %s88, 0
      %s91 = sadd.s32 %s90, 1
      %s92 = scalar_select %p89, %s90, %s91
      %p95 = pneg %p89
      %p96 = scmp.eq.s32.totalorder %s12, 1
      %p97 = por %p95, %p96
      %p98 = scmp.ne.s32.totalorder %s90, %s93
      %p99 = scmp.eq.s32.totalorder %s12, 0
      %p100 = por %p98, %p99
      %p101 = scmp.ne.s32.totalorder %s90, %s93
      %p102 = scmp.eq.s32.totalorder %s17, 1
      %p103 = por %p101, %p102
      %p104 = scmp.ne.s32.totalorder %s93, %s94
      %p105 = scmp.eq.s32.totalorder %s17, 0
      %p106 = por %p104, %p105
      %p107 = scmp.ne.s32.totalorder %s93, %s94
      %p108 = scmp.eq.s32.totalorder %s18, 1
      %p109 = por %p107, %p108
      %p111 = scmp.ne.s32.totalorder %s94, %s110
      %p112 = scmp.eq.s32.totalorder %s18, 0
      %p113 = por %p111, %p112
      %p114 = scmp.le.s32.totalorder 1, %s12
      %p115 = scmp.lt.s32.totalorder %s12, 3
      %p116 = pnand %p114, %p115
      %p117 = pneg %p116
      // Predicated region
      $region9: #{crossformer_forward.1} parent=5 // pred_check
        _
      $region10: #{crossformer_forward.1} parent=5 // pred_check_branch
        %119 = sbr.rel (%p116) target = $region12
      $region11: #{crossformer_forward.1} parent=5 // pred_region
        %s120 = ssub.s32 %s12, 1
        // Predicated region
        $region13: #{crossformer_forward.1} parent=11 // pred_check
          %p121 = pneg %p59
        $region14: #{crossformer_forward.1} parent=11 // pred_check_branch
          %123 = sbr.rel (%p121) target = $region16
        $region15: #{crossformer_forward.1} parent=11 // pred_region
          _
        $region16: #{crossformer_forward.1} parent=11 // pred_fallthru
          _
        // Predicated region
        $region17: #{crossformer_forward.1} parent=11 // pred_check
          %p124 = pneg %p80
        $region18: #{crossformer_forward.1} parent=11 // pred_check_branch
          %126 = sbr.rel (%p124) target = $region20
        $region19: #{crossformer_forward.1} parent=11 // pred_region
          _
        $region20: #{crossformer_forward.1} parent=11 // pred_fallthru
          _
      $region12: #{crossformer_forward.1} parent=5 // pred_fallthru
        _
      %p127 = scmp.lt.s32.totalorder %s12, 2
      // Predicated region
      $region21: #{crossformer_forward.1} parent=5 // pred_check
        %p128 = pneg %p127
      $region22: #{crossformer_forward.1} parent=5 // pred_check_branch
        %130 = sbr.rel (%p128) target = $region24
      $region23: #{crossformer_forward.1} parent=5 // pred_region
        // Predicated region
        $region25: #{crossformer_forward.1} parent=23 // pred_check
          %p131 = pneg %p32
        $region26: #{crossformer_forward.1} parent=23 // pred_check_branch
          %133 = sbr.rel (%p131) target = $region28
        $region27: #{crossformer_forward.1} parent=23 // pred_region
          %p134 = scmp.lt.s32.totalorder %s12, 1
          %s135 = scalar_select %p134, %s12, 1
          %s136 = smul.addr %s135, 4
          %s137 = scalar_lea.vmem %s0, %s136
        $region28: #{crossformer_forward.1} parent=23 // pred_fallthru
          _
      $region24: #{crossformer_forward.1} parent=5 // pred_fallthru
        _
      %p138 = scmp.le.s32.totalorder 1, %s12
      %p139 = scmp.lt.s32.totalorder %s12, 3
      %p140 = pnand %p138, %p139
      %p141 = pneg %p140
      // Predicated region
      $region29: #{crossformer_forward.1} parent=5 // pred_check
        _
      $region30: #{crossformer_forward.1} parent=5 // pred_check_branch
        %143 = sbr.rel (%p140) target = $region32
      $region31: #{crossformer_forward.1} parent=5 // pred_region
        %s144 = ssub.s32 %s12, 1
        %p145 = scmp.lt.s32.totalorder %s17, 1
        %s146 = scalar_select %p145, %s17, 1
        %s147 = smul.addr %s146, 4
        %s148 = scalar_lea.vmem %s0, %s147
        %p149 = pneg %p38
        %p150 = pneg %p35
        %p151 = pneg %p59
        %p152 = pneg %p56
        %p153 = pneg %p80
        %p154 = pneg %p77
        %p155 = pneg %p106
        %p156 = pneg %p103
        %s157 = sand.u32 %s93, 1
        %s158 = scalar_lea.sflag [#allocation4], %s157
        %s159 = sand.u32 %s93, 1
        %s160 = smul.addr %s159, 4
        %s161 = scalar_lea.vmem [#allocation3], %s160
        %p162 = scmp.lt.s32.totalorder %s17, 1
        %s163 = scalar_select %p162, %s17, 1
        %s164 = smul.addr %s163, 4
        %s165 = scalar_lea.vmem %s0, %s164
        %v166 = vld [vmem:[%s165] sm:$0xf]
        %vm167 = vcmask 125952
        %v168 = vsel %vm167, %v166, 0.0
        %169 = vadd.xlane.f32.xlu0 %v168
        %v170 = vpop.xlane.xlu0 %169
        %v171 = vrcp.pop 16.0
        %v172 = vmul.f32 %v170, %v171
        %v173 = vsub.f32 %v166, %v172
        %v174 = vmul.f32 %v173, %v173
        %v175 = vsel %vm167, %v174, 0.0
        %176 = vadd.xlane.f32.xlu0 %v175
        %v177 = vpop.xlane.xlu0 %176
        %v178 = vmul.f32 %v177, %v171
        %v179 = vadd.f32 %v178, 1e-05
        %v180 = vrsqrt.pop %v179
        %v181 = vmul.f32 %v179, %v180
        %vm182 = vcmp.eq.f32.partialorder %v179, inf
        %v183 = vsel %vm182, %v179, %v181
        %vm184 = vcmp.eq.f32.partialorder %v179, 0.0
        %v185 = vand.u32 %v179, 2147483648
        %v186 = vsel %vm184, %v185, %v183
        %v187 = vrcp.pop %v186
        %v188 = vmul.f32 %v173, %v187
        %v189 = vld [vmem:[%s1] sm:$0xf]
        %v190 = vld [vmem:[%s2] sm:$0x1]
        %v191 = vld [vmem:[%s1 + $0x8] sm:$0xf]
        %v192 = vld [vmem:[%s2 + $0x8] sm:$0x1]
        %v193 = vld [vmem:[%s2 + $0x10] sm:$0x1]
        %v194 = vlaneseq
        %v195 = vshrl.u32 %v194, 7
        %v196 = vsub.s32 0, %v195
        %v197 = vrot.slane %v190, %v196
        %vm198 = vcmask 31744
        %v200 = vsel %vm198, %v188, 0
        %vm202 = vcmask 1043456
        %v204 = vsel %vm202, %v189, 0
        %206 = vmatprep.subr.mxu0 0.0
        %207 = vmatpush1.msra.mxu0 %v204
        %208 = vmatprep.subr.mxu0 0.0
        %209 = vmatpush1.msra.mxu0 0.0
        %210 = vmatprep.subr.mxu0 0.0
        %211 = vmatpush1.msra.mxu0 0.0
        %212 = vmatprep.subr.mxu0 0.0
        %213 = vmatpush1.msra.mxu0 0.0
        %214 = vmatprep.subr.mxu0 0.0
        %215 = vmatpush1.msra.mxu0 0.0
        %216 = vmatprep.subr.mxu0 0.0
        %217 = vmatpush1.msra.mxu0 0.0
        %218 = vmatprep.subr.mxu0 0.0
        %219 = vmatpush1.msra.mxu0 0.0
        %220 = vmatprep.subr.mxu0 0.0
        %221 = vmatpush1.msra.mxu0 0.0
        %222 = vmatprep.subr.mxu0 0.0
        %223 = vmatpush1.msra.mxu0 0.0
        %224 = vmatprep.subr.mxu0 0.0
        %225 = vmatpush1.msra.mxu0 0.0
        %226 = vmatprep.subr.mxu0 0.0
        %227 = vmatpush1.msra.mxu0 0.0
        %228 = vmatprep.subr.mxu0 0.0
        %229 = vmatpush1.msra.mxu0 0.0
        %230 = vmatprep.subr.mxu0 0.0
        %231 = vmatpush1.msra.mxu0 0.0
        %232 = vmatprep.subr.mxu0 0.0
        %233 = vmatpush1.msra.mxu0 0.0
        %234 = vmatprep.subr.mxu0 0.0
        %235 = vmatpush1.msra.mxu0 0.0
        %236 = vmatprep.subr.mxu0 0.0
        %237 = vmatpush1.msra.mxu0 0.0
        %238 = vmatprep.subr.mxu0 0.0
        %239 = vmatpush1.msra.mxu0 0.0
        %240 = vmatprep.subr.mxu0 0.0
        %241 = vmatpush1.msra.mxu0 0.0
        %242 = vmatprep.subr.mxu0 0.0
        %243 = vmatpush1.msra.mxu0 0.0
        %244 = vmatprep.subr.mxu0 0.0
        %245 = vmatpush1.msra.mxu0 0.0
        %246 = vmatprep.subr.mxu0 0.0
        %247 = vmatpush1.msra.mxu0 0.0
        %248 = vmatprep.subr.mxu0 0.0
        %249 = vmatpush1.msra.mxu0 0.0
        %250 = vmatprep.subr.mxu0 0.0
        %251 = vmatpush1.msra.mxu0 0.0
        %252 = vmatprep.subr.mxu0 0.0
        %253 = vmatpush1.msra.mxu0 0.0
        %254 = vmatprep.subr.mxu0 0.0
        %255 = vmatpush1.msra.mxu0 0.0
        %256 = vmatprep.subr.mxu0 0.0
        %257 = vmatpush1.msra.mxu0 0.0
        %258 = vmatprep.subr.mxu0 0.0
        %259 = vmatpush1.msra.mxu0 0.0
        %260 = vmatprep.subr.mxu0 0.0
        %261 = vmatpush1.msra.mxu0 0.0
        %262 = vmatprep.subr.mxu0 0.0
        %263 = vmatpush1.msra.mxu0 0.0
        %264 = vmatprep.subr.mxu0 0.0
        %265 = vmatpush1.msra.mxu0 0.0
        %266 = vmatprep.subr.mxu0 0.0
        %267 = vmatpush1.msra.mxu0 0.0
        %268 = vmatprep.subr.mxu0 0.0
        %269 = vmatpush1.msra.mxu0 0.0
        %270 = vmatprep.mubr.f32.mxu0 0.0
        %271 = vmatmul.mubr.f32.gmra.mrb[0].mxu0 %v200
        %v272 = vpop.f32.mrb[0].mxu0
        %v273 = vadd.f32 %v197, %v272
        %v274 = vpop.f32.mrb[0].mxu0
        %275 = vdwg.mxu0
        %v276 = vlaneseq
        %v277 = vshrl.u32 %v276, 7
        %v278 = vsub.s32 0, %v277
        %v279 = vrot.slane %v191, %v278
        %v280 = vadd.f32 %v273, %v279
        %vm281 = vcmask 257024
        %v282 = vsel %vm281, %v280, 0.0
        %283 = vadd.xlane.f32.xlu0 %v282
        %v284 = vpop.xlane.xlu0 %283
        %v285 = vrcp.pop 32.0
        %v286 = vmul.f32 %v284, %v285
        %v287 = vsub.f32 %v280, %v286
        %v288 = vmul.f32 %v287, %v287
        %v289 = vsel %vm281, %v288, 0.0
        %290 = vadd.xlane.f32.xlu0 %v289
        %v291 = vpop.xlane.xlu0 %290
        %v292 = vmul.f32 %v291, %v285
        %v293 = vadd.f32 %v292, 1e-05
        %v294 = vrsqrt.pop %v293
        %v295 = vmul.f32 %v287, %v294
        %v296 = vlaneseq
        %v297 = vshrl.u32 %v296, 7
        %v298 = vsub.s32 0, %v297
        %v299 = vrot.slane %v192, %v298
        %v300 = vmul.f32 %v295, %v299
        %v301 = vlaneseq
        %v302 = vshrl.u32 %v301, 7
        %v303 = vsub.s32 0, %v302
        %v304 = vrot.slane %v193, %v303
        %v305 = vadd.f32 %v300, %v304
        %306 = vst.msk [vmem:[#allocation2] sm:$0xf] %vm281, %v305
        %307 = vrot.lane.b32.xlu0 %v188, 124
        %v308 = vpop.permute.xlu0 %307
        %v309 = vsel %vm198, %v308, 0
        %311 = vmatprep.subr.mxu0 0.0
        %312 = vmatpush1.msra.mxu0 %v204
        %313 = vmatprep.subr.mxu0 0.0
        %314 = vmatpush1.msra.mxu0 0.0
        %315 = vmatprep.subr.mxu0 0.0
        %316 = vmatpush1.msra.mxu0 0.0
        %317 = vmatprep.subr.mxu0 0.0
        %318 = vmatpush1.msra.mxu0 0.0
        %319 = vmatprep.subr.mxu0 0.0
        %320 = vmatpush1.msra.mxu0 0.0
        %321 = vmatprep.subr.mxu0 0.0
        %322 = vmatpush1.msra.mxu0 0.0
        %323 = vmatprep.subr.mxu0 0.0
        %324 = vmatpush1.msra.mxu0 0.0
        %325 = vmatprep.subr.mxu0 0.0
        %326 = vmatpush1.msra.mxu0 0.0
        %327 = vmatprep.subr.mxu0 0.0
        %328 = vmatpush1.msra.mxu0 0.0
        %329 = vmatprep.subr.mxu0 0.0
        %330 = vmatpush1.msra.mxu0 0.0
        %331 = vmatprep.subr.mxu0 0.0
        %332 = vmatpush1.msra.mxu0 0.0
        %333 = vmatprep.subr.mxu0 0.0
        %334 = vmatpush1.msra.mxu0 0.0
        %335 = vmatprep.subr.mxu0 0.0
        %336 = vmatpush1.msra.mxu0 0.0
        %337 = vmatprep.subr.mxu0 0.0
        %338 = vmatpush1.msra.mxu0 0.0
        %339 = vmatprep.subr.mxu0 0.0
        %340 = vmatpush1.msra.mxu0 0.0
        %341 = vmatprep.subr.mxu0 0.0
        %342 = vmatpush1.msra.mxu0 0.0
        %343 = vmatprep.subr.mxu0 0.0
        %344 = vmatpush1.msra.mxu0 0.0
        %345 = vmatprep.subr.mxu0 0.0
        %346 = vmatpush1.msra.mxu0 0.0
        %347 = vmatprep.subr.mxu0 0.0
        %348 = vmatpush1.msra.mxu0 0.0
        %349 = vmatprep.subr.mxu0 0.0
        %350 = vmatpush1.msra.mxu0 0.0
        %351 = vmatprep.subr.mxu0 0.0
        %352 = vmatpush1.msra.mxu0 0.0
        %353 = vmatprep.subr.mxu0 0.0
        %354 = vmatpush1.msra.mxu0 0.0
        %355 = vmatprep.subr.mxu0 0.0
        %356 = vmatpush1.msra.mxu0 0.0
        %357 = vmatprep.subr.mxu0 0.0
        %358 = vmatpush1.msra.mxu0 0.0
        %359 = vmatprep.subr.mxu0 0.0
        %360 = vmatpush1.msra.mxu0 0.0
        %361 = vmatprep.subr.mxu0 0.0
        %362 = vmatpush1.msra.mxu0 0.0
        %363 = vmatprep.subr.mxu0 0.0
        %364 = vmatpush1.msra.mxu0 0.0
        %365 = vmatprep.subr.mxu0 0.0
        %366 = vmatpush1.msra.mxu0 0.0
        %367 = vmatprep.subr.mxu0 0.0
        %368 = vmatpush1.msra.mxu0 0.0
        %369 = vmatprep.subr.mxu0 0.0
        %370 = vmatpush1.msra.mxu0 0.0
        %371 = vmatprep.subr.mxu0 0.0
        %372 = vmatpush1.msra.mxu0 0.0
        %373 = vmatprep.subr.mxu0 0.0
        %374 = vmatpush1.msra.mxu0 0.0
        %375 = vmatprep.mubr.f32.mxu0 0.0
        %376 = vmatmul.mubr.f32.gmra.mrb[0].mxu0 %v309
        %v377 = vpop.f32.mrb[0].mxu0
        %v378 = vadd.f32 %v197, %v377
        %v379 = vpop.f32.mrb[0].mxu0
        %380 = vdwg.mxu0
        %v381 = vlaneseq
        %v382 = vshrl.u32 %v381, 7
        %v383 = vsub.s32 1, %v382
        %v384 = vrot.slane %v191, %v383
        %v385 = vadd.f32 %v378, %v384
        %v386 = vsel %vm281, %v385, 0.0
        %387 = vadd.xlane.f32.xlu0 %v386
        %v388 = vpop.xlane.xlu0 %387
        %v389 = vmul.f32 %v388, %v285
        %v390 = vsub.f32 %v385, %v389
        %v391 = vmul.f32 %v390, %v390
        %v392 = vsel %vm281, %v391, 0.0
        %393 = vadd.xlane.f32.xlu0 %v392
        %v394 = vpop.xlane.xlu0 %393
        %v395 = vmul.f32 %v394, %v285
        %v396 = vadd.f32 %v395, 1e-05
        %v397 = vrsqrt.pop %v396
        %v398 = vmul.f32 %v390, %v397
        %v399 = vmul.f32 %v398, %v299
        %v400 = vadd.f32 %v399, %v304
        %401 = vst.msk [vmem:[#allocation2 + $0x4] sm:$0xf] %vm281, %v400
        %402 = vrot.lane.b32.xlu0 %v188, 120
        %v403 = vpop.permute.xlu0 %402
        %v404 = vsel %vm198, %v403, 0
        %406 = vmatprep.subr.mxu0 0.0
        %407 = vmatpush1.msra.mxu0 %v204
        %408 = vmatprep.subr.mxu0 0.0
        %409 = vmatpush1.msra.mxu0 0.0
        %410 = vmatprep.subr.mxu0 0.0
        %411 = vmatpush1.msra.mxu0 0.0
        %412 = vmatprep.subr.mxu0 0.0
        %413 = vmatpush1.msra.mxu0 0.0
        %414 = vmatprep.subr.mxu0 0.0
        %415 = vmatpush1.msra.mxu0 0.0
        %416 = vmatprep.subr.mxu0 0.0
        %417 = vmatpush1.msra.mxu0 0.0
        %418 = vmatprep.subr.mxu0 0.0
        %419 = vmatpush1.msra.mxu0 0.0
        %420 = vmatprep.subr.mxu0 0.0
        %421 = vmatpush1.msra.mxu0 0.0
        %422 = vmatprep.subr.mxu0 0.0
        %423 = vmatpush1.msra.mxu0 0.0
        %424 = vmatprep.subr.mxu0 0.0
        %425 = vmatpush1.msra.mxu0 0.0
        %426 = vmatprep.subr.mxu0 0.0
        %427 = vmatpush1.msra.mxu0 0.0
        %428 = vmatprep.subr.mxu0 0.0
        %429 = vmatpush1.msra.mxu0 0.0
        %430 = vmatprep.subr.mxu0 0.0
        %431 = vmatpush1.msra.mxu0 0.0
        %432 = vmatprep.subr.mxu0 0.0
        %433 = vmatpush1.msra.mxu0 0.0
        %434 = vmatprep.subr.mxu0 0.0
        %435 = vmatpush1.msra.mxu0 0.0
        %436 = vmatprep.subr.mxu0 0.0
        %437 = vmatpush1.msra.mxu0 0.0
        %438 = vmatprep.subr.mxu0 0.0
        %439 = vmatpush1.msra.mxu0 0.0
        %440 = vmatprep.subr.mxu0 0.0
        %441 = vmatpush1.msra.mxu0 0.0
        %442 = vmatprep.subr.mxu0 0.0
        %443 = vmatpush1.msra.mxu0 0.0
        %444 = vmatprep.subr.mxu0 0.0
        %445 = vmatpush1.msra.mxu0 0.0
        %446 = vmatprep.subr.mxu0 0.0
        %447 = vmatpush1.msra.mxu0 0.0
        %448 = vmatprep.subr.mxu0 0.0
        %449 = vmatpush1.msra.mxu0 0.0
        %450 = vmatprep.subr.mxu0 0.0
        %451 = vmatpush1.msra.mxu0 0.0
        %452 = vmatprep.subr.mxu0 0.0
        %453 = vmatpush1.msra.mxu0 0.0
        %454 = vmatprep.subr.mxu0 0.0
        %455 = vmatpush1.msra.mxu0 0.0
        %456 = vmatprep.subr.mxu0 0.0
        %457 = vmatpush1.msra.mxu0 0.0
        %458 = vmatprep.subr.mxu0 0.0
        %459 = vmatpush1.msra.mxu0 0.0
        %460 = vmatprep.subr.mxu0 0.0
        %461 = vmatpush1.msra.mxu0 0.0
        %462 = vmatprep.subr.mxu0 0.0
        %463 = vmatpush1.msra.mxu0 0.0
        %464 = vmatprep.subr.mxu0 0.0
        %465 = vmatpush1.msra.mxu0 0.0
        %466 = vmatprep.subr.mxu0 0.0
        %467 = vmatpush1.msra.mxu0 0.0
        %468 = vmatprep.subr.mxu0 0.0
        %469 = vmatpush1.msra.mxu0 0.0
        %470 = vmatprep.mubr.f32.mxu0 0.0
        %471 = vmatmul.mubr.f32.gmra.mrb[0].mxu0 %v404
        %v472 = vpop.f32.mrb[0].mxu0
        %v473 = vadd.f32 %v197, %v472
        %v474 = vpop.f32.mrb[0].mxu0
        %475 = vdwg.mxu0
        %v476 = vlaneseq
        %v477 = vshrl.u32 %v476, 7
        %v478 = vsub.s32 2, %v477
        %v479 = vrot.slane %v191, %v478
        %v480 = vadd.f32 %v473, %v479
        %v481 = vsel %vm281, %v480, 0.0
        %482 = vadd.xlane.f32.xlu0 %v481
        %v483 = vpop.xlane.xlu0 %482
        %v484 = vmul.f32 %v483, %v285
        %v485 = vsub.f32 %v480, %v484
        %v486 = vmul.f32 %v485, %v485
        %v487 = vsel %vm281, %v486, 0.0
        %488 = vadd.xlane.f32.xlu0 %v487
        %v489 = vpop.xlane.xlu0 %488
        %v490 = vmul.f32 %v489, %v285
        %v491 = vadd.f32 %v490, 1e-05
        %v492 = vrsqrt.pop %v491
        %v493 = vmul.f32 %v485, %v492
        %v494 = vmul.f32 %v493, %v299
        %v495 = vadd.f32 %v494, %v304
        %496 = vst.msk [vmem:[#allocation2 + $0x8] sm:$0xf] %vm281, %v495
        %497 = vrot.lane.b32.xlu0 %v188, 116
        %v498 = vpop.permute.xlu0 %497
        %v499 = vsel %vm198, %v498, 0
        %501 = vmatprep.subr.mxu0 0.0
        %502 = vmatpush1.msra.mxu0 %v204
        %503 = vmatprep.subr.mxu0 0.0
        %504 = vmatpush1.msra.mxu0 0.0
        %505 = vmatprep.subr.mxu0 0.0
        %506 = vmatpush1.msra.mxu0 0.0
        %507 = vmatprep.subr.mxu0 0.0
        %508 = vmatpush1.msra.mxu0 0.0
        %509 = vmatprep.subr.mxu0 0.0
        %510 = vmatpush1.msra.mxu0 0.0
        %511 = vmatprep.subr.mxu0 0.0
        %512 = vmatpush1.msra.mxu0 0.0
        %513 = vmatprep.subr.mxu0 0.0
        %514 = vmatpush1.msra.mxu0 0.0
        %515 = vmatprep.subr.mxu0 0.0
        %516 = vmatpush1.msra.mxu0 0.0
        %517 = vmatprep.subr.mxu0 0.0
        %518 = vmatpush1.msra.mxu0 0.0
        %519 = vmatprep.subr.mxu0 0.0
        %520 = vmatpush1.msra.mxu0 0.0
        %521 = vmatprep.subr.mxu0 0.0
        %522 = vmatpush1.msra.mxu0 0.0
        %523 = vmatprep.subr.mxu0 0.0
        %524 = vmatpush1.msra.mxu0 0.0
        %525 = vmatprep.subr.mxu0 0.0
        %526 = vmatpush1.msra.mxu0 0.0
        %527 = vmatprep.subr.mxu0 0.0
        %528 = vmatpush1.msra.mxu0 0.0
        %529 = vmatprep.subr.mxu0 0.0
        %530 = vmatpush1.msra.mxu0 0.0
        %531 = vmatprep.subr.mxu0 0.0
        %532 = vmatpush1.msra.mxu0 0.0
        %533 = vmatprep.subr.mxu0 0.0
        %534 = vmatpush1.msra.mxu0 0.0
        %535 = vmatprep.subr.mxu0 0.0
        %536 = vmatpush1.msra.mxu0 0.0
        %537 = vmatprep.subr.mxu0 0.0
        %538 = vmatpush1.msra.mxu0 0.0
        %539 = vmatprep.subr.mxu0 0.0
        %540 = vmatpush1.msra.mxu0 0.0
        %541 = vmatprep.subr.mxu0 0.0
        %542 = vmatpush1.msra.mxu0 0.0
        %543 = vmatprep.subr.mxu0 0.0
        %544 = vmatpush1.msra.mxu0 0.0
        %545 = vmatprep.subr.mxu0 0.0
        %546 = vmatpush1.msra.mxu0 0.0
        %547 = vmatprep.subr.mxu0 0.0
        %548 = vmatpush1.msra.mxu0 0.0
        %549 = vmatprep.subr.mxu0 0.0
        %550 = vmatpush1.msra.mxu0 0.0
        %551 = vmatprep.subr.mxu0 0.0
        %552 = vmatpush1.msra.mxu0 0.0
        %553 = vmatprep.subr.mxu0 0.0
        %554 = vmatpush1.msra.mxu0 0.0
        %555 = vmatprep.subr.mxu0 0.0
        %556 = vmatpush1.msra.mxu0 0.0
        %557 = vmatprep.subr.mxu0 0.0
        %558 = vmatpush1.msra.mxu0 0.0
        %559 = vmatprep.subr.mxu0 0.0
        %560 = vmatpush1.msra.mxu0 0.0
        %561 = vmatprep.subr.mxu0 0.0
        %562 = vmatpush1.msra.mxu0 0.0
        %563 = vmatprep.subr.mxu0 0.0
        %564 = vmatpush1.msra.mxu0 0.0
        %565 = vmatprep.mubr.f32.mxu0 0.0
        %566 = vmatmul.mubr.f32.gmra.mrb[0].mxu0 %v499
        %v567 = vpop.f32.mrb[0].mxu0
        %v568 = vadd.f32 %v197, %v567
        %v569 = vpop.f32.mrb[0].mxu0
        %570 = vdwg.mxu0
        %v571 = vlaneseq
        %v572 = vshrl.u32 %v571, 7
        %v573 = vsub.s32 3, %v572
        %v574 = vrot.slane %v191, %v573
        %v575 = vadd.f32 %v568, %v574
        %v576 = vsel %vm281, %v575, 0.0
        %577 = vadd.xlane.f32.xlu0 %v576
        %v578 = vpop.xlane.xlu0 %577
        %v579 = vmul.f32 %v578, %v285
        %v580 = vsub.f32 %v575, %v579
        %v581 = vmul.f32 %v580, %v580
        %v582 = vsel %vm281, %v581, 0.0
        %583 = vadd.xlane.f32.xlu0 %v582
        %v584 = vpop.xlane.xlu0 %583
        %v585 = vmul.f32 %v584, %v285
        %v586 = vadd.f32 %v585, 1e-05
        %v587 = vrsqrt.pop %v586
        %v588 = vmul.f32 %v580, %v587
        %v589 = vmul.f32 %v588, %v299
        %v590 = vadd.f32 %v589, %v304
        %591 = vst.msk [vmem:[#allocation2 + $0xc] sm:$0xf] %vm281, %v590
        %v592 = vld [vmem:[#allocation2] sm:$0xff]
        %v593 = vld [vmem:[#allocation2 + $0x8] sm:$0xff]
        %v594 = vld [vmem:[%s1 + $0x10] sm:$0xff]
        %v595 = vld [vmem:[%s1 + $0x18] sm:$0xff]
        %v596 = vld [vmem:[%s1 + $0x20] sm:$0xff]
        %v597 = vld [vmem:[%s1 + $0x28] sm:$0xff]
        %v598 = vld [vmem:[%s1 + $0x30] sm:$0xff]
        %v599 = vld [vmem:[%s1 + $0x38] sm:$0xff]
        %v600 = vld [vmem:[%s1 + $0x40] sm:$0xff]
        %v601 = vld [vmem:[%s1 + $0x48] sm:$0xff]
        %v602 = vld [vmem:[%s1 + $0x50] sm:$0xff]
        %v603 = vld [vmem:[%s1 + $0x58] sm:$0xff]
        %v604 = vld [vmem:[%s1 + $0x60] sm:$0xff]
        %v605 = vld [vmem:[%s1 + $0x68] sm:$0xff]
        %v606 = vld [vmem:[%s2 + $0x18] sm:$0x1]
        %v607 = vlaneseq
        %v608 = vshrl.u32 %v607, 7
        %v609 = vsub.s32 0, %v608
        %v610 = vrot.slane %v606, %v609
        %vm611 = vcmask 261120
        %v613 = vsel %vm611, %v592, 0
        %v616 = vsel %vm611, %v593, 0
        %v619 = vsel %vm611, %v594, 0
        %v622 = vsel %vm611, %v595, 0
        %v625 = vsel %vm611, %v596, 0
        %v628 = vsel %vm611, %v597, 0
        %v631 = vsel %vm611, %v598, 0
        %v634 = vsel %vm611, %v599, 0
        %v637 = vsel %vm611, %v600, 0
        %v640 = vsel %vm611, %v601, 0
        %v643 = vsel %vm611, %v602, 0
        %v646 = vsel %vm611, %v603, 0
        %v649 = vsel %vm611, %v604, 0
        %v652 = vsel %vm611, %v605, 0
        %654 = vmatprep.subr.mxu0 0.0
        %655 = vmatpush1.xpose.msra.mxu0 %v619
        %656 = vmatprep.subr.mxu0 0.0
        %657 = vmatpush1.xpose.msra.mxu0 %v622
        %658 = vmatprep.subr.mxu0 0.0
        %659 = vmatpush1.xpose.msra.mxu0 %v625
        %660 = vmatprep.subr.mxu0 0.0
        %661 = vmatpush1.xpose.msra.mxu0 %v628
        %662 = vmatprep.subr.mxu0 0.0
        %663 = vmatpush1.xpose.msra.mxu0 %v631
        %664 = vmatprep.subr.mxu0 0.0
        %665 = vmatpush1.xpose.msra.mxu0 %v634
        %666 = vmatprep.subr.mxu0 0.0
        %667 = vmatpush1.xpose.msra.mxu0 %v637
        %668 = vmatprep.subr.mxu0 0.0
        %669 = vmatpush1.xpose.msra.mxu0 %v640
        %670 = vmatprep.subr.mxu0 0.0
        %671 = vmatpush1.xpose.msra.mxu0 %v643
        %672 = vmatprep.subr.mxu0 0.0
        %673 = vmatpush1.xpose.msra.mxu0 %v646
        %674 = vmatprep.subr.mxu0 0.0
        %675 = vmatpush1.xpose.msra.mxu0 %v649
        %676 = vmatprep.subr.mxu0 0.0
        %677 = vmatpush1.xpose.msra.mxu0 %v652
        %678 = vmatprep.subr.mxu0 0.0
        %679 = vmatpush1.xpose.msra.mxu0 0.0
        %680 = vmatprep.subr.mxu0 0.0
        %681 = vmatpush1.xpose.msra.mxu0 0.0
        %682 = vmatprep.subr.mxu0 0.0
        %683 = vmatpush1.xpose.msra.mxu0 0.0
        %684 = vmatprep.subr.mxu0 0.0
        %685 = vmatpush1.xpose.msra.mxu0 0.0
        %686 = vmatprep.subr.mxu0 0.0
        %687 = vmatpush1.xpose.msra.mxu0 0.0
        %688 = vmatprep.subr.mxu0 0.0
        %689 = vmatpush1.xpose.msra.mxu0 0.0
        %690 = vmatprep.subr.mxu0 0.0
        %691 = vmatpush1.xpose.msra.mxu0 0.0
        %692 = vmatprep.subr.mxu0 0.0
        %693 = vmatpush1.xpose.msra.mxu0 0.0
        %694 = vmatprep.subr.mxu0 0.0
        %695 = vmatpush1.xpose.msra.mxu0 0.0
        %696 = vmatprep.subr.mxu0 0.0
        %697 = vmatpush1.xpose.msra.mxu0 0.0
        %698 = vmatprep.subr.mxu0 0.0
        %699 = vmatpush1.xpose.msra.mxu0 0.0
        %700 = vmatprep.subr.mxu0 0.0
        %701 = vmatpush1.xpose.msra.mxu0 0.0
        %702 = vmatprep.subr.mxu0 0.0
        %703 = vmatpush1.xpose.msra.mxu0 0.0
        %704 = vmatprep.subr.mxu0 0.0
        %705 = vmatpush1.xpose.msra.mxu0 0.0
        %706 = vmatprep.subr.mxu0 0.0
        %707 = vmatpush1.xpose.msra.mxu0 0.0
        %708 = vmatprep.subr.mxu0 0.0
        %709 = vmatpush1.xpose.msra.mxu0 0.0
        %710 = vmatprep.subr.mxu0 0.0
        %711 = vmatpush1.xpose.msra.mxu0 0.0
        %712 = vmatprep.subr.mxu0 0.0
        %713 = vmatpush1.xpose.msra.mxu0 0.0
        %714 = vmatprep.subr.mxu0 0.0
        %715 = vmatpush1.xpose.msra.mxu0 0.0
        %716 = vmatprep.subr.mxu0 0.0
        %717 = vmatpush1.xpose.msra.mxu0 0.0
        %718 = vmatprep.mubr.f32.mxu0 0.0
        %719 = vmatmul.mubr.f32.gmra.mrb[0].mxu0 %v613
        %v720 = vpop.f32.mrb[0].mxu0
        %v721 = vadd.f32 %v610, %v720
        %v722 = vpop.f32.mrb[0].mxu0
        %723 = vmatprep.mubr.f32.mxu0 0.0
        %724 = vmatmul.mubr.f32.gmra.mrb[0].mxu0 %v616
        %v725 = vpop.f32.mrb[0].mxu0
        %v726 = vadd.f32 %v610, %v725
        %v727 = vpop.f32.mrb[0].mxu0
        %728 = vdwg.mxu0
        %v729 = vld [vmem:[%s1 + $0x70] sm:$0xff]
        %v730 = vld [vmem:[%s1 + $0x78] sm:$0xff]
        %v731 = vld [vmem:[%s1 + $0x80] sm:$0xff]
        %v732 = vld [vmem:[%s1 + $0x88] sm:$0xff]
        %v733 = vlaneseq
        %v734 = vshrl.u32 %v733, 7
        %v735 = vadd.s32 %v734, 8
        %vm736 = vcmp.lt.s32.totalorder %v734, 0
        %v737 = vsub.s32 0, %v734
        %v738 = vsel %vm736, %v737, %v734
        %v739 = vshrl.u32 %v738, 2
        %v740 = vand.u32 %v738, 3
        %v741 = vsub.s32 0, %v740
        %v742 = vsel %vm736, %v741, %v740
        %vm743 = vcmp.lt.s32.totalorder %v735, 0
        %v744 = vsub.s32 0, %v735
        %v745 = vsel %vm743, %v744, %v735
        %v746 = vshrl.u32 %v745, 2
        %v747 = vand.u32 %v745, 3
        %v748 = vsub.s32 0, %v747
        %v749 = vsel %vm743, %v748, %v747
        %vm750 = vcmp.ne.s32.totalorder %v742, 0
        %vm751 = vcmp.ne.s32.totalorder %v749, 0
        %vm752 = vcmp.lt.s32.totalorder %v742, 0
        %vm753 = vcmp.lt.s32.totalorder %v749, 0
        %vm754 = vmand %vm752, %vm750
        %vm755 = vmand %vm753, %vm751
        %v756 = vadd.s32 %v742, 4
        %v757 = vadd.s32 %v749, 4
        %v758 = vsel %vm754, %v756, %v742
        %v759 = vsel %vm755, %v757, %v749
        %v760 = vlaneseq
        %v761 = vand.u32 %v760, 127
        %vm762 = vcmp.lt.s32.totalorder %v761, 0
        %v763 = vsub.s32 0, %v761
        %v764 = vsel %vm762, %v763, %v761
        %v765 = vshrl.u32 %v764, 2
        %v766 = vand.u32 %v764, 3
        %v767 = vsub.s32 0, %v766
        %v768 = vsel %vm762, %v767, %v766
        %vm769 = vcmp.ne.s32.totalorder %v768, 0
        %vm770 = vcmp.lt.s32.totalorder %v768, 0
        %vm771 = vmand %vm770, %vm769
        %v772 = vadd.s32 %v768, 4
        %v773 = vsel %vm771, %v772, %v768
        %vm774 = vcmp.eq.s32.totalorder %v758, %v773
        %vm775 = vcmp.eq.s32.totalorder %v759, %v773
        %778 = vrot.lane.b32.xlu0 %v721, 96
        %v779 = vpop.permute.xlu0 %778
        %780 = vrot.lane.b32.xlu0 %v726, 96
        %v781 = vpop.permute.xlu0 %780
        %vm782 = vcmask 130048
        %v783 = vsel %vm782, %v721, 0
        %v785 = vsel %vm782, %v726, 0
        %v787 = vsel %vm782, %v779, 0
        %v789 = vsel %vm782, %v781, 0
        %791 = vmatprep.subr.mxu0 0.0
        %792 = vmatpush1.xpose.msra.mxu0 %v787
        %793 = vmatprep.subr.mxu0 0.0
        %794 = vmatpush1.xpose.msra.mxu0 %v789
        %795 = vmatprep.subr.mxu0 0.0
        %796 = vmatpush1.xpose.msra.mxu0 0.0
        %797 = vmatprep.subr.mxu0 0.0
        %798 = vmatpush1.xpose.msra.mxu0 0.0
        %799 = vmatprep.subr.mxu0 0.0
        %800 = vmatpush1.xpose.msra.mxu0 0.0
        %801 = vmatprep.subr.mxu0 0.0
        %802 = vmatpush1.xpose.msra.mxu0 0.0
        %803 = vmatprep.subr.mxu0 0.0
        %804 = vmatpush1.xpose.msra.mxu0 0.0
        %805 = vmatprep.subr.mxu0 0.0
        %806 = vmatpush1.xpose.msra.mxu0 0.0
        %807 = vmatprep.subr.mxu0 0.0
        %808 = vmatpush1.xpose.msra.mxu0 0.0
        %809 = vmatprep.subr.mxu0 0.0
        %810 = vmatpush1.xpose.msra.mxu0 0.0
        %811 = vmatprep.subr.mxu0 0.0
        %812 = vmatpush1.xpose.msra.mxu0 0.0
        %813 = vmatprep.subr.mxu0 0.0
        %814 = vmatpush1.xpose.msra.mxu0 0.0
        %815 = vmatprep.subr.mxu0 0.0
        %816 = vmatpush1.xpose.msra.mxu0 0.0
        %817 = vmatprep.subr.mxu0 0.0
        %818 = vmatpush1.xpose.msra.mxu0 0.0
        %819 = vmatprep.subr.mxu0 0.0
        %820 = vmatpush1.xpose.msra.mxu0 0.0
        %821 = vmatprep.subr.mxu0 0.0
        %822 = vmatpush1.xpose.msra.mxu0 0.0
        %823 = vmatprep.subr.mxu0 0.0
        %824 = vmatpush1.xpose.msra.mxu0 0.0
        %825 = vmatprep.subr.mxu0 0.0
        %826 = vmatpush1.xpose.msra.mxu0 0.0
        %827 = vmatprep.subr.mxu0 0.0
        %828 = vmatpush1.xpose.msra.mxu0 0.0
        %829 = vmatprep.subr.mxu0 0.0
        %830 = vmatpush1.xpose.msra.mxu0 0.0
        %831 = vmatprep.subr.mxu0 0.0
        %832 = vmatpush1.xpose.msra.mxu0 0.0
        %833 = vmatprep.subr.mxu0 0.0
        %834 = vmatpush1.xpose.msra.mxu0 0.0
        %835 = vmatprep.subr.mxu0 0.0
        %836 = vmatpush1.xpose.msra.mxu0 0.0
        %837 = vmatprep.subr.mxu0 0.0
        %838 = vmatpush1.xpose.msra.mxu0 0.0
        %839 = vmatprep.subr.mxu0 0.0
        %840 = vmatpush1.xpose.msra.mxu0 0.0
        %841 = vmatprep.subr.mxu0 0.0
        %842 = vmatpush1.xpose.msra.mxu0 0.0
        %843 = vmatprep.subr.mxu0 0.0
        %844 = vmatpush1.xpose.msra.mxu0 0.0
        %845 = vmatprep.subr.mxu0 0.0
        %846 = vmatpush1.xpose.msra.mxu0 0.0
        %847 = vmatprep.subr.mxu0 0.0
        %848 = vmatpush1.xpose.msra.mxu0 0.0
        %849 = vmatprep.subr.mxu0 0.0
        %850 = vmatpush1.xpose.msra.mxu0 0.0
        %851 = vmatprep.subr.mxu0 0.0
        %852 = vmatpush1.xpose.msra.mxu0 0.0
        %853 = vmatprep.subr.mxu0 0.0
        %854 = vmatpush1.xpose.msra.mxu0 0.0
        %855 = vmatprep.mubr.f32.mxu0 0.0
        %856 = vmatmul.mubr.f32.gmra.mrb[0].mxu0 %v783
        %v857 = vpop.f32.mrb[0].mxu0
        %v858 = vadd.f32 0.0, %v857
        %v859 = vpop.f32.mrb[0].mxu0
        %860 = vmatprep.mubr.f32.mxu0 0.0
        %861 = vmatmul.mubr.f32.gmra.mrb[0].mxu0 %v785
        %v862 = vpop.f32.mrb[0].mxu0
        %v863 = vadd.f32 0.0, %v862
        %v864 = vpop.f32.mrb[0].mxu0
        %865 = vdwg.mxu0
        %v866 = vsel %vm774, %v858, -1e+30
        %v867 = vsel %vm775, %v863, -1e+30
        %v868 = vsel %vm782, %v866, -inf
        %869 = vmax.xlane.f32.xlu0 %v868
        %v870 = vpop.xlane.xlu0 %869
        %v871 = vsel %vm782, %v867, -inf
        %872 = vmax.xlane.f32.xlu0 %v871
        %v873 = vpop.xlane.xlu0 %872
        %v874 = vsub.f32 %v866, %v870
        %v875 = vsub.f32 %v867, %v873
        %v876 = vmul.f32 %v874, 1.442695
        %v877 = vpow.pop %v876
        %v878 = vmul.f32 %v875, 1.442695
        %v879 = vpow.pop %v878
        %v880 = vsel %vm782, %v877, 0.0
        %881 = vadd.xlane.f32.xlu0 %v880
        %v882 = vpop.xlane.xlu0 %881
        %v883 = vsel %vm782, %v879, 0.0
        %884 = vadd.xlane.f32.xlu0 %v883
        %v885 = vpop.xlane.xlu0 %884
        %v886 = vrcp.pop %v882
        %v887 = vrcp.pop %v885
        %v888 = vmul.f32 %v877, %v886
        %v889 = vmul.f32 %v879, %v887
        %890 = vrot.lane.b32.xlu0 %v721, 64
        %v891 = vpop.permute.xlu0 %890
        %892 = vrot.lane.b32.xlu0 %v726, 64
        %v893 = vpop.permute.xlu0 %892
        %v897 = vsel %vm782, %v888, 0
        %v900 = vsel %vm782, %v889, 0
        %902 = vmatprep.subr.mxu0 0.0
        %903 = vmatpush1.msra.mxu0 %v891
        %904 = vmatprep.subr.mxu0 0.0
        %905 = vmatpush1.msra.mxu0 %v893
        %906 = vmatprep.subr.mxu0 0.0
        %907 = vmatpush1.msra.mxu0 0.0
        %908 = vmatprep.subr.mxu0 0.0
        %909 = vmatpush1.msra.mxu0 0.0
        %910 = vmatprep.subr.mxu0 0.0
        %911 = vmatpush1.msra.mxu0 0.0
        %912 = vmatprep.subr.mxu0 0.0
        %913 = vmatpush1.msra.mxu0 0.0
        %914 = vmatprep.subr.mxu0 0.0
        %915 = vmatpush1.msra.mxu0 0.0
        %916 = vmatprep.subr.mxu0 0.0
        %917 = vmatpush1.msra.mxu0 0.0
        %918 = vmatprep.subr.mxu0 0.0
        %919 = vmatpush1.msra.mxu0 0.0
        %920 = vmatprep.subr.mxu0 0.0
        %921 = vmatpush1.msra.mxu0 0.0
        %922 = vmatprep.subr.mxu0 0.0
        %923 = vmatpush1.msra.mxu0 0.0
        %924 = vmatprep.subr.mxu0 0.0
        %925 = vmatpush1.msra.mxu0 0.0
        %926 = vmatprep.subr.mxu0 0.0
        %927 = vmatpush1.msra.mxu0 0.0
        %928 = vmatprep.subr.mxu0 0.0
        %929 = vmatpush1.msra.mxu0 0.0
        %930 = vmatprep.subr.mxu0 0.0
        %931 = vmatpush1.msra.mxu0 0.0
        %932 = vmatprep.subr.mxu0 0.0
        %933 = vmatpush1.msra.mxu0 0.0
        %934 = vmatprep.subr.mxu0 0.0
        %935 = vmatpush1.msra.mxu0 0.0
        %936 = vmatprep.subr.mxu0 0.0
        %937 = vmatpush1.msra.mxu0 0.0
        %938 = vmatprep.subr.mxu0 0.0
        %939 = vmatpush1.msra.mxu0 0.0
        %940 = vmatprep.subr.mxu0 0.0
        %941 = vmatpush1.msra.mxu0 0.0
        %942 = vmatprep.subr.mxu0 0.0
        %943 = vmatpush1.msra.mxu0 0.0
        %944 = vmatprep.subr.mxu0 0.0
        %945 = vmatpush1.msra.mxu0 0.0
        %946 = vmatprep.subr.mxu0 0.0
        %947 = vmatpush1.msra.mxu0 0.0
        %948 = vmatprep.subr.mxu0 0.0
        %949 = vmatpush1.msra.mxu0 0.0
        %950 = vmatprep.subr.mxu0 0.0
        %951 = vmatpush1.msra.mxu0 0.0
        %952 = vmatprep.subr.mxu0 0.0
        %953 = vmatpush1.msra.mxu0 0.0
        %954 = vmatprep.subr.mxu0 0.0
        %955 = vmatpush1.msra.mxu0 0.0
        %956 = vmatprep.subr.mxu0 0.0
        %957 = vmatpush1.msra.mxu0 0.0
        %958 = vmatprep.subr.mxu0 0.0
        %959 = vmatpush1.msra.mxu0 0.0
        %960 = vmatprep.subr.mxu0 0.0
        %961 = vmatpush1.msra.mxu0 0.0
        %962 = vmatprep.subr.mxu0 0.0
        %963 = vmatpush1.msra.mxu0 0.0
        %964 = vmatprep.subr.mxu0 0.0
        %965 = vmatpush1.msra.mxu0 0.0
        %966 = vmatprep.mubr.f32.mxu0 0.0
        %967 = vmatmul.mubr.f32.gmra.mrb[0].mxu0 %v897
        %v968 = vpop.f32.mrb[0].mxu0
        %v969 = vadd.f32 0.0, %v968
        %v970 = vpop.f32.mrb[0].mxu0
        %971 = vmatprep.mubr.f32.mxu0 0.0
        %972 = vmatmul.mubr.f32.gmra.mrb[0].mxu0 %v900
        %v973 = vpop.f32.mrb[0].mxu0
        %v974 = vadd.f32 0.0, %v973
        %v975 = vpop.f32.mrb[0].mxu0
        %976 = vdwg.mxu0
        %977 = vrot.lane.b32.xlu0 %v721, 112
        %v978 = vpop.permute.xlu0 %977
        %979 = vrot.lane.b32.xlu0 %v726, 112
        %v980 = vpop.permute.xlu0 %979
        %981 = vrot.lane.b32.xlu0 %v721, 80
        %v982 = vpop.permute.xlu0 %981
        %983 = vrot.lane.b32.xlu0 %v726, 80
        %v984 = vpop.permute.xlu0 %983
        %v985 = vsel %vm782, %v978, 0
        %v987 = vsel %vm782, %v980, 0
        %v989 = vsel %vm782, %v982, 0
        %v991 = vsel %vm782, %v984, 0
        %993 = vmatprep.subr.mxu0 0.0
        %994 = vmatpush1.xpose.msra.mxu0 %v989
        %995 = vmatprep.subr.mxu0 0.0
        %996 = vmatpush1.xpose.msra.mxu0 %v991
        %997 = vmatprep.subr.mxu0 0.0
        %998 = vmatpush1.xpose.msra.mxu0 0.0
        %999 = vmatprep.subr.mxu0 0.0
        %1000 = vmatpush1.xpose.msra.mxu0 0.0
        %1001 = vmatprep.subr.mxu0 0.0
        %1002 = vmatpush1.xpose.msra.mxu0 0.0
        %1003 = vmatprep.subr.mxu0 0.0
        %1004 = vmatpush1.xpose.msra.mxu0 0.0
        %1005 = vmatprep.subr.mxu0 0.0
        %1006 = vmatpush1.xpose.msra.mxu0 0.0
        %1007 = vmatprep.subr.mxu0 0.0
        %1008 = vmatpush1.xpose.msra.mxu0 0.0
        %1009 = vmatprep.subr.mxu0 0.0
        %1010 = vmatpush1.xpose.msra.mxu0 0.0
        %1011 = vmatprep.subr.mxu0 0.0
        %1012 = vmatpush1.xpose.msra.mxu0 0.0
        %1013 = vmatprep.subr.mxu0 0.0
        %1014 = vmatpush1.xpose.msra.mxu0 0.0
        %1015 = vmatprep.subr.mxu0 0.0
        %1016 = vmatpush1.xpose.msra.mxu0 0.0
        %1017 = vmatprep.subr.mxu0 0.0
        %1018 = vmatpush1.xpose.msra.mxu0 0.0
        %1019 = vmatprep.subr.mxu0 0.0
        %1020 = vmatpush1.xpose.msra.mxu0 0.0
        %1021 = vmatprep.subr.mxu0 0.0
        %1022 = vmatpush1.xpose.msra.mxu0 0.0
        %1023 = vmatprep.subr.mxu0 0.0
        %1024 = vmatpush1.xpose.msra.mxu0 0.0
        %1025 = vmatprep.subr.mxu0 0.0
        %1026 = vmatpush1.xpose.msra.mxu0 0.0
        %1027 = vmatprep.subr.mxu0 0.0
        %1028 = vmatpush1.xpose.msra.mxu0 0.0
        %1029 = vmatprep.subr.mxu0 0.0
        %1030 = vmatpush1.xpose.msra.mxu0 0.0
        %1031 = vmatprep.subr.mxu0 0.0
        %1032 = vmatpush1.xpose.msra.mxu0 0.0
        %1033 = vmatprep.subr.mxu0 0.0
        %1034 = vmatpush1.xpose.msra.mxu0 0.0
        %1035 = vmatprep.subr.mxu0 0.0
        %1036 = vmatpush1.xpose.msra.mxu0 0.0
        %1037 = vmatprep.subr.mxu0 0.0
        %1038 = vmatpush1.xpose.msra.mxu0 0.0
        %1039 = vmatprep.subr.mxu0 0.0
        %1040 = vmatpush1.xpose.msra.mxu0 0.0
        %1041 = vmatprep.subr.mxu0 0.0
        %1042 = vmatpush1.xpose.msra.mxu0 0.0
        %1043 = vmatprep.subr.mxu0 0.0
        %1044 = vmatpush1.xpose.msra.mxu0 0.0
        %1045 = vmatprep.subr.mxu0 0.0
        %1046 = vmatpush1.xpose.msra.mxu0 0.0
        %1047 = vmatprep.subr.mxu0 0.0
        %1048 = vmatpush1.xpose.msra.mxu0 0.0
        %1049 = vmatprep.subr.mxu0 0.0
        %1050 = vmatpush1.xpose.msra.mxu0 0.0
        %1051 = vmatprep.subr.mxu0 0.0
        %1052 = vmatpush1.xpose.msra.mxu0 0.0
        %1053 = vmatprep.subr.mxu0 0.0
        %1054 = vmatpush1.xpose.msra.mxu0 0.0
        %1055 = vmatprep.subr.mxu0 0.0
        %1056 = vmatpush1.xpose.msra.mxu0 0.0
        %1057 = vmatprep.mubr.f32.mxu0 0.0
        %1058 = vmatmul.mubr.f32.gmra.mrb[0].mxu0 %v985
        %v1059 = vpop.f32.mrb[0].mxu0
        %v1060 = vadd.f32 0.0, %v1059
        %v1061 = vpop.f32.mrb[0].mxu0
        %1062 = vmatprep.mubr.f32.mxu0 0.0
        %1063 = vmatmul.mubr.f32.gmra.mrb[0].mxu0 %v987
        %v1064 = vpop.f32.mrb[0].mxu0
        %v1065 = vadd.f32 0.0, %v1064
        %v1066 = vpop.f32.mrb[0].mxu0
        %1067 = vdwg.mxu0
        %v1068 = vsel %vm774, %v1060, -1e+30
        %v1069 = vsel %vm775, %v1065, -1e+30
        %v1070 = vsel %vm782, %v1068, -inf
        %1071 = vmax.xlane.f32.xlu0 %v1070
        %v1072 = vpop.xlane.xlu0 %1071
        %v1073 = vsel %vm782, %v1069, -inf
        %1074 = vmax.xlane.f32.xlu0 %v1073
        %v1075 = vpop.xlane.xlu0 %1074
        %v1076 = vsub.f32 %v1068, %v1072
        %v1077 = vsub.f32 %v1069, %v1075
        %v1078 = vmul.f32 %v1076, 1.442695
        %v1079 = vpow.pop %v1078
        %v1080 = vmul.f32 %v1077, 1.442695
        %v1081 = vpow.pop %v1080
        %v1082 = vsel %vm782, %v1079, 0.0
        %1083 = vadd.xlane.f32.xlu0 %v1082
        %v1084 = vpop.xlane.xlu0 %1083
        %v1085 = vsel %vm782, %v1081, 0.0
        %1086 = vadd.xlane.f32.xlu0 %v1085
        %v1087 = vpop.xlane.xlu0 %1086
        %v1088 = vrcp.pop %v1084
        %v1089 = vrcp.pop %v1087
        %v1090 = vmul.f32 %v1079, %v1088
        %v1091 = vmul.f32 %v1081, %v1089
        %1092 = vrot.lane.b32.xlu0 %v721, 48
        %v1093 = vpop.permute.xlu0 %1092
        %1094 = vrot.lane.b32.xlu0 %v726, 48
        %v1095 = vpop.permute.xlu0 %1094
        %v1099 = vsel %vm782, %v1090, 0
        %v1102 = vsel %vm782, %v1091, 0
        %1104 = vmatprep.subr.mxu0 0.0
        %1105 = vmatpush1.msra.mxu0 %v1093
        %1106 = vmatprep.subr.mxu0 0.0
        %1107 = vmatpush1.msra.mxu0 %v1095
        %1108 = vmatprep.subr.mxu0 0.0
        %1109 = vmatpush1.msra.mxu0 0.0
        %1110 = vmatprep.subr.mxu0 0.0
        %1111 = vmatpush1.msra.mxu0 0.0
        %1112 = vmatprep.subr.mxu0 0.0
        %1113 = vmatpush1.msra.mxu0 0.0
        %1114 = vmatprep.subr.mxu0 0.0
        %1115 = vmatpush1.msra.mxu0 0.0
        %1116 = vmatprep.subr.mxu0 0.0
        %1117 = vmatpush1.msra.mxu0 0.0
        %1118 = vmatprep.subr.mxu0 0.0
        %1119 = vmatpush1.msra.mxu0 0.0
        %1120 = vmatprep.subr.mxu0 0.0
        %1121 = vmatpush1.msra.mxu0 0.0
        %1122 = vmatprep.subr.mxu0 0.0
        %1123 = vmatpush1.msra.mxu0 0.0
        %1124 = vmatprep.subr.mxu0 0.0
        %1125 = vmatpush1.msra.mxu0 0.0
        %1126 = vmatprep.subr.mxu0 0.0
        %1127 = vmatpush1.msra.mxu0 0.0
        %1128 = vmatprep.subr.mxu0 0.0
        %1129 = vmatpush1.msra.mxu0 0.0
        %1130 = vmatprep.subr.mxu0 0.0
        %1131 = vmatpush1.msra.mxu0 0.0
        %1132 = vmatprep.subr.mxu0 0.0
        %1133 = vmatpush1.msra.mxu0 0.0
        %1134 = vmatprep.subr.mxu0 0.0
        %1135 = vmatpush1.msra.mxu0 0.0
        %1136 = vmatprep.subr.mxu0 0.0
        %1137 = vmatpush1.msra.mxu0 0.0
        %1138 = vmatprep.subr.mxu0 0.0
        %1139 = vmatpush1.msra.mxu0 0.0
        %1140 = vmatprep.subr.mxu0 0.0
        %1141 = vmatpush1.msra.mxu0 0.0
        %1142 = vmatprep.subr.mxu0 0.0
        %1143 = vmatpush1.msra.mxu0 0.0
        %1144 = vmatprep.subr.mxu0 0.0
        %1145 = vmatpush1.msra.mxu0 0.0
        %1146 = vmatprep.subr.mxu0 0.0
        %1147 = vmatpush1.msra.mxu0 0.0
        %1148 = vmatprep.subr.mxu0 0.0
        %1149 = vmatpush1.msra.mxu0 0.0
        %1150 = vmatprep.subr.mxu0 0.0
        %1151 = vmatpush1.msra.mxu0 0.0
        %1152 = vmatprep.subr.mxu0 0.0
        %1153 = vmatpush1.msra.mxu0 0.0
        %1154 = vmatprep.subr.mxu0 0.0
        %1155 = vmatpush1.msra.mxu0 0.0
        %1156 = vmatprep.subr.mxu0 0.0
        %1157 = vmatpush1.msra.mxu0 0.0
        %1158 = vmatprep.subr.mxu0 0.0
        %1159 = vmatpush1.msra.mxu0 0.0
        %1160 = vmatprep.subr.mxu0 0.0
        %1161 = vmatpush1.msra.mxu0 0.0
        %1162 = vmatprep.subr.mxu0 0.0
        %1163 = vmatpush1.msra.mxu0 0.0
        %1164 = vmatprep.subr.mxu0 0.0
        %1165 = vmatpush1.msra.mxu0 0.0
        %1166 = vmatprep.subr.mxu0 0.0
        %1167 = vmatpush1.msra.mxu0 0.0
        %1168 = vmatprep.mubr.f32.mxu0 0.0
        %1169 = vmatmul.mubr.f32.gmra.mrb[0].mxu0 %v1099
        %v1170 = vpop.f32.mrb[0].mxu0
        %v1171 = vadd.f32 0.0, %v1170
        %v1172 = vpop.f32.mrb[0].mxu0
        %1173 = vmatprep.mubr.f32.mxu0 0.0
        %1174 = vmatmul.mubr.f32.gmra.mrb[0].mxu0 %v1102
        %v1175 = vpop.f32.mrb[0].mxu0
        %v1176 = vadd.f32 0.0, %v1175
        %v1177 = vpop.f32.mrb[0].mxu0
        %1178 = vdwg.mxu0
        %v1180 = vsel %vm782, %v1171, 0
        %v1183 = vsel %vm782, %v1176, 0
        %1185 = vmatprep.subr.mxu0 0.0
        %1186 = vmatpush1.msra.mxu0 %v731
        %1187 = vmatprep.subr.mxu0 0.0
        %1188 = vmatpush1.msra.mxu0 %v732
        %1189 = vmatprep.subr.mxu0 0.0
        %1190 = vmatpush1.msra.mxu0 0.0
        %1191 = vmatprep.subr.mxu0 0.0
        %1192 = vmatpush1.msra.mxu0 0.0
        %1193 = vmatprep.subr.mxu0 0.0
        %1194 = vmatpush1.msra.mxu0 0.0
        %1195 = vmatprep.subr.mxu0 0.0
        %1196 = vmatpush1.msra.mxu0 0.0
        %1197 = vmatprep.subr.mxu0 0.0
        %1198 = vmatpush1.msra.mxu0 0.0
        %1199 = vmatprep.subr.mxu0 0.0
        %1200 = vmatpush1.msra.mxu0 0.0
        %1201 = vmatprep.subr.mxu0 0.0
        %1202 = vmatpush1.msra.mxu0 0.0
        %1203 = vmatprep.subr.mxu0 0.0
        %1204 = vmatpush1.msra.mxu0 0.0
        %1205 = vmatprep.subr.mxu0 0.0
        %1206 = vmatpush1.msra.mxu0 0.0
        %1207 = vmatprep.subr.mxu0 0.0
        %1208 = vmatpush1.msra.mxu0 0.0
        %1209 = vmatprep.subr.mxu0 0.0
        %1210 = vmatpush1.msra.mxu0 0.0
        %1211 = vmatprep.subr.mxu0 0.0
        %1212 = vmatpush1.msra.mxu0 0.0
        %1213 = vmatprep.subr.mxu0 0.0
        %1214 = vmatpush1.msra.mxu0 0.0
        %1215 = vmatprep.subr.mxu0 0.0
        %1216 = vmatpush1.msra.mxu0 0.0
        %1217 = vmatprep.subr.mxu0 0.0
        %1218 = vmatpush1.msra.mxu0 0.0
        %1219 = vmatprep.subr.mxu0 0.0
        %1220 = vmatpush1.msra.mxu0 0.0
        %1221 = vmatprep.subr.mxu0 0.0
        %1222 = vmatpush1.msra.mxu0 0.0
        %1223 = vmatprep.subr.mxu0 0.0
        %1224 = vmatpush1.msra.mxu0 0.0
        %1225 = vmatprep.subr.mxu0 0.0
        %1226 = vmatpush1.msra.mxu0 0.0
        %1227 = vmatprep.subr.mxu0 0.0
        %1228 = vmatpush1.msra.mxu0 0.0
        %1229 = vmatprep.subr.mxu0 0.0
        %1230 = vmatpush1.msra.mxu0 0.0
        %1231 = vmatprep.subr.mxu0 0.0
        %1232 = vmatpush1.msra.mxu0 0.0
        %1233 = vmatprep.subr.mxu0 0.0
        %1234 = vmatpush1.msra.mxu0 0.0
        %1235 = vmatprep.subr.mxu0 0.0
        %1236 = vmatpush1.msra.mxu0 0.0
        %1237 = vmatprep.subr.mxu0 0.0
        %1238 = vmatpush1.msra.mxu0 0.0
        %1239 = vmatprep.subr.mxu0 0.0
        %1240 = vmatpush1.msra.mxu0 0.0
        %1241 = vmatprep.subr.mxu0 0.0
        %1242 = vmatpush1.msra.mxu0 0.0
        %1243 = vmatprep.subr.mxu0 0.0
        %1244 = vmatpush1.msra.mxu0 0.0
        %1245 = vmatprep.subr.mxu0 0.0
        %1246 = vmatpush1.msra.mxu0 0.0
        %1247 = vmatprep.subr.mxu0 0.0
        %1248 = vmatpush1.msra.mxu0 0.0
        %1249 = vmatprep.mubr.f32.mxu0 0.0
        %1250 = vmatmul.mubr.f32.gmra.mrb[0].mxu0 %v1180
        %v1251 = vpop.f32.mrb[0].mxu0
        %v1252 = vadd.f32 0.0, %v1251
        %v1253 = vpop.f32.mrb[0].mxu0
        %1254 = vmatprep.mubr.f32.mxu0 0.0
        %1255 = vmatmul.mubr.f32.gmra.mrb[0].mxu0 %v1183
        %v1256 = vpop.f32.mrb[0].mxu0
        %v1257 = vadd.f32 0.0, %v1256
        %v1258 = vpop.f32.mrb[0].mxu0
        %1259 = vdwg.mxu0
        %v1261 = vsel %vm782, %v969, 0
        %v1264 = vsel %vm782, %v974, 0
        %1266 = vmatprep.subr.mxu0 0.0
        %1267 = vmatpush1.msra.mxu0 %v729
        %1268 = vmatprep.subr.mxu0 0.0
        %1269 = vmatpush1.msra.mxu0 %v730
        %1270 = vmatprep.subr.mxu0 0.0
        %1271 = vmatpush1.msra.mxu0 0.0
        %1272 = vmatprep.subr.mxu0 0.0
        %1273 = vmatpush1.msra.mxu0 0.0
        %1274 = vmatprep.subr.mxu0 0.0
        %1275 = vmatpush1.msra.mxu0 0.0
        %1276 = vmatprep.subr.mxu0 0.0
        %1277 = vmatpush1.msra.mxu0 0.0
        %1278 = vmatprep.subr.mxu0 0.0
        %1279 = vmatpush1.msra.mxu0 0.0
        %1280 = vmatprep.subr.mxu0 0.0
        %1281 = vmatpush1.msra.mxu0 0.0
        %1282 = vmatprep.subr.mxu0 0.0
        %1283 = vmatpush1.msra.mxu0 0.0
        %1284 = vmatprep.subr.mxu0 0.0
        %1285 = vmatpush1.msra.mxu0 0.0
        %1286 = vmatprep.subr.mxu0 0.0
        %1287 = vmatpush1.msra.mxu0 0.0
        %1288 = vmatprep.subr.mxu0 0.0
        %1289 = vmatpush1.msra.mxu0 0.0
        %1290 = vmatprep.subr.mxu0 0.0
        %1291 = vmatpush1.msra.mxu0 0.0
        %1292 = vmatprep.subr.mxu0 0.0
        %1293 = vmatpush1.msra.mxu0 0.0
        %1294 = vmatprep.subr.mxu0 0.0
        %1295 = vmatpush1.msra.mxu0 0.0
        %1296 = vmatprep.subr.mxu0 0.0
        %1297 = vmatpush1.msra.mxu0 0.0
        %1298 = vmatprep.subr.mxu0 0.0
        %1299 = vmatpush1.msra.mxu0 0.0
        %1300 = vmatprep.subr.mxu0 0.0
        %1301 = vmatpush1.msra.mxu0 0.0
        %1302 = vmatprep.subr.mxu0 0.0
        %1303 = vmatpush1.msra.mxu0 0.0
        %1304 = vmatprep.subr.mxu0 0.0
        %1305 = vmatpush1.msra.mxu0 0.0
        %1306 = vmatprep.subr.mxu0 0.0
        %1307 = vmatpush1.msra.mxu0 0.0
        %1308 = vmatprep.subr.mxu0 0.0
        %1309 = vmatpush1.msra.mxu0 0.0
        %1310 = vmatprep.subr.mxu0 0.0
        %1311 = vmatpush1.msra.mxu0 0.0
        %1312 = vmatprep.subr.mxu0 0.0
        %1313 = vmatpush1.msra.mxu0 0.0
        %1314 = vmatprep.subr.mxu0 0.0
        %1315 = vmatpush1.msra.mxu0 0.0
        %1316 = vmatprep.subr.mxu0 0.0
        %1317 = vmatpush1.msra.mxu0 0.0
        %1318 = vmatprep.subr.mxu0 0.0
        %1319 = vmatpush1.msra.mxu0 0.0
        %1320 = vmatprep.subr.mxu0 0.0
        %1321 = vmatpush1.msra.mxu0 0.0
        %1322 = vmatprep.subr.mxu0 0.0
        %1323 = vmatpush1.msra.mxu0 0.0
        %1324 = vmatprep.subr.mxu0 0.0
        %1325 = vmatpush1.msra.mxu0 0.0
        %1326 = vmatprep.subr.mxu0 0.0
        %1327 = vmatpush1.msra.mxu0 0.0
        %1328 = vmatprep.subr.mxu0 0.0
        %1329 = vmatpush1.msra.mxu0 0.0
        %1330 = vmatprep.mubr.f32.mxu0 0.0
        %1331 = vmatmul.mubr.f32.gmra.mrb[0].mxu0 %v1261
        %v1332 = vpop.f32.mrb[0].mxu0
        %v1333 = vadd.f32 %v1252, %v1332
        %v1334 = vpop.f32.mrb[0].mxu0
        %1335 = vmatprep.mubr.f32.mxu0 0.0
        %1336 = vmatmul.mubr.f32.gmra.mrb[0].mxu0 %v1264
        %v1337 = vpop.f32.mrb[0].mxu0
        %v1338 = vadd.f32 %v1257, %v1337
        %v1339 = vpop.f32.mrb[0].mxu0
        %1340 = vdwg.mxu0
        %v1341 = vld [vmem:[%s2 + $0x20] sm:$0x1]
        %v1342 = vlaneseq
        %v1343 = vshrl.u32 %v1342, 7
        %v1344 = vsub.s32 0, %v1343
        %v1345 = vrot.slane %v1341, %v1344
        %v1346 = vadd.f32 %v1333, %v1345
        %v1347 = vadd.f32 %v1338, %v1345
        %v1348 = vadd.f32 %v592, %v1346
        %v1349 = vadd.f32 %v593, %v1347
        %v1350 = vld [vmem:[%s2 + $0x28] sm:$0x1]
        %v1351 = vld [vmem:[%s2 + $0x30] sm:$0x1]
        %v1352 = vsel %vm611, %v1348, 0.0
        %1353 = vadd.xlane.f32.xlu0 %v1352
        %v1354 = vpop.xlane.xlu0 %1353
        %v1355 = vsel %vm611, %v1349, 0.0
        %1356 = vadd.xlane.f32.xlu0 %v1355
        %v1357 = vpop.xlane.xlu0 %1356
        %v1358 = vmul.f32 %v1354, %v285
        %v1359 = vmul.f32 %v1357, %v285
        %v1360 = vsub.f32 %v1348, %v1358
        %v1361 = vsub.f32 %v1349, %v1359
        %v1362 = vmul.f32 %v1360, %v1360
        %v1363 = vmul.f32 %v1361, %v1361
        %v1364 = vsel %vm611, %v1362, 0.0
        %1365 = vadd.xlane.f32.xlu0 %v1364
        %v1366 = vpop.xlane.xlu0 %1365
        %v1367 = vsel %vm611, %v1363, 0.0
        %1368 = vadd.xlane.f32.xlu0 %v1367
        %v1369 = vpop.xlane.xlu0 %1368
        %v1370 = vmul.f32 %v1366, %v285
        %v1371 = vmul.f32 %v1369, %v285
        %v1372 = vadd.f32 %v1370, 1e-05
        %v1373 = vadd.f32 %v1371, 1e-05
        %v1374 = vrsqrt.pop %v1372
        %v1375 = vrsqrt.pop %v1373
        %v1376 = vmul.f32 %v1360, %v1374
        %v1377 = vmul.f32 %v1361, %v1375
        %v1378 = vlaneseq
        %v1379 = vshrl.u32 %v1378, 7
        %v1380 = vsub.s32 0, %v1379
        %v1381 = vrot.slane %v1350, %v1380
        %v1382 = vmul.f32 %v1376, %v1381
        %v1383 = vmul.f32 %v1377, %v1381
        %v1384 = vlaneseq
        %v1385 = vshrl.u32 %v1384, 7
        %v1386 = vsub.s32 0, %v1385
        %v1387 = vrot.slane %v1351, %v1386
        %v1388 = vadd.f32 %v1382, %v1387
        %v1389 = vadd.f32 %v1383, %v1387
        %v1390 = vld [vmem:[%s1 + $0x90] sm:$0xff]
        %v1391 = vld [vmem:[%s1 + $0x98] sm:$0xff]
        %v1392 = vld [vmem:[%s1 + $0xa0] sm:$0xff]
        %v1393 = vld [vmem:[%s1 + $0xa8] sm:$0xff]
        %v1394 = vld [vmem:[%s1 + $0xb0] sm:$0xff]
        %v1395 = vld [vmem:[%s1 + $0xb8] sm:$0xff]
        %v1396 = vld [vmem:[%s1 + $0xc0] sm:$0xff]
        %v1397 = vld [vmem:[%s1 + $0xc8] sm:$0xff]
        %v1398 = vld [vmem:[%s2 + $0x38] sm:$0x1]
        %v1399 = vlaneseq
        %v1400 = vshrl.u32 %v1399, 7
        %v1401 = vsub.s32 0, %v1400
        %v1402 = vrot.slane %v1398, %v1401
        %v1404 = vsel %vm611, %v1388, 0
        %v1407 = vsel %vm611, %v1389, 0
        %v1410 = vsel %vm611, %v1390, 0
        %v1413 = vsel %vm611, %v1391, 0
        %v1416 = vsel %vm611, %v1392, 0
        %v1419 = vsel %vm611, %v1393, 0
        %v1422 = vsel %vm611, %v1394, 0
        %v1425 = vsel %vm611, %v1395, 0
        %v1428 = vsel %vm611, %v1396, 0
        %v1431 = vsel %vm611, %v1397, 0
        %1433 = vmatprep.subr.mxu0 0.0
        %1434 = vmatpush1.xpose.msra.mxu0 %v1410
        %1435 = vmatprep.subr.mxu0 0.0
        %1436 = vmatpush1.xpose.msra.mxu0 %v1413
        %1437 = vmatprep.subr.mxu0 0.0
        %1438 = vmatpush1.xpose.msra.mxu0 %v1416
        %1439 = vmatprep.subr.mxu0 0.0
        %1440 = vmatpush1.xpose.msra.mxu0 %v1419
        %1441 = vmatprep.subr.mxu0 0.0
        %1442 = vmatpush1.xpose.msra.mxu0 %v1422
        %1443 = vmatprep.subr.mxu0 0.0
        %1444 = vmatpush1.xpose.msra.mxu0 %v1425
        %1445 = vmatprep.subr.mxu0 0.0
        %1446 = vmatpush1.xpose.msra.mxu0 %v1428
        %1447 = vmatprep.subr.mxu0 0.0
        %1448 = vmatpush1.xpose.msra.mxu0 %v1431
        %1449 = vmatprep.subr.mxu0 0.0
        %1450 = vmatpush1.xpose.msra.mxu0 0.0
        %1451 = vmatprep.subr.mxu0 0.0
        %1452 = vmatpush1.xpose.msra.mxu0 0.0
        %1453 = vmatprep.subr.mxu0 0.0
        %1454 = vmatpush1.xpose.msra.mxu0 0.0
        %1455 = vmatprep.subr.mxu0 0.0
        %1456 = vmatpush1.xpose.msra.mxu0 0.0
        %1457 = vmatprep.subr.mxu0 0.0
        %1458 = vmatpush1.xpose.msra.mxu0 0.0
        %1459 = vmatprep.subr.mxu0 0.0
        %1460 = vmatpush1.xpose.msra.mxu0 0.0
        %1461 = vmatprep.subr.mxu0 0.0
        %1462 = vmatpush1.xpose.msra.mxu0 0.0
        %1463 = vmatprep.subr.mxu0 0.0
        %1464 = vmatpush1.xpose.msra.mxu0 0.0
        %1465 = vmatprep.subr.mxu0 0.0
        %1466 = vmatpush1.xpose.msra.mxu0 0.0
        %1467 = vmatprep.subr.mxu0 0.0
        %1468 = vmatpush1.xpose.msra.mxu0 0.0
        %1469 = vmatprep.subr.mxu0 0.0
        %1470 = vmatpush1.xpose.msra.mxu0 0.0
        %1471 = vmatprep.subr.mxu0 0.0
        %1472 = vmatpush1.xpose.msra.mxu0 0.0
        %1473 = vmatprep.subr.mxu0 0.0
        %1474 = vmatpush1.xpose.msra.mxu0 0.0
        %1475 = vmatprep.subr.mxu0 0.0
        %1476 = vmatpush1.xpose.msra.mxu0 0.0
        %1477 = vmatprep.subr.mxu0 0.0
        %1478 = vmatpush1.xpose.msra.mxu0 0.0
        %1479 = vmatprep.subr.mxu0 0.0
        %1480 = vmatpush1.xpose.msra.mxu0 0.0
        %1481 = vmatprep.subr.mxu0 0.0
        %1482 = vmatpush1.xpose.msra.mxu0 0.0
        %1483 = vmatprep.subr.mxu0 0.0
        %1484 = vmatpush1.xpose.msra.mxu0 0.0
        %1485 = vmatprep.subr.mxu0 0.0
        %1486 = vmatpush1.xpose.msra.mxu0 0.0
        %1487 = vmatprep.subr.mxu0 0.0
        %1488 = vmatpush1.xpose.msra.mxu0 0.0
        %1489 = vmatprep.subr.mxu0 0.0
        %1490 = vmatpush1.xpose.msra.mxu0 0.0
        %1491 = vmatprep.subr.mxu0 0.0
        %1492 = vmatpush1.xpose.msra.mxu0 0.0
        %1493 = vmatprep.subr.mxu0 0.0
        %1494 = vmatpush1.xpose.msra.mxu0 0.0
        %1495 = vmatprep.subr.mxu0 0.0
        %1496 = vmatpush1.xpose.msra.mxu0 0.0
        %1497 = vmatprep.mubr.f32.mxu0 0.0
        %1498 = vmatmul.mubr.f32.gmra.mrb[0].mxu0 %v1404
        %v1499 = vpop.f32.mrb[0].mxu0
        %v1500 = vadd.f32 %v1402, %v1499
        %v1501 = vpop.f32.mrb[0].mxu0
        %1502 = vmatprep.mubr.f32.mxu0 0.0
        %1503 = vmatmul.mubr.f32.gmra.mrb[0].mxu0 %v1407
        %v1504 = vpop.f32.mrb[0].mxu0
        %v1505 = vadd.f32 %v1402, %v1504
        %v1506 = vpop.f32.mrb[0].mxu0
        %1507 = vdwg.mxu0
        %v1508 = vmul.f32 %v1500, %v1500
        %v1509 = vmul.f32 %v1505, %v1505
        %v1510 = vmul.f32 %v1500, %v1508
        %v1511 = vmul.f32 %v1505, %v1509
        %v1512 = vmul.f32 %v1510, 0.044715
        %v1513 = vmul.f32 %v1511, 0.044715
        %v1514 = vadd.f32 %v1500, %v1512
        %v1515 = vadd.f32 %v1505, %v1513
        %v1516 = vmul.f32 %v1514, 0.7978846
        %v1517 = vmul.f32 %v1515, 0.7978846
        %v1518 = vtanh.pop %v1516
        %v1519 = vtanh.pop %v1517
        %v1520 = vadd.f32 %v1518, 1.0
        %v1521 = vadd.f32 %v1519, 1.0
        %v1522 = vmul.f32 %v1520, 0.5
        %v1523 = vmul.f32 %v1521, 0.5
        %v1524 = vmul.f32 %v1500, %v1522
        %v1525 = vmul.f32 %v1505, %v1523
        %v1526 = vld [vmem:[%s1 + $0xd0] sm:$0xff]
        %v1527 = vld [vmem:[%s1 + $0xd8] sm:$0xff]
        %v1528 = vld [vmem:[%s1 + $0xe0] sm:$0xff]
        %v1529 = vld [vmem:[%s1 + $0xe8] sm:$0xff]
        %v1530 = vld [vmem:[%s1 + $0xf0] sm:$0xff]
        %v1531 = vld [vmem:[%s1 + $0xf8] sm:$0xff]
        %v1532 = vld [vmem:[%s1 + $0x100] sm:$0xff]
        %v1533 = vld [vmem:[%s1 + $0x108] sm:$0xff]
        %v1534 = vld [vmem:[%s2 + $0x40] sm:$0x1]
        %v1535 = vlaneseq
        %v1536 = vshrl.u32 %v1535, 7
        %v1537 = vsub.s32 0, %v1536
        %v1538 = vrot.slane %v1534, %v1537
        %vm1539 = vcmask 523264
        %v1541 = vsel %vm1539, %v1524, 0
        %v1544 = vsel %vm1539, %v1525, 0
        %1546 = vmatprep.subr.mxu0 0.0
        %1547 = vmatpush1.msra.mxu0 %v1526
        %1548 = vmatprep.subr.mxu0 0.0
        %1549 = vmatpush1.msra.mxu0 %v1527
        %1550 = vmatprep.subr.mxu0 0.0
        %1551 = vmatpush1.msra.mxu0 %v1528
        %1552 = vmatprep.subr.mxu0 0.0
        %1553 = vmatpush1.msra.mxu0 %v1529
        %1554 = vmatprep.subr.mxu0 0.0
        %1555 = vmatpush1.msra.mxu0 %v1530
        %1556 = vmatprep.subr.mxu0 0.0
        %1557 = vmatpush1.msra.mxu0 %v1531
        %1558 = vmatprep.subr.mxu0 0.0
        %1559 = vmatpush1.msra.mxu0 %v1532
        %1560 = vmatprep.subr.mxu0 0.0
        %1561 = vmatpush1.msra.mxu0 %v1533
        %1562 = vmatprep.subr.mxu0 0.0
        %1563 = vmatpush1.msra.mxu0 0.0
        %1564 = vmatprep.subr.mxu0 0.0
        %1565 = vmatpush1.msra.mxu0 0.0
        %1566 = vmatprep.subr.mxu0 0.0
        %1567 = vmatpush1.msra.mxu0 0.0
        %1568 = vmatprep.subr.mxu0 0.0
        %1569 = vmatpush1.msra.mxu0 0.0
        %1570 = vmatprep.subr.mxu0 0.0
        %1571 = vmatpush1.msra.mxu0 0.0
        %1572 = vmatprep.subr.mxu0 0.0
        %1573 = vmatpush1.msra.mxu0 0.0
        %1574 = vmatprep.subr.mxu0 0.0
        %1575 = vmatpush1.msra.mxu0 0.0
        %1576 = vmatprep.subr.mxu0 0.0
        %1577 = vmatpush1.msra.mxu0 0.0
        %1578 = vmatprep.subr.mxu0 0.0
        %1579 = vmatpush1.msra.mxu0 0.0
        %1580 = vmatprep.subr.mxu0 0.0
        %1581 = vmatpush1.msra.mxu0 0.0
        %1582 = vmatprep.subr.mxu0 0.0
        %1583 = vmatpush1.msra.mxu0 0.0
        %1584 = vmatprep.subr.mxu0 0.0
        %1585 = vmatpush1.msra.mxu0 0.0
        %1586 = vmatprep.subr.mxu0 0.0
        %1587 = vmatpush1.msra.mxu0 0.0
        %1588 = vmatprep.subr.mxu0 0.0
        %1589 = vmatpush1.msra.mxu0 0.0
        %1590 = vmatprep.subr.mxu0 0.0
        %1591 = vmatpush1.msra.mxu0 0.0
        %1592 = vmatprep.subr.mxu0 0.0
        %1593 = vmatpush1.msra.mxu0 0.0
        %1594 = vmatprep.subr.mxu0 0.0
        %1595 = vmatpush1.msra.mxu0 0.0
        %1596 = vmatprep.subr.mxu0 0.0
        %1597 = vmatpush1.msra.mxu0 0.0
        %1598 = vmatprep.subr.mxu0 0.0
        %1599 = vmatpush1.msra.mxu0 0.0
        %1600 = vmatprep.subr.mxu0 0.0
        %1601 = vmatpush1.msra.mxu0 0.0
        %1602 = vmatprep.subr.mxu0 0.0
        %1603 = vmatpush1.msra.mxu0 0.0
        %1604 = vmatprep.subr.mxu0 0.0
        %1605 = vmatpush1.msra.mxu0 0.0
        %1606 = vmatprep.subr.mxu0 0.0
        %1607 = vmatpush1.msra.mxu0 0.0
        %1608 = vmatprep.subr.mxu0 0.0
        %1609 = vmatpush1.msra.mxu0 0.0
        %1610 = vmatprep.mubr.f32.mxu0 0.0
        %1611 = vmatmul.mubr.f32.gmra.mrb[0].mxu0 %v1541
        %v1612 = vpop.f32.mrb[0].mxu0
        %v1613 = vadd.f32 %v1538, %v1612
        %v1614 = vpop.f32.mrb[0].mxu0
        %1615 = vmatprep.mubr.f32.mxu0 0.0
        %1616 = vmatmul.mubr.f32.gmra.mrb[0].mxu0 %v1544
        %v1617 = vpop.f32.mrb[0].mxu0
        %v1618 = vadd.f32 %v1538, %v1617
        %v1619 = vpop.f32.mrb[0].mxu0
        %1620 = vdwg.mxu0
        %v1621 = vadd.f32 %v1388, %v1613
        %v1622 = vadd.f32 %v1389, %v1618
        %v1623 = vld [vmem:[%s2 + $0x48] sm:$0x1]
        %v1624 = vld [vmem:[%s2 + $0x50] sm:$0x1]
        %v1625 = vsel %vm611, %v1621, 0.0
        %1626 = vadd.xlane.f32.xlu0 %v1625
        %v1627 = vpop.xlane.xlu0 %1626
        %v1628 = vsel %vm611, %v1622, 0.0
        %1629 = vadd.xlane.f32.xlu0 %v1628
        %v1630 = vpop.xlane.xlu0 %1629
        %v1631 = vmul.f32 %v1627, %v285
        %v1632 = vmul.f32 %v1630, %v285
        %v1633 = vsub.f32 %v1621, %v1631
        %v1634 = vsub.f32 %v1622, %v1632
        %v1635 = vmul.f32 %v1633, %v1633
        %v1636 = vmul.f32 %v1634, %v1634
        %v1637 = vsel %vm611, %v1635, 0.0
        %1638 = vadd.xlane.f32.xlu0 %v1637
        %v1639 = vpop.xlane.xlu0 %1638
        %v1640 = vsel %vm611, %v1636, 0.0
        %1641 = vadd.xlane.f32.xlu0 %v1640
        %v1642 = vpop.xlane.xlu0 %1641
        %v1643 = vmul.f32 %v1639, %v285
        %v1644 = vmul.f32 %v1642, %v285
        %v1645 = vadd.f32 %v1643, 1e-05
        %v1646 = vadd.f32 %v1644, 1e-05
        %v1647 = vrsqrt.pop %v1645
        %v1648 = vrsqrt.pop %v1646
        %v1649 = vmul.f32 %v1633, %v1647
        %v1650 = vmul.f32 %v1634, %v1648
        %v1651 = vlaneseq
        %v1652 = vshrl.u32 %v1651, 7
        %v1653 = vsub.s32 0, %v1652
        %v1654 = vrot.slane %v1623, %v1653
        %v1655 = vmul.f32 %v1649, %v1654
        %v1656 = vmul.f32 %v1650, %v1654
        %v1657 = vlaneseq
        %v1658 = vshrl.u32 %v1657, 7
        %v1659 = vsub.s32 0, %v1658
        %v1660 = vrot.slane %v1624, %v1659
        %v1661 = vadd.f32 %v1655, %v1660
        %v1662 = vadd.f32 %v1656, %v1660
        %v1663 = vld [vmem:[%s1 + $0x420] sm:$0xff]
        %v1664 = vld [vmem:[%s1 + $0x110] sm:$0xff]
        %v1665 = vld [vmem:[%s1 + $0x118] sm:$0xff]
        %v1666 = vld [vmem:[%s1 + $0x120] sm:$0xff]
        %v1667 = vld [vmem:[%s1 + $0x128] sm:$0xff]
        %v1668 = vld [vmem:[%s1 + $0x130] sm:$0xff]
        %v1669 = vld [vmem:[%s1 + $0x138] sm:$0xff]
        %v1670 = vld [vmem:[%s1 + $0x140] sm:$0xff]
        %v1671 = vld [vmem:[%s1 + $0x148] sm:$0xff]
        %v1672 = vld [vmem:[%s1 + $0x150] sm:$0xff]
        %v1673 = vld [vmem:[%s1 + $0x158] sm:$0xff]
        %v1674 = vld [vmem:[%s1 + $0x160] sm:$0xff]
        %v1675 = vld [vmem:[%s1 + $0x168] sm:$0xff]
        %v1676 = vld [vmem:[%s2 + $0x58] sm:$0x1]
        %v1677 = vlaneseq
        %v1678 = vshrl.u32 %v1677, 7
        %v1679 = vsub.s32 0, %v1678
        %v1680 = vrot.slane %v1676, %v1679
        %v1682 = vsel %vm611, %v1663, 0
        %v1685 = vsel %vm611, %v1664, 0
        %v1688 = vsel %vm611, %v1665, 0
        %v1691 = vsel %vm611, %v1666, 0
        %v1694 = vsel %vm611, %v1667, 0
        %v1697 = vsel %vm611, %v1668, 0
        %v1700 = vsel %vm611, %v1669, 0
        %v1703 = vsel %vm611, %v1670, 0
        %v1706 = vsel %vm611, %v1671, 0
        %v1709 = vsel %vm611, %v1672, 0
        %v1712 = vsel %vm611, %v1673, 0
        %v1715 = vsel %vm611, %v1674, 0
        %v1718 = vsel %vm611, %v1675, 0
        %1720 = vmatprep.subr.mxu0 0.0
        %1721 = vmatpush1.xpose.msra.mxu0 %v1685
        %1722 = vmatprep.subr.mxu0 0.0
        %1723 = vmatpush1.xpose.msra.mxu0 %v1688
        %1724 = vmatprep.subr.mxu0 0.0
        %1725 = vmatpush1.xpose.msra.mxu0 %v1691
        %1726 = vmatprep.subr.mxu0 0.0
        %1727 = vmatpush1.xpose.msra.mxu0 %v1694
        %1728 = vmatprep.subr.mxu0 0.0
        %1729 = vmatpush1.xpose.msra.mxu0 %v1697
        %1730 = vmatprep.subr.mxu0 0.0
        %1731 = vmatpush1.xpose.msra.mxu0 %v1700
        %1732 = vmatprep.subr.mxu0 0.0
        %1733 = vmatpush1.xpose.msra.mxu0 %v1703
        %1734 = vmatprep.subr.mxu0 0.0
        %1735 = vmatpush1.xpose.msra.mxu0 %v1706
        %1736 = vmatprep.subr.mxu0 0.0
        %1737 = vmatpush1.xpose.msra.mxu0 %v1709
        %1738 = vmatprep.subr.mxu0 0.0
        %1739 = vmatpush1.xpose.msra.mxu0 %v1712
        %1740 = vmatprep.subr.mxu0 0.0
        %1741 = vmatpush1.xpose.msra.mxu0 %v1715
        %1742 = vmatprep.subr.mxu0 0.0
        %1743 = vmatpush1.xpose.msra.mxu0 %v1718
        %1744 = vmatprep.subr.mxu0 0.0
        %1745 = vmatpush1.xpose.msra.mxu0 0.0
        %1746 = vmatprep.subr.mxu0 0.0
        %1747 = vmatpush1.xpose.msra.mxu0 0.0
        %1748 = vmatprep.subr.mxu0 0.0
        %1749 = vmatpush1.xpose.msra.mxu0 0.0
        %1750 = vmatprep.subr.mxu0 0.0
        %1751 = vmatpush1.xpose.msra.mxu0 0.0
        %1752 = vmatprep.subr.mxu0 0.0
        %1753 = vmatpush1.xpose.msra.mxu0 0.0
        %1754 = vmatprep.subr.mxu0 0.0
        %1755 = vmatpush1.xpose.msra.mxu0 0.0
        %1756 = vmatprep.subr.mxu0 0.0
        %1757 = vmatpush1.xpose.msra.mxu0 0.0
        %1758 = vmatprep.subr.mxu0 0.0
        %1759 = vmatpush1.xpose.msra.mxu0 0.0
        %1760 = vmatprep.subr.mxu0 0.0
        %1761 = vmatpush1.xpose.msra.mxu0 0.0
        %1762 = vmatprep.subr.mxu0 0.0
        %1763 = vmatpush1.xpose.msra.mxu0 0.0
        %1764 = vmatprep.subr.mxu0 0.0
        %1765 = vmatpush1.xpose.msra.mxu0 0.0
        %1766 = vmatprep.subr.mxu0 0.0
        %1767 = vmatpush1.xpose.msra.mxu0 0.0
        %1768 = vmatprep.subr.mxu0 0.0
        %1769 = vmatpush1.xpose.msra.mxu0 0.0
        %1770 = vmatprep.subr.mxu0 0.0
        %1771 = vmatpush1.xpose.msra.mxu0 0.0
        %1772 = vmatprep.subr.mxu0 0.0
        %1773 = vmatpush1.xpose.msra.mxu0 0.0
        %1774 = vmatprep.subr.mxu0 0.0
        %1775 = vmatpush1.xpose.msra.mxu0 0.0
        %1776 = vmatprep.subr.mxu0 0.0
        %1777 = vmatpush1.xpose.msra.mxu0 0.0
        %1778 = vmatprep.subr.mxu0 0.0
        %1779 = vmatpush1.xpose.msra.mxu0 0.0
        %1780 = vmatprep.subr.mxu0 0.0
        %1781 = vmatpush1.xpose.msra.mxu0 0.0
        %1782 = vmatprep.subr.mxu0 0.0
        %1783 = vmatpush1.xpose.msra.mxu0 0.0
        %1784 = vmatprep.mubr.f32.mxu0 0.0
        %1785 = vmatmul.mubr.f32.gmra.mrb[0].mxu0 %v1682
        %v1786 = vpop.f32.mrb[0].mxu0
        %v1787 = vadd.f32 %v1680, %v1786
        %v1788 = vpop.f32.mrb[0].mxu0
        %1789 = vdwg.mxu0
        %v1790 = vld [vmem:[%s1 + $0x170] sm:$0xff]
        %v1791 = vld [vmem:[%s1 + $0x178] sm:$0xff]
        %v1792 = vld [vmem:[%s1 + $0x180] sm:$0xff]
        %v1793 = vld [vmem:[%s1 + $0x188] sm:$0xff]
        %1795 = vrot.lane.b32.xlu0 %v1787, 96
        %v1796 = vpop.permute.xlu0 %1795
        %v1797 = vsel %vm782, %v1787, 0
        %v1799 = vsel %vm782, %v1796, 0
        %1801 = vmatprep.subr.mxu0 0.0
        %1802 = vmatpush1.xpose.msra.mxu0 %v1799
        %1803 = vmatprep.subr.mxu0 0.0
        %1804 = vmatpush1.xpose.msra.mxu0 0.0
        %1805 = vmatprep.subr.mxu0 0.0
        %1806 = vmatpush1.xpose.msra.mxu0 0.0
        %1807 = vmatprep.subr.mxu0 0.0
        %1808 = vmatpush1.xpose.msra.mxu0 0.0
        %1809 = vmatprep.subr.mxu0 0.0
        %1810 = vmatpush1.xpose.msra.mxu0 0.0
        %1811 = vmatprep.subr.mxu0 0.0
        %1812 = vmatpush1.xpose.msra.mxu0 0.0
        %1813 = vmatprep.subr.mxu0 0.0
        %1814 = vmatpush1.xpose.msra.mxu0 0.0
        %1815 = vmatprep.subr.mxu0 0.0
        %1816 = vmatpush1.xpose.msra.mxu0 0.0
        %1817 = vmatprep.subr.mxu0 0.0
        %1818 = vmatpush1.xpose.msra.mxu0 0.0
        %1819 = vmatprep.subr.mxu0 0.0
        %1820 = vmatpush1.xpose.msra.mxu0 0.0
        %1821 = vmatprep.subr.mxu0 0.0
        %1822 = vmatpush1.xpose.msra.mxu0 0.0
        %1823 = vmatprep.subr.mxu0 0.0
        %1824 = vmatpush1.xpose.msra.mxu0 0.0
        %1825 = vmatprep.subr.mxu0 0.0
        %1826 = vmatpush1.xpose.msra.mxu0 0.0
        %1827 = vmatprep.subr.mxu0 0.0
        %1828 = vmatpush1.xpose.msra.mxu0 0.0
        %1829 = vmatprep.subr.mxu0 0.0
        %1830 = vmatpush1.xpose.msra.mxu0 0.0
        %1831 = vmatprep.subr.mxu0 0.0
        %1832 = vmatpush1.xpose.msra.mxu0 0.0
        %1833 = vmatprep.subr.mxu0 0.0
        %1834 = vmatpush1.xpose.msra.mxu0 0.0
        %1835 = vmatprep.subr.mxu0 0.0
        %1836 = vmatpush1.xpose.msra.mxu0 0.0
        %1837 = vmatprep.subr.mxu0 0.0
        %1838 = vmatpush1.xpose.msra.mxu0 0.0
        %1839 = vmatprep.subr.mxu0 0.0
        %1840 = vmatpush1.xpose.msra.mxu0 0.0
        %1841 = vmatprep.subr.mxu0 0.0
        %1842 = vmatpush1.xpose.msra.mxu0 0.0
        %1843 = vmatprep.subr.mxu0 0.0
        %1844 = vmatpush1.xpose.msra.mxu0 0.0
        %1845 = vmatprep.subr.mxu0 0.0
        %1846 = vmatpush1.xpose.msra.mxu0 0.0
        %1847 = vmatprep.subr.mxu0 0.0
        %1848 = vmatpush1.xpose.msra.mxu0 0.0
        %1849 = vmatprep.subr.mxu0 0.0
        %1850 = vmatpush1.xpose.msra.mxu0 0.0
        %1851 = vmatprep.subr.mxu0 0.0
        %1852 = vmatpush1.xpose.msra.mxu0 0.0
        %1853 = vmatprep.subr.mxu0 0.0
        %1854 = vmatpush1.xpose.msra.mxu0 0.0
        %1855 = vmatprep.subr.mxu0 0.0
        %1856 = vmatpush1.xpose.msra.mxu0 0.0
        %1857 = vmatprep.subr.mxu0 0.0
        %1858 = vmatpush1.xpose.msra.mxu0 0.0
        %1859 = vmatprep.subr.mxu0 0.0
        %1860 = vmatpush1.xpose.msra.mxu0 0.0
        %1861 = vmatprep.subr.mxu0 0.0
        %1862 = vmatpush1.xpose.msra.mxu0 0.0
        %1863 = vmatprep.subr.mxu0 0.0
        %1864 = vmatpush1.xpose.msra.mxu0 0.0
        %1865 = vmatprep.mubr.f32.mxu0 0.0
        %1866 = vmatmul.mubr.f32.gmra.mrb[0].mxu0 %v1797
        %v1867 = vpop.f32.mrb[0].mxu0
        %v1868 = vadd.f32 0.0, %v1867
        %v1869 = vpop.f32.mrb[0].mxu0
        %1870 = vdwg.mxu0
        %v1871 = vsel %vm774, %v1868, -1e+30
        %vm1872 = vcmask 64512
        %v1873 = vsel %vm1872, %v1871, -inf
        %1874 = vmax.xlane.f32.xlu0 %v1873
        %v1875 = vpop.xlane.xlu0 %1874
        %v1876 = vsub.f32 %v1871, %v1875
        %v1877 = vmul.f32 %v1876, 1.442695
        %v1878 = vpow.pop %v1877
        %v1879 = vsel %vm1872, %v1878, 0.0
        %1880 = vadd.xlane.f32.xlu0 %v1879
        %v1881 = vpop.xlane.xlu0 %1880
        %v1882 = vrcp.pop %v1881
        %v1883 = vmul.f32 %v1878, %v1882
        %1884 = vrot.lane.b32.xlu0 %v1787, 64
        %v1885 = vpop.permute.xlu0 %1884
        %v1888 = vsel %vm1872, %v1883, 0
        %1890 = vmatprep.subr.mxu0 0.0
        %1891 = vmatpush1.msra.mxu0 %v1885
        %1892 = vmatprep.subr.mxu0 0.0
        %1893 = vmatpush1.msra.mxu0 0.0
        %1894 = vmatprep.subr.mxu0 0.0
        %1895 = vmatpush1.msra.mxu0 0.0
        %1896 = vmatprep.subr.mxu0 0.0
        %1897 = vmatpush1.msra.mxu0 0.0
        %1898 = vmatprep.subr.mxu0 0.0
        %1899 = vmatpush1.msra.mxu0 0.0
        %1900 = vmatprep.subr.mxu0 0.0
        %1901 = vmatpush1.msra.mxu0 0.0
        %1902 = vmatprep.subr.mxu0 0.0
        %1903 = vmatpush1.msra.mxu0 0.0
        %1904 = vmatprep.subr.mxu0 0.0
        %1905 = vmatpush1.msra.mxu0 0.0
        %1906 = vmatprep.subr.mxu0 0.0
        %1907 = vmatpush1.msra.mxu0 0.0
        %1908 = vmatprep.subr.mxu0 0.0
        %1909 = vmatpush1.msra.mxu0 0.0
        %1910 = vmatprep.subr.mxu0 0.0
        %1911 = vmatpush1.msra.mxu0 0.0
        %1912 = vmatprep.subr.mxu0 0.0
        %1913 = vmatpush1.msra.mxu0 0.0
        %1914 = vmatprep.subr.mxu0 0.0
        %1915 = vmatpush1.msra.mxu0 0.0
        %1916 = vmatprep.subr.mxu0 0.0
        %1917 = vmatpush1.msra.mxu0 0.0
        %1918 = vmatprep.subr.mxu0 0.0
        %1919 = vmatpush1.msra.mxu0 0.0
        %1920 = vmatprep.subr.mxu0 0.0
        %1921 = vmatpush1.msra.mxu0 0.0
        %1922 = vmatprep.subr.mxu0 0.0
        %1923 = vmatpush1.msra.mxu0 0.0
        %1924 = vmatprep.subr.mxu0 0.0
        %1925 = vmatpush1.msra.mxu0 0.0
        %1926 = vmatprep.subr.mxu0 0.0
        %1927 = vmatpush1.msra.mxu0 0.0
        %1928 = vmatprep.subr.mxu0 0.0
        %1929 = vmatpush1.msra.mxu0 0.0
        %1930 = vmatprep.subr.mxu0 0.0
        %1931 = vmatpush1.msra.mxu0 0.0
        %1932 = vmatprep.subr.mxu0 0.0
        %1933 = vmatpush1.msra.mxu0 0.0
        %1934 = vmatprep.subr.mxu0 0.0
        %1935 = vmatpush1.msra.mxu0 0.0
        %1936 = vmatprep.subr.mxu0 0.0
        %1937 = vmatpush1.msra.mxu0 0.0
        %1938 = vmatprep.subr.mxu0 0.0
        %1939 = vmatpush1.msra.mxu0 0.0
        %1940 = vmatprep.subr.mxu0 0.0
        %1941 = vmatpush1.msra.mxu0 0.0
        %1942 = vmatprep.subr.mxu0 0.0
        %1943 = vmatpush1.msra.mxu0 0.0
        %1944 = vmatprep.subr.mxu0 0.0
        %1945 = vmatpush1.msra.mxu0 0.0
        %1946 = vmatprep.subr.mxu0 0.0
        %1947 = vmatpush1.msra.mxu0 0.0
        %1948 = vmatprep.subr.mxu0 0.0
        %1949 = vmatpush1.msra.mxu0 0.0
        %1950 = vmatprep.subr.mxu0 0.0
        %1951 = vmatpush1.msra.mxu0 0.0
        %1952 = vmatprep.subr.mxu0 0.0
        %1953 = vmatpush1.msra.mxu0 0.0
        %1954 = vmatprep.mubr.f32.mxu0 0.0
        %1955 = vmatmul.mubr.f32.gmra.mrb[0].mxu0 %v1888
        %v1956 = vpop.f32.mrb[0].mxu0
        %v1957 = vadd.f32 0.0, %v1956
        %v1958 = vpop.f32.mrb[0].mxu0
        %1959 = vdwg.mxu0
        %1960 = vrot.lane.b32.xlu0 %v1787, 112
        %v1961 = vpop.permute.xlu0 %1960
        %1962 = vrot.lane.b32.xlu0 %v1787, 80
        %v1963 = vpop.permute.xlu0 %1962
        %v1964 = vsel %vm782, %v1961, 0
        %v1966 = vsel %vm782, %v1963, 0
        %1968 = vmatprep.subr.mxu0 0.0
        %1969 = vmatpush1.xpose.msra.mxu0 %v1966
        %1970 = vmatprep.subr.mxu0 0.0
        %1971 = vmatpush1.xpose.msra.mxu0 0.0
        %1972 = vmatprep.subr.mxu0 0.0
        %1973 = vmatpush1.xpose.msra.mxu0 0.0
        %1974 = vmatprep.subr.mxu0 0.0
        %1975 = vmatpush1.xpose.msra.mxu0 0.0
        %1976 = vmatprep.subr.mxu0 0.0
        %1977 = vmatpush1.xpose.msra.mxu0 0.0
        %1978 = vmatprep.subr.mxu0 0.0
        %1979 = vmatpush1.xpose.msra.mxu0 0.0
        %1980 = vmatprep.subr.mxu0 0.0
        %1981 = vmatpush1.xpose.msra.mxu0 0.0
        %1982 = vmatprep.subr.mxu0 0.0
        %1983 = vmatpush1.xpose.msra.mxu0 0.0
        %1984 = vmatprep.subr.mxu0 0.0
        %1985 = vmatpush1.xpose.msra.mxu0 0.0
        %1986 = vmatprep.subr.mxu0 0.0
        %1987 = vmatpush1.xpose.msra.mxu0 0.0
        %1988 = vmatprep.subr.mxu0 0.0
        %1989 = vmatpush1.xpose.msra.mxu0 0.0
        %1990 = vmatprep.subr.mxu0 0.0
        %1991 = vmatpush1.xpose.msra.mxu0 0.0
        %1992 = vmatprep.subr.mxu0 0.0
        %1993 = vmatpush1.xpose.msra.mxu0 0.0
        %1994 = vmatprep.subr.mxu0 0.0
        %1995 = vmatpush1.xpose.msra.mxu0 0.0
        %1996 = vmatprep.subr.mxu0 0.0
        %1997 = vmatpush1.xpose.msra.mxu0 0.0
        %1998 = vmatprep.subr.mxu0 0.0
        %1999 = vmatpush1.xpose.msra.mxu0 0.0
        %2000 = vmatprep.subr.mxu0 0.0
        %2001 = vmatpush1.xpose.msra.mxu0 0.0
        %2002 = vmatprep.subr.mxu0 0.0
        %2003 = vmatpush1.xpose.msra.mxu0 0.0
        %2004 = vmatprep.subr.mxu0 0.0
        %2005 = vmatpush1.xpose.msra.mxu0 0.0
        %2006 = vmatprep.subr.mxu0 0.0
        %2007 = vmatpush1.xpose.msra.mxu0 0.0
        %2008 = vmatprep.subr.mxu0 0.0
        %2009 = vmatpush1.xpose.msra.mxu0 0.0
        %2010 = vmatprep.subr.mxu0 0.0
        %2011 = vmatpush1.xpose.msra.mxu0 0.0
        %2012 = vmatprep.subr.mxu0 0.0
        %2013 = vmatpush1.xpose.msra.mxu0 0.0
        %2014 = vmatprep.subr.mxu0 0.0
        %2015 = vmatpush1.xpose.msra.mxu0 0.0
        %2016 = vmatprep.subr.mxu0 0.0
        %2017 = vmatpush1.xpose.msra.mxu0 0.0
        %2018 = vmatprep.subr.mxu0 0.0
        %2019 = vmatpush1.xpose.msra.mxu0 0.0
        %2020 = vmatprep.subr.mxu0 0.0
        %2021 = vmatpush1.xpose.msra.mxu0 0.0
        %2022 = vmatprep.subr.mxu0 0.0
        %2023 = vmatpush1.xpose.msra.mxu0 0.0
        %2024 = vmatprep.subr.mxu0 0.0
        %2025 = vmatpush1.xpose.msra.mxu0 0.0
        %2026 = vmatprep.subr.mxu0 0.0
        %2027 = vmatpush1.xpose.msra.mxu0 0.0
        %2028 = vmatprep.subr.mxu0 0.0
        %2029 = vmatpush1.xpose.msra.mxu0 0.0
        %2030 = vmatprep.subr.mxu0 0.0
        %2031 = vmatpush1.xpose.msra.mxu0 0.0
        %2032 = vmatprep.mubr.f32.mxu0 0.0
        %2033 = vmatmul.mubr.f32.gmra.mrb[0].mxu0 %v1964
        %v2034 = vpop.f32.mrb[0].mxu0
        %v2035 = vadd.f32 0.0, %v2034
        %v2036 = vpop.f32.mrb[0].mxu0
        %2037 = vdwg.mxu0
        %v2038 = vsel %vm774, %v2035, -1e+30
        %v2039 = vsel %vm1872, %v2038, -inf
        %2040 = vmax.xlane.f32.xlu0 %v2039
        %v2041 = vpop.xlane.xlu0 %2040
        %v2042 = vsub.f32 %v2038, %v2041
        %v2043 = vmul.f32 %v2042, 1.442695
        %v2044 = vpow.pop %v2043
        %v2045 = vsel %vm1872, %v2044, 0.0
        %2046 = vadd.xlane.f32.xlu0 %v2045
        %v2047 = vpop.xlane.xlu0 %2046
        %v2048 = vrcp.pop %v2047
        %v2049 = vmul.f32 %v2044, %v2048
        %2050 = vrot.lane.b32.xlu0 %v1787, 48
        %v2051 = vpop.permute.xlu0 %2050
        %v2054 = vsel %vm1872, %v2049, 0
        %2056 = vmatprep.subr.mxu0 0.0
        %2057 = vmatpush1.msra.mxu0 %v2051
        %2058 = vmatprep.subr.mxu0 0.0
        %2059 = vmatpush1.msra.mxu0 0.0
        %2060 = vmatprep.subr.mxu0 0.0
        %2061 = vmatpush1.msra.mxu0 0.0
        %2062 = vmatprep.subr.mxu0 0.0
        %2063 = vmatpush1.msra.mxu0 0.0
        %2064 = vmatprep.subr.mxu0 0.0
        %2065 = vmatpush1.msra.mxu0 0.0
        %2066 = vmatprep.subr.mxu0 0.0
        %2067 = vmatpush1.msra.mxu0 0.0
        %2068 = vmatprep.subr.mxu0 0.0
        %2069 = vmatpush1.msra.mxu0 0.0
        %2070 = vmatprep.subr.mxu0 0.0
        %2071 = vmatpush1.msra.mxu0 0.0
        %2072 = vmatprep.subr.mxu0 0.0
        %2073 = vmatpush1.msra.mxu0 0.0
        %2074 = vmatprep.subr.mxu0 0.0
        %2075 = vmatpush1.msra.mxu0 0.0
        %2076 = vmatprep.subr.mxu0 0.0
        %2077 = vmatpush1.msra.mxu0 0.0
        %2078 = vmatprep.subr.mxu0 0.0
        %2079 = vmatpush1.msra.mxu0 0.0
        %2080 = vmatprep.subr.mxu0 0.0
        %2081 = vmatpush1.msra.mxu0 0.0
        %2082 = vmatprep.subr.mxu0 0.0
        %2083 = vmatpush1.msra.mxu0 0.0
        %2084 = vmatprep.subr.mxu0 0.0
        %2085 = vmatpush1.msra.mxu0 0.0
        %2086 = vmatprep.subr.mxu0 0.0
        %2087 = vmatpush1.msra.mxu0 0.0
        %2088 = vmatprep.subr.mxu0 0.0
        %2089 = vmatpush1.msra.mxu0 0.0
        %2090 = vmatprep.subr.mxu0 0.0
        %2091 = vmatpush1.msra.mxu0 0.0
        %2092 = vmatprep.subr.mxu0 0.0
        %2093 = vmatpush1.msra.mxu0 0.0
        %2094 = vmatprep.subr.mxu0 0.0
        %2095 = vmatpush1.msra.mxu0 0.0
        %2096 = vmatprep.subr.mxu0 0.0
        %2097 = vmatpush1.msra.mxu0 0.0
        %2098 = vmatprep.subr.mxu0 0.0
        %2099 = vmatpush1.msra.mxu0 0.0
        %2100 = vmatprep.subr.mxu0 0.0
        %2101 = vmatpush1.msra.mxu0 0.0
        %2102 = vmatprep.subr.mxu0 0.0
        %2103 = vmatpush1.msra.mxu0 0.0
        %2104 = vmatprep.subr.mxu0 0.0
        %2105 = vmatpush1.msra.mxu0 0.0
        %2106 = vmatprep.subr.mxu0 0.0
        %2107 = vmatpush1.msra.mxu0 0.0
        %2108 = vmatprep.subr.mxu0 0.0
        %2109 = vmatpush1.msra.mxu0 0.0
        %2110 = vmatprep.subr.mxu0 0.0
        %2111 = vmatpush1.msra.mxu0 0.0
        %2112 = vmatprep.subr.mxu0 0.0
        %2113 = vmatpush1.msra.mxu0 0.0
        %2114 = vmatprep.subr.mxu0 0.0
        %2115 = vmatpush1.msra.mxu0 0.0
        %2116 = vmatprep.subr.mxu0 0.0
        %2117 = vmatpush1.msra.mxu0 0.0
        %2118 = vmatprep.subr.mxu0 0.0
        %2119 = vmatpush1.msra.mxu0 0.0
        %2120 = vmatprep.mubr.f32.mxu0 0.0
        %2121 = vmatmul.mubr.f32.gmra.mrb[0].mxu0 %v2054
        %v2122 = vpop.f32.mrb[0].mxu0
        %v2123 = vadd.f32 0.0, %v2122
        %v2124 = vpop.f32.mrb[0].mxu0
        %2125 = vdwg.mxu0
        %v2127 = vsel %vm782, %v2123, 0
        %2129 = vmatprep.subr.mxu0 0.0
        %2130 = vmatpush1.msra.mxu0 %v1792
        %2131 = vmatprep.subr.mxu0 0.0
        %2132 = vmatpush1.msra.mxu0 %v1793
        %2133 = vmatprep.subr.mxu0 0.0
        %2134 = vmatpush1.msra.mxu0 0.0
        %2135 = vmatprep.subr.mxu0 0.0
        %2136 = vmatpush1.msra.mxu0 0.0
        %2137 = vmatprep.subr.mxu0 0.0
        %2138 = vmatpush1.msra.mxu0 0.0
        %2139 = vmatprep.subr.mxu0 0.0
        %2140 = vmatpush1.msra.mxu0 0.0
        %2141 = vmatprep.subr.mxu0 0.0
        %2142 = vmatpush1.msra.mxu0 0.0
        %2143 = vmatprep.subr.mxu0 0.0
        %2144 = vmatpush1.msra.mxu0 0.0
        %2145 = vmatprep.subr.mxu0 0.0
        %2146 = vmatpush1.msra.mxu0 0.0
        %2147 = vmatprep.subr.mxu0 0.0
        %2148 = vmatpush1.msra.mxu0 0.0
        %2149 = vmatprep.subr.mxu0 0.0
        %2150 = vmatpush1.msra.mxu0 0.0
        %2151 = vmatprep.subr.mxu0 0.0
        %2152 = vmatpush1.msra.mxu0 0.0
        %2153 = vmatprep.subr.mxu0 0.0
        %2154 = vmatpush1.msra.mxu0 0.0
        %2155 = vmatprep.subr.mxu0 0.0
        %2156 = vmatpush1.msra.mxu0 0.0
        %2157 = vmatprep.subr.mxu0 0.0
        %2158 = vmatpush1.msra.mxu0 0.0
        %2159 = vmatprep.subr.mxu0 0.0
        %2160 = vmatpush1.msra.mxu0 0.0
        %2161 = vmatprep.subr.mxu0 0.0
        %2162 = vmatpush1.msra.mxu0 0.0
        %2163 = vmatprep.subr.mxu0 0.0
        %2164 = vmatpush1.msra.mxu0 0.0
        %2165 = vmatprep.subr.mxu0 0.0
        %2166 = vmatpush1.msra.mxu0 0.0
        %2167 = vmatprep.subr.mxu0 0.0
        %2168 = vmatpush1.msra.mxu0 0.0
        %2169 = vmatprep.subr.mxu0 0.0
        %2170 = vmatpush1.msra.mxu0 0.0
        %2171 = vmatprep.subr.mxu0 0.0
        %2172 = vmatpush1.msra.mxu0 0.0
        %2173 = vmatprep.subr.mxu0 0.0
        %2174 = vmatpush1.msra.mxu0 0.0
        %2175 = vmatprep.subr.mxu0 0.0
        %2176 = vmatpush1.msra.mxu0 0.0
        %2177 = vmatprep.subr.mxu0 0.0
        %2178 = vmatpush1.msra.mxu0 0.0
        %2179 = vmatprep.subr.mxu0 0.0
        %2180 = vmatpush1.msra.mxu0 0.0
        %2181 = vmatprep.subr.mxu0 0.0
        %2182 = vmatpush1.msra.mxu0 0.0
        %2183 = vmatprep.subr.mxu0 0.0
        %2184 = vmatpush1.msra.mxu0 0.0
        %2185 = vmatprep.subr.mxu0 0.0
        %2186 = vmatpush1.msra.mxu0 0.0
        %2187 = vmatprep.subr.mxu0 0.0
        %2188 = vmatpush1.msra.mxu0 0.0
        %2189 = vmatprep.subr.mxu0 0.0
        %2190 = vmatpush1.msra.mxu0 0.0
        %2191 = vmatprep.subr.mxu0 0.0
        %2192 = vmatpush1.msra.mxu0 0.0
        %2193 = vmatprep.mubr.f32.mxu0 0.0
        %2194 = vmatmul.mubr.f32.gmra.mrb[0].mxu0 %v2127
        %v2195 = vpop.f32.mrb[0].mxu0
        %v2196 = vadd.f32 0.0, %v2195
        %v2197 = vpop.f32.mrb[0].mxu0
        %2198 = vdwg.mxu0
        %v2200 = vsel %vm782, %v1957, 0
        %2202 = vmatprep.subr.mxu0 0.0
        %2203 = vmatpush1.msra.mxu0 %v1790
        %2204 = vmatprep.subr.mxu0 0.0
        %2205 = vmatpush1.msra.mxu0 %v1791
        %2206 = vmatprep.subr.mxu0 0.0
        %2207 = vmatpush1.msra.mxu0 0.0
        %2208 = vmatprep.subr.mxu0 0.0
        %2209 = vmatpush1.msra.mxu0 0.0
        %2210 = vmatprep.subr.mxu0 0.0
        %2211 = vmatpush1.msra.mxu0 0.0
        %2212 = vmatprep.subr.mxu0 0.0
        %2213 = vmatpush1.msra.mxu0 0.0
        %2214 = vmatprep.subr.mxu0 0.0
        %2215 = vmatpush1.msra.mxu0 0.0
        %2216 = vmatprep.subr.mxu0 0.0
        %2217 = vmatpush1.msra.mxu0 0.0
        %2218 = vmatprep.subr.mxu0 0.0
        %2219 = vmatpush1.msra.mxu0 0.0
        %2220 = vmatprep.subr.mxu0 0.0
        %2221 = vmatpush1.msra.mxu0 0.0
        %2222 = vmatprep.subr.mxu0 0.0
        %2223 = vmatpush1.msra.mxu0 0.0
        %2224 = vmatprep.subr.mxu0 0.0
        %2225 = vmatpush1.msra.mxu0 0.0
        %2226 = vmatprep.subr.mxu0 0.0
        %2227 = vmatpush1.msra.mxu0 0.0
        %2228 = vmatprep.subr.mxu0 0.0
        %2229 = vmatpush1.msra.mxu0 0.0
        %2230 = vmatprep.subr.mxu0 0.0
        %2231 = vmatpush1.msra.mxu0 0.0
        %2232 = vmatprep.subr.mxu0 0.0
        %2233 = vmatpush1.msra.mxu0 0.0
        %2234 = vmatprep.subr.mxu0 0.0
        %2235 = vmatpush1.msra.mxu0 0.0
        %2236 = vmatprep.subr.mxu0 0.0
        %2237 = vmatpush1.msra.mxu0 0.0
        %2238 = vmatprep.subr.mxu0 0.0
        %2239 = vmatpush1.msra.mxu0 0.0
        %2240 = vmatprep.subr.mxu0 0.0
        %2241 = vmatpush1.msra.mxu0 0.0
        %2242 = vmatprep.subr.mxu0 0.0
        %2243 = vmatpush1.msra.mxu0 0.0
        %2244 = vmatprep.subr.mxu0 0.0
        %2245 = vmatpush1.msra.mxu0 0.0
        %2246 = vmatprep.subr.mxu0 0.0
        %2247 = vmatpush1.msra.mxu0 0.0
        %2248 = vmatprep.subr.mxu0 0.0
        %2249 = vmatpush1.msra.mxu0 0.0
        %2250 = vmatprep.subr.mxu0 0.0
        %2251 = vmatpush1.msra.mxu0 0.0
        %2252 = vmatprep.subr.mxu0 0.0
        %2253 = vmatpush1.msra.mxu0 0.0
        %2254 = vmatprep.subr.mxu0 0.0
        %2255 = vmatpush1.msra.mxu0 0.0
        %2256 = vmatprep.subr.mxu0 0.0
        %2257 = vmatpush1.msra.mxu0 0.0
        %2258 = vmatprep.subr.mxu0 0.0
        %2259 = vmatpush1.msra.mxu0 0.0
        %2260 = vmatprep.subr.mxu0 0.0
        %2261 = vmatpush1.msra.mxu0 0.0
        %2262 = vmatprep.subr.mxu0 0.0
        %2263 = vmatpush1.msra.mxu0 0.0
        %2264 = vmatprep.subr.mxu0 0.0
        %2265 = vmatpush1.msra.mxu0 0.0
        %2266 = vmatprep.mubr.f32.mxu0 0.0
        %2267 = vmatmul.mubr.f32.gmra.mrb[0].mxu0 %v2200
        %v2268 = vpop.f32.mrb[0].mxu0
        %v2269 = vadd.f32 %v2196, %v2268
        %v2270 = vpop.f32.mrb[0].mxu0
        %2271 = vdwg.mxu0
        %v2272 = vld [vmem:[%s2 + $0x60] sm:$0x1]
        %v2273 = vlaneseq
        %v2274 = vshrl.u32 %v2273, 7
        %v2275 = vsub.s32 0, %v2274
        %v2276 = vrot.slane %v2272, %v2275
        %v2277 = vadd.f32 %v2269, %v2276
        %v2278 = vadd.f32 %v1663, %v2277
        %v2279 = vld [vmem:[%s2 + $0x68] sm:$0x1]
        %v2280 = vld [vmem:[%s2 + $0x70] sm:$0x1]
        %v2281 = vsel %vm611, %v2278, 0.0
        %2282 = vadd.xlane.f32.xlu0 %v2281
        %v2283 = vpop.xlane.xlu0 %2282
        %v2284 = vmul.f32 %v2283, %v285
        %v2285 = vsub.f32 %v2278, %v2284
        %v2286 = vmul.f32 %v2285, %v2285
        %v2287 = vsel %vm611, %v2286, 0.0
        %2288 = vadd.xlane.f32.xlu0 %v2287
        %v2289 = vpop.xlane.xlu0 %2288
        %v2290 = vmul.f32 %v2289, %v285
        %v2291 = vadd.f32 %v2290, 1e-05
        %v2292 = vrsqrt.pop %v2291
        %v2293 = vmul.f32 %v2285, %v2292
        %v2294 = vlaneseq
        %v2295 = vshrl.u32 %v2294, 7
        %v2296 = vsub.s32 0, %v2295
        %v2297 = vrot.slane %v2279, %v2296
        %v2298 = vmul.f32 %v2293, %v2297
        %v2299 = vlaneseq
        %v2300 = vshrl.u32 %v2299, 7
        %v2301 = vsub.s32 0, %v2300
        %v2302 = vrot.slane %v2280, %v2301
        %v2303 = vadd.f32 %v2298, %v2302
        %v2304 = vld [vmem:[%s1 + $0x190] sm:$0xff]
        %v2305 = vld [vmem:[%s1 + $0x198] sm:$0xff]
        %v2306 = vld [vmem:[%s1 + $0x1a0] sm:$0xff]
        %v2307 = vld [vmem:[%s1 + $0x1a8] sm:$0xff]
        %v2308 = vld [vmem:[%s2 + $0x78] sm:$0x1]
        %v2309 = vlaneseq
        %v2310 = vshrl.u32 %v2309, 7
        %v2311 = vsub.s32 0, %v2310
        %v2312 = vrot.slane %v2308, %v2311
        %v2314 = vsel %vm611, %v2303, 0
        %v2317 = vsel %vm611, %v2304, 0
        %v2320 = vsel %vm611, %v2305, 0
        %v2323 = vsel %vm611, %v2306, 0
        %v2326 = vsel %vm611, %v2307, 0
        %2328 = vmatprep.subr.mxu0 0.0
        %2329 = vmatpush1.xpose.msra.mxu0 %v2317
        %2330 = vmatprep.subr.mxu0 0.0
        %2331 = vmatpush1.xpose.msra.mxu0 %v2320
        %2332 = vmatprep.subr.mxu0 0.0
        %2333 = vmatpush1.xpose.msra.mxu0 %v2323
        %2334 = vmatprep.subr.mxu0 0.0
        %2335 = vmatpush1.xpose.msra.mxu0 %v2326
        %2336 = vmatprep.subr.mxu0 0.0
        %2337 = vmatpush1.xpose.msra.mxu0 0.0
        %2338 = vmatprep.subr.mxu0 0.0
        %2339 = vmatpush1.xpose.msra.mxu0 0.0
        %2340 = vmatprep.subr.mxu0 0.0
        %2341 = vmatpush1.xpose.msra.mxu0 0.0
        %2342 = vmatprep.subr.mxu0 0.0
        %2343 = vmatpush1.xpose.msra.mxu0 0.0
        %2344 = vmatprep.subr.mxu0 0.0
        %2345 = vmatpush1.xpose.msra.mxu0 0.0
        %2346 = vmatprep.subr.mxu0 0.0
        %2347 = vmatpush1.xpose.msra.mxu0 0.0
        %2348 = vmatprep.subr.mxu0 0.0
        %2349 = vmatpush1.xpose.msra.mxu0 0.0
        %2350 = vmatprep.subr.mxu0 0.0
        %2351 = vmatpush1.xpose.msra.mxu0 0.0
        %2352 = vmatprep.subr.mxu0 0.0
        %2353 = vmatpush1.xpose.msra.mxu0 0.0
        %2354 = vmatprep.subr.mxu0 0.0
        %2355 = vmatpush1.xpose.msra.mxu0 0.0
        %2356 = vmatprep.subr.mxu0 0.0
        %2357 = vmatpush1.xpose.msra.mxu0 0.0
        %2358 = vmatprep.subr.mxu0 0.0
        %2359 = vmatpush1.xpose.msra.mxu0 0.0
        %2360 = vmatprep.subr.mxu0 0.0
        %2361 = vmatpush1.xpose.msra.mxu0 0.0
        %2362 = vmatprep.subr.mxu0 0.0
        %2363 = vmatpush1.xpose.msra.mxu0 0.0
        %2364 = vmatprep.subr.mxu0 0.0
        %2365 = vmatpush1.xpose.msra.mxu0 0.0
        %2366 = vmatprep.subr.mxu0 0.0
        %2367 = vmatpush1.xpose.msra.mxu0 0.0
        %2368 = vmatprep.subr.mxu0 0.0
        %2369 = vmatpush1.xpose.msra.mxu0 0.0
        %2370 = vmatprep.subr.mxu0 0.0
        %2371 = vmatpush1.xpose.msra.mxu0 0.0
        %2372 = vmatprep.subr.mxu0 0.0
        %2373 = vmatpush1.xpose.msra.mxu0 0.0
        %2374 = vmatprep.subr.mxu0 0.0
        %2375 = vmatpush1.xpose.msra.mxu0 0.0
        %2376 = vmatprep.subr.mxu0 0.0
        %2377 = vmatpush1.xpose.msra.mxu0 0.0
        %2378 = vmatprep.subr.mxu0 0.0
        %2379 = vmatpush1.xpose.msra.mxu0 0.0
        %2380 = vmatprep.subr.mxu0 0.0
        %2381 = vmatpush1.xpose.msra.mxu0 0.0
        %2382 = vmatprep.subr.mxu0 0.0
        %2383 = vmatpush1.xpose.msra.mxu0 0.0
        %2384 = vmatprep.subr.mxu0 0.0
        %2385 = vmatpush1.xpose.msra.mxu0 0.0
        %2386 = vmatprep.subr.mxu0 0.0
        %2387 = vmatpush1.xpose.msra.mxu0 0.0
        %2388 = vmatprep.subr.mxu0 0.0
        %2389 = vmatpush1.xpose.msra.mxu0 0.0
        %2390 = vmatprep.subr.mxu0 0.0
        %2391 = vmatpush1.xpose.msra.mxu0 0.0
        %2392 = vmatprep.mubr.f32.mxu0 0.0
        %2393 = vmatmul.mubr.f32.gmra.mrb[0].mxu0 %v2314
        %v2394 = vpop.f32.mrb[0].mxu0
        %v2395 = vadd.f32 %v2312, %v2394
        %v2396 = vpop.f32.mrb[0].mxu0
        %2397 = vdwg.mxu0
        %v2398 = vld [vmem:[%s1 + $0x1b0] sm:$0xff]
        %v2399 = vld [vmem:[%s1 + $0x1b8] sm:$0xff]
        %v2400 = vld [vmem:[%s1 + $0x1c0] sm:$0xff]
        %v2401 = vld [vmem:[%s1 + $0x1c8] sm:$0xff]
        %v2402 = vld [vmem:[%s1 + $0x1d0] sm:$0xff]
        %v2403 = vld [vmem:[%s1 + $0x1d8] sm:$0xff]
        %v2404 = vld [vmem:[%s1 + $0x1e0] sm:$0xff]
        %v2405 = vld [vmem:[%s1 + $0x1e8] sm:$0xff]
        %v2406 = vld [vmem:[%s2 + $0x80] sm:$0x1]
        %v2407 = vlaneseq
        %v2408 = vshrl.u32 %v2407, 7
        %v2409 = vsub.s32 0, %v2408
        %v2410 = vrot.slane %v2406, %v2409
        %v2412 = vsel %vm611, %v2398, 0
        %v2415 = vsel %vm611, %v2399, 0
        %v2418 = vsel %vm611, %v2400, 0
        %v2421 = vsel %vm611, %v2401, 0
        %v2424 = vsel %vm611, %v2402, 0
        %v2427 = vsel %vm611, %v2403, 0
        %v2430 = vsel %vm611, %v2404, 0
        %v2433 = vsel %vm611, %v2405, 0
        %2435 = vmatprep.subr.mxu0 0.0
        %2436 = vmatpush1.xpose.msra.mxu0 %v2412
        %2437 = vmatprep.subr.mxu0 0.0
        %2438 = vmatpush1.xpose.msra.mxu0 %v2415
        %2439 = vmatprep.subr.mxu0 0.0
        %2440 = vmatpush1.xpose.msra.mxu0 %v2418
        %2441 = vmatprep.subr.mxu0 0.0
        %2442 = vmatpush1.xpose.msra.mxu0 %v2421
        %2443 = vmatprep.subr.mxu0 0.0
        %2444 = vmatpush1.xpose.msra.mxu0 %v2424
        %2445 = vmatprep.subr.mxu0 0.0
        %2446 = vmatpush1.xpose.msra.mxu0 %v2427
        %2447 = vmatprep.subr.mxu0 0.0
        %2448 = vmatpush1.xpose.msra.mxu0 %v2430
        %2449 = vmatprep.subr.mxu0 0.0
        %2450 = vmatpush1.xpose.msra.mxu0 %v2433
        %2451 = vmatprep.subr.mxu0 0.0
        %2452 = vmatpush1.xpose.msra.mxu0 0.0
        %2453 = vmatprep.subr.mxu0 0.0
        %2454 = vmatpush1.xpose.msra.mxu0 0.0
        %2455 = vmatprep.subr.mxu0 0.0
        %2456 = vmatpush1.xpose.msra.mxu0 0.0
        %2457 = vmatprep.subr.mxu0 0.0
        %2458 = vmatpush1.xpose.msra.mxu0 0.0
        %2459 = vmatprep.subr.mxu0 0.0
        %2460 = vmatpush1.xpose.msra.mxu0 0.0
        %2461 = vmatprep.subr.mxu0 0.0
        %2462 = vmatpush1.xpose.msra.mxu0 0.0
        %2463 = vmatprep.subr.mxu0 0.0
        %2464 = vmatpush1.xpose.msra.mxu0 0.0
        %2465 = vmatprep.subr.mxu0 0.0
        %2466 = vmatpush1.xpose.msra.mxu0 0.0
        %2467 = vmatprep.subr.mxu0 0.0
        %2468 = vmatpush1.xpose.msra.mxu0 0.0
        %2469 = vmatprep.subr.mxu0 0.0
        %2470 = vmatpush1.xpose.msra.mxu0 0.0
        %2471 = vmatprep.subr.mxu0 0.0
        %2472 = vmatpush1.xpose.msra.mxu0 0.0
        %2473 = vmatprep.subr.mxu0 0.0
        %2474 = vmatpush1.xpose.msra.mxu0 0.0
        %2475 = vmatprep.subr.mxu0 0.0
        %2476 = vmatpush1.xpose.msra.mxu0 0.0
        %2477 = vmatprep.subr.mxu0 0.0
        %2478 = vmatpush1.xpose.msra.mxu0 0.0
        %2479 = vmatprep.subr.mxu0 0.0
        %2480 = vmatpush1.xpose.msra.mxu0 0.0
        %2481 = vmatprep.subr.mxu0 0.0
        %2482 = vmatpush1.xpose.msra.mxu0 0.0
        %2483 = vmatprep.subr.mxu0 0.0
        %2484 = vmatpush1.xpose.msra.mxu0 0.0
        %2485 = vmatprep.subr.mxu0 0.0
        %2486 = vmatpush1.xpose.msra.mxu0 0.0
        %2487 = vmatprep.subr.mxu0 0.0
        %2488 = vmatpush1.xpose.msra.mxu0 0.0
        %2489 = vmatprep.subr.mxu0 0.0
        %2490 = vmatpush1.xpose.msra.mxu0 0.0
        %2491 = vmatprep.subr.mxu0 0.0
        %2492 = vmatpush1.xpose.msra.mxu0 0.0
        %2493 = vmatprep.subr.mxu0 0.0
        %2494 = vmatpush1.xpose.msra.mxu0 0.0
        %2495 = vmatprep.subr.mxu0 0.0
        %2496 = vmatpush1.xpose.msra.mxu0 0.0
        %2497 = vmatprep.subr.mxu0 0.0
        %2498 = vmatpush1.xpose.msra.mxu0 0.0
        %2499 = vmatprep.mubr.f32.mxu0 0.0
        %2500 = vmatmul.mubr.f32.gmra.mrb[0].mxu0 %v613
        %v2501 = vpop.f32.mrb[0].mxu0
        %v2502 = vadd.f32 %v2410, %v2501
        %v2503 = vpop.f32.mrb[0].mxu0
        %2504 = vmatprep.mubr.f32.mxu0 0.0
        %2505 = vmatmul.mubr.f32.gmra.mrb[0].mxu0 %v616
        %v2506 = vpop.f32.mrb[0].mxu0
        %v2507 = vadd.f32 %v2410, %v2506
        %v2508 = vpop.f32.mrb[0].mxu0
        %2509 = vdwg.mxu0
        %v2510 = vld [vmem:[%s1 + $0x1f0] sm:$0xff]
        %v2511 = vld [vmem:[%s1 + $0x1f8] sm:$0xff]
        %v2512 = vld [vmem:[%s1 + $0x200] sm:$0xff]
        %v2513 = vld [vmem:[%s1 + $0x208] sm:$0xff]
        %v2515 = vsel %vm782, %v2395, 0
        %v2518 = vsel %vm782, %v2502, 0
        %v2521 = vsel %vm782, %v2507, 0
        %2523 = vmatprep.subr.mxu0 0.0
        %2524 = vmatpush1.xpose.msra.mxu0 %v2518
        %2525 = vmatprep.subr.mxu0 0.0
        %2526 = vmatpush1.xpose.msra.mxu0 %v2521
        %2527 = vmatprep.subr.mxu0 0.0
        %2528 = vmatpush1.xpose.msra.mxu0 0.0
        %2529 = vmatprep.subr.mxu0 0.0
        %2530 = vmatpush1.xpose.msra.mxu0 0.0
        %2531 = vmatprep.subr.mxu0 0.0
        %2532 = vmatpush1.xpose.msra.mxu0 0.0
        %2533 = vmatprep.subr.mxu0 0.0
        %2534 = vmatpush1.xpose.msra.mxu0 0.0
        %2535 = vmatprep.subr.mxu0 0.0
        %2536 = vmatpush1.xpose.msra.mxu0 0.0
        %2537 = vmatprep.subr.mxu0 0.0
        %2538 = vmatpush1.xpose.msra.mxu0 0.0
        %2539 = vmatprep.subr.mxu0 0.0
        %2540 = vmatpush1.xpose.msra.mxu0 0.0
        %2541 = vmatprep.subr.mxu0 0.0
        %2542 = vmatpush1.xpose.msra.mxu0 0.0
        %2543 = vmatprep.subr.mxu0 0.0
        %2544 = vmatpush1.xpose.msra.mxu0 0.0
        %2545 = vmatprep.subr.mxu0 0.0
        %2546 = vmatpush1.xpose.msra.mxu0 0.0
        %2547 = vmatprep.subr.mxu0 0.0
        %2548 = vmatpush1.xpose.msra.mxu0 0.0
        %2549 = vmatprep.subr.mxu0 0.0
        %2550 = vmatpush1.xpose.msra.mxu0 0.0
        %2551 = vmatprep.subr.mxu0 0.0
        %2552 = vmatpush1.xpose.msra.mxu0 0.0
        %2553 = vmatprep.subr.mxu0 0.0
        %2554 = vmatpush1.xpose.msra.mxu0 0.0
        %2555 = vmatprep.subr.mxu0 0.0
        %2556 = vmatpush1.xpose.msra.mxu0 0.0
        %2557 = vmatprep.subr.mxu0 0.0
        %2558 = vmatpush1.xpose.msra.mxu0 0.0
        %2559 = vmatprep.subr.mxu0 0.0
        %2560 = vmatpush1.xpose.msra.mxu0 0.0
        %2561 = vmatprep.subr.mxu0 0.0
        %2562 = vmatpush1.xpose.msra.mxu0 0.0
        %2563 = vmatprep.subr.mxu0 0.0
        %2564 = vmatpush1.xpose.msra.mxu0 0.0
        %2565 = vmatprep.subr.mxu0 0.0
        %2566 = vmatpush1.xpose.msra.mxu0 0.0
        %2567 = vmatprep.subr.mxu0 0.0
        %2568 = vmatpush1.xpose.msra.mxu0 0.0
        %2569 = vmatprep.subr.mxu0 0.0
        %2570 = vmatpush1.xpose.msra.mxu0 0.0
        %2571 = vmatprep.subr.mxu0 0.0
        %2572 = vmatpush1.xpose.msra.mxu0 0.0
        %2573 = vmatprep.subr.mxu0 0.0
        %2574 = vmatpush1.xpose.msra.mxu0 0.0
        %2575 = vmatprep.subr.mxu0 0.0
        %2576 = vmatpush1.xpose.msra.mxu0 0.0
        %2577 = vmatprep.subr.mxu0 0.0
        %2578 = vmatpush1.xpose.msra.mxu0 0.0
        %2579 = vmatprep.subr.mxu0 0.0
        %2580 = vmatpush1.xpose.msra.mxu0 0.0
        %2581 = vmatprep.subr.mxu0 0.0
        %2582 = vmatpush1.xpose.msra.mxu0 0.0
        %2583 = vmatprep.subr.mxu0 0.0
        %2584 = vmatpush1.xpose.msra.mxu0 0.0
        %2585 = vmatprep.subr.mxu0 0.0
        %2586 = vmatpush1.xpose.msra.mxu0 0.0
        %2587 = vmatprep.mubr.f32.mxu0 0.0
        %2588 = vmatmul.mubr.f32.gmra.mrb[0].mxu0 %v2515
        %v2589 = vpop.f32.mrb[0].mxu0
        %v2590 = vadd.f32 0.0, %v2589
        %v2591 = vpop.f32.mrb[0].mxu0
        %2592 = vdwg.mxu0
        %v2593 = vsel %vm774, %v2590, -1e+30
        %v2594 = vsel %vm782, %v2593, -inf
        %2595 = vmax.xlane.f32.xlu0 %v2594
        %v2596 = vpop.xlane.xlu0 %2595
        %v2597 = vsub.f32 %v2593, %v2596
        %v2598 = vmul.f32 %v2597, 1.442695
        %v2599 = vpow.pop %v2598
        %v2600 = vsel %vm782, %v2599, 0.0
        %2601 = vadd.xlane.f32.xlu0 %v2600
        %v2602 = vpop.xlane.xlu0 %2601
        %v2603 = vrcp.pop %v2602
        %v2604 = vmul.f32 %v2599, %v2603
        %2605 = vrot.lane.b32.xlu0 %v2502, 96
        %v2606 = vpop.permute.xlu0 %2605
        %2607 = vrot.lane.b32.xlu0 %v2507, 96
        %v2608 = vpop.permute.xlu0 %2607
        %v2612 = vsel %vm782, %v2604, 0
        %2614 = vmatprep.subr.mxu0 0.0
        %2615 = vmatpush1.msra.mxu0 %v2606
        %2616 = vmatprep.subr.mxu0 0.0
        %2617 = vmatpush1.msra.mxu0 %v2608
        %2618 = vmatprep.subr.mxu0 0.0
        %2619 = vmatpush1.msra.mxu0 0.0
        %2620 = vmatprep.subr.mxu0 0.0
        %2621 = vmatpush1.msra.mxu0 0.0
        %2622 = vmatprep.subr.mxu0 0.0
        %2623 = vmatpush1.msra.mxu0 0.0
        %2624 = vmatprep.subr.mxu0 0.0
        %2625 = vmatpush1.msra.mxu0 0.0
        %2626 = vmatprep.subr.mxu0 0.0
        %2627 = vmatpush1.msra.mxu0 0.0
        %2628 = vmatprep.subr.mxu0 0.0
        %2629 = vmatpush1.msra.mxu0 0.0
        %2630 = vmatprep.subr.mxu0 0.0
        %2631 = vmatpush1.msra.mxu0 0.0
        %2632 = vmatprep.subr.mxu0 0.0
        %2633 = vmatpush1.msra.mxu0 0.0
        %2634 = vmatprep.subr.mxu0 0.0
        %2635 = vmatpush1.msra.mxu0 0.0
        %2636 = vmatprep.subr.mxu0 0.0
        %2637 = vmatpush1.msra.mxu0 0.0
        %2638 = vmatprep.subr.mxu0 0.0
        %2639 = vmatpush1.msra.mxu0 0.0
        %2640 = vmatprep.subr.mxu0 0.0
        %2641 = vmatpush1.msra.mxu0 0.0
        %2642 = vmatprep.subr.mxu0 0.0
        %2643 = vmatpush1.msra.mxu0 0.0
        %2644 = vmatprep.subr.mxu0 0.0
        %2645 = vmatpush1.msra.mxu0 0.0
        %2646 = vmatprep.subr.mxu0 0.0
        %2647 = vmatpush1.msra.mxu0 0.0
        %2648 = vmatprep.subr.mxu0 0.0
        %2649 = vmatpush1.msra.mxu0 0.0
        %2650 = vmatprep.subr.mxu0 0.0
        %2651 = vmatpush1.msra.mxu0 0.0
        %2652 = vmatprep.subr.mxu0 0.0
        %2653 = vmatpush1.msra.mxu0 0.0
        %2654 = vmatprep.subr.mxu0 0.0
        %2655 = vmatpush1.msra.mxu0 0.0
        %2656 = vmatprep.subr.mxu0 0.0
        %2657 = vmatpush1.msra.mxu0 0.0
        %2658 = vmatprep.subr.mxu0 0.0
        %2659 = vmatpush1.msra.mxu0 0.0
        %2660 = vmatprep.subr.mxu0 0.0
        %2661 = vmatpush1.msra.mxu0 0.0
        %2662 = vmatprep.subr.mxu0 0.0
        %2663 = vmatpush1.msra.mxu0 0.0
        %2664 = vmatprep.subr.mxu0 0.0
        %2665 = vmatpush1.msra.mxu0 0.0
        %2666 = vmatprep.subr.mxu0 0.0
        %2667 = vmatpush1.msra.mxu0 0.0
        %2668 = vmatprep.subr.mxu0 0.0
        %2669 = vmatpush1.msra.mxu0 0.0
        %2670 = vmatprep.subr.mxu0 0.0
        %2671 = vmatpush1.msra.mxu0 0.0
        %2672 = vmatprep.subr.mxu0 0.0
        %2673 = vmatpush1.msra.mxu0 0.0
        %2674 = vmatprep.subr.mxu0 0.0
        %2675 = vmatpush1.msra.mxu0 0.0
        %2676 = vmatprep.subr.mxu0 0.0
        %2677 = vmatpush1.msra.mxu0 0.0
        %2678 = vmatprep.mubr.f32.mxu0 0.0
        %2679 = vmatmul.mubr.f32.gmra.mrb[0].mxu0 %v2612
        %v2680 = vpop.f32.mrb[0].mxu0
        %v2681 = vadd.f32 0.0, %v2680
        %v2682 = vpop.f32.mrb[0].mxu0
        %2683 = vdwg.mxu0
        %2684 = vrot.lane.b32.xlu0 %v2395, 112
        %v2685 = vpop.permute.xlu0 %2684
        %2686 = vrot.lane.b32.xlu0 %v2502, 112
        %v2687 = vpop.permute.xlu0 %2686
        %2688 = vrot.lane.b32.xlu0 %v2507, 112
        %v2689 = vpop.permute.xlu0 %2688
        %v2690 = vsel %vm782, %v2685, 0
        %v2692 = vsel %vm782, %v2687, 0
        %v2694 = vsel %vm782, %v2689, 0
        %2696 = vmatprep.subr.mxu0 0.0
        %2697 = vmatpush1.xpose.msra.mxu0 %v2692
        %2698 = vmatprep.subr.mxu0 0.0
        %2699 = vmatpush1.xpose.msra.mxu0 %v2694
        %2700 = vmatprep.subr.mxu0 0.0
        %2701 = vmatpush1.xpose.msra.mxu0 0.0
        %2702 = vmatprep.subr.mxu0 0.0
        %2703 = vmatpush1.xpose.msra.mxu0 0.0
        %2704 = vmatprep.subr.mxu0 0.0
        %2705 = vmatpush1.xpose.msra.mxu0 0.0
        %2706 = vmatprep.subr.mxu0 0.0
        %2707 = vmatpush1.xpose.msra.mxu0 0.0
        %2708 = vmatprep.subr.mxu0 0.0
        %2709 = vmatpush1.xpose.msra.mxu0 0.0
        %2710 = vmatprep.subr.mxu0 0.0
        %2711 = vmatpush1.xpose.msra.mxu0 0.0
        %2712 = vmatprep.subr.mxu0 0.0
        %2713 = vmatpush1.xpose.msra.mxu0 0.0
        %2714 = vmatprep.subr.mxu0 0.0
        %2715 = vmatpush1.xpose.msra.mxu0 0.0
        %2716 = vmatprep.subr.mxu0 0.0
        %2717 = vmatpush1.xpose.msra.mxu0 0.0
        %2718 = vmatprep.subr.mxu0 0.0
        %2719 = vmatpush1.xpose.msra.mxu0 0.0
        %2720 = vmatprep.subr.mxu0 0.0
        %2721 = vmatpush1.xpose.msra.mxu0 0.0
        %2722 = vmatprep.subr.mxu0 0.0
        %2723 = vmatpush1.xpose.msra.mxu0 0.0
        %2724 = vmatprep.subr.mxu0 0.0
        %2725 = vmatpush1.xpose.msra.mxu0 0.0
        %2726 = vmatprep.subr.mxu0 0.0
        %2727 = vmatpush1.xpose.msra.mxu0 0.0
        %2728 = vmatprep.subr.mxu0 0.0
        %2729 = vmatpush1.xpose.msra.mxu0 0.0
        %2730 = vmatprep.subr.mxu0 0.0
        %2731 = vmatpush1.xpose.msra.mxu0 0.0
        %2732 = vmatprep.subr.mxu0 0.0
        %2733 = vmatpush1.xpose.msra.mxu0 0.0
        %2734 = vmatprep.subr.mxu0 0.0
        %2735 = vmatpush1.xpose.msra.mxu0 0.0
        %2736 = vmatprep.subr.mxu0 0.0
        %2737 = vmatpush1.xpose.msra.mxu0 0.0
        %2738 = vmatprep.subr.mxu0 0.0
        %2739 = vmatpush1.xpose.msra.mxu0 0.0
        %2740 = vmatprep.subr.mxu0 0.0
        %2741 = vmatpush1.xpose.msra.mxu0 0.0
        %2742 = vmatprep.subr.mxu0 0.0
        %2743 = vmatpush1.xpose.msra.mxu0 0.0
        %2744 = vmatprep.subr.mxu0 0.0
        %2745 = vmatpush1.xpose.msra.mxu0 0.0
        %2746 = vmatprep.subr.mxu0 0.0
        %2747 = vmatpush1.xpose.msra.mxu0 0.0
        %2748 = vmatprep.subr.mxu0 0.0
        %2749 = vmatpush1.xpose.msra.mxu0 0.0
        %2750 = vmatprep.subr.mxu0 0.0
        %2751 = vmatpush1.xpose.msra.mxu0 0.0
        %2752 = vmatprep.subr.mxu0 0.0
        %2753 = vmatpush1.xpose.msra.mxu0 0.0
        %2754 = vmatprep.subr.mxu0 0.0
        %2755 = vmatpush1.xpose.msra.mxu0 0.0
        %2756 = vmatprep.subr.mxu0 0.0
        %2757 = vmatpush1.xpose.msra.mxu0 0.0
        %2758 = vmatprep.subr.mxu0 0.0
        %2759 = vmatpush1.xpose.msra.mxu0 0.0
        %2760 = vmatprep.mubr.f32.mxu0 0.0
        %2761 = vmatmul.mubr.f32.gmra.mrb[0].mxu0 %v2690
        %v2762 = vpop.f32.mrb[0].mxu0
        %v2763 = vadd.f32 0.0, %v2762
        %v2764 = vpop.f32.mrb[0].mxu0
        %2765 = vdwg.mxu0
        %v2766 = vsel %vm774, %v2763, -1e+30
        %v2767 = vsel %vm782, %v2766, -inf
        %2768 = vmax.xlane.f32.xlu0 %v2767
        %v2769 = vpop.xlane.xlu0 %2768
        %v2770 = vsub.f32 %v2766, %v2769
        %v2771 = vmul.f32 %v2770, 1.442695
        %v2772 = vpow.pop %v2771
        %v2773 = vsel %vm782, %v2772, 0.0
        %2774 = vadd.xlane.f32.xlu0 %v2773
        %v2775 = vpop.xlane.xlu0 %2774
        %v2776 = vrcp.pop %v2775
        %v2777 = vmul.f32 %v2772, %v2776
        %2778 = vrot.lane.b32.xlu0 %v2502, 80
        %v2779 = vpop.permute.xlu0 %2778
        %2780 = vrot.lane.b32.xlu0 %v2507, 80
        %v2781 = vpop.permute.xlu0 %2780
        %v2785 = vsel %vm782, %v2777, 0
        %2787 = vmatprep.subr.mxu0 0.0
        %2788 = vmatpush1.msra.mxu0 %v2779
        %2789 = vmatprep.subr.mxu0 0.0
        %2790 = vmatpush1.msra.mxu0 %v2781
        %2791 = vmatprep.subr.mxu0 0.0
        %2792 = vmatpush1.msra.mxu0 0.0
        %2793 = vmatprep.subr.mxu0 0.0
        %2794 = vmatpush1.msra.mxu0 0.0
        %2795 = vmatprep.subr.mxu0 0.0
        %2796 = vmatpush1.msra.mxu0 0.0
        %2797 = vmatprep.subr.mxu0 0.0
        %2798 = vmatpush1.msra.mxu0 0.0
        %2799 = vmatprep.subr.mxu0 0.0
        %2800 = vmatpush1.msra.mxu0 0.0
        %2801 = vmatprep.subr.mxu0 0.0
        %2802 = vmatpush1.msra.mxu0 0.0
        %2803 = vmatprep.subr.mxu0 0.0
        %2804 = vmatpush1.msra.mxu0 0.0
        %2805 = vmatprep.subr.mxu0 0.0
        %2806 = vmatpush1.msra.mxu0 0.0
        %2807 = vmatprep.subr.mxu0 0.0
        %2808 = vmatpush1.msra.mxu0 0.0
        %2809 = vmatprep.subr.mxu0 0.0
        %2810 = vmatpush1.msra.mxu0 0.0
        %2811 = vmatprep.subr.mxu0 0.0
        %2812 = vmatpush1.msra.mxu0 0.0
        %2813 = vmatprep.subr.mxu0 0.0
        %2814 = vmatpush1.msra.mxu0 0.0
        %2815 = vmatprep.subr.mxu0 0.0
        %2816 = vmatpush1.msra.mxu0 0.0
        %2817 = vmatprep.subr.mxu0 0.0
        %2818 = vmatpush1.msra.mxu0 0.0
        %2819 = vmatprep.subr.mxu0 0.0
        %2820 = vmatpush1.msra.mxu0 0.0
        %2821 = vmatprep.subr.mxu0 0.0
        %2822 = vmatpush1.msra.mxu0 0.0
        %2823 = vmatprep.subr.mxu0 0.0
        %2824 = vmatpush1.msra.mxu0 0.0
        %2825 = vmatprep.subr.mxu0 0.0
        %2826 = vmatpush1.msra.mxu0 0.0
        %2827 = vmatprep.subr.mxu0 0.0
        %2828 = vmatpush1.msra.mxu0 0.0
        %2829 = vmatprep.subr.mxu0 0.0
        %2830 = vmatpush1.msra.mxu0 0.0
        %2831 = vmatprep.subr.mxu0 0.0
        %2832 = vmatpush1.msra.mxu0 0.0
        %2833 = vmatprep.subr.mxu0 0.0
        %2834 = vmatpush1.msra.mxu0 0.0
        %2835 = vmatprep.subr.mxu0 0.0
        %2836 = vmatpush1.msra.mxu0 0.0
        %2837 = vmatprep.subr.mxu0 0.0
        %2838 = vmatpush1.msra.mxu0 0.0
        %2839 = vmatprep.subr.mxu0 0.0
        %2840 = vmatpush1.msra.mxu0 0.0
        %2841 = vmatprep.subr.mxu0 0.0
        %2842 = vmatpush1.msra.mxu0 0.0
        %2843 = vmatprep.subr.mxu0 0.0
        %2844 = vmatpush1.msra.mxu0 0.0
        %2845 = vmatprep.subr.mxu0 0.0
        %2846 = vmatpush1.msra.mxu0 0.0
        %2847 = vmatprep.subr.mxu0 0.0
        %2848 = vmatpush1.msra.mxu0 0.0
        %2849 = vmatprep.subr.mxu0 0.0
        %2850 = vmatpush1.msra.mxu0 0.0
        %2851 = vmatprep.mubr.f32.mxu0 0.0
        %2852 = vmatmul.mubr.f32.gmra.mrb[0].mxu0 %v2785
        %v2853 = vpop.f32.mrb[0].mxu0
        %v2854 = vadd.f32 0.0, %v2853
        %v2855 = vpop.f32.mrb[0].mxu0
        %2856 = vdwg.mxu0
        %v2858 = vsel %vm782, %v2854, 0
        %2860 = vmatprep.subr.mxu0 0.0
        %2861 = vmatpush1.msra.mxu0 %v2512
        %2862 = vmatprep.subr.mxu0 0.0
        %2863 = vmatpush1.msra.mxu0 %v2513
        %2864 = vmatprep.subr.mxu0 0.0
        %2865 = vmatpush1.msra.mxu0 0.0
        %2866 = vmatprep.subr.mxu0 0.0
        %2867 = vmatpush1.msra.mxu0 0.0
        %2868 = vmatprep.subr.mxu0 0.0
        %2869 = vmatpush1.msra.mxu0 0.0
        %2870 = vmatprep.subr.mxu0 0.0
        %2871 = vmatpush1.msra.mxu0 0.0
        %2872 = vmatprep.subr.mxu0 0.0
        %2873 = vmatpush1.msra.mxu0 0.0
        %2874 = vmatprep.subr.mxu0 0.0
        %2875 = vmatpush1.msra.mxu0 0.0
        %2876 = vmatprep.subr.mxu0 0.0
        %2877 = vmatpush1.msra.mxu0 0.0
        %2878 = vmatprep.subr.mxu0 0.0
        %2879 = vmatpush1.msra.mxu0 0.0
        %2880 = vmatprep.subr.mxu0 0.0
        %2881 = vmatpush1.msra.mxu0 0.0
        %2882 = vmatprep.subr.mxu0 0.0
        %2883 = vmatpush1.msra.mxu0 0.0
        %2884 = vmatprep.subr.mxu0 0.0
        %2885 = vmatpush1.msra.mxu0 0.0
        %2886 = vmatprep.subr.mxu0 0.0
        %2887 = vmatpush1.msra.mxu0 0.0
        %2888 = vmatprep.subr.mxu0 0.0
        %2889 = vmatpush1.msra.mxu0 0.0
        %2890 = vmatprep.subr.mxu0 0.0
        %2891 = vmatpush1.msra.mxu0 0.0
        %2892 = vmatprep.subr.mxu0 0.0
        %2893 = vmatpush1.msra.mxu0 0.0
        %2894 = vmatprep.subr.mxu0 0.0
        %2895 = vmatpush1.msra.mxu0 0.0
        %2896 = vmatprep.subr.mxu0 0.0
        %2897 = vmatpush1.msra.mxu0 0.0
        %2898 = vmatprep.subr.mxu0 0.0
        %2899 = vmatpush1.msra.mxu0 0.0
        %2900 = vmatprep.subr.mxu0 0.0
        %2901 = vmatpush1.msra.mxu0 0.0
        %2902 = vmatprep.subr.mxu0 0.0
        %2903 = vmatpush1.msra.mxu0 0.0
        %2904 = vmatprep.subr.mxu0 0.0
        %2905 = vmatpush1.msra.mxu0 0.0
        %2906 = vmatprep.subr.mxu0 0.0
        %2907 = vmatpush1.msra.mxu0 0.0
        %2908 = vmatprep.subr.mxu0 0.0
        %2909 = vmatpush1.msra.mxu0 0.0
        %2910 = vmatprep.subr.mxu0 0.0
        %2911 = vmatpush1.msra.mxu0 0.0
        %2912 = vmatprep.subr.mxu0 0.0
        %2913 = vmatpush1.msra.mxu0 0.0
        %2914 = vmatprep.subr.mxu0 0.0
        %2915 = vmatpush1.msra.mxu0 0.0
        %2916 = vmatprep.subr.mxu0 0.0
        %2917 = vmatpush1.msra.mxu0 0.0
        %2918 = vmatprep.subr.mxu0 0.0
        %2919 = vmatpush1.msra.mxu0 0.0
        %2920 = vmatprep.subr.mxu0 0.0
        %2921 = vmatpush1.msra.mxu0 0.0
        %2922 = vmatprep.subr.mxu0 0.0
        %2923 = vmatpush1.msra.mxu0 0.0
        %2924 = vmatprep.mubr.f32.mxu0 0.0
        %2925 = vmatmul.mubr.f32.gmra.mrb[0].mxu0 %v2858
        %v2926 = vpop.f32.mrb[0].mxu0
        %v2927 = vadd.f32 0.0, %v2926
        %v2928 = vpop.f32.mrb[0].mxu0
        %2929 = vdwg.mxu0
        %v2931 = vsel %vm782, %v2681, 0
        %2933 = vmatprep.subr.mxu0 0.0
        %2934 = vmatpush1.msra.mxu0 %v2510
        %2935 = vmatprep.subr.mxu0 0.0
        %2936 = vmatpush1.msra.mxu0 %v2511
        %2937 = vmatprep.subr.mxu0 0.0
        %2938 = vmatpush1.msra.mxu0 0.0
        %2939 = vmatprep.subr.mxu0 0.0
        %2940 = vmatpush1.msra.mxu0 0.0
        %2941 = vmatprep.subr.mxu0 0.0
        %2942 = vmatpush1.msra.mxu0 0.0
        %2943 = vmatprep.subr.mxu0 0.0
        %2944 = vmatpush1.msra.mxu0 0.0
        %2945 = vmatprep.subr.mxu0 0.0
        %2946 = vmatpush1.msra.mxu0 0.0
        %2947 = vmatprep.subr.mxu0 0.0
        %2948 = vmatpush1.msra.mxu0 0.0
        %2949 = vmatprep.subr.mxu0 0.0
        %2950 = vmatpush1.msra.mxu0 0.0
        %2951 = vmatprep.subr.mxu0 0.0
        %2952 = vmatpush1.msra.mxu0 0.0
        %2953 = vmatprep.subr.mxu0 0.0
        %2954 = vmatpush1.msra.mxu0 0.0
        %2955 = vmatprep.subr.mxu0 0.0
        %2956 = vmatpush1.msra.mxu0 0.0
        %2957 = vmatprep.subr.mxu0 0.0
        %2958 = vmatpush1.msra.mxu0 0.0
        %2959 = vmatprep.subr.mxu0 0.0
        %2960 = vmatpush1.msra.mxu0 0.0
        %2961 = vmatprep.subr.mxu0 0.0
        %2962 = vmatpush1.msra.mxu0 0.0
        %2963 = vmatprep.subr.mxu0 0.0
        %2964 = vmatpush1.msra.mxu0 0.0
        %2965 = vmatprep.subr.mxu0 0.0
        %2966 = vmatpush1.msra.mxu0 0.0
        %2967 = vmatprep.subr.mxu0 0.0
        %2968 = vmatpush1.msra.mxu0 0.0
        %2969 = vmatprep.subr.mxu0 0.0
        %2970 = vmatpush1.msra.mxu0 0.0
        %2971 = vmatprep.subr.mxu0 0.0
        %2972 = vmatpush1.msra.mxu0 0.0
        %2973 = vmatprep.subr.mxu0 0.0
        %2974 = vmatpush1.msra.mxu0 0.0
        %2975 = vmatprep.subr.mxu0 0.0
        %2976 = vmatpush1.msra.mxu0 0.0
        %2977 = vmatprep.subr.mxu0 0.0
        %2978 = vmatpush1.msra.mxu0 0.0
        %2979 = vmatprep.subr.mxu0 0.0
        %2980 = vmatpush1.msra.mxu0 0.0
        %2981 = vmatprep.subr.mxu0 0.0
        %2982 = vmatpush1.msra.mxu0 0.0
        %2983 = vmatprep.subr.mxu0 0.0
        %2984 = vmatpush1.msra.mxu0 0.0
        %2985 = vmatprep.subr.mxu0 0.0
        %2986 = vmatpush1.msra.mxu0 0.0
        %2987 = vmatprep.subr.mxu0 0.0
        %2988 = vmatpush1.msra.mxu0 0.0
        %2989 = vmatprep.subr.mxu0 0.0
        %2990 = vmatpush1.msra.mxu0 0.0
        %2991 = vmatprep.subr.mxu0 0.0
        %2992 = vmatpush1.msra.mxu0 0.0
        %2993 = vmatprep.subr.mxu0 0.0
        %2994 = vmatpush1.msra.mxu0 0.0
        %2995 = vmatprep.subr.mxu0 0.0
        %2996 = vmatpush1.msra.mxu0 0.0
        %2997 = vmatprep.mubr.f32.mxu0 0.0
        %2998 = vmatmul.mubr.f32.gmra.mrb[0].mxu0 %v2931
        %v2999 = vpop.f32.mrb[0].mxu0
        %v3000 = vadd.f32 %v2927, %v2999
        %v3001 = vpop.f32.mrb[0].mxu0
        %3002 = vdwg.mxu0
        %v3003 = vld [vmem:[%s2 + $0x88] sm:$0x1]
        %v3004 = vlaneseq
        %v3005 = vshrl.u32 %v3004, 7
        %v3006 = vsub.s32 0, %v3005
        %v3007 = vrot.slane %v3003, %v3006
        %v3008 = vadd.f32 %v3000, %v3007
        %v3009 = vadd.f32 %v2303, %v3008
        %v3010 = vld [vmem:[%s2 + $0x90] sm:$0x1]
        %v3011 = vld [vmem:[%s2 + $0x98] sm:$0x1]
        %v3012 = vsel %vm611, %v3009, 0.0
        %3013 = vadd.xlane.f32.xlu0 %v3012
        %v3014 = vpop.xlane.xlu0 %3013
        %v3015 = vmul.f32 %v3014, %v285
        %v3016 = vsub.f32 %v3009, %v3015
        %v3017 = vmul.f32 %v3016, %v3016
        %v3018 = vsel %vm611, %v3017, 0.0
        %3019 = vadd.xlane.f32.xlu0 %v3018
        %v3020 = vpop.xlane.xlu0 %3019
        %v3021 = vmul.f32 %v3020, %v285
        %v3022 = vadd.f32 %v3021, 1e-05
        %v3023 = vrsqrt.pop %v3022
        %v3024 = vmul.f32 %v3016, %v3023
        %v3025 = vlaneseq
        %v3026 = vshrl.u32 %v3025, 7
        %v3027 = vsub.s32 0, %v3026
        %v3028 = vrot.slane %v3010, %v3027
        %v3029 = vmul.f32 %v3024, %v3028
        %v3030 = vlaneseq
        %v3031 = vshrl.u32 %v3030, 7
        %v3032 = vsub.s32 0, %v3031
        %v3033 = vrot.slane %v3011, %v3032
        %v3034 = vadd.f32 %v3029, %v3033
        %v3035 = vld [vmem:[%s1 + $0x210] sm:$0xff]
        %v3036 = vld [vmem:[%s1 + $0x218] sm:$0xff]
        %v3037 = vld [vmem:[%s1 + $0x220] sm:$0xff]
        %v3038 = vld [vmem:[%s1 + $0x228] sm:$0xff]
        %v3039 = vld [vmem:[%s1 + $0x230] sm:$0xff]
        %v3040 = vld [vmem:[%s1 + $0x238] sm:$0xff]
        %v3041 = vld [vmem:[%s1 + $0x240] sm:$0xff]
        %v3042 = vld [vmem:[%s1 + $0x248] sm:$0xff]
        %v3043 = vld [vmem:[%s2 + $0xa0] sm:$0x1]
        %v3044 = vlaneseq
        %v3045 = vshrl.u32 %v3044, 7
        %v3046 = vsub.s32 0, %v3045
        %v3047 = vrot.slane %v3043, %v3046
        %v3049 = vsel %vm611, %v3034, 0
        %v3052 = vsel %vm611, %v3035, 0
        %v3055 = vsel %vm611, %v3036, 0
        %v3058 = vsel %vm611, %v3037, 0
        %v3061 = vsel %vm611, %v3038, 0
        %v3064 = vsel %vm611, %v3039, 0
        %v3067 = vsel %vm611, %v3040, 0
        %v3070 = vsel %vm611, %v3041, 0
        %v3073 = vsel %vm611, %v3042, 0
        %3075 = vmatprep.subr.mxu0 0.0
        %3076 = vmatpush1.xpose.msra.mxu0 %v3052
        %3077 = vmatprep.subr.mxu0 0.0
        %3078 = vmatpush1.xpose.msra.mxu0 %v3055
        %3079 = vmatprep.subr.mxu0 0.0
        %3080 = vmatpush1.xpose.msra.mxu0 %v3058
        %3081 = vmatprep.subr.mxu0 0.0
        %3082 = vmatpush1.xpose.msra.mxu0 %v3061
        %3083 = vmatprep.subr.mxu0 0.0
        %3084 = vmatpush1.xpose.msra.mxu0 %v3064
        %3085 = vmatprep.subr.mxu0 0.0
        %3086 = vmatpush1.xpose.msra.mxu0 %v3067
        %3087 = vmatprep.subr.mxu0 0.0
        %3088 = vmatpush1.xpose.msra.mxu0 %v3070
        %3089 = vmatprep.subr.mxu0 0.0
        %3090 = vmatpush1.xpose.msra.mxu0 %v3073
        %3091 = vmatprep.subr.mxu0 0.0
        %3092 = vmatpush1.xpose.msra.mxu0 0.0
        %3093 = vmatprep.subr.mxu0 0.0
        %3094 = vmatpush1.xpose.msra.mxu0 0.0
        %3095 = vmatprep.subr.mxu0 0.0
        %3096 = vmatpush1.xpose.msra.mxu0 0.0
        %3097 = vmatprep.subr.mxu0 0.0
        %3098 = vmatpush1.xpose.msra.mxu0 0.0
        %3099 = vmatprep.subr.mxu0 0.0
        %3100 = vmatpush1.xpose.msra.mxu0 0.0
        %3101 = vmatprep.subr.mxu0 0.0
        %3102 = vmatpush1.xpose.msra.mxu0 0.0
        %3103 = vmatprep.subr.mxu0 0.0
        %3104 = vmatpush1.xpose.msra.mxu0 0.0
        %3105 = vmatprep.subr.mxu0 0.0
        %3106 = vmatpush1.xpose.msra.mxu0 0.0
        %3107 = vmatprep.subr.mxu0 0.0
        %3108 = vmatpush1.xpose.msra.mxu0 0.0
        %3109 = vmatprep.subr.mxu0 0.0
        %3110 = vmatpush1.xpose.msra.mxu0 0.0
        %3111 = vmatprep.subr.mxu0 0.0
        %3112 = vmatpush1.xpose.msra.mxu0 0.0
        %3113 = vmatprep.subr.mxu0 0.0
        %3114 = vmatpush1.xpose.msra.mxu0 0.0
        %3115 = vmatprep.subr.mxu0 0.0
        %3116 = vmatpush1.xpose.msra.mxu0 0.0
        %3117 = vmatprep.subr.mxu0 0.0
        %3118 = vmatpush1.xpose.msra.mxu0 0.0
        %3119 = vmatprep.subr.mxu0 0.0
        %3120 = vmatpush1.xpose.msra.mxu0 0.0
        %3121 = vmatprep.subr.mxu0 0.0
        %3122 = vmatpush1.xpose.msra.mxu0 0.0
        %3123 = vmatprep.subr.mxu0 0.0
        %3124 = vmatpush1.xpose.msra.mxu0 0.0
        %3125 = vmatprep.subr.mxu0 0.0
        %3126 = vmatpush1.xpose.msra.mxu0 0.0
        %3127 = vmatprep.subr.mxu0 0.0
        %3128 = vmatpush1.xpose.msra.mxu0 0.0
        %3129 = vmatprep.subr.mxu0 0.0
        %3130 = vmatpush1.xpose.msra.mxu0 0.0
        %3131 = vmatprep.subr.mxu0 0.0
        %3132 = vmatpush1.xpose.msra.mxu0 0.0
        %3133 = vmatprep.subr.mxu0 0.0
        %3134 = vmatpush1.xpose.msra.mxu0 0.0
        %3135 = vmatprep.subr.mxu0 0.0
        %3136 = vmatpush1.xpose.msra.mxu0 0.0
        %3137 = vmatprep.subr.mxu0 0.0
        %3138 = vmatpush1.xpose.msra.mxu0 0.0
        %3139 = vmatprep.mubr.f32.mxu0 0.0
        %3140 = vmatmul.mubr.f32.gmra.mrb[0].mxu0 %v3049
        %v3141 = vpop.f32.mrb[0].mxu0
        %v3142 = vadd.f32 %v3047, %v3141
        %v3143 = vpop.f32.mrb[0].mxu0
        %3144 = vdwg.mxu0
        %v3145 = vmul.f32 %v3142, %v3142
        %v3146 = vmul.f32 %v3142, %v3145
        %v3147 = vmul.f32 %v3146, 0.044715
        %v3148 = vadd.f32 %v3142, %v3147
        %v3149 = vmul.f32 %v3148, 0.7978846
        %v3150 = vtanh.pop %v3149
        %v3151 = vadd.f32 %v3150, 1.0
        %v3152 = vmul.f32 %v3151, 0.5
        %v3153 = vmul.f32 %v3142, %v3152
        %v3154 = vld [vmem:[%s1 + $0x250] sm:$0xff]
        %v3155 = vld [vmem:[%s1 + $0x258] sm:$0xff]
        %v3156 = vld [vmem:[%s1 + $0x260] sm:$0xff]
        %v3157 = vld [vmem:[%s1 + $0x268] sm:$0xff]
        %v3158 = vld [vmem:[%s1 + $0x270] sm:$0xff]
        %v3159 = vld [vmem:[%s1 + $0x278] sm:$0xff]
        %v3160 = vld [vmem:[%s1 + $0x280] sm:$0xff]
        %v3161 = vld [vmem:[%s1 + $0x288] sm:$0xff]
        %v3162 = vld [vmem:[%s2 + $0xa8] sm:$0x1]
        %v3163 = vlaneseq
        %v3164 = vshrl.u32 %v3163, 7
        %v3165 = vsub.s32 0, %v3164
        %v3166 = vrot.slane %v3162, %v3165
        %v3168 = vsel %vm1539, %v3153, 0
        %3170 = vmatprep.subr.mxu0 0.0
        %3171 = vmatpush1.msra.mxu0 %v3154
        %3172 = vmatprep.subr.mxu0 0.0
        %3173 = vmatpush1.msra.mxu0 %v3155
        %3174 = vmatprep.subr.mxu0 0.0
        %3175 = vmatpush1.msra.mxu0 %v3156
        %3176 = vmatprep.subr.mxu0 0.0
        %3177 = vmatpush1.msra.mxu0 %v3157
        %3178 = vmatprep.subr.mxu0 0.0
        %3179 = vmatpush1.msra.mxu0 %v3158
        %3180 = vmatprep.subr.mxu0 0.0
        %3181 = vmatpush1.msra.mxu0 %v3159
        %3182 = vmatprep.subr.mxu0 0.0
        %3183 = vmatpush1.msra.mxu0 %v3160
        %3184 = vmatprep.subr.mxu0 0.0
        %3185 = vmatpush1.msra.mxu0 %v3161
        %3186 = vmatprep.subr.mxu0 0.0
        %3187 = vmatpush1.msra.mxu0 0.0
        %3188 = vmatprep.subr.mxu0 0.0
        %3189 = vmatpush1.msra.mxu0 0.0
        %3190 = vmatprep.subr.mxu0 0.0
        %3191 = vmatpush1.msra.mxu0 0.0
        %3192 = vmatprep.subr.mxu0 0.0
        %3193 = vmatpush1.msra.mxu0 0.0
        %3194 = vmatprep.subr.mxu0 0.0
        %3195 = vmatpush1.msra.mxu0 0.0
        %3196 = vmatprep.subr.mxu0 0.0
        %3197 = vmatpush1.msra.mxu0 0.0
        %3198 = vmatprep.subr.mxu0 0.0
        %3199 = vmatpush1.msra.mxu0 0.0
        %3200 = vmatprep.subr.mxu0 0.0
        %3201 = vmatpush1.msra.mxu0 0.0
        %3202 = vmatprep.subr.mxu0 0.0
        %3203 = vmatpush1.msra.mxu0 0.0
        %3204 = vmatprep.subr.mxu0 0.0
        %3205 = vmatpush1.msra.mxu0 0.0
        %3206 = vmatprep.subr.mxu0 0.0
        %3207 = vmatpush1.msra.mxu0 0.0
        %3208 = vmatprep.subr.mxu0 0.0
        %3209 = vmatpush1.msra.mxu0 0.0
        %3210 = vmatprep.subr.mxu0 0.0
        %3211 = vmatpush1.msra.mxu0 0.0
        %3212 = vmatprep.subr.mxu0 0.0
        %3213 = vmatpush1.msra.mxu0 0.0
        %3214 = vmatprep.subr.mxu0 0.0
        %3215 = vmatpush1.msra.mxu0 0.0
        %3216 = vmatprep.subr.mxu0 0.0
        %3217 = vmatpush1.msra.mxu0 0.0
        %3218 = vmatprep.subr.mxu0 0.0
        %3219 = vmatpush1.msra.mxu0 0.0
        %3220 = vmatprep.subr.mxu0 0.0
        %3221 = vmatpush1.msra.mxu0 0.0
        %3222 = vmatprep.subr.mxu0 0.0
        %3223 = vmatpush1.msra.mxu0 0.0
        %3224 = vmatprep.subr.mxu0 0.0
        %3225 = vmatpush1.msra.mxu0 0.0
        %3226 = vmatprep.subr.mxu0 0.0
        %3227 = vmatpush1.msra.mxu0 0.0
        %3228 = vmatprep.subr.mxu0 0.0
        %3229 = vmatpush1.msra.mxu0 0.0
        %3230 = vmatprep.subr.mxu0 0.0
        %3231 = vmatpush1.msra.mxu0 0.0
        %3232 = vmatprep.subr.mxu0 0.0
        %3233 = vmatpush1.msra.mxu0 0.0
        %3234 = vmatprep.mubr.f32.mxu0 0.0
        %3235 = vmatmul.mubr.f32.gmra.mrb[0].mxu0 %v3168
        %v3236 = vpop.f32.mrb[0].mxu0
        %v3237 = vadd.f32 %v3166, %v3236
        %v3238 = vpop.f32.mrb[0].mxu0
        %3239 = vdwg.mxu0
        %v3240 = vadd.f32 %v3034, %v3237
        %v3241 = vld [vmem:[%s2 + $0xb0] sm:$0x1]
        %v3242 = vld [vmem:[%s2 + $0xb8] sm:$0x1]
        %v3243 = vsel %vm611, %v3240, 0.0
        %3244 = vadd.xlane.f32.xlu0 %v3243
        %v3245 = vpop.xlane.xlu0 %3244
        %v3246 = vmul.f32 %v3245, %v285
        %v3247 = vsub.f32 %v3240, %v3246
        %v3248 = vmul.f32 %v3247, %v3247
        %v3249 = vsel %vm611, %v3248, 0.0
        %3250 = vadd.xlane.f32.xlu0 %v3249
        %v3251 = vpop.xlane.xlu0 %3250
        %v3252 = vmul.f32 %v3251, %v285
        %v3253 = vadd.f32 %v3252, 1e-05
        %v3254 = vrsqrt.pop %v3253
        %v3255 = vmul.f32 %v3247, %v3254
        %v3256 = vlaneseq
        %v3257 = vshrl.u32 %v3256, 7
        %v3258 = vsub.s32 0, %v3257
        %v3259 = vrot.slane %v3241, %v3258
        %v3260 = vmul.f32 %v3255, %v3259
        %v3261 = vlaneseq
        %v3262 = vshrl.u32 %v3261, 7
        %v3263 = vsub.s32 0, %v3262
        %v3264 = vrot.slane %v3242, %v3263
        %v3265 = vadd.f32 %v3260, %v3264
        %v3266 = vld [vmem:[%s1 + $0x290] sm:$0xf]
        %v3267 = vld [vmem:[%s2 + $0xc0] sm:$0x1]
        %v3268 = vlaneseq
        %v3269 = vshrl.u32 %v3268, 7
        %v3270 = vsub.s32 0, %v3269
        %v3271 = vrot.slane %v3267, %v3270
        %v3273 = vsel %vm611, %v3265, 0
        %v3276 = vsel %vm611, %v3266, 0
        %3278 = vmatprep.subr.mxu0 0.0
        %3279 = vmatpush1.xpose.msra.mxu0 %v3276
        %3280 = vmatprep.subr.mxu0 0.0
        %3281 = vmatpush1.xpose.msra.mxu0 0.0
        %3282 = vmatprep.subr.mxu0 0.0
        %3283 = vmatpush1.xpose.msra.mxu0 0.0
        %3284 = vmatprep.subr.mxu0 0.0
        %3285 = vmatpush1.xpose.msra.mxu0 0.0
        %3286 = vmatprep.subr.mxu0 0.0
        %3287 = vmatpush1.xpose.msra.mxu0 0.0
        %3288 = vmatprep.subr.mxu0 0.0
        %3289 = vmatpush1.xpose.msra.mxu0 0.0
        %3290 = vmatprep.subr.mxu0 0.0
        %3291 = vmatpush1.xpose.msra.mxu0 0.0
        %3292 = vmatprep.subr.mxu0 0.0
        %3293 = vmatpush1.xpose.msra.mxu0 0.0
        %3294 = vmatprep.subr.mxu0 0.0
        %3295 = vmatpush1.xpose.msra.mxu0 0.0
        %3296 = vmatprep.subr.mxu0 0.0
        %3297 = vmatpush1.xpose.msra.mxu0 0.0
        %3298 = vmatprep.subr.mxu0 0.0
        %3299 = vmatpush1.xpose.msra.mxu0 0.0
        %3300 = vmatprep.subr.mxu0 0.0
        %3301 = vmatpush1.xpose.msra.mxu0 0.0
        %3302 = vmatprep.subr.mxu0 0.0
        %3303 = vmatpush1.xpose.msra.mxu0 0.0
        %3304 = vmatprep.subr.mxu0 0.0
        %3305 = vmatpush1.xpose.msra.mxu0 0.0
        %3306 = vmatprep.subr.mxu0 0.0
        %3307 = vmatpush1.xpose.msra.mxu0 0.0
        %3308 = vmatprep.subr.mxu0 0.0
        %3309 = vmatpush1.xpose.msra.mxu0 0.0
        %3310 = vmatprep.subr.mxu0 0.0
        %3311 = vmatpush1.xpose.msra.mxu0 0.0
        %3312 = vmatprep.subr.mxu0 0.0
        %3313 = vmatpush1.xpose.msra.mxu0 0.0
        %3314 = vmatprep.subr.mxu0 0.0
        %3315 = vmatpush1.xpose.msra.mxu0 0.0
        %3316 = vmatprep.subr.mxu0 0.0
        %3317 = vmatpush1.xpose.msra.mxu0 0.0
        %3318 = vmatprep.subr.mxu0 0.0
        %3319 = vmatpush1.xpose.msra.mxu0 0.0
        %3320 = vmatprep.subr.mxu0 0.0
        %3321 = vmatpush1.xpose.msra.mxu0 0.0
        %3322 = vmatprep.subr.mxu0 0.0
        %3323 = vmatpush1.xpose.msra.mxu0 0.0
        %3324 = vmatprep.subr.mxu0 0.0
        %3325 = vmatpush1.xpose.msra.mxu0 0.0
        %3326 = vmatprep.subr.mxu0 0.0
        %3327 = vmatpush1.xpose.msra.mxu0 0.0
        %3328 = vmatprep.subr.mxu0 0.0
        %3329 = vmatpush1.xpose.msra.mxu0 0.0
        %3330 = vmatprep.subr.mxu0 0.0
        %3331 = vmatpush1.xpose.msra.mxu0 0.0
        %3332 = vmatprep.subr.mxu0 0.0
        %3333 = vmatpush1.xpose.msra.mxu0 0.0
        %3334 = vmatprep.subr.mxu0 0.0
        %3335 = vmatpush1.xpose.msra.mxu0 0.0
        %3336 = vmatprep.subr.mxu0 0.0
        %3337 = vmatpush1.xpose.msra.mxu0 0.0
        %3338 = vmatprep.subr.mxu0 0.0
        %3339 = vmatpush1.xpose.msra.mxu0 0.0
        %3340 = vmatprep.subr.mxu0 0.0
        %3341 = vmatpush1.xpose.msra.mxu0 0.0
        %3342 = vmatprep.mubr.f32.mxu0 0.0
        %3343 = vmatmul.mubr.f32.gmra.mrb[0].mxu0 %v3273
        %v3344 = vpop.f32.mrb[0].mxu0
        %v3345 = vadd.f32 %v3271, %v3344
        %v3346 = vpop.f32.mrb[0].mxu0
        %3347 = vdwg.mxu0
        %v3348 = vadd.f32 %v3345, 0.0
        %v3349 = vld [vmem:[%s1 + $0x298] sm:$0xff]
        %v3350 = vld [vmem:[%s1 + $0x2a0] sm:$0xff]
        %v3351 = vld [vmem:[%s1 + $0x2a8] sm:$0xff]
        %v3352 = vld [vmem:[%s1 + $0x2b0] sm:$0xff]
        %v3353 = vld [vmem:[%s1 + $0x2b8] sm:$0xff]
        %v3354 = vld [vmem:[%s1 + $0x2c0] sm:$0xff]
        %v3355 = vld [vmem:[%s1 + $0x2c8] sm:$0xff]
        %v3356 = vld [vmem:[%s1 + $0x2d0] sm:$0xff]
        %v3357 = vld [vmem:[%s1 + $0x2d8] sm:$0xff]
        %v3358 = vld [vmem:[%s1 + $0x2e0] sm:$0xff]
        %v3359 = vld [vmem:[%s1 + $0x2e8] sm:$0xff]
        %v3360 = vld [vmem:[%s1 + $0x2f0] sm:$0xff]
        %v3361 = vld [vmem:[%s2 + $0xc8] sm:$0x1]
        %v3362 = vlaneseq
        %v3363 = vshrl.u32 %v3362, 7
        %v3364 = vsub.s32 0, %v3363
        %v3365 = vrot.slane %v3361, %v3364
        %v3367 = vsel %vm611, %v3349, 0
        %v3370 = vsel %vm611, %v3350, 0
        %v3373 = vsel %vm611, %v3351, 0
        %v3376 = vsel %vm611, %v3352, 0
        %v3379 = vsel %vm611, %v3353, 0
        %v3382 = vsel %vm611, %v3354, 0
        %v3385 = vsel %vm611, %v3355, 0
        %v3388 = vsel %vm611, %v3356, 0
        %v3391 = vsel %vm611, %v3357, 0
        %v3394 = vsel %vm611, %v3358, 0
        %v3397 = vsel %vm611, %v3359, 0
        %v3400 = vsel %vm611, %v3360, 0
        %3402 = vmatprep.subr.mxu0 0.0
        %3403 = vmatpush1.xpose.msra.mxu0 %v3367
        %3404 = vmatprep.subr.mxu0 0.0
        %3405 = vmatpush1.xpose.msra.mxu0 %v3370
        %3406 = vmatprep.subr.mxu0 0.0
        %3407 = vmatpush1.xpose.msra.mxu0 %v3373
        %3408 = vmatprep.subr.mxu0 0.0
        %3409 = vmatpush1.xpose.msra.mxu0 %v3376
        %3410 = vmatprep.subr.mxu0 0.0
        %3411 = vmatpush1.xpose.msra.mxu0 %v3379
        %3412 = vmatprep.subr.mxu0 0.0
        %3413 = vmatpush1.xpose.msra.mxu0 %v3382
        %3414 = vmatprep.subr.mxu0 0.0
        %3415 = vmatpush1.xpose.msra.mxu0 %v3385
        %3416 = vmatprep.subr.mxu0 0.0
        %3417 = vmatpush1.xpose.msra.mxu0 %v3388
        %3418 = vmatprep.subr.mxu0 0.0
        %3419 = vmatpush1.xpose.msra.mxu0 %v3391
        %3420 = vmatprep.subr.mxu0 0.0
        %3421 = vmatpush1.xpose.msra.mxu0 %v3394
        %3422 = vmatprep.subr.mxu0 0.0
        %3423 = vmatpush1.xpose.msra.mxu0 %v3397
        %3424 = vmatprep.subr.mxu0 0.0
        %3425 = vmatpush1.xpose.msra.mxu0 %v3400
        %3426 = vmatprep.subr.mxu0 0.0
        %3427 = vmatpush1.xpose.msra.mxu0 0.0
        %3428 = vmatprep.subr.mxu0 0.0
        %3429 = vmatpush1.xpose.msra.mxu0 0.0
        %3430 = vmatprep.subr.mxu0 0.0
        %3431 = vmatpush1.xpose.msra.mxu0 0.0
        %3432 = vmatprep.subr.mxu0 0.0
        %3433 = vmatpush1.xpose.msra.mxu0 0.0
        %3434 = vmatprep.subr.mxu0 0.0
        %3435 = vmatpush1.xpose.msra.mxu0 0.0
        %3436 = vmatprep.subr.mxu0 0.0
        %3437 = vmatpush1.xpose.msra.mxu0 0.0
        %3438 = vmatprep.subr.mxu0 0.0
        %3439 = vmatpush1.xpose.msra.mxu0 0.0
        %3440 = vmatprep.subr.mxu0 0.0
        %3441 = vmatpush1.xpose.msra.mxu0 0.0
        %3442 = vmatprep.subr.mxu0 0.0
        %3443 = vmatpush1.xpose.msra.mxu0 0.0
        %3444 = vmatprep.subr.mxu0 0.0
        %3445 = vmatpush1.xpose.msra.mxu0 0.0
        %3446 = vmatprep.subr.mxu0 0.0
        %3447 = vmatpush1.xpose.msra.mxu0 0.0
        %3448 = vmatprep.subr.mxu0 0.0
        %3449 = vmatpush1.xpose.msra.mxu0 0.0
        %3450 = vmatprep.subr.mxu0 0.0
        %3451 = vmatpush1.xpose.msra.mxu0 0.0
        %3452 = vmatprep.subr.mxu0 0.0
        %3453 = vmatpush1.xpose.msra.mxu0 0.0
        %3454 = vmatprep.subr.mxu0 0.0
        %3455 = vmatpush1.xpose.msra.mxu0 0.0
        %3456 = vmatprep.subr.mxu0 0.0
        %3457 = vmatpush1.xpose.msra.mxu0 0.0
        %3458 = vmatprep.subr.mxu0 0.0
        %3459 = vmatpush1.xpose.msra.mxu0 0.0
        %3460 = vmatprep.subr.mxu0 0.0
        %3461 = vmatpush1.xpose.msra.mxu0 0.0
        %3462 = vmatprep.subr.mxu0 0.0
        %3463 = vmatpush1.xpose.msra.mxu0 0.0
        %3464 = vmatprep.subr.mxu0 0.0
        %3465 = vmatpush1.xpose.msra.mxu0 0.0
        %3466 = vmatprep.mubr.f32.mxu0 0.0
        %3467 = vmatmul.mubr.f32.gmra.mrb[0].mxu0 %v3273
        %v3468 = vpop.f32.mrb[0].mxu0
        %v3469 = vadd.f32 %v3365, %v3468
        %v3470 = vpop.f32.mrb[0].mxu0
        %3471 = vdwg.mxu0
        %v3472 = vld [vmem:[%s1 + $0x2f8] sm:$0xff]
        %v3473 = vld [vmem:[%s1 + $0x300] sm:$0xff]
        %v3474 = vld [vmem:[%s1 + $0x308] sm:$0xff]
        %v3475 = vld [vmem:[%s1 + $0x310] sm:$0xff]
        %3477 = vrot.lane.b32.xlu0 %v3469, 96
        %v3478 = vpop.permute.xlu0 %3477
        %v3479 = vsel %vm782, %v3469, 0
        %v3481 = vsel %vm782, %v3478, 0
        %3483 = vmatprep.subr.mxu0 0.0
        %3484 = vmatpush1.xpose.msra.mxu0 %v3481
        %3485 = vmatprep.subr.mxu0 0.0
        %3486 = vmatpush1.xpose.msra.mxu0 0.0
        %3487 = vmatprep.subr.mxu0 0.0
        %3488 = vmatpush1.xpose.msra.mxu0 0.0
        %3489 = vmatprep.subr.mxu0 0.0
        %3490 = vmatpush1.xpose.msra.mxu0 0.0
        %3491 = vmatprep.subr.mxu0 0.0
        %3492 = vmatpush1.xpose.msra.mxu0 0.0
        %3493 = vmatprep.subr.mxu0 0.0
        %3494 = vmatpush1.xpose.msra.mxu0 0.0
        %3495 = vmatprep.subr.mxu0 0.0
        %3496 = vmatpush1.xpose.msra.mxu0 0.0
        %3497 = vmatprep.subr.mxu0 0.0
        %3498 = vmatpush1.xpose.msra.mxu0 0.0
        %3499 = vmatprep.subr.mxu0 0.0
        %3500 = vmatpush1.xpose.msra.mxu0 0.0
        %3501 = vmatprep.subr.mxu0 0.0
        %3502 = vmatpush1.xpose.msra.mxu0 0.0
        %3503 = vmatprep.subr.mxu0 0.0
        %3504 = vmatpush1.xpose.msra.mxu0 0.0
        %3505 = vmatprep.subr.mxu0 0.0
        %3506 = vmatpush1.xpose.msra.mxu0 0.0
        %3507 = vmatprep.subr.mxu0 0.0
        %3508 = vmatpush1.xpose.msra.mxu0 0.0
        %3509 = vmatprep.subr.mxu0 0.0
        %3510 = vmatpush1.xpose.msra.mxu0 0.0
        %3511 = vmatprep.subr.mxu0 0.0
        %3512 = vmatpush1.xpose.msra.mxu0 0.0
        %3513 = vmatprep.subr.mxu0 0.0
        %3514 = vmatpush1.xpose.msra.mxu0 0.0
        %3515 = vmatprep.subr.mxu0 0.0
        %3516 = vmatpush1.xpose.msra.mxu0 0.0
        %3517 = vmatprep.subr.mxu0 0.0
        %3518 = vmatpush1.xpose.msra.mxu0 0.0
        %3519 = vmatprep.subr.mxu0 0.0
        %3520 = vmatpush1.xpose.msra.mxu0 0.0
        %3521 = vmatprep.subr.mxu0 0.0
        %3522 = vmatpush1.xpose.msra.mxu0 0.0
        %3523 = vmatprep.subr.mxu0 0.0
        %3524 = vmatpush1.xpose.msra.mxu0 0.0
        %3525 = vmatprep.subr.mxu0 0.0
        %3526 = vmatpush1.xpose.msra.mxu0 0.0
        %3527 = vmatprep.subr.mxu0 0.0
        %3528 = vmatpush1.xpose.msra.mxu0 0.0
        %3529 = vmatprep.subr.mxu0 0.0
        %3530 = vmatpush1.xpose.msra.mxu0 0.0
        %3531 = vmatprep.subr.mxu0 0.0
        %3532 = vmatpush1.xpose.msra.mxu0 0.0
        %3533 = vmatprep.subr.mxu0 0.0
        %3534 = vmatpush1.xpose.msra.mxu0 0.0
        %3535 = vmatprep.subr.mxu0 0.0
        %3536 = vmatpush1.xpose.msra.mxu0 0.0
        %3537 = vmatprep.subr.mxu0 0.0
        %3538 = vmatpush1.xpose.msra.mxu0 0.0
        %3539 = vmatprep.subr.mxu0 0.0
        %3540 = vmatpush1.xpose.msra.mxu0 0.0
        %3541 = vmatprep.subr.mxu0 0.0
        %3542 = vmatpush1.xpose.msra.mxu0 0.0
        %3543 = vmatprep.subr.mxu0 0.0
        %3544 = vmatpush1.xpose.msra.mxu0 0.0
        %3545 = vmatprep.subr.mxu0 0.0
        %3546 = vmatpush1.xpose.msra.mxu0 0.0
        %3547 = vmatprep.mubr.f32.mxu0 0.0
        %3548 = vmatmul.mubr.f32.gmra.mrb[0].mxu0 %v3479
        %v3549 = vpop.f32.mrb[0].mxu0
        %v3550 = vadd.f32 0.0, %v3549
        %v3551 = vpop.f32.mrb[0].mxu0
        %3552 = vdwg.mxu0
        %v3553 = vsel %vm774, %v3550, -1e+30
        %v3554 = vsel %vm1872, %v3553, -inf
        %3555 = vmax.xlane.f32.xlu0 %v3554
        %v3556 = vpop.xlane.xlu0 %3555
        %v3557 = vsub.f32 %v3553, %v3556
        %v3558 = vmul.f32 %v3557, 1.442695
        %v3559 = vpow.pop %v3558
        %v3560 = vsel %vm1872, %v3559, 0.0
        %3561 = vadd.xlane.f32.xlu0 %v3560
        %v3562 = vpop.xlane.xlu0 %3561
        %v3563 = vrcp.pop %v3562
        %v3564 = vmul.f32 %v3559, %v3563
        %3565 = vrot.lane.b32.xlu0 %v3469, 64
        %v3566 = vpop.permute.xlu0 %3565
        %v3569 = vsel %vm1872, %v3564, 0
        %3571 = vmatprep.subr.mxu0 0.0
        %3572 = vmatpush1.msra.mxu0 %v3566
        %3573 = vmatprep.subr.mxu0 0.0
        %3574 = vmatpush1.msra.mxu0 0.0
        %3575 = vmatprep.subr.mxu0 0.0
        %3576 = vmatpush1.msra.mxu0 0.0
        %3577 = vmatprep.subr.mxu0 0.0
        %3578 = vmatpush1.msra.mxu0 0.0
        %3579 = vmatprep.subr.mxu0 0.0
        %3580 = vmatpush1.msra.mxu0 0.0
        %3581 = vmatprep.subr.mxu0 0.0
        %3582 = vmatpush1.msra.mxu0 0.0
        %3583 = vmatprep.subr.mxu0 0.0
        %3584 = vmatpush1.msra.mxu0 0.0
        %3585 = vmatprep.subr.mxu0 0.0
        %3586 = vmatpush1.msra.mxu0 0.0
        %3587 = vmatprep.subr.mxu0 0.0
        %3588 = vmatpush1.msra.mxu0 0.0
        %3589 = vmatprep.subr.mxu0 0.0
        %3590 = vmatpush1.msra.mxu0 0.0
        %3591 = vmatprep.subr.mxu0 0.0
        %3592 = vmatpush1.msra.mxu0 0.0
        %3593 = vmatprep.subr.mxu0 0.0
        %3594 = vmatpush1.msra.mxu0 0.0
        %3595 = vmatprep.subr.mxu0 0.0
        %3596 = vmatpush1.msra.mxu0 0.0
        %3597 = vmatprep.subr.mxu0 0.0
        %3598 = vmatpush1.msra.mxu0 0.0
        %3599 = vmatprep.subr.mxu0 0.0
        %3600 = vmatpush1.msra.mxu0 0.0
        %3601 = vmatprep.subr.mxu0 0.0
        %3602 = vmatpush1.msra.mxu0 0.0
        %3603 = vmatprep.subr.mxu0 0.0
        %3604 = vmatpush1.msra.mxu0 0.0
        %3605 = vmatprep.subr.mxu0 0.0
        %3606 = vmatpush1.msra.mxu0 0.0
        %3607 = vmatprep.subr.mxu0 0.0
        %3608 = vmatpush1.msra.mxu0 0.0
        %3609 = vmatprep.subr.mxu0 0.0
        %3610 = vmatpush1.msra.mxu0 0.0
        %3611 = vmatprep.subr.mxu0 0.0
        %3612 = vmatpush1.msra.mxu0 0.0
        %3613 = vmatprep.subr.mxu0 0.0
        %3614 = vmatpush1.msra.mxu0 0.0
        %3615 = vmatprep.subr.mxu0 0.0
        %3616 = vmatpush1.msra.mxu0 0.0
        %3617 = vmatprep.subr.mxu0 0.0
        %3618 = vmatpush1.msra.mxu0 0.0
        %3619 = vmatprep.subr.mxu0 0.0
        %3620 = vmatpush1.msra.mxu0 0.0
        %3621 = vmatprep.subr.mxu0 0.0
        %3622 = vmatpush1.msra.mxu0 0.0
        %3623 = vmatprep.subr.mxu0 0.0
        %3624 = vmatpush1.msra.mxu0 0.0
        %3625 = vmatprep.subr.mxu0 0.0
        %3626 = vmatpush1.msra.mxu0 0.0
        %3627 = vmatprep.subr.mxu0 0.0
        %3628 = vmatpush1.msra.mxu0 0.0
        %3629 = vmatprep.subr.mxu0 0.0
        %3630 = vmatpush1.msra.mxu0 0.0
        %3631 = vmatprep.subr.mxu0 0.0
        %3632 = vmatpush1.msra.mxu0 0.0
        %3633 = vmatprep.subr.mxu0 0.0
        %3634 = vmatpush1.msra.mxu0 0.0
        %3635 = vmatprep.mubr.f32.mxu0 0.0
        %3636 = vmatmul.mubr.f32.gmra.mrb[0].mxu0 %v3569
        %v3637 = vpop.f32.mrb[0].mxu0
        %v3638 = vadd.f32 0.0, %v3637
        %v3639 = vpop.f32.mrb[0].mxu0
        %3640 = vdwg.mxu0
        %3641 = vrot.lane.b32.xlu0 %v3469, 112
        %v3642 = vpop.permute.xlu0 %3641
        %3643 = vrot.lane.b32.xlu0 %v3469, 80
        %v3644 = vpop.permute.xlu0 %3643
        %v3645 = vsel %vm782, %v3642, 0
        %v3647 = vsel %vm782, %v3644, 0
        %3649 = vmatprep.subr.mxu0 0.0
        %3650 = vmatpush1.xpose.msra.mxu0 %v3647
        %3651 = vmatprep.subr.mxu0 0.0
        %3652 = vmatpush1.xpose.msra.mxu0 0.0
        %3653 = vmatprep.subr.mxu0 0.0
        %3654 = vmatpush1.xpose.msra.mxu0 0.0
        %3655 = vmatprep.subr.mxu0 0.0
        %3656 = vmatpush1.xpose.msra.mxu0 0.0
        %3657 = vmatprep.subr.mxu0 0.0
        %3658 = vmatpush1.xpose.msra.mxu0 0.0
        %3659 = vmatprep.subr.mxu0 0.0
        %3660 = vmatpush1.xpose.msra.mxu0 0.0
        %3661 = vmatprep.subr.mxu0 0.0
        %3662 = vmatpush1.xpose.msra.mxu0 0.0
        %3663 = vmatprep.subr.mxu0 0.0
        %3664 = vmatpush1.xpose.msra.mxu0 0.0
        %3665 = vmatprep.subr.mxu0 0.0
        %3666 = vmatpush1.xpose.msra.mxu0 0.0
        %3667 = vmatprep.subr.mxu0 0.0
        %3668 = vmatpush1.xpose.msra.mxu0 0.0
        %3669 = vmatprep.subr.mxu0 0.0
        %3670 = vmatpush1.xpose.msra.mxu0 0.0
        %3671 = vmatprep.subr.mxu0 0.0
        %3672 = vmatpush1.xpose.msra.mxu0 0.0
        %3673 = vmatprep.subr.mxu0 0.0
        %3674 = vmatpush1.xpose.msra.mxu0 0.0
        %3675 = vmatprep.subr.mxu0 0.0
        %3676 = vmatpush1.xpose.msra.mxu0 0.0
        %3677 = vmatprep.subr.mxu0 0.0
        %3678 = vmatpush1.xpose.msra.mxu0 0.0
        %3679 = vmatprep.subr.mxu0 0.0
        %3680 = vmatpush1.xpose.msra.mxu0 0.0
        %3681 = vmatprep.subr.mxu0 0.0
        %3682 = vmatpush1.xpose.msra.mxu0 0.0
        %3683 = vmatprep.subr.mxu0 0.0
        %3684 = vmatpush1.xpose.msra.mxu0 0.0
        %3685 = vmatprep.subr.mxu0 0.0
        %3686 = vmatpush1.xpose.msra.mxu0 0.0
        %3687 = vmatprep.subr.mxu0 0.0
        %3688 = vmatpush1.xpose.msra.mxu0 0.0
        %3689 = vmatprep.subr.mxu0 0.0
        %3690 = vmatpush1.xpose.msra.mxu0 0.0
        %3691 = vmatprep.subr.mxu0 0.0
        %3692 = vmatpush1.xpose.msra.mxu0 0.0
        %3693 = vmatprep.subr.mxu0 0.0
        %3694 = vmatpush1.xpose.msra.mxu0 0.0
        %3695 = vmatprep.subr.mxu0 0.0
        %3696 = vmatpush1.xpose.msra.mxu0 0.0
        %3697 = vmatprep.subr.mxu0 0.0
        %3698 = vmatpush1.xpose.msra.mxu0 0.0
        %3699 = vmatprep.subr.mxu0 0.0
        %3700 = vmatpush1.xpose.msra.mxu0 0.0
        %3701 = vmatprep.subr.mxu0 0.0
        %3702 = vmatpush1.xpose.msra.mxu0 0.0
        %3703 = vmatprep.subr.mxu0 0.0
        %3704 = vmatpush1.xpose.msra.mxu0 0.0
        %3705 = vmatprep.subr.mxu0 0.0
        %3706 = vmatpush1.xpose.msra.mxu0 0.0
        %3707 = vmatprep.subr.mxu0 0.0
        %3708 = vmatpush1.xpose.msra.mxu0 0.0
        %3709 = vmatprep.subr.mxu0 0.0
        %3710 = vmatpush1.xpose.msra.mxu0 0.0
        %3711 = vmatprep.subr.mxu0 0.0
        %3712 = vmatpush1.xpose.msra.mxu0 0.0
        %3713 = vmatprep.mubr.f32.mxu0 0.0
        %3714 = vmatmul.mubr.f32.gmra.mrb[0].mxu0 %v3645
        %v3715 = vpop.f32.mrb[0].mxu0
        %v3716 = vadd.f32 0.0, %v3715
        %v3717 = vpop.f32.mrb[0].mxu0
        %3718 = vdwg.mxu0
        %v3719 = vsel %vm774, %v3716, -1e+30
        %v3720 = vsel %vm1872, %v3719, -inf
        %3721 = vmax.xlane.f32.xlu0 %v3720
        %v3722 = vpop.xlane.xlu0 %3721
        %v3723 = vsub.f32 %v3719, %v3722
        %v3724 = vmul.f32 %v3723, 1.442695
        %v3725 = vpow.pop %v3724
        %v3726 = vsel %vm1872, %v3725, 0.0
        %3727 = vadd.xlane.f32.xlu0 %v3726
        %v3728 = vpop.xlane.xlu0 %3727
        %v3729 = vrcp.pop %v3728
        %v3730 = vmul.f32 %v3725, %v3729
        %3731 = vrot.lane.b32.xlu0 %v3469, 48
        %v3732 = vpop.permute.xlu0 %3731
        %v3735 = vsel %vm1872, %v3730, 0
        %3737 = vmatprep.subr.mxu0 0.0
        %3738 = vmatpush1.msra.mxu0 %v3732
        %3739 = vmatprep.subr.mxu0 0.0
        %3740 = vmatpush1.msra.mxu0 0.0
        %3741 = vmatprep.subr.mxu0 0.0
        %3742 = vmatpush1.msra.mxu0 0.0
        %3743 = vmatprep.subr.mxu0 0.0
        %3744 = vmatpush1.msra.mxu0 0.0
        %3745 = vmatprep.subr.mxu0 0.0
        %3746 = vmatpush1.msra.mxu0 0.0
        %3747 = vmatprep.subr.mxu0 0.0
        %3748 = vmatpush1.msra.mxu0 0.0
        %3749 = vmatprep.subr.mxu0 0.0
        %3750 = vmatpush1.msra.mxu0 0.0
        %3751 = vmatprep.subr.mxu0 0.0
        %3752 = vmatpush1.msra.mxu0 0.0
        %3753 = vmatprep.subr.mxu0 0.0
        %3754 = vmatpush1.msra.mxu0 0.0
        %3755 = vmatprep.subr.mxu0 0.0
        %3756 = vmatpush1.msra.mxu0 0.0
        %3757 = vmatprep.subr.mxu0 0.0
        %3758 = vmatpush1.msra.mxu0 0.0
        %3759 = vmatprep.subr.mxu0 0.0
        %3760 = vmatpush1.msra.mxu0 0.0
        %3761 = vmatprep.subr.mxu0 0.0
        %3762 = vmatpush1.msra.mxu0 0.0
        %3763 = vmatprep.subr.mxu0 0.0
        %3764 = vmatpush1.msra.mxu0 0.0
        %3765 = vmatprep.subr.mxu0 0.0
        %3766 = vmatpush1.msra.mxu0 0.0
        %3767 = vmatprep.subr.mxu0 0.0
        %3768 = vmatpush1.msra.mxu0 0.0
        %3769 = vmatprep.subr.mxu0 0.0
        %3770 = vmatpush1.msra.mxu0 0.0
        %3771 = vmatprep.subr.mxu0 0.0
        %3772 = vmatpush1.msra.mxu0 0.0
        %3773 = vmatprep.subr.mxu0 0.0
        %3774 = vmatpush1.msra.mxu0 0.0
        %3775 = vmatprep.subr.mxu0 0.0
        %3776 = vmatpush1.msra.mxu0 0.0
        %3777 = vmatprep.subr.mxu0 0.0
        %3778 = vmatpush1.msra.mxu0 0.0
        %3779 = vmatprep.subr.mxu0 0.0
        %3780 = vmatpush1.msra.mxu0 0.0
        %3781 = vmatprep.subr.mxu0 0.0
        %3782 = vmatpush1.msra.mxu0 0.0
        %3783 = vmatprep.subr.mxu0 0.0
        %3784 = vmatpush1.msra.mxu0 0.0
        %3785 = vmatprep.subr.mxu0 0.0
        %3786 = vmatpush1.msra.mxu0 0.0
        %3787 = vmatprep.subr.mxu0 0.0
        %3788 = vmatpush1.msra.mxu0 0.0
        %3789 = vmatprep.subr.mxu0 0.0
        %3790 = vmatpush1.msra.mxu0 0.0
        %3791 = vmatprep.subr.mxu0 0.0
        %3792 = vmatpush1.msra.mxu0 0.0
        %3793 = vmatprep.subr.mxu0 0.0
        %3794 = vmatpush1.msra.mxu0 0.0
        %3795 = vmatprep.subr.mxu0 0.0
        %3796 = vmatpush1.msra.mxu0 0.0
        %3797 = vmatprep.subr.mxu0 0.0
        %3798 = vmatpush1.msra.mxu0 0.0
        %3799 = vmatprep.subr.mxu0 0.0
        %3800 = vmatpush1.msra.mxu0 0.0
        %3801 = vmatprep.mubr.f32.mxu0 0.0
        %3802 = vmatmul.mubr.f32.gmra.mrb[0].mxu0 %v3735
        %v3803 = vpop.f32.mrb[0].mxu0
        %v3804 = vadd.f32 0.0, %v3803
        %v3805 = vpop.f32.mrb[0].mxu0
        %3806 = vdwg.mxu0
        %v3808 = vsel %vm782, %v3804, 0
        %3810 = vmatprep.subr.mxu0 0.0
        %3811 = vmatpush1.msra.mxu0 %v3474
        %3812 = vmatprep.subr.mxu0 0.0
        %3813 = vmatpush1.msra.mxu0 %v3475
        %3814 = vmatprep.subr.mxu0 0.0
        %3815 = vmatpush1.msra.mxu0 0.0
        %3816 = vmatprep.subr.mxu0 0.0
        %3817 = vmatpush1.msra.mxu0 0.0
        %3818 = vmatprep.subr.mxu0 0.0
        %3819 = vmatpush1.msra.mxu0 0.0
        %3820 = vmatprep.subr.mxu0 0.0
        %3821 = vmatpush1.msra.mxu0 0.0
        %3822 = vmatprep.subr.mxu0 0.0
        %3823 = vmatpush1.msra.mxu0 0.0
        %3824 = vmatprep.subr.mxu0 0.0
        %3825 = vmatpush1.msra.mxu0 0.0
        %3826 = vmatprep.subr.mxu0 0.0
        %3827 = vmatpush1.msra.mxu0 0.0
        %3828 = vmatprep.subr.mxu0 0.0
        %3829 = vmatpush1.msra.mxu0 0.0
        %3830 = vmatprep.subr.mxu0 0.0
        %3831 = vmatpush1.msra.mxu0 0.0
        %3832 = vmatprep.subr.mxu0 0.0
        %3833 = vmatpush1.msra.mxu0 0.0
        %3834 = vmatprep.subr.mxu0 0.0
        %3835 = vmatpush1.msra.mxu0 0.0
        %3836 = vmatprep.subr.mxu0 0.0
        %3837 = vmatpush1.msra.mxu0 0.0
        %3838 = vmatprep.subr.mxu0 0.0
        %3839 = vmatpush1.msra.mxu0 0.0
        %3840 = vmatprep.subr.mxu0 0.0
        %3841 = vmatpush1.msra.mxu0 0.0
        %3842 = vmatprep.subr.mxu0 0.0
        %3843 = vmatpush1.msra.mxu0 0.0
        %3844 = vmatprep.subr.mxu0 0.0
        %3845 = vmatpush1.msra.mxu0 0.0
        %3846 = vmatprep.subr.mxu0 0.0
        %3847 = vmatpush1.msra.mxu0 0.0
        %3848 = vmatprep.subr.mxu0 0.0
        %3849 = vmatpush1.msra.mxu0 0.0
        %3850 = vmatprep.subr.mxu0 0.0
        %3851 = vmatpush1.msra.mxu0 0.0
        %3852 = vmatprep.subr.mxu0 0.0
        %3853 = vmatpush1.msra.mxu0 0.0
        %3854 = vmatprep.subr.mxu0 0.0
        %3855 = vmatpush1.msra.mxu0 0.0
        %3856 = vmatprep.subr.mxu0 0.0
        %3857 = vmatpush1.msra.mxu0 0.0
        %3858 = vmatprep.subr.mxu0 0.0
        %3859 = vmatpush1.msra.mxu0 0.0
        %3860 = vmatprep.subr.mxu0 0.0
        %3861 = vmatpush1.msra.mxu0 0.0
        %3862 = vmatprep.subr.mxu0 0.0
        %3863 = vmatpush1.msra.mxu0 0.0
        %3864 = vmatprep.subr.mxu0 0.0
        %3865 = vmatpush1.msra.mxu0 0.0
        %3866 = vmatprep.subr.mxu0 0.0
        %3867 = vmatpush1.msra.mxu0 0.0
        %3868 = vmatprep.subr.mxu0 0.0
        %3869 = vmatpush1.msra.mxu0 0.0
        %3870 = vmatprep.subr.mxu0 0.0
        %3871 = vmatpush1.msra.mxu0 0.0
        %3872 = vmatprep.subr.mxu0 0.0
        %3873 = vmatpush1.msra.mxu0 0.0
        %3874 = vmatprep.mubr.f32.mxu0 0.0
        %3875 = vmatmul.mubr.f32.gmra.mrb[0].mxu0 %v3808
        %v3876 = vpop.f32.mrb[0].mxu0
        %v3877 = vadd.f32 0.0, %v3876
        %v3878 = vpop.f32.mrb[0].mxu0
        %3879 = vdwg.mxu0
        %v3881 = vsel %vm782, %v3638, 0
        %3883 = vmatprep.subr.mxu0 0.0
        %3884 = vmatpush1.msra.mxu0 %v3472
        %3885 = vmatprep.subr.mxu0 0.0
        %3886 = vmatpush1.msra.mxu0 %v3473
        %3887 = vmatprep.subr.mxu0 0.0
        %3888 = vmatpush1.msra.mxu0 0.0
        %3889 = vmatprep.subr.mxu0 0.0
        %3890 = vmatpush1.msra.mxu0 0.0
        %3891 = vmatprep.subr.mxu0 0.0
        %3892 = vmatpush1.msra.mxu0 0.0
        %3893 = vmatprep.subr.mxu0 0.0
        %3894 = vmatpush1.msra.mxu0 0.0
        %3895 = vmatprep.subr.mxu0 0.0
        %3896 = vmatpush1.msra.mxu0 0.0
        %3897 = vmatprep.subr.mxu0 0.0
        %3898 = vmatpush1.msra.mxu0 0.0
        %3899 = vmatprep.subr.mxu0 0.0
        %3900 = vmatpush1.msra.mxu0 0.0
        %3901 = vmatprep.subr.mxu0 0.0
        %3902 = vmatpush1.msra.mxu0 0.0
        %3903 = vmatprep.subr.mxu0 0.0
        %3904 = vmatpush1.msra.mxu0 0.0
        %3905 = vmatprep.subr.mxu0 0.0
        %3906 = vmatpush1.msra.mxu0 0.0
        %3907 = vmatprep.subr.mxu0 0.0
        %3908 = vmatpush1.msra.mxu0 0.0
        %3909 = vmatprep.subr.mxu0 0.0
        %3910 = vmatpush1.msra.mxu0 0.0
        %3911 = vmatprep.subr.mxu0 0.0
        %3912 = vmatpush1.msra.mxu0 0.0
        %3913 = vmatprep.subr.mxu0 0.0
        %3914 = vmatpush1.msra.mxu0 0.0
        %3915 = vmatprep.subr.mxu0 0.0
        %3916 = vmatpush1.msra.mxu0 0.0
        %3917 = vmatprep.subr.mxu0 0.0
        %3918 = vmatpush1.msra.mxu0 0.0
        %3919 = vmatprep.subr.mxu0 0.0
        %3920 = vmatpush1.msra.mxu0 0.0
        %3921 = vmatprep.subr.mxu0 0.0
        %3922 = vmatpush1.msra.mxu0 0.0
        %3923 = vmatprep.subr.mxu0 0.0
        %3924 = vmatpush1.msra.mxu0 0.0
        %3925 = vmatprep.subr.mxu0 0.0
        %3926 = vmatpush1.msra.mxu0 0.0
        %3927 = vmatprep.subr.mxu0 0.0
        %3928 = vmatpush1.msra.mxu0 0.0
        %3929 = vmatprep.subr.mxu0 0.0
        %3930 = vmatpush1.msra.mxu0 0.0
        %3931 = vmatprep.subr.mxu0 0.0
        %3932 = vmatpush1.msra.mxu0 0.0
        %3933 = vmatprep.subr.mxu0 0.0
        %3934 = vmatpush1.msra.mxu0 0.0
        %3935 = vmatprep.subr.mxu0 0.0
        %3936 = vmatpush1.msra.mxu0 0.0
        %3937 = vmatprep.subr.mxu0 0.0
        %3938 = vmatpush1.msra.mxu0 0.0
        %3939 = vmatprep.subr.mxu0 0.0
        %3940 = vmatpush1.msra.mxu0 0.0
        %3941 = vmatprep.subr.mxu0 0.0
        %3942 = vmatpush1.msra.mxu0 0.0
        %3943 = vmatprep.subr.mxu0 0.0
        %3944 = vmatpush1.msra.mxu0 0.0
        %3945 = vmatprep.subr.mxu0 0.0
        %3946 = vmatpush1.msra.mxu0 0.0
        %3947 = vmatprep.mubr.f32.mxu0 0.0
        %3948 = vmatmul.mubr.f32.gmra.mrb[0].mxu0 %v3881
        %v3949 = vpop.f32.mrb[0].mxu0
        %v3950 = vadd.f32 %v3877, %v3949
        %v3951 = vpop.f32.mrb[0].mxu0
        %3952 = vdwg.mxu0
        %v3953 = vld [vmem:[%s2 + $0xd0] sm:$0x1]
        %v3954 = vlaneseq
        %v3955 = vshrl.u32 %v3954, 7
        %v3956 = vsub.s32 0, %v3955
        %v3957 = vrot.slane %v3953, %v3956
        %v3958 = vadd.f32 %v3950, %v3957
        %v3959 = vadd.f32 %v3265, %v3958
        %v3960 = vld [vmem:[%s2 + $0xd8] sm:$0x1]
        %v3961 = vld [vmem:[%s2 + $0xe0] sm:$0x1]
        %v3962 = vsel %vm611, %v3959, 0.0
        %3963 = vadd.xlane.f32.xlu0 %v3962
        %v3964 = vpop.xlane.xlu0 %3963
        %v3965 = vmul.f32 %v3964, %v285
        %v3966 = vsub.f32 %v3959, %v3965
        %v3967 = vmul.f32 %v3966, %v3966
        %v3968 = vsel %vm611, %v3967, 0.0
        %3969 = vadd.xlane.f32.xlu0 %v3968
        %v3970 = vpop.xlane.xlu0 %3969
        %v3971 = vmul.f32 %v3970, %v285
        %v3972 = vadd.f32 %v3971, 1e-05
        %v3973 = vrsqrt.pop %v3972
        %v3974 = vmul.f32 %v3966, %v3973
        %v3975 = vlaneseq
        %v3976 = vshrl.u32 %v3975, 7
        %v3977 = vsub.s32 0, %v3976
        %v3978 = vrot.slane %v3960, %v3977
        %v3979 = vmul.f32 %v3974, %v3978
        %v3980 = vlaneseq
        %v3981 = vshrl.u32 %v3980, 7
        %v3982 = vsub.s32 0, %v3981
        %v3983 = vrot.slane %v3961, %v3982
        %v3984 = vadd.f32 %v3979, %v3983
        %v3985 = vld [vmem:[%s1 + $0x318] sm:$0xff]
        %v3986 = vld [vmem:[%s1 + $0x320] sm:$0xff]
        %v3987 = vld [vmem:[%s1 + $0x328] sm:$0xff]
        %v3988 = vld [vmem:[%s1 + $0x330] sm:$0xff]
        %v3989 = vld [vmem:[%s2 + $0xe8] sm:$0x1]
        %v3990 = vlaneseq
        %v3991 = vshrl.u32 %v3990, 7
        %v3992 = vsub.s32 0, %v3991
        %v3993 = vrot.slane %v3989, %v3992
        %v3995 = vsel %vm611, %v3984, 0
        %v3998 = vsel %vm611, %v3985, 0
        %v4001 = vsel %vm611, %v3986, 0
        %v4004 = vsel %vm611, %v3987, 0
        %v4007 = vsel %vm611, %v3988, 0
        %4009 = vmatprep.subr.mxu0 0.0
        %4010 = vmatpush1.xpose.msra.mxu0 %v3998
        %4011 = vmatprep.subr.mxu0 0.0
        %4012 = vmatpush1.xpose.msra.mxu0 %v4001
        %4013 = vmatprep.subr.mxu0 0.0
        %4014 = vmatpush1.xpose.msra.mxu0 %v4004
        %4015 = vmatprep.subr.mxu0 0.0
        %4016 = vmatpush1.xpose.msra.mxu0 %v4007
        %4017 = vmatprep.subr.mxu0 0.0
        %4018 = vmatpush1.xpose.msra.mxu0 0.0
        %4019 = vmatprep.subr.mxu0 0.0
        %4020 = vmatpush1.xpose.msra.mxu0 0.0
        %4021 = vmatprep.subr.mxu0 0.0
        %4022 = vmatpush1.xpose.msra.mxu0 0.0
        %4023 = vmatprep.subr.mxu0 0.0
        %4024 = vmatpush1.xpose.msra.mxu0 0.0
        %4025 = vmatprep.subr.mxu0 0.0
        %4026 = vmatpush1.xpose.msra.mxu0 0.0
        %4027 = vmatprep.subr.mxu0 0.0
        %4028 = vmatpush1.xpose.msra.mxu0 0.0
        %4029 = vmatprep.subr.mxu0 0.0
        %4030 = vmatpush1.xpose.msra.mxu0 0.0
        %4031 = vmatprep.subr.mxu0 0.0
        %4032 = vmatpush1.xpose.msra.mxu0 0.0
        %4033 = vmatprep.subr.mxu0 0.0
        %4034 = vmatpush1.xpose.msra.mxu0 0.0
        %4035 = vmatprep.subr.mxu0 0.0
        %4036 = vmatpush1.xpose.msra.mxu0 0.0
        %4037 = vmatprep.subr.mxu0 0.0
        %4038 = vmatpush1.xpose.msra.mxu0 0.0
        %4039 = vmatprep.subr.mxu0 0.0
        %4040 = vmatpush1.xpose.msra.mxu0 0.0
        %4041 = vmatprep.subr.mxu0 0.0
        %4042 = vmatpush1.xpose.msra.mxu0 0.0
        %4043 = vmatprep.subr.mxu0 0.0
        %4044 = vmatpush1.xpose.msra.mxu0 0.0
        %4045 = vmatprep.subr.mxu0 0.0
        %4046 = vmatpush1.xpose.msra.mxu0 0.0
        %4047 = vmatprep.subr.mxu0 0.0
        %4048 = vmatpush1.xpose.msra.mxu0 0.0
        %4049 = vmatprep.subr.mxu0 0.0
        %4050 = vmatpush1.xpose.msra.mxu0 0.0
        %4051 = vmatprep.subr.mxu0 0.0
        %4052 = vmatpush1.xpose.msra.mxu0 0.0
        %4053 = vmatprep.subr.mxu0 0.0
        %4054 = vmatpush1.xpose.msra.mxu0 0.0
        %4055 = vmatprep.subr.mxu0 0.0
        %4056 = vmatpush1.xpose.msra.mxu0 0.0
        %4057 = vmatprep.subr.mxu0 0.0
        %4058 = vmatpush1.xpose.msra.mxu0 0.0
        %4059 = vmatprep.subr.mxu0 0.0
        %4060 = vmatpush1.xpose.msra.mxu0 0.0
        %4061 = vmatprep.subr.mxu0 0.0
        %4062 = vmatpush1.xpose.msra.mxu0 0.0
        %4063 = vmatprep.subr.mxu0 0.0
        %4064 = vmatpush1.xpose.msra.mxu0 0.0
        %4065 = vmatprep.subr.mxu0 0.0
        %4066 = vmatpush1.xpose.msra.mxu0 0.0
        %4067 = vmatprep.subr.mxu0 0.0
        %4068 = vmatpush1.xpose.msra.mxu0 0.0
        %4069 = vmatprep.subr.mxu0 0.0
        %4070 = vmatpush1.xpose.msra.mxu0 0.0
        %4071 = vmatprep.subr.mxu0 0.0
        %4072 = vmatpush1.xpose.msra.mxu0 0.0
        %4073 = vmatprep.mubr.f32.mxu0 0.0
        %4074 = vmatmul.mubr.f32.gmra.mrb[0].mxu0 %v3995
        %v4075 = vpop.f32.mrb[0].mxu0
        %v4076 = vadd.f32 %v3993, %v4075
        %v4077 = vpop.f32.mrb[0].mxu0
        %4078 = vdwg.mxu0
        %v4079 = vld [vmem:[%s1 + $0x338] sm:$0xff]
        %v4080 = vld [vmem:[%s1 + $0x340] sm:$0xff]
        %v4081 = vld [vmem:[%s1 + $0x348] sm:$0xff]
        %v4082 = vld [vmem:[%s1 + $0x350] sm:$0xff]
        %v4083 = vld [vmem:[%s1 + $0x358] sm:$0xff]
        %v4084 = vld [vmem:[%s1 + $0x360] sm:$0xff]
        %v4085 = vld [vmem:[%s1 + $0x368] sm:$0xff]
        %v4086 = vld [vmem:[%s1 + $0x370] sm:$0xff]
        %v4087 = vld [vmem:[%s2 + $0xf0] sm:$0x1]
        %v4088 = vlaneseq
        %v4089 = vshrl.u32 %v4088, 7
        %v4090 = vsub.s32 0, %v4089
        %v4091 = vrot.slane %v4087, %v4090
        %v4093 = vsel %vm611, %v1661, 0
        %v4096 = vsel %vm611, %v1662, 0
        %v4099 = vsel %vm611, %v4079, 0
        %v4102 = vsel %vm611, %v4080, 0
        %v4105 = vsel %vm611, %v4081, 0
        %v4108 = vsel %vm611, %v4082, 0
        %v4111 = vsel %vm611, %v4083, 0
        %v4114 = vsel %vm611, %v4084, 0
        %v4117 = vsel %vm611, %v4085, 0
        %v4120 = vsel %vm611, %v4086, 0
        %4122 = vmatprep.subr.mxu0 0.0
        %4123 = vmatpush1.xpose.msra.mxu0 %v4099
        %4124 = vmatprep.subr.mxu0 0.0
        %4125 = vmatpush1.xpose.msra.mxu0 %v4102
        %4126 = vmatprep.subr.mxu0 0.0
        %4127 = vmatpush1.xpose.msra.mxu0 %v4105
        %4128 = vmatprep.subr.mxu0 0.0
        %4129 = vmatpush1.xpose.msra.mxu0 %v4108
        %4130 = vmatprep.subr.mxu0 0.0
        %4131 = vmatpush1.xpose.msra.mxu0 %v4111
        %4132 = vmatprep.subr.mxu0 0.0
        %4133 = vmatpush1.xpose.msra.mxu0 %v4114
        %4134 = vmatprep.subr.mxu0 0.0
        %4135 = vmatpush1.xpose.msra.mxu0 %v4117
        %4136 = vmatprep.subr.mxu0 0.0
        %4137 = vmatpush1.xpose.msra.mxu0 %v4120
        %4138 = vmatprep.subr.mxu0 0.0
        %4139 = vmatpush1.xpose.msra.mxu0 0.0
        %4140 = vmatprep.subr.mxu0 0.0
        %4141 = vmatpush1.xpose.msra.mxu0 0.0
        %4142 = vmatprep.subr.mxu0 0.0
        %4143 = vmatpush1.xpose.msra.mxu0 0.0
        %4144 = vmatprep.subr.mxu0 0.0
        %4145 = vmatpush1.xpose.msra.mxu0 0.0
        %4146 = vmatprep.subr.mxu0 0.0
        %4147 = vmatpush1.xpose.msra.mxu0 0.0
        %4148 = vmatprep.subr.mxu0 0.0
        %4149 = vmatpush1.xpose.msra.mxu0 0.0
        %4150 = vmatprep.subr.mxu0 0.0
        %4151 = vmatpush1.xpose.msra.mxu0 0.0
        %4152 = vmatprep.subr.mxu0 0.0
        %4153 = vmatpush1.xpose.msra.mxu0 0.0
        %4154 = vmatprep.subr.mxu0 0.0
        %4155 = vmatpush1.xpose.msra.mxu0 0.0
        %4156 = vmatprep.subr.mxu0 0.0
        %4157 = vmatpush1.xpose.msra.mxu0 0.0
        %4158 = vmatprep.subr.mxu0 0.0
        %4159 = vmatpush1.xpose.msra.mxu0 0.0
        %4160 = vmatprep.subr.mxu0 0.0
        %4161 = vmatpush1.xpose.msra.mxu0 0.0
        %4162 = vmatprep.subr.mxu0 0.0
        %4163 = vmatpush1.xpose.msra.mxu0 0.0
        %4164 = vmatprep.subr.mxu0 0.0
        %4165 = vmatpush1.xpose.msra.mxu0 0.0
        %4166 = vmatprep.subr.mxu0 0.0
        %4167 = vmatpush1.xpose.msra.mxu0 0.0
        %4168 = vmatprep.subr.mxu0 0.0
        %4169 = vmatpush1.xpose.msra.mxu0 0.0
        %4170 = vmatprep.subr.mxu0 0.0
        %4171 = vmatpush1.xpose.msra.mxu0 0.0
        %4172 = vmatprep.subr.mxu0 0.0
        %4173 = vmatpush1.xpose.msra.mxu0 0.0
        %4174 = vmatprep.subr.mxu0 0.0
        %4175 = vmatpush1.xpose.msra.mxu0 0.0
        %4176 = vmatprep.subr.mxu0 0.0
        %4177 = vmatpush1.xpose.msra.mxu0 0.0
        %4178 = vmatprep.subr.mxu0 0.0
        %4179 = vmatpush1.xpose.msra.mxu0 0.0
        %4180 = vmatprep.subr.mxu0 0.0
        %4181 = vmatpush1.xpose.msra.mxu0 0.0
        %4182 = vmatprep.subr.mxu0 0.0
        %4183 = vmatpush1.xpose.msra.mxu0 0.0
        %4184 = vmatprep.subr.mxu0 0.0
        %4185 = vmatpush1.xpose.msra.mxu0 0.0
        %4186 = vmatprep.mubr.f32.mxu0 0.0
        %4187 = vmatmul.mubr.f32.gmra.mrb[0].mxu0 %v4093
        %v4188 = vpop.f32.mrb[0].mxu0
        %v4189 = vadd.f32 %v4091, %v4188
        %v4190 = vpop.f32.mrb[0].mxu0
        %4191 = vmatprep.mubr.f32.mxu0 0.0
        %4192 = vmatmul.mubr.f32.gmra.mrb[0].mxu0 %v4096
        %v4193 = vpop.f32.mrb[0].mxu0
        %v4194 = vadd.f32 %v4091, %v4193
        %v4195 = vpop.f32.mrb[0].mxu0
        %4196 = vdwg.mxu0
        %v4197 = vld [vmem:[%s1 + $0x378] sm:$0xff]
        %v4198 = vld [vmem:[%s1 + $0x380] sm:$0xff]
        %v4199 = vld [vmem:[%s1 + $0x388] sm:$0xff]
        %v4200 = vld [vmem:[%s1 + $0x390] sm:$0xff]
        %v4202 = vsel %vm782, %v4076, 0
        %v4205 = vsel %vm782, %v4189, 0
        %v4208 = vsel %vm782, %v4194, 0
        %4210 = vmatprep.subr.mxu0 0.0
        %4211 = vmatpush1.xpose.msra.mxu0 %v4205
        %4212 = vmatprep.subr.mxu0 0.0
        %4213 = vmatpush1.xpose.msra.mxu0 %v4208
        %4214 = vmatprep.subr.mxu0 0.0
        %4215 = vmatpush1.xpose.msra.mxu0 0.0
        %4216 = vmatprep.subr.mxu0 0.0
        %4217 = vmatpush1.xpose.msra.mxu0 0.0
        %4218 = vmatprep.subr.mxu0 0.0
        %4219 = vmatpush1.xpose.msra.mxu0 0.0
        %4220 = vmatprep.subr.mxu0 0.0
        %4221 = vmatpush1.xpose.msra.mxu0 0.0
        %4222 = vmatprep.subr.mxu0 0.0
        %4223 = vmatpush1.xpose.msra.mxu0 0.0
        %4224 = vmatprep.subr.mxu0 0.0
        %4225 = vmatpush1.xpose.msra.mxu0 0.0
        %4226 = vmatprep.subr.mxu0 0.0
        %4227 = vmatpush1.xpose.msra.mxu0 0.0
        %4228 = vmatprep.subr.mxu0 0.0
        %4229 = vmatpush1.xpose.msra.mxu0 0.0
        %4230 = vmatprep.subr.mxu0 0.0
        %4231 = vmatpush1.xpose.msra.mxu0 0.0
        %4232 = vmatprep.subr.mxu0 0.0
        %4233 = vmatpush1.xpose.msra.mxu0 0.0
        %4234 = vmatprep.subr.mxu0 0.0
        %4235 = vmatpush1.xpose.msra.mxu0 0.0
        %4236 = vmatprep.subr.mxu0 0.0
        %4237 = vmatpush1.xpose.msra.mxu0 0.0
        %4238 = vmatprep.subr.mxu0 0.0
        %4239 = vmatpush1.xpose.msra.mxu0 0.0
        %4240 = vmatprep.subr.mxu0 0.0
        %4241 = vmatpush1.xpose.msra.mxu0 0.0
        %4242 = vmatprep.subr.mxu0 0.0
        %4243 = vmatpush1.xpose.msra.mxu0 0.0
        %4244 = vmatprep.subr.mxu0 0.0
        %4245 = vmatpush1.xpose.msra.mxu0 0.0
        %4246 = vmatprep.subr.mxu0 0.0
        %4247 = vmatpush1.xpose.msra.mxu0 0.0
        %4248 = vmatprep.subr.mxu0 0.0
        %4249 = vmatpush1.xpose.msra.mxu0 0.0
        %4250 = vmatprep.subr.mxu0 0.0
        %4251 = vmatpush1.xpose.msra.mxu0 0.0
        %4252 = vmatprep.subr.mxu0 0.0
        %4253 = vmatpush1.xpose.msra.mxu0 0.0
        %4254 = vmatprep.subr.mxu0 0.0
        %4255 = vmatpush1.xpose.msra.mxu0 0.0
        %4256 = vmatprep.subr.mxu0 0.0
        %4257 = vmatpush1.xpose.msra.mxu0 0.0
        %4258 = vmatprep.subr.mxu0 0.0
        %4259 = vmatpush1.xpose.msra.mxu0 0.0
        %4260 = vmatprep.subr.mxu0 0.0
        %4261 = vmatpush1.xpose.msra.mxu0 0.0
        %4262 = vmatprep.subr.mxu0 0.0
        %4263 = vmatpush1.xpose.msra.mxu0 0.0
        %4264 = vmatprep.subr.mxu0 0.0
        %4265 = vmatpush1.xpose.msra.mxu0 0.0
        %4266 = vmatprep.subr.mxu0 0.0
        %4267 = vmatpush1.xpose.msra.mxu0 0.0
        %4268 = vmatprep.subr.mxu0 0.0
        %4269 = vmatpush1.xpose.msra.mxu0 0.0
        %4270 = vmatprep.subr.mxu0 0.0
        %4271 = vmatpush1.xpose.msra.mxu0 0.0
        %4272 = vmatprep.subr.mxu0 0.0
        %4273 = vmatpush1.xpose.msra.mxu0 0.0
        %4274 = vmatprep.mubr.f32.mxu0 0.0
        %4275 = vmatmul.mubr.f32.gmra.mrb[0].mxu0 %v4202
        %v4276 = vpop.f32.mrb[0].mxu0
        %v4277 = vadd.f32 0.0, %v4276
        %v4278 = vpop.f32.mrb[0].mxu0
        %4279 = vdwg.mxu0
        %v4280 = vsel %vm774, %v4277, -1e+30
        %v4281 = vsel %vm782, %v4280, -inf
        %4282 = vmax.xlane.f32.xlu0 %v4281
        %v4283 = vpop.xlane.xlu0 %4282
        %v4284 = vsub.f32 %v4280, %v4283
        %v4285 = vmul.f32 %v4284, 1.442695
        %v4286 = vpow.pop %v4285
        %v4287 = vsel %vm782, %v4286, 0.0
        %4288 = vadd.xlane.f32.xlu0 %v4287
        %v4289 = vpop.xlane.xlu0 %4288
        %v4290 = vrcp.pop %v4289
        %v4291 = vmul.f32 %v4286, %v4290
        %4292 = vrot.lane.b32.xlu0 %v4189, 96
        %v4293 = vpop.permute.xlu0 %4292
        %4294 = vrot.lane.b32.xlu0 %v4194, 96
        %v4295 = vpop.permute.xlu0 %4294
        %v4299 = vsel %vm782, %v4291, 0
        %4301 = vmatprep.subr.mxu0 0.0
        %4302 = vmatpush1.msra.mxu0 %v4293
        %4303 = vmatprep.subr.mxu0 0.0
        %4304 = vmatpush1.msra.mxu0 %v4295
        %4305 = vmatprep.subr.mxu0 0.0
        %4306 = vmatpush1.msra.mxu0 0.0
        %4307 = vmatprep.subr.mxu0 0.0
        %4308 = vmatpush1.msra.mxu0 0.0
        %4309 = vmatprep.subr.mxu0 0.0
        %4310 = vmatpush1.msra.mxu0 0.0
        %4311 = vmatprep.subr.mxu0 0.0
        %4312 = vmatpush1.msra.mxu0 0.0
        %4313 = vmatprep.subr.mxu0 0.0
        %4314 = vmatpush1.msra.mxu0 0.0
        %4315 = vmatprep.subr.mxu0 0.0
        %4316 = vmatpush1.msra.mxu0 0.0
        %4317 = vmatprep.subr.mxu0 0.0
        %4318 = vmatpush1.msra.mxu0 0.0
        %4319 = vmatprep.subr.mxu0 0.0
        %4320 = vmatpush1.msra.mxu0 0.0
        %4321 = vmatprep.subr.mxu0 0.0
        %4322 = vmatpush1.msra.mxu0 0.0
        %4323 = vmatprep.subr.mxu0 0.0
        %4324 = vmatpush1.msra.mxu0 0.0
        %4325 = vmatprep.subr.mxu0 0.0
        %4326 = vmatpush1.msra.mxu0 0.0
        %4327 = vmatprep.subr.mxu0 0.0
        %4328 = vmatpush1.msra.mxu0 0.0
        %4329 = vmatprep.subr.mxu0 0.0
        %4330 = vmatpush1.msra.mxu0 0.0
        %4331 = vmatprep.subr.mxu0 0.0
        %4332 = vmatpush1.msra.mxu0 0.0
        %4333 = vmatprep.subr.mxu0 0.0
        %4334 = vmatpush1.msra.mxu0 0.0
        %4335 = vmatprep.subr.mxu0 0.0
        %4336 = vmatpush1.msra.mxu0 0.0
        %4337 = vmatprep.subr.mxu0 0.0
        %4338 = vmatpush1.msra.mxu0 0.0
        %4339 = vmatprep.subr.mxu0 0.0
        %4340 = vmatpush1.msra.mxu0 0.0
        %4341 = vmatprep.subr.mxu0 0.0
        %4342 = vmatpush1.msra.mxu0 0.0
        %4343 = vmatprep.subr.mxu0 0.0
        %4344 = vmatpush1.msra.mxu0 0.0
        %4345 = vmatprep.subr.mxu0 0.0
        %4346 = vmatpush1.msra.mxu0 0.0
        %4347 = vmatprep.subr.mxu0 0.0
        %4348 = vmatpush1.msra.mxu0 0.0
        %4349 = vmatprep.subr.mxu0 0.0
        %4350 = vmatpush1.msra.mxu0 0.0
        %4351 = vmatprep.subr.mxu0 0.0
        %4352 = vmatpush1.msra.mxu0 0.0
        %4353 = vmatprep.subr.mxu0 0.0
        %4354 = vmatpush1.msra.mxu0 0.0
        %4355 = vmatprep.subr.mxu0 0.0
        %4356 = vmatpush1.msra.mxu0 0.0
        %4357 = vmatprep.subr.mxu0 0.0
        %4358 = vmatpush1.msra.mxu0 0.0
        %4359 = vmatprep.subr.mxu0 0.0
        %4360 = vmatpush1.msra.mxu0 0.0
        %4361 = vmatprep.subr.mxu0 0.0
        %4362 = vmatpush1.msra.mxu0 0.0
        %4363 = vmatprep.subr.mxu0 0.0
        %4364 = vmatpush1.msra.mxu0 0.0
        %4365 = vmatprep.mubr.f32.mxu0 0.0
        %4366 = vmatmul.mubr.f32.gmra.mrb[0].mxu0 %v4299
        %v4367 = vpop.f32.mrb[0].mxu0
        %v4368 = vadd.f32 0.0, %v4367
        %v4369 = vpop.f32.mrb[0].mxu0
        %4370 = vdwg.mxu0
        %4371 = vrot.lane.b32.xlu0 %v4076, 112
        %v4372 = vpop.permute.xlu0 %4371
        %4373 = vrot.lane.b32.xlu0 %v4189, 112
        %v4374 = vpop.permute.xlu0 %4373
        %4375 = vrot.lane.b32.xlu0 %v4194, 112
        %v4376 = vpop.permute.xlu0 %4375
        %v4377 = vsel %vm782, %v4372, 0
        %v4379 = vsel %vm782, %v4374, 0
        %v4381 = vsel %vm782, %v4376, 0
        %4383 = vmatprep.subr.mxu0 0.0
        %4384 = vmatpush1.xpose.msra.mxu0 %v4379
        %4385 = vmatprep.subr.mxu0 0.0
        %4386 = vmatpush1.xpose.msra.mxu0 %v4381
        %4387 = vmatprep.subr.mxu0 0.0
        %4388 = vmatpush1.xpose.msra.mxu0 0.0
        %4389 = vmatprep.subr.mxu0 0.0
        %4390 = vmatpush1.xpose.msra.mxu0 0.0
        %4391 = vmatprep.subr.mxu0 0.0
        %4392 = vmatpush1.xpose.msra.mxu0 0.0
        %4393 = vmatprep.subr.mxu0 0.0
        %4394 = vmatpush1.xpose.msra.mxu0 0.0
        %4395 = vmatprep.subr.mxu0 0.0
        %4396 = vmatpush1.xpose.msra.mxu0 0.0
        %4397 = vmatprep.subr.mxu0 0.0
        %4398 = vmatpush1.xpose.msra.mxu0 0.0
        %4399 = vmatprep.subr.mxu0 0.0
        %4400 = vmatpush1.xpose.msra.mxu0 0.0
        %4401 = vmatprep.subr.mxu0 0.0
        %4402 = vmatpush1.xpose.msra.mxu0 0.0
        %4403 = vmatprep.subr.mxu0 0.0
        %4404 = vmatpush1.xpose.msra.mxu0 0.0
        %4405 = vmatprep.subr.mxu0 0.0
        %4406 = vmatpush1.xpose.msra.mxu0 0.0
        %4407 = vmatprep.subr.mxu0 0.0
        %4408 = vmatpush1.xpose.msra.mxu0 0.0
        %4409 = vmatprep.subr.mxu0 0.0
        %4410 = vmatpush1.xpose.msra.mxu0 0.0
        %4411 = vmatprep.subr.mxu0 0.0
        %4412 = vmatpush1.xpose.msra.mxu0 0.0
        %4413 = vmatprep.subr.mxu0 0.0
        %4414 = vmatpush1.xpose.msra.mxu0 0.0
        %4415 = vmatprep.subr.mxu0 0.0
        %4416 = vmatpush1.xpose.msra.mxu0 0.0
        %4417 = vmatprep.subr.mxu0 0.0
        %4418 = vmatpush1.xpose.msra.mxu0 0.0
        %4419 = vmatprep.subr.mxu0 0.0
        %4420 = vmatpush1.xpose.msra.mxu0 0.0
        %4421 = vmatprep.subr.mxu0 0.0
        %4422 = vmatpush1.xpose.msra.mxu0 0.0
        %4423 = vmatprep.subr.mxu0 0.0
        %4424 = vmatpush1.xpose.msra.mxu0 0.0
        %4425 = vmatprep.subr.mxu0 0.0
        %4426 = vmatpush1.xpose.msra.mxu0 0.0
        %4427 = vmatprep.subr.mxu0 0.0
        %4428 = vmatpush1.xpose.msra.mxu0 0.0
        %4429 = vmatprep.subr.mxu0 0.0
        %4430 = vmatpush1.xpose.msra.mxu0 0.0
        %4431 = vmatprep.subr.mxu0 0.0
        %4432 = vmatpush1.xpose.msra.mxu0 0.0
        %4433 = vmatprep.subr.mxu0 0.0
        %4434 = vmatpush1.xpose.msra.mxu0 0.0
        %4435 = vmatprep.subr.mxu0 0.0
        %4436 = vmatpush1.xpose.msra.mxu0 0.0
        %4437 = vmatprep.subr.mxu0 0.0
        %4438 = vmatpush1.xpose.msra.mxu0 0.0
        %4439 = vmatprep.subr.mxu0 0.0
        %4440 = vmatpush1.xpose.msra.mxu0 0.0
        %4441 = vmatprep.subr.mxu0 0.0
        %4442 = vmatpush1.xpose.msra.mxu0 0.0
        %4443 = vmatprep.subr.mxu0 0.0
        %4444 = vmatpush1.xpose.msra.mxu0 0.0
        %4445 = vmatprep.subr.mxu0 0.0
        %4446 = vmatpush1.xpose.msra.mxu0 0.0
        %4447 = vmatprep.mubr.f32.mxu0 0.0
        %4448 = vmatmul.mubr.f32.gmra.mrb[0].mxu0 %v4377
        %v4449 = vpop.f32.mrb[0].mxu0
        %v4450 = vadd.f32 0.0, %v4449
        %v4451 = vpop.f32.mrb[0].mxu0
        %4452 = vdwg.mxu0
        %v4453 = vsel %vm774, %v4450, -1e+30
        %v4454 = vsel %vm782, %v4453, -inf
        %4455 = vmax.xlane.f32.xlu0 %v4454
        %v4456 = vpop.xlane.xlu0 %4455
        %v4457 = vsub.f32 %v4453, %v4456
        %v4458 = vmul.f32 %v4457, 1.442695
        %v4459 = vpow.pop %v4458
        %v4460 = vsel %vm782, %v4459, 0.0
        %4461 = vadd.xlane.f32.xlu0 %v4460
        %v4462 = vpop.xlane.xlu0 %4461
        %v4463 = vrcp.pop %v4462
        %v4464 = vmul.f32 %v4459, %v4463
        %4465 = vrot.lane.b32.xlu0 %v4189, 80
        %v4466 = vpop.permute.xlu0 %4465
        %4467 = vrot.lane.b32.xlu0 %v4194, 80
        %v4468 = vpop.permute.xlu0 %4467
        %v4472 = vsel %vm782, %v4464, 0
        %4474 = vmatprep.subr.mxu0 0.0
        %4475 = vmatpush1.msra.mxu0 %v4466
        %4476 = vmatprep.subr.mxu0 0.0
        %4477 = vmatpush1.msra.mxu0 %v4468
        %4478 = vmatprep.subr.mxu0 0.0
        %4479 = vmatpush1.msra.mxu0 0.0
        %4480 = vmatprep.subr.mxu0 0.0
        %4481 = vmatpush1.msra.mxu0 0.0
        %4482 = vmatprep.subr.mxu0 0.0
        %4483 = vmatpush1.msra.mxu0 0.0
        %4484 = vmatprep.subr.mxu0 0.0
        %4485 = vmatpush1.msra.mxu0 0.0
        %4486 = vmatprep.subr.mxu0 0.0
        %4487 = vmatpush1.msra.mxu0 0.0
        %4488 = vmatprep.subr.mxu0 0.0
        %4489 = vmatpush1.msra.mxu0 0.0
        %4490 = vmatprep.subr.mxu0 0.0
        %4491 = vmatpush1.msra.mxu0 0.0
        %4492 = vmatprep.subr.mxu0 0.0
        %4493 = vmatpush1.msra.mxu0 0.0
        %4494 = vmatprep.subr.mxu0 0.0
        %4495 = vmatpush1.msra.mxu0 0.0
        %4496 = vmatprep.subr.mxu0 0.0
        %4497 = vmatpush1.msra.mxu0 0.0
        %4498 = vmatprep.subr.mxu0 0.0
        %4499 = vmatpush1.msra.mxu0 0.0
        %4500 = vmatprep.subr.mxu0 0.0
        %4501 = vmatpush1.msra.mxu0 0.0
        %4502 = vmatprep.subr.mxu0 0.0
        %4503 = vmatpush1.msra.mxu0 0.0
        %4504 = vmatprep.subr.mxu0 0.0
        %4505 = vmatpush1.msra.mxu0 0.0
        %4506 = vmatprep.subr.mxu0 0.0
        %4507 = vmatpush1.msra.mxu0 0.0
        %4508 = vmatprep.subr.mxu0 0.0
        %4509 = vmatpush1.msra.mxu0 0.0
        %4510 = vmatprep.subr.mxu0 0.0
        %4511 = vmatpush1.msra.mxu0 0.0
        %4512 = vmatprep.subr.mxu0 0.0
        %4513 = vmatpush1.msra.mxu0 0.0
        %4514 = vmatprep.subr.mxu0 0.0
        %4515 = vmatpush1.msra.mxu0 0.0
        %4516 = vmatprep.subr.mxu0 0.0
        %4517 = vmatpush1.msra.mxu0 0.0
        %4518 = vmatprep.subr.mxu0 0.0
        %4519 = vmatpush1.msra.mxu0 0.0
        %4520 = vmatprep.subr.mxu0 0.0
        %4521 = vmatpush1.msra.mxu0 0.0
        %4522 = vmatprep.subr.mxu0 0.0
        %4523 = vmatpush1.msra.mxu0 0.0
        %4524 = vmatprep.subr.mxu0 0.0
        %4525 = vmatpush1.msra.mxu0 0.0
        %4526 = vmatprep.subr.mxu0 0.0
        %4527 = vmatpush1.msra.mxu0 0.0
        %4528 = vmatprep.subr.mxu0 0.0
        %4529 = vmatpush1.msra.mxu0 0.0
        %4530 = vmatprep.subr.mxu0 0.0
        %4531 = vmatpush1.msra.mxu0 0.0
        %4532 = vmatprep.subr.mxu0 0.0
        %4533 = vmatpush1.msra.mxu0 0.0
        %4534 = vmatprep.subr.mxu0 0.0
        %4535 = vmatpush1.msra.mxu0 0.0
        %4536 = vmatprep.subr.mxu0 0.0
        %4537 = vmatpush1.msra.mxu0 0.0
        %4538 = vmatprep.mubr.f32.mxu0 0.0
        %4539 = vmatmul.mubr.f32.gmra.mrb[0].mxu0 %v4472
        %v4540 = vpop.f32.mrb[0].mxu0
        %v4541 = vadd.f32 0.0, %v4540
        %v4542 = vpop.f32.mrb[0].mxu0
        %4543 = vdwg.mxu0
        %v4545 = vsel %vm782, %v4541, 0
        %4547 = vmatprep.subr.mxu0 0.0
        %4548 = vmatpush1.msra.mxu0 %v4199
        %4549 = vmatprep.subr.mxu0 0.0
        %4550 = vmatpush1.msra.mxu0 %v4200
        %4551 = vmatprep.subr.mxu0 0.0
        %4552 = vmatpush1.msra.mxu0 0.0
        %4553 = vmatprep.subr.mxu0 0.0
        %4554 = vmatpush1.msra.mxu0 0.0
        %4555 = vmatprep.subr.mxu0 0.0
        %4556 = vmatpush1.msra.mxu0 0.0
        %4557 = vmatprep.subr.mxu0 0.0
        %4558 = vmatpush1.msra.mxu0 0.0
        %4559 = vmatprep.subr.mxu0 0.0
        %4560 = vmatpush1.msra.mxu0 0.0
        %4561 = vmatprep.subr.mxu0 0.0
        %4562 = vmatpush1.msra.mxu0 0.0
        %4563 = vmatprep.subr.mxu0 0.0
        %4564 = vmatpush1.msra.mxu0 0.0
        %4565 = vmatprep.subr.mxu0 0.0
        %4566 = vmatpush1.msra.mxu0 0.0
        %4567 = vmatprep.subr.mxu0 0.0
        %4568 = vmatpush1.msra.mxu0 0.0
        %4569 = vmatprep.subr.mxu0 0.0
        %4570 = vmatpush1.msra.mxu0 0.0
        %4571 = vmatprep.subr.mxu0 0.0
        %4572 = vmatpush1.msra.mxu0 0.0
        %4573 = vmatprep.subr.mxu0 0.0
        %4574 = vmatpush1.msra.mxu0 0.0
        %4575 = vmatprep.subr.mxu0 0.0
        %4576 = vmatpush1.msra.mxu0 0.0
        %4577 = vmatprep.subr.mxu0 0.0
        %4578 = vmatpush1.msra.mxu0 0.0
        %4579 = vmatprep.subr.mxu0 0.0
        %4580 = vmatpush1.msra.mxu0 0.0
        %4581 = vmatprep.subr.mxu0 0.0
        %4582 = vmatpush1.msra.mxu0 0.0
        %4583 = vmatprep.subr.mxu0 0.0
        %4584 = vmatpush1.msra.mxu0 0.0
        %4585 = vmatprep.subr.mxu0 0.0
        %4586 = vmatpush1.msra.mxu0 0.0
        %4587 = vmatprep.subr.mxu0 0.0
        %4588 = vmatpush1.msra.mxu0 0.0
        %4589 = vmatprep.subr.mxu0 0.0
        %4590 = vmatpush1.msra.mxu0 0.0
        %4591 = vmatprep.subr.mxu0 0.0
        %4592 = vmatpush1.msra.mxu0 0.0
        %4593 = vmatprep.subr.mxu0 0.0
        %4594 = vmatpush1.msra.mxu0 0.0
        %4595 = vmatprep.subr.mxu0 0.0
        %4596 = vmatpush1.msra.mxu0 0.0
        %4597 = vmatprep.subr.mxu0 0.0
        %4598 = vmatpush1.msra.mxu0 0.0
        %4599 = vmatprep.subr.mxu0 0.0
        %4600 = vmatpush1.msra.mxu0 0.0
        %4601 = vmatprep.subr.mxu0 0.0
        %4602 = vmatpush1.msra.mxu0 0.0
        %4603 = vmatprep.subr.mxu0 0.0
        %4604 = vmatpush1.msra.mxu0 0.0
        %4605 = vmatprep.subr.mxu0 0.0
        %4606 = vmatpush1.msra.mxu0 0.0
        %4607 = vmatprep.subr.mxu0 0.0
        %4608 = vmatpush1.msra.mxu0 0.0
        %4609 = vmatprep.subr.mxu0 0.0
        %4610 = vmatpush1.msra.mxu0 0.0
        %4611 = vmatprep.mubr.f32.mxu0 0.0
        %4612 = vmatmul.mubr.f32.gmra.mrb[0].mxu0 %v4545
        %v4613 = vpop.f32.mrb[0].mxu0
        %v4614 = vadd.f32 0.0, %v4613
        %v4615 = vpop.f32.mrb[0].mxu0
        %4616 = vdwg.mxu0
        %v4618 = vsel %vm782, %v4368, 0
        %4620 = vmatprep.subr.mxu0 0.0
        %4621 = vmatpush1.msra.mxu0 %v4197
        %4622 = vmatprep.subr.mxu0 0.0
        %4623 = vmatpush1.msra.mxu0 %v4198
        %4624 = vmatprep.subr.mxu0 0.0
        %4625 = vmatpush1.msra.mxu0 0.0
        %4626 = vmatprep.subr.mxu0 0.0
        %4627 = vmatpush1.msra.mxu0 0.0
        %4628 = vmatprep.subr.mxu0 0.0
        %4629 = vmatpush1.msra.mxu0 0.0
        %4630 = vmatprep.subr.mxu0 0.0
        %4631 = vmatpush1.msra.mxu0 0.0
        %4632 = vmatprep.subr.mxu0 0.0
        %4633 = vmatpush1.msra.mxu0 0.0
        %4634 = vmatprep.subr.mxu0 0.0
        %4635 = vmatpush1.msra.mxu0 0.0
        %4636 = vmatprep.subr.mxu0 0.0
        %4637 = vmatpush1.msra.mxu0 0.0
        %4638 = vmatprep.subr.mxu0 0.0
        %4639 = vmatpush1.msra.mxu0 0.0
        %4640 = vmatprep.subr.mxu0 0.0
        %4641 = vmatpush1.msra.mxu0 0.0
        %4642 = vmatprep.subr.mxu0 0.0
        %4643 = vmatpush1.msra.mxu0 0.0
        %4644 = vmatprep.subr.mxu0 0.0
        %4645 = vmatpush1.msra.mxu0 0.0
        %4646 = vmatprep.subr.mxu0 0.0
        %4647 = vmatpush1.msra.mxu0 0.0
        %4648 = vmatprep.subr.mxu0 0.0
        %4649 = vmatpush1.msra.mxu0 0.0
        %4650 = vmatprep.subr.mxu0 0.0
        %4651 = vmatpush1.msra.mxu0 0.0
        %4652 = vmatprep.subr.mxu0 0.0
        %4653 = vmatpush1.msra.mxu0 0.0
        %4654 = vmatprep.subr.mxu0 0.0
        %4655 = vmatpush1.msra.mxu0 0.0
        %4656 = vmatprep.subr.mxu0 0.0
        %4657 = vmatpush1.msra.mxu0 0.0
        %4658 = vmatprep.subr.mxu0 0.0
        %4659 = vmatpush1.msra.mxu0 0.0
        %4660 = vmatprep.subr.mxu0 0.0
        %4661 = vmatpush1.msra.mxu0 0.0
        %4662 = vmatprep.subr.mxu0 0.0
        %4663 = vmatpush1.msra.mxu0 0.0
        %4664 = vmatprep.subr.mxu0 0.0
        %4665 = vmatpush1.msra.mxu0 0.0
        %4666 = vmatprep.subr.mxu0 0.0
        %4667 = vmatpush1.msra.mxu0 0.0
        %4668 = vmatprep.subr.mxu0 0.0
        %4669 = vmatpush1.msra.mxu0 0.0
        %4670 = vmatprep.subr.mxu0 0.0
        %4671 = vmatpush1.msra.mxu0 0.0
        %4672 = vmatprep.subr.mxu0 0.0
        %4673 = vmatpush1.msra.mxu0 0.0
        %4674 = vmatprep.subr.mxu0 0.0
        %4675 = vmatpush1.msra.mxu0 0.0
        %4676 = vmatprep.subr.mxu0 0.0
        %4677 = vmatpush1.msra.mxu0 0.0
        %4678 = vmatprep.subr.mxu0 0.0
        %4679 = vmatpush1.msra.mxu0 0.0
        %4680 = vmatprep.subr.mxu0 0.0
        %4681 = vmatpush1.msra.mxu0 0.0
        %4682 = vmatprep.subr.mxu0 0.0
        %4683 = vmatpush1.msra.mxu0 0.0
        %4684 = vmatprep.mubr.f32.mxu0 0.0
        %4685 = vmatmul.mubr.f32.gmra.mrb[0].mxu0 %v4618
        %v4686 = vpop.f32.mrb[0].mxu0
        %v4687 = vadd.f32 %v4614, %v4686
        %v4688 = vpop.f32.mrb[0].mxu0
        %4689 = vdwg.mxu0
        %v4690 = vld [vmem:[%s2 + $0xf8] sm:$0x1]
        %v4691 = vlaneseq
        %v4692 = vshrl.u32 %v4691, 7
        %v4693 = vsub.s32 0, %v4692
        %v4694 = vrot.slane %v4690, %v4693
        %v4695 = vadd.f32 %v4687, %v4694
        %v4696 = vadd.f32 %v3984, %v4695
        %v4697 = vld [vmem:[%s2 + $0x100] sm:$0x1]
        %v4698 = vld [vmem:[%s2 + $0x108] sm:$0x1]
        %v4699 = vsel %vm611, %v4696, 0.0
        %4700 = vadd.xlane.f32.xlu0 %v4699
        %v4701 = vpop.xlane.xlu0 %4700
        %v4702 = vmul.f32 %v4701, %v285
        %v4703 = vsub.f32 %v4696, %v4702
        %v4704 = vmul.f32 %v4703, %v4703
        %v4705 = vsel %vm611, %v4704, 0.0
        %4706 = vadd.xlane.f32.xlu0 %v4705
        %v4707 = vpop.xlane.xlu0 %4706
        %v4708 = vmul.f32 %v4707, %v285
        %v4709 = vadd.f32 %v4708, 1e-05
        %v4710 = vrsqrt.pop %v4709
        %v4711 = vmul.f32 %v4703, %v4710
        %v4712 = vlaneseq
        %v4713 = vshrl.u32 %v4712, 7
        %v4714 = vsub.s32 0, %v4713
        %v4715 = vrot.slane %v4697, %v4714
        %v4716 = vmul.f32 %v4711, %v4715
        %v4717 = vlaneseq
        %v4718 = vshrl.u32 %v4717, 7
        %v4719 = vsub.s32 0, %v4718
        %v4720 = vrot.slane %v4698, %v4719
        %v4721 = vadd.f32 %v4716, %v4720
        %v4722 = vld [vmem:[%s1 + $0x398] sm:$0xff]
        %v4723 = vld [vmem:[%s1 + $0x3a0] sm:$0xff]
        %v4724 = vld [vmem:[%s1 + $0x3a8] sm:$0xff]
        %v4725 = vld [vmem:[%s1 + $0x3b0] sm:$0xff]
        %v4726 = vld [vmem:[%s1 + $0x3b8] sm:$0xff]
        %v4727 = vld [vmem:[%s1 + $0x3c0] sm:$0xff]
        %v4728 = vld [vmem:[%s1 + $0x3c8] sm:$0xff]
        %v4729 = vld [vmem:[%s1 + $0x3d0] sm:$0xff]
        %v4730 = vld [vmem:[%s2 + $0x110] sm:$0x1]
        %v4731 = vlaneseq
        %v4732 = vshrl.u32 %v4731, 7
        %v4733 = vsub.s32 0, %v4732
        %v4734 = vrot.slane %v4730, %v4733
        %v4736 = vsel %vm611, %v4721, 0
        %v4739 = vsel %vm611, %v4722, 0
        %v4742 = vsel %vm611, %v4723, 0
        %v4745 = vsel %vm611, %v4724, 0
        %v4748 = vsel %vm611, %v4725, 0
        %v4751 = vsel %vm611, %v4726, 0
        %v4754 = vsel %vm611, %v4727, 0
        %v4757 = vsel %vm611, %v4728, 0
        %v4760 = vsel %vm611, %v4729, 0
        %4762 = vmatprep.subr.mxu0 0.0
        %4763 = vmatpush1.xpose.msra.mxu0 %v4739
        %4764 = vmatprep.subr.mxu0 0.0
        %4765 = vmatpush1.xpose.msra.mxu0 %v4742
        %4766 = vmatprep.subr.mxu0 0.0
        %4767 = vmatpush1.xpose.msra.mxu0 %v4745
        %4768 = vmatprep.subr.mxu0 0.0
        %4769 = vmatpush1.xpose.msra.mxu0 %v4748
        %4770 = vmatprep.subr.mxu0 0.0
        %4771 = vmatpush1.xpose.msra.mxu0 %v4751
        %4772 = vmatprep.subr.mxu0 0.0
        %4773 = vmatpush1.xpose.msra.mxu0 %v4754
        %4774 = vmatprep.subr.mxu0 0.0
        %4775 = vmatpush1.xpose.msra.mxu0 %v4757
        %4776 = vmatprep.subr.mxu0 0.0
        %4777 = vmatpush1.xpose.msra.mxu0 %v4760
        %4778 = vmatprep.subr.mxu0 0.0
        %4779 = vmatpush1.xpose.msra.mxu0 0.0
        %4780 = vmatprep.subr.mxu0 0.0
        %4781 = vmatpush1.xpose.msra.mxu0 0.0
        %4782 = vmatprep.subr.mxu0 0.0
        %4783 = vmatpush1.xpose.msra.mxu0 0.0
        %4784 = vmatprep.subr.mxu0 0.0
        %4785 = vmatpush1.xpose.msra.mxu0 0.0
        %4786 = vmatprep.subr.mxu0 0.0
        %4787 = vmatpush1.xpose.msra.mxu0 0.0
        %4788 = vmatprep.subr.mxu0 0.0
        %4789 = vmatpush1.xpose.msra.mxu0 0.0
        %4790 = vmatprep.subr.mxu0 0.0
        %4791 = vmatpush1.xpose.msra.mxu0 0.0
        %4792 = vmatprep.subr.mxu0 0.0
        %4793 = vmatpush1.xpose.msra.mxu0 0.0
        %4794 = vmatprep.subr.mxu0 0.0
        %4795 = vmatpush1.xpose.msra.mxu0 0.0
        %4796 = vmatprep.subr.mxu0 0.0
        %4797 = vmatpush1.xpose.msra.mxu0 0.0
        %4798 = vmatprep.subr.mxu0 0.0
        %4799 = vmatpush1.xpose.msra.mxu0 0.0
        %4800 = vmatprep.subr.mxu0 0.0
        %4801 = vmatpush1.xpose.msra.mxu0 0.0
        %4802 = vmatprep.subr.mxu0 0.0
        %4803 = vmatpush1.xpose.msra.mxu0 0.0
        %4804 = vmatprep.subr.mxu0 0.0
        %4805 = vmatpush1.xpose.msra.mxu0 0.0
        %4806 = vmatprep.subr.mxu0 0.0
        %4807 = vmatpush1.xpose.msra.mxu0 0.0
        %4808 = vmatprep.subr.mxu0 0.0
        %4809 = vmatpush1.xpose.msra.mxu0 0.0
        %4810 = vmatprep.subr.mxu0 0.0
        %4811 = vmatpush1.xpose.msra.mxu0 0.0
        %4812 = vmatprep.subr.mxu0 0.0
        %4813 = vmatpush1.xpose.msra.mxu0 0.0
        %4814 = vmatprep.subr.mxu0 0.0
        %4815 = vmatpush1.xpose.msra.mxu0 0.0
        %4816 = vmatprep.subr.mxu0 0.0
        %4817 = vmatpush1.xpose.msra.mxu0 0.0
        %4818 = vmatprep.subr.mxu0 0.0
        %4819 = vmatpush1.xpose.msra.mxu0 0.0
        %4820 = vmatprep.subr.mxu0 0.0
        %4821 = vmatpush1.xpose.msra.mxu0 0.0
        %4822 = vmatprep.subr.mxu0 0.0
        %4823 = vmatpush1.xpose.msra.mxu0 0.0
        %4824 = vmatprep.subr.mxu0 0.0
        %4825 = vmatpush1.xpose.msra.mxu0 0.0
        %4826 = vmatprep.mubr.f32.mxu0 0.0
        %4827 = vmatmul.mubr.f32.gmra.mrb[0].mxu0 %v4736
        %v4828 = vpop.f32.mrb[0].mxu0
        %v4829 = vadd.f32 %v4734, %v4828
        %v4830 = vpop.f32.mrb[0].mxu0
        %4831 = vdwg.mxu0
        %v4832 = vmul.f32 %v4829, %v4829
        %v4833 = vmul.f32 %v4829, %v4832
        %v4834 = vmul.f32 %v4833, 0.044715
        %v4835 = vadd.f32 %v4829, %v4834
        %v4836 = vmul.f32 %v4835, 0.7978846
        %v4837 = vtanh.pop %v4836
        %v4838 = vadd.f32 %v4837, 1.0
        %v4839 = vmul.f32 %v4838, 0.5
        %v4840 = vmul.f32 %v4829, %v4839
        %v4841 = vld [vmem:[%s1 + $0x3d8] sm:$0xff]
        %v4842 = vld [vmem:[%s1 + $0x3e0] sm:$0xff]
        %v4843 = vld [vmem:[%s1 + $0x3e8] sm:$0xff]
        %v4844 = vld [vmem:[%s1 + $0x3f0] sm:$0xff]
        %v4845 = vld [vmem:[%s1 + $0x3f8] sm:$0xff]
        %v4846 = vld [vmem:[%s1 + $0x400] sm:$0xff]
        %v4847 = vld [vmem:[%s1 + $0x408] sm:$0xff]
        %v4848 = vld [vmem:[%s1 + $0x410] sm:$0xff]
        %v4849 = vld [vmem:[%s2 + $0x118] sm:$0x1]
        %v4850 = vlaneseq
        %v4851 = vshrl.u32 %v4850, 7
        %v4852 = vsub.s32 0, %v4851
        %v4853 = vrot.slane %v4849, %v4852
        %v4855 = vsel %vm1539, %v4840, 0
        %4857 = vmatprep.subr.mxu0 0.0
        %4858 = vmatpush1.msra.mxu0 %v4841
        %4859 = vmatprep.subr.mxu0 0.0
        %4860 = vmatpush1.msra.mxu0 %v4842
        %4861 = vmatprep.subr.mxu0 0.0
        %4862 = vmatpush1.msra.mxu0 %v4843
        %4863 = vmatprep.subr.mxu0 0.0
        %4864 = vmatpush1.msra.mxu0 %v4844
        %4865 = vmatprep.subr.mxu0 0.0
        %4866 = vmatpush1.msra.mxu0 %v4845
        %4867 = vmatprep.subr.mxu0 0.0
        %4868 = vmatpush1.msra.mxu0 %v4846
        %4869 = vmatprep.subr.mxu0 0.0
        %4870 = vmatpush1.msra.mxu0 %v4847
        %4871 = vmatprep.subr.mxu0 0.0
        %4872 = vmatpush1.msra.mxu0 %v4848
        %4873 = vmatprep.subr.mxu0 0.0
        %4874 = vmatpush1.msra.mxu0 0.0
        %4875 = vmatprep.subr.mxu0 0.0
        %4876 = vmatpush1.msra.mxu0 0.0
        %4877 = vmatprep.subr.mxu0 0.0
        %4878 = vmatpush1.msra.mxu0 0.0
        %4879 = vmatprep.subr.mxu0 0.0
        %4880 = vmatpush1.msra.mxu0 0.0
        %4881 = vmatprep.subr.mxu0 0.0
        %4882 = vmatpush1.msra.mxu0 0.0
        %4883 = vmatprep.subr.mxu0 0.0
        %4884 = vmatpush1.msra.mxu0 0.0
        %4885 = vmatprep.subr.mxu0 0.0
        %4886 = vmatpush1.msra.mxu0 0.0
        %4887 = vmatprep.subr.mxu0 0.0
        %4888 = vmatpush1.msra.mxu0 0.0
        %4889 = vmatprep.subr.mxu0 0.0
        %4890 = vmatpush1.msra.mxu0 0.0
        %4891 = vmatprep.subr.mxu0 0.0
        %4892 = vmatpush1.msra.mxu0 0.0
        %4893 = vmatprep.subr.mxu0 0.0
        %4894 = vmatpush1.msra.mxu0 0.0
        %4895 = vmatprep.subr.mxu0 0.0
        %4896 = vmatpush1.msra.mxu0 0.0
        %4897 = vmatprep.subr.mxu0 0.0
        %4898 = vmatpush1.msra.mxu0 0.0
        %4899 = vmatprep.subr.mxu0 0.0
        %4900 = vmatpush1.msra.mxu0 0.0
        %4901 = vmatprep.subr.mxu0 0.0
        %4902 = vmatpush1.msra.mxu0 0.0
        %4903 = vmatprep.subr.mxu0 0.0
        %4904 = vmatpush1.msra.mxu0 0.0
        %4905 = vmatprep.subr.mxu0 0.0
        %4906 = vmatpush1.msra.mxu0 0.0
        %4907 = vmatprep.subr.mxu0 0.0
        %4908 = vmatpush1.msra.mxu0 0.0
        %4909 = vmatprep.subr.mxu0 0.0
        %4910 = vmatpush1.msra.mxu0 0.0
        %4911 = vmatprep.subr.mxu0 0.0
        %4912 = vmatpush1.msra.mxu0 0.0
        %4913 = vmatprep.subr.mxu0 0.0
        %4914 = vmatpush1.msra.mxu0 0.0
        %4915 = vmatprep.subr.mxu0 0.0
        %4916 = vmatpush1.msra.mxu0 0.0
        %4917 = vmatprep.subr.mxu0 0.0
        %4918 = vmatpush1.msra.mxu0 0.0
        %4919 = vmatprep.subr.mxu0 0.0
        %4920 = vmatpush1.msra.mxu0 0.0
        %4921 = vmatprep.mubr.f32.mxu0 0.0
        %4922 = vmatmul.mubr.f32.gmra.mrb[0].mxu0 %v4855
        %v4923 = vpop.f32.mrb[0].mxu0
        %v4924 = vadd.f32 %v4853, %v4923
        %v4925 = vpop.f32.mrb[0].mxu0
        %4926 = vdwg.mxu0
        %v4927 = vadd.f32 %v4721, %v4924
        %v4928 = vld [vmem:[%s2 + $0x120] sm:$0x1]
        %v4929 = vld [vmem:[%s2 + $0x128] sm:$0x1]
        %v4930 = vsel %vm611, %v4927, 0.0
        %4931 = vadd.xlane.f32.xlu0 %v4930
        %v4932 = vpop.xlane.xlu0 %4931
        %v4933 = vmul.f32 %v4932, %v285
        %v4934 = vsub.f32 %v4927, %v4933
        %v4935 = vmul.f32 %v4934, %v4934
        %v4936 = vsel %vm611, %v4935, 0.0
        %4937 = vadd.xlane.f32.xlu0 %v4936
        %v4938 = vpop.xlane.xlu0 %4937
        %v4939 = vmul.f32 %v4938, %v285
        %v4940 = vadd.f32 %v4939, 1e-05
        %v4941 = vrsqrt.pop %v4940
        %v4942 = vmul.f32 %v4934, %v4941
        %v4943 = vlaneseq
        %v4944 = vshrl.u32 %v4943, 7
        %v4945 = vsub.s32 0, %v4944
        %v4946 = vrot.slane %v4928, %v4945
        %v4947 = vmul.f32 %v4942, %v4946
        %v4948 = vlaneseq
        %v4949 = vshrl.u32 %v4948, 7
        %v4950 = vsub.s32 0, %v4949
        %v4951 = vrot.slane %v4929, %v4950
        %v4952 = vadd.f32 %v4947, %v4951
        %v4953 = vld [vmem:[%s1 + $0x418] sm:$0xf]
        %v4954 = vld [vmem:[%s2 + $0x130] sm:$0x1]
        %v4955 = vlaneseq
        %v4956 = vshrl.u32 %v4955, 7
        %v4957 = vsub.s32 0, %v4956
        %v4958 = vrot.slane %v4954, %v4957
        %v4960 = vsel %vm611, %v4952, 0
        %v4963 = vsel %vm611, %v4953, 0
        %4965 = vmatprep.subr.mxu0 0.0
        %4966 = vmatpush1.xpose.msra.mxu0 %v4963
        %4967 = vmatprep.subr.mxu0 0.0
        %4968 = vmatpush1.xpose.msra.mxu0 0.0
        %4969 = vmatprep.subr.mxu0 0.0
        %4970 = vmatpush1.xpose.msra.mxu0 0.0
        %4971 = vmatprep.subr.mxu0 0.0
        %4972 = vmatpush1.xpose.msra.mxu0 0.0
        %4973 = vmatprep.subr.mxu0 0.0
        %4974 = vmatpush1.xpose.msra.mxu0 0.0
        %4975 = vmatprep.subr.mxu0 0.0
        %4976 = vmatpush1.xpose.msra.mxu0 0.0
        %4977 = vmatprep.subr.mxu0 0.0
        %4978 = vmatpush1.xpose.msra.mxu0 0.0
        %4979 = vmatprep.subr.mxu0 0.0
        %4980 = vmatpush1.xpose.msra.mxu0 0.0
        %4981 = vmatprep.subr.mxu0 0.0
        %4982 = vmatpush1.xpose.msra.mxu0 0.0
        %4983 = vmatprep.subr.mxu0 0.0
        %4984 = vmatpush1.xpose.msra.mxu0 0.0
        %4985 = vmatprep.subr.mxu0 0.0
        %4986 = vmatpush1.xpose.msra.mxu0 0.0
        %4987 = vmatprep.subr.mxu0 0.0
        %4988 = vmatpush1.xpose.msra.mxu0 0.0
        %4989 = vmatprep.subr.mxu0 0.0
        %4990 = vmatpush1.xpose.msra.mxu0 0.0
        %4991 = vmatprep.subr.mxu0 0.0
        %4992 = vmatpush1.xpose.msra.mxu0 0.0
        %4993 = vmatprep.subr.mxu0 0.0
        %4994 = vmatpush1.xpose.msra.mxu0 0.0
        %4995 = vmatprep.subr.mxu0 0.0
        %4996 = vmatpush1.xpose.msra.mxu0 0.0
        %4997 = vmatprep.subr.mxu0 0.0
        %4998 = vmatpush1.xpose.msra.mxu0 0.0
        %4999 = vmatprep.subr.mxu0 0.0
        %5000 = vmatpush1.xpose.msra.mxu0 0.0
        %5001 = vmatprep.subr.mxu0 0.0
        %5002 = vmatpush1.xpose.msra.mxu0 0.0
        %5003 = vmatprep.subr.mxu0 0.0
        %5004 = vmatpush1.xpose.msra.mxu0 0.0
        %5005 = vmatprep.subr.mxu0 0.0
        %5006 = vmatpush1.xpose.msra.mxu0 0.0
        %5007 = vmatprep.subr.mxu0 0.0
        %5008 = vmatpush1.xpose.msra.mxu0 0.0
        %5009 = vmatprep.subr.mxu0 0.0
        %5010 = vmatpush1.xpose.msra.mxu0 0.0
        %5011 = vmatprep.subr.mxu0 0.0
        %5012 = vmatpush1.xpose.msra.mxu0 0.0
        %5013 = vmatprep.subr.mxu0 0.0
        %5014 = vmatpush1.xpose.msra.mxu0 0.0
        %5015 = vmatprep.subr.mxu0 0.0
        %5016 = vmatpush1.xpose.msra.mxu0 0.0
        %5017 = vmatprep.subr.mxu0 0.0
        %5018 = vmatpush1.xpose.msra.mxu0 0.0
        %5019 = vmatprep.subr.mxu0 0.0
        %5020 = vmatpush1.xpose.msra.mxu0 0.0
        %5021 = vmatprep.subr.mxu0 0.0
        %5022 = vmatpush1.xpose.msra.mxu0 0.0
        %5023 = vmatprep.subr.mxu0 0.0
        %5024 = vmatpush1.xpose.msra.mxu0 0.0
        %5025 = vmatprep.subr.mxu0 0.0
        %5026 = vmatpush1.xpose.msra.mxu0 0.0
        %5027 = vmatprep.subr.mxu0 0.0
        %5028 = vmatpush1.xpose.msra.mxu0 0.0
        %5029 = vmatprep.mubr.f32.mxu0 0.0
        %5030 = vmatmul.mubr.f32.gmra.mrb[0].mxu0 %v4960
        %v5031 = vpop.f32.mrb[0].mxu0
        %v5032 = vadd.f32 %v4958, %v5031
        %v5033 = vpop.f32.mrb[0].mxu0
        %5034 = vdwg.mxu0
        %v5035 = vadd.f32 %v3348, %v5032
        %v5036 = vld [vmem:[%s2 + $0x138] sm:$0x1]
        %v5037 = vlaneseq
        %v5038 = vshrl.u32 %v5037, 7
        %v5039 = vsub.s32 0, %v5038
        %v5040 = vrot.slane %v5036, %v5039
        %v5041 = vrcp.pop %v5040
        %v5042 = vmul.f32 %v5035, %v5041
        %v5043 = vmul.f32 %v5042, %v186
        %v5044 = vadd.f32 %v5043, %v172
        %vm5045 = vcmask 27648
        %5046 = vst.msk [vmem:[%s161] sm:$0xf] %vm5045, %v5044
        %5048 = vrot.lane.b32.xlu0 %v5040, 124
        %v5049 = vpop.permute.xlu0 %5048
        %v5051 = vrcp.pop %v5049
        %v5052 = vmul.f32 %v5035, %v5051
        %v5054 = vrot.slane %v186, 4
        %v5056 = vmul.f32 %v5052, %v5054
        %v5058 = vrot.slane %v172, 4
        %v5060 = vadd.f32 %v5056, %v5058
        %5062 = vrot.lane.b32.xlu0 %v5060, 4
        %v5063 = vpop.permute.xlu0 %5062
        %vm5065 = vcmask 64548
        %5066 = vst.msk [vmem:[%s161 - $0x4] sm:$0xf0] %vm5065, %v5063
        %s5067 = sand.u32 %s93, 1
        %s5068 = scalar_lea.sflag [#allocation4], %s5067
        %s5069 = sand.u32 %s93, 1
        %s5070 = smul.addr %s5069, 4
        %s5071 = scalar_lea.vmem [#allocation3], %s5070
        // Predicated region
        $region33: #{crossformer_forward.1} parent=31 // pred_check
          %p5072 = pneg %p103
        $region34: #{crossformer_forward.1} parent=31 // pred_check_branch
          %5074 = sbr.rel (%p5072) target = $region36
        $region35: #{crossformer_forward.1} parent=31 // pred_region
          %s5076 = ssub.s32 64, 64
          %5077 = vsyncadd %s5068, %s5076
          %s5078 = smul.addr %s17, 64
          %s5079 = scalar_lea.hbm %s3, %s5078
          %s5081 = sshll.u32 %s5071, 4
          %s5082 = int_to_ptr.vmem [resolvable:$true] %s5081
          %5084 = dma.vmem_to_hbm [thread:$0]  %s5082, 64, %s5079, %s5068
        $region36: #{crossformer_forward.1} parent=31 // pred_fallthru
          _
      $region32: #{crossformer_forward.1} parent=5 // pred_fallthru
        _
      %p5085 = scmp.le.s32.totalorder 2, %s12
      // Predicated region
      $region37: #{crossformer_forward.1} parent=5 // pred_check
        %p5086 = pneg %p5085
      $region38: #{crossformer_forward.1} parent=5 // pred_check_branch
        %5088 = sbr.rel (%p5086) target = $region40
      $region39: #{crossformer_forward.1} parent=5 // pred_region
        %s5089 = ssub.s32 %s12, 2
        // Predicated region
        $region41: #{crossformer_forward.1} parent=39 // pred_check
          %p5090 = pneg %p109
        $region42: #{crossformer_forward.1} parent=39 // pred_check_branch
          %5092 = sbr.rel (%p5090) target = $region44
        $region43: #{crossformer_forward.1} parent=39 // pred_region
          %s5093 = sand.u32 %s94, 1
          %s5094 = scalar_lea.sflag [#allocation4], %s5093
          %s5095 = sand.u32 %s94, 1
          %s5096 = smul.addr %s5095, 4
          %s5097 = scalar_lea.vmem [#allocation3], %s5096
          %5098 = dma.done %s5094, 64
        $region44: #{crossformer_forward.1} parent=39 // pred_fallthru
          _
      $region40: #{crossformer_forward.1} parent=5 // pred_fallthru
        _
    $region6: #{crossformer_forward.1} parent=1 // loop_footer
      %s16 = sadd.s32 1, %s12
    $region7: #{crossformer_forward.1} parent=1 // loop_footer_branch
      %11 = sbr.rel target = $region3
    $region8: #{crossformer_forward.1} parent=1 // loop_exit
      _
    %5099 = vsyncpa [#allocation4], 1
    %s5100 = scalar_lea.sflag [#allocation4], 1
    %5101 = vsyncpa %s5100, 1

</llo_original>
